<compile_context>
chip_gen: v7x
topology: tpu7x:2x2x1
jax: 0.10.0
libtpu: 0.0.40
codegen_flags: <defaults>
</compile_context>

<pallas_src>
import numpy as np
import jax
import jax.numpy as jnp
from jax.experimental import pallas as pl
from jax.experimental.pallas import tpu as pltpu


# ----------------------------- hyper-parameters ------------------------------
N_CHANNELS = 3                 # 1 data channel + 2 positional-encoding channels
NF1, KS1, POOLK1, POOLS1 = 8, 3, 2, 2
NF2, KS2, POOLK2, POOLS2 = 16, 3, 2, 2
NF3, KS3 = 32, 2
LSTM_DIM = 32
FC1_DIM = 32
OUTDIM = 4
BN_EPS = 1e-5
CIN1_PAD = 8                   # pad the 3 input channels to a full sublane tile


def _round_up(x, m):
    return ((x + m - 1) // m) * m


# ----------------------------- positional encoding ---------------------------
def make_pos_encodings(bs, seqlen, band_dim):
    """Exact replica of the reference numpy positional encoding."""
    ypos = (np.arange(band_dim) - 63.5) / 36.94928957368463
    xpos = np.log(np.arange(seqlen) + 1) / 4.38202663 - 0.33
    ypos_extend = np.tile(ypos, (bs, len(xpos), 1))
    ypos_extend = ypos_extend.reshape(ypos_extend.shape[0], 1,
                                      ypos_extend.shape[1], ypos_extend.shape[2])
    xpos_extend = np.tile(xpos, (bs, len(ypos), 1))
    xpos_extend = xpos_extend.transpose(0, -1, -2)
    xpos_extend = xpos_extend.reshape(xpos_extend.shape[0], 1,
                                      xpos_extend.shape[1], xpos_extend.shape[2])
    posenc = np.concatenate((xpos_extend, ypos_extend), axis=1)
    return posenc.astype(np.float32)          # (bs, 2, seqlen, band_dim)


# ----------------------------- static geometry -------------------------------
def build_geometry(B, H1, W1):
    """Static layout constants + constant 0/1 selection (decimation) matrices."""
    OH1, OW1 = H1 - KS1 + 1, W1 - KS1 + 1
    H2 = (OH1 - POOLK1) // POOLS1 + 1
    W2 = (OW1 - POOLK1) // POOLS1 + 1
    OH2, OW2 = H2 - KS2 + 1, W2 - KS2 + 1
    H3 = (OH2 - POOLK2) // POOLS2 + 1
    W3 = (OW2 - POOLK2) // POOLS2 + 1
    OH3, OW3 = H3 - KS3 + 1, W3 - KS3 + 1
    assert OW3 == 1, "reference squeezes the last spatial dim of conv3"
    Lseq = OH3

    def conv_stage(H, W, k):
        M = B * H * W                                    # flattened (b, h, w) extent
        taps = tuple(i * W + j for i in range(k) for j in range(k))
        L = _round_up(M + max(taps), 128)                # conv-output tile width
        XW = _round_up(L + max(taps), 128)               # zero-padded input tile width
        return M, taps, L, XW

    M1, taps1, L1, X1W = conv_stage(H1, W1, KS1)
    M2, taps2, L2, X2W = conv_stage(H2, W2, KS2)
    M3, taps3, L3, X3W = conv_stage(H3, W3, KS3)
    NSEL = _round_up(Lseq * B, 8)

    # maxpool window offsets in the flattened index space of each stage's input
    pool1 = tuple(di * W1 + dj for di in range(POOLK1) for dj in range(POOLK1))
    pool2 = tuple(di * W2 + dj for di in range(POOLK2) for dj in range(POOLK2))

    # pooled anchor m -> next-stage flattened column (remaining columns == 0 pad)
    S1 = np.zeros((M1, X2W), np.float32)
    for b in range(B):
        for i in range(H2):
            for j in range(W2):
                S1[b * H1 * W1 + (POOLS1 * i) * W1 + POOLS1 * j,
                   b * H2 * W2 + i * W2 + j] = 1.0
    S2 = np.zeros((M2, X3W), np.float32)
    for b in range(B):
        for i in range(H3):
            for j in range(W3):
                S2[b * H2 * W2 + (POOLS2 * i) * W2 + POOLS2 * j,
                   b * H3 * W3 + i * W3 + j] = 1.0
    # conv3 output column (b, t) -> LSTM input column t*B + b (time-major)
    S3 = np.zeros((L3, NSEL), np.float32)
    for b in range(B):
        for t in range(Lseq):
            S3[b * H3 * W3 + t * W3, t * B + b] = 1.0

    return dict(B=B, Lseq=Lseq, NSEL=NSEL,
                M1=M1, taps1=taps1, L1=L1, X1W=X1W,
                M2=M2, taps2=taps2, L2=L2, X2W=X2W,
                M3=M3, taps3=taps3, L3=L3, X3W=X3W,
                pool1=pool1, pool2=pool2, S1=S1, S2=S2, S3=S3)


# ----------------------------- fused kernel ----------------------------------
def make_kernel(geo):
    B = geo["B"]
    H = LSTM_DIM
    Lseq = geo["Lseq"]
    taps1, taps2, taps3 = geo["taps1"], geo["taps2"], geo["taps3"]
    L1, L2, L3 = geo["L1"], geo["L2"], geo["L3"]
    M1, M2 = geo["M1"], geo["M2"]
    pool1, pool2 = geo["pool1"], geo["pool2"]

    def _sigmoid(x):
        return 1.0 / (1.0 + jnp.exp(-x))

    def _conv_bn_relu(src_ref, w_ref, sc_ref, sh_ref, taps, width):
        """relu(scale * conv(src) + shift) -> (Cout, width).  In-kernel im2col:
        one MXU matmul per kernel tap over a lane-shifted slice of the tile."""
        acc = None
        for t, d in enumerate(taps):
            y = jnp.dot(w_ref[t], src_ref[:, d:d + width],
                        preferred_element_type=jnp.float32)
            acc = y if acc is None else acc + y
        return jnp.maximum(acc * sc_ref[...] + sh_ref[...], 0.0)

    def _window_max(a_ref, offsets, width):
        m = a_ref[:, offsets[0]:offsets[0] + width]
        for d in offsets[1:]:
            m = jnp.maximum(m, a_ref[:, d:d + width])
        return m

    def kernel(x_ref,
               w1_ref, sc1_ref, sh1_ref, s1_ref,
               w2_ref, sc2_ref, sh2_ref, s2_ref,
               w3_ref, sc3_ref, sh3_ref, s3_ref,
               wihf_ref, whhf_ref, bf_ref,
               wihb_ref, whhb_ref, bb_ref,
               fc1w_ref, fc1b_ref, fc2w_ref, fc2b_ref,
               out_ref,
               a1_scr, z1_scr, a2_scr, z2_scr, gf_scr, gb_scr):
        # ---- stage 1: conv1+BN+ReLU; maxpool = window max + decimation matmul
        a1_scr[...] = _conv_bn_relu(x_ref, w1_ref, sc1_ref, sh1_ref, taps1, L1)
        z1_scr[...] = jnp.dot(_window_max(a1_scr, pool1, M1), s1_ref[...],
                              preferred_element_type=jnp.float32)
        # ---- stage 2
        a2_scr[...] = _conv_bn_relu(z1_scr, w2_ref, sc2_ref, sh2_ref, taps2, L2)
        z2_scr[...] = jnp.dot(_window_max(a2_scr, pool2, M2), s2_ref[...],
                              preferred_element_type=jnp.float32)
        # ---- stage 3: conv3 + BN + ReLU (no pool)
        a3 = _conv_bn_relu(z2_scr, w3_ref, sc3_ref, sh3_ref, taps3, L3)
        # ---- LSTM input sequence: column j = t*B + b  -> (In, NSEL)
        xsel = jnp.dot(a3, s3_ref[...], preferred_element_type=jnp.float32)
        # ---- hoisted input projections (+ combined bias), both directions
        gf_scr[...] = jnp.dot(wihf_ref[...], xsel,
                              preferred_element_type=jnp.float32) + bf_ref[...]
        gb_scr[...] = jnp.dot(wihb_ref[...], xsel,
                              preferred_element_type=jnp.float32) + bb_ref[...]

        whh_f = whhf_ref[...]
        whh_b = whhb_ref[...]

        def cell(g_in, h, c, whh):
            gates = g_in + jnp.dot(whh, h, preferred_element_type=jnp.float32)
            i_g = _sigmoid(gates[0 * H:1 * H, :])          # PyTorch gate order i,f,g,o
            f_g = _sigmoid(gates[1 * H:2 * H, :])
            g_g = jnp.tanh(gates[2 * H:3 * H, :])
            o_g = _sigmoid(gates[3 * H:4 * H, :])
            c_new = f_g * c + i_g * g_g
            return o_g * jnp.tanh(c_new), c_new

        hf = jnp.zeros((H, B), jnp.float32)
        cf = jnp.zeros((H, B), jnp.float32)
        hb = jnp.zeros((H, B), jnp.float32)
        cb = jnp.zeros((H, B), jnp.float32)
        # fully unrolled (Lseq small & static); fwd/bwd interleaved so the two
        # dependent chains overlap on the MXU/EUP.
        for step in range(Lseq):
            tf = step
            tb = Lseq - 1 - step
            hf, cf = cell(gf_scr[:, B * tf:B * tf + B], hf, cf, whh_f)
            hb, cb = cell(gb_scr[:, B * tb:B * tb + B], hb, cb, whh_b)

        # ---- fused fc1 + ReLU + fc2 epilogue (feature-major: features x batch)
        s = jnp.concatenate([hf, hb], axis=0)              # (2H, B)
        h1 = jnp.maximum(
            jnp.dot(fc1w_ref[...], s, preferred_element_type=jnp.float32)
            + fc1b_ref[...], 0.0)
        out_ref[...] = (jnp.dot(fc2w_ref[...], h1,
                                preferred_element_type=jnp.float32)
                        + fc2b_ref[...])

    return kernel


# ----------------------------- parameters ------------------------------------
def init_params(key):
    ks = iter(jax.random.split(key, 30))

    def nrm(shape, s=0.1):
        return s * jax.random.normal(next(ks), shape, jnp.float32)

    def conv_pack(cout, cin, ksz):
        return dict(w=nrm((cout, cin, ksz, ksz)), b=nrm((cout,)),
                    gamma=1.0 + nrm((cout,)), beta=nrm((cout,)),
                    mean=nrm((cout,)), var=1.0 + jnp.abs(nrm((cout,))))

    def lstm_dir(in_dim, h):
        return dict(w_ih=nrm((4 * h, in_dim)), w_hh=nrm((4 * h, h)),
                    b_ih=nrm((4 * h,)), b_hh=nrm((4 * h,)))

    return dict(
        conv1=conv_pack(NF1, N_CHANNELS, KS1),
        conv2=conv_pack(NF2, NF1, KS2),
        conv3=conv_pack(NF3, NF2, KS3),
        lstm_f=lstm_dir(NF3, LSTM_DIM),
        lstm_b=lstm_dir(NF3, LSTM_DIM),
        fc1_w=nrm((FC1_DIM, 2 * LSTM_DIM)), fc1_b=nrm((FC1_DIM,)),
        fc2_w=nrm((OUTDIM, FC1_DIM)), fc2_b=nrm((OUTDIM,)),
    )


def prepare_ops(params, geo):
    """Fold BN into per-channel scale/shift, rearrange conv weights to
    (kh*kw, Cout, Cin) taps, combine LSTM biases, attach selection matrices."""
    def fold_bn(cp):
        scale = cp["gamma"] / jnp.sqrt(cp["var"] + BN_EPS)
        shift = (cp["b"] - cp["mean"]) * scale + cp["beta"]
        return scale.reshape(-1, 1), shift.reshape(-1, 1)

    def conv_taps(w, cin_pad=None):
        co, ci, kh, kw = w.shape
        t = jnp.transpose(w, (2, 3, 0, 1)).reshape(kh * kw, co, ci)
        if cin_pad is not None and cin_pad != ci:
            t = jnp.concatenate(
                [t, jnp.zeros((kh * kw, co, cin_pad - ci), jnp.float32)], axis=2)
        return t

    sc1, sh1 = fold_bn(params["conv1"])
    sc2, sh2 = fold_bn(params["conv2"])
    sc3, sh3 = fold_bn(params["conv3"])
    lf, lb = params["lstm_f"], params["lstm_b"]
    return dict(
        w1=conv_taps(params["conv1"]["w"], CIN1_PAD), sc1=sc1, sh1=sh1,
        S1=jnp.asarray(geo["S1"]),
        w2=conv_taps(params["conv2"]["w"]), sc2=sc2, sh2=sh2,
        S2=jnp.asarray(geo["S2"]),
        w3=conv_taps(params["conv3"]["w"]), sc3=sc3, sh3=sh3,
        S3=jnp.asarray(geo["S3"]),
        wih_f=lf["w_ih"], whh_f=lf["w_hh"],
        b_f=(lf["b_ih"] + lf["b_hh"]).reshape(-1, 1),
        wih_b=lb["w_ih"], whh_b=lb["w_hh"],
        b_b=(lb["b_ih"] + lb["b_hh"]).reshape(-1, 1),
        fc1_w=params["fc1_w"], fc1_b=params["fc1_b"].reshape(-1, 1),
        fc2_w=params["fc2_w"], fc2_b=params["fc2_b"].reshape(-1, 1),
    )


# ----------------------------- forward builder --------------------------------
def build_forward(B, seqlen, band_dim):
    geo = build_geometry(B, seqlen, band_dim)
    kernel = make_kernel(geo)
    posenc = make_pos_encodings(B, seqlen, band_dim)      # numpy, trace-time const
    M1, X1W = geo["M1"], geo["X1W"]

    def _spec(shape):
        nd = len(shape)
        return pl.BlockSpec(shape, lambda i, _n=nd: (0,) * _n)

    def fwd(bx, ops):
        # one-time input prep: concat posenc, channel-major, flatten (b,h,w)
        # onto lanes, zero-pad channels -> 8 and lanes -> X1W.
        x = jnp.concatenate(
            [jnp.asarray(posenc), bx[:, None, :, :].astype(jnp.float32)], axis=1)
        x_cm = jnp.transpose(x, (1, 0, 2, 3)).reshape(N_CHANNELS, M1)
        x_pad = jnp.zeros((CIN1_PAD, X1W), jnp.float32).at[:N_CHANNELS, :M1].set(x_cm)

        operands = [
            x_pad,
            ops["w1"], ops["sc1"], ops["sh1"], ops["S1"],
            ops["w2"], ops["sc2"], ops["sh2"], ops["S2"],
            ops["w3"], ops["sc3"], ops["sh3"], ops["S3"],
            ops["wih_f"], ops["whh_f"], ops["b_f"],
            ops["wih_b"], ops["whh_b"], ops["b_b"],
            ops["fc1_w"], ops["fc1_b"], ops["fc2_w"], ops["fc2_b"],
        ]
        out_cm = pl.pallas_call(
            kernel,
            out_shape=jax.ShapeDtypeStruct((OUTDIM, B), jnp.float32),
            grid=(1,),
            in_specs=[_spec(o.shape) for o in operands],
            out_specs=pl.BlockSpec((OUTDIM, B), lambda i: (0, 0)),
            scratch_shapes=[
                pltpu.VMEM((NF1, geo["L1"]), jnp.float32),    # conv1 activation
                pltpu.VMEM((NF1, geo["X2W"]), jnp.float32),   # pooled conv1 / conv2 in
                pltpu.VMEM((NF2, geo["L2"]), jnp.float32),    # conv2 activation
                pltpu.VMEM((NF2, geo["X3W"]), jnp.float32),   # pooled conv2 / conv3 in
                pltpu.VMEM((4 * LSTM_DIM, geo["NSEL"]), jnp.float32),  # fwd in-proj
                pltpu.VMEM((4 * LSTM_DIM, geo["NSEL"]), jnp.float32),  # bwd in-proj
            ],
            compiler_params=pltpu.CompilerParams(
                dimension_semantics=("arbitrary",)),
        )(*operands)
        return out_cm.T                                       # (B, OUTDIM)

    return jax.jit(fwd), geo


# ----------------------------- main -------------------------------------------
if __name__ == "__main__":
    bs, seqlen, band_dim = 2, 32, 16
    key = jax.random.PRNGKey(0)
    kx, kp = jax.random.split(key)
    bx = jax.random.normal(kx, (bs, seqlen, band_dim), jnp.float32)

    params = init_params(kp)
    fwd, geo = build_forward(bs, seqlen, band_dim)
    ops = prepare_ops(params, geo)

    out = fwd(bx, ops)
    out = jax.block_until_ready(out)
    assert out.shape == (bs, OUTDIM), out.shape
    assert bool(jnp.all(jnp.isfinite(out)))
    print("KERNEL_OK")
</pallas_src>

<mosaic_0001>
module attributes {stable_mosaic.version = 11 : i64} {
  func.func @kernel(%arg0: i32, %arg1: memref<8x1280xf32, #tpu.memory_space<vmem>>, %arg2: memref<9x8x8xf32, #tpu.memory_space<vmem>>, %arg3: memref<8x1xf32, #tpu.memory_space<vmem>>, %arg4: memref<8x1xf32, #tpu.memory_space<vmem>>, %arg5: memref<1024x384xf32, #tpu.memory_space<vmem>>, %arg6: memref<9x16x8xf32, #tpu.memory_space<vmem>>, %arg7: memref<16x1xf32, #tpu.memory_space<vmem>>, %arg8: memref<16x1xf32, #tpu.memory_space<vmem>>, %arg9: memref<210x256xf32, #tpu.memory_space<vmem>>, %arg10: memref<4x32x16xf32, #tpu.memory_space<vmem>>, %arg11: memref<32x1xf32, #tpu.memory_space<vmem>>, %arg12: memref<32x1xf32, #tpu.memory_space<vmem>>, %arg13: memref<128x16xf32, #tpu.memory_space<vmem>>, %arg14: memref<128x32xf32, #tpu.memory_space<vmem>>, %arg15: memref<128x32xf32, #tpu.memory_space<vmem>>, %arg16: memref<128x1xf32, #tpu.memory_space<vmem>>, %arg17: memref<128x32xf32, #tpu.memory_space<vmem>>, %arg18: memref<128x32xf32, #tpu.memory_space<vmem>>, %arg19: memref<128x1xf32, #tpu.memory_space<vmem>>, %arg20: memref<32x64xf32, #tpu.memory_space<vmem>>, %arg21: memref<32x1xf32, #tpu.memory_space<vmem>>, %arg22: memref<4x32xf32, #tpu.memory_space<vmem>>, %arg23: memref<4x1xf32, #tpu.memory_space<vmem>>, %arg24: memref<4x2xf32, #tpu.memory_space<vmem>>, %arg25: memref<8x1152xf32, #tpu.memory_space<vmem>>, %arg26: memref<8x384xf32, #tpu.memory_space<vmem>>, %arg27: memref<16x256xf32, #tpu.memory_space<vmem>>, %arg28: memref<16x256xf32, #tpu.memory_space<vmem>>, %arg29: memref<128x16xf32, #tpu.memory_space<vmem>>, %arg30: memref<128x16xf32, #tpu.memory_space<vmem>>) attributes {dimension_semantics = [#tpu.dimension_semantics<arbitrary>], iteration_bounds = array<i64: 1>, scalar_prefetch = 0 : i64, scratch_operands = 6 : i64, tpu.core_type = #tpu.core_type<tc>, window_params = [{pipeline_mode = #tpu.pipeline_mode<synchronous>, transform_indices = @transform_0, window_bounds = array<i64: 8, 1280>}, {pipeline_mode = #tpu.pipeline_mode<synchronous>, transform_indices = @transform_1, window_bounds = array<i64: 9, 8, 8>}, {pipeline_mode = #tpu.pipeline_mode<synchronous>, transform_indices = @transform_2, window_bounds = array<i64: 8, 1>}, {pipeline_mode = #tpu.pipeline_mode<synchronous>, transform_indices = @transform_3, window_bounds = array<i64: 8, 1>}, {pipeline_mode = #tpu.pipeline_mode<synchronous>, transform_indices = @transform_4, window_bounds = array<i64: 1024, 384>}, {pipeline_mode = #tpu.pipeline_mode<synchronous>, transform_indices = @transform_5, window_bounds = array<i64: 9, 16, 8>}, {pipeline_mode = #tpu.pipeline_mode<synchronous>, transform_indices = @transform_6, window_bounds = array<i64: 16, 1>}, {pipeline_mode = #tpu.pipeline_mode<synchronous>, transform_indices = @transform_7, window_bounds = array<i64: 16, 1>}, {pipeline_mode = #tpu.pipeline_mode<synchronous>, transform_indices = @transform_8, window_bounds = array<i64: 210, 256>}, {pipeline_mode = #tpu.pipeline_mode<synchronous>, transform_indices = @transform_9, window_bounds = array<i64: 4, 32, 16>}, {pipeline_mode = #tpu.pipeline_mode<synchronous>, transform_indices = @transform_10, window_bounds = array<i64: 32, 1>}, {pipeline_mode = #tpu.pipeline_mode<synchronous>, transform_indices = @transform_11, window_bounds = array<i64: 32, 1>}, {pipeline_mode = #tpu.pipeline_mode<synchronous>, transform_indices = @transform_12, window_bounds = array<i64: 128, 16>}, {pipeline_mode = #tpu.pipeline_mode<synchronous>, transform_indices = @transform_13, window_bounds = array<i64: 128, 32>}, {pipeline_mode = #tpu.pipeline_mode<synchronous>, transform_indices = @transform_14, window_bounds = array<i64: 128, 32>}, {pipeline_mode = #tpu.pipeline_mode<synchronous>, transform_indices = @transform_15, window_bounds = array<i64: 128, 1>}, {pipeline_mode = #tpu.pipeline_mode<synchronous>, transform_indices = @transform_16, window_bounds = array<i64: 128, 32>}, {pipeline_mode = #tpu.pipeline_mode<synchronous>, transform_indices = @transform_17, window_bounds = array<i64: 128, 32>}, {pipeline_mode = #tpu.pipeline_mode<synchronous>, transform_indices = @transform_18, window_bounds = array<i64: 128, 1>}, {pipeline_mode = #tpu.pipeline_mode<synchronous>, transform_indices = @transform_19, window_bounds = array<i64: 32, 64>}, {pipeline_mode = #tpu.pipeline_mode<synchronous>, transform_indices = @transform_20, window_bounds = array<i64: 32, 1>}, {pipeline_mode = #tpu.pipeline_mode<synchronous>, transform_indices = @transform_21, window_bounds = array<i64: 4, 32>}, {pipeline_mode = #tpu.pipeline_mode<synchronous>, transform_indices = @transform_22, window_bounds = array<i64: 4, 1>}, {pipeline_mode = #tpu.pipeline_mode<synchronous>, transform_indices = @transform_23, window_bounds = array<i64: 4, 2>}]} {
    %c0 = arith.constant 0 : index
    %c0_0 = arith.constant 0 : index
    %c0_1 = arith.constant 0 : index
    %0 = vector.load %arg2[%c0, %c0_0, %c0_1] : memref<9x8x8xf32, #tpu.memory_space<vmem>>, vector<1x8x8xf32>
    %1 = vector.shape_cast %0 : vector<1x8x8xf32> to vector<8x8xf32>
    %c0_2 = arith.constant 0 : index
    %c0_3 = arith.constant 0 : index
    %2 = vector.load %arg1[%c0_2, %c0_3] : memref<8x1280xf32, #tpu.memory_space<vmem>>, vector<8x1152xf32>
    %cst = arith.constant dense<0.000000e+00> : vector<8x1152xf32>
    %3 = tpu.matmul %1, %2, %cst {dimension_numbers = #tpu.dot_dimension_numbers<[1], [0], [0], [1], [0, 0, 1, 1], [], []>} : vector<8x8xf32>, vector<8x1152xf32>, vector<8x1152xf32> -> vector<8x1152xf32>
    %c1 = arith.constant 1 : index
    %c0_4 = arith.constant 0 : index
    %c0_5 = arith.constant 0 : index
    %4 = vector.load %arg2[%c1, %c0_4, %c0_5] : memref<9x8x8xf32, #tpu.memory_space<vmem>>, vector<1x8x8xf32>
    %5 = vector.shape_cast %4 : vector<1x8x8xf32> to vector<8x8xf32>
    %c0_6 = arith.constant 0 : index
    %c1_7 = arith.constant 1 : index
    %6 = vector.load %arg1[%c0_6, %c1_7] : memref<8x1280xf32, #tpu.memory_space<vmem>>, vector<8x1152xf32>
    %cst_8 = arith.constant dense<0.000000e+00> : vector<8x1152xf32>
    %7 = tpu.matmul %5, %6, %cst_8 {dimension_numbers = #tpu.dot_dimension_numbers<[1], [0], [0], [1], [0, 0, 1, 1], [], []>} : vector<8x8xf32>, vector<8x1152xf32>, vector<8x1152xf32> -> vector<8x1152xf32>
    %8 = arith.addf %3, %7 : vector<8x1152xf32>
    %c2 = arith.constant 2 : index
    %c0_9 = arith.constant 0 : index
    %c0_10 = arith.constant 0 : index
    %9 = vector.load %arg2[%c2, %c0_9, %c0_10] : memref<9x8x8xf32, #tpu.memory_space<vmem>>, vector<1x8x8xf32>
    %10 = vector.shape_cast %9 : vector<1x8x8xf32> to vector<8x8xf32>
    %c0_11 = arith.constant 0 : index
    %c2_12 = arith.constant 2 : index
    %11 = vector.load %arg1[%c0_11, %c2_12] : memref<8x1280xf32, #tpu.memory_space<vmem>>, vector<8x1152xf32>
    %cst_13 = arith.constant dense<0.000000e+00> : vector<8x1152xf32>
    %12 = tpu.matmul %10, %11, %cst_13 {dimension_numbers = #tpu.dot_dimension_numbers<[1], [0], [0], [1], [0, 0, 1, 1], [], []>} : vector<8x8xf32>, vector<8x1152xf32>, vector<8x1152xf32> -> vector<8x1152xf32>
    %13 = arith.addf %8, %12 : vector<8x1152xf32>
    %c3 = arith.constant 3 : index
    %c0_14 = arith.constant 0 : index
    %c0_15 = arith.constant 0 : index
    %14 = vector.load %arg2[%c3, %c0_14, %c0_15] : memref<9x8x8xf32, #tpu.memory_space<vmem>>, vector<1x8x8xf32>
    %15 = vector.shape_cast %14 : vector<1x8x8xf32> to vector<8x8xf32>
    %c0_16 = arith.constant 0 : index
    %c16 = arith.constant 16 : index
    %16 = vector.load %arg1[%c0_16, %c16] : memref<8x1280xf32, #tpu.memory_space<vmem>>, vector<8x1152xf32>
    %cst_17 = arith.constant dense<0.000000e+00> : vector<8x1152xf32>
    %17 = tpu.matmul %15, %16, %cst_17 {dimension_numbers = #tpu.dot_dimension_numbers<[1], [0], [0], [1], [0, 0, 1, 1], [], []>} : vector<8x8xf32>, vector<8x1152xf32>, vector<8x1152xf32> -> vector<8x1152xf32>
    %18 = arith.addf %13, %17 : vector<8x1152xf32>
    %c4 = arith.constant 4 : index
    %c0_18 = arith.constant 0 : index
    %c0_19 = arith.constant 0 : index
    %19 = vector.load %arg2[%c4, %c0_18, %c0_19] : memref<9x8x8xf32, #tpu.memory_space<vmem>>, vector<1x8x8xf32>
    %20 = vector.shape_cast %19 : vector<1x8x8xf32> to vector<8x8xf32>
    %c0_20 = arith.constant 0 : index
    %c17 = arith.constant 17 : index
    %21 = vector.load %arg1[%c0_20, %c17] : memref<8x1280xf32, #tpu.memory_space<vmem>>, vector<8x1152xf32>
    %cst_21 = arith.constant dense<0.000000e+00> : vector<8x1152xf32>
    %22 = tpu.matmul %20, %21, %cst_21 {dimension_numbers = #tpu.dot_dimension_numbers<[1], [0], [0], [1], [0, 0, 1, 1], [], []>} : vector<8x8xf32>, vector<8x1152xf32>, vector<8x1152xf32> -> vector<8x1152xf32>
    %23 = arith.addf %18, %22 : vector<8x1152xf32>
    %c5 = arith.constant 5 : index
    %c0_22 = arith.constant 0 : index
    %c0_23 = arith.constant 0 : index
    %24 = vector.load %arg2[%c5, %c0_22, %c0_23] : memref<9x8x8xf32, #tpu.memory_space<vmem>>, vector<1x8x8xf32>
    %25 = vector.shape_cast %24 : vector<1x8x8xf32> to vector<8x8xf32>
    %c0_24 = arith.constant 0 : index
    %c18 = arith.constant 18 : index
    %26 = vector.load %arg1[%c0_24, %c18] : memref<8x1280xf32, #tpu.memory_space<vmem>>, vector<8x1152xf32>
    %cst_25 = arith.constant dense<0.000000e+00> : vector<8x1152xf32>
    %27 = tpu.matmul %25, %26, %cst_25 {dimension_numbers = #tpu.dot_dimension_numbers<[1], [0], [0], [1], [0, 0, 1, 1], [], []>} : vector<8x8xf32>, vector<8x1152xf32>, vector<8x1152xf32> -> vector<8x1152xf32>
    %28 = arith.addf %23, %27 : vector<8x1152xf32>
    %c6 = arith.constant 6 : index
    %c0_26 = arith.constant 0 : index
    %c0_27 = arith.constant 0 : index
    %29 = vector.load %arg2[%c6, %c0_26, %c0_27] : memref<9x8x8xf32, #tpu.memory_space<vmem>>, vector<1x8x8xf32>
    %30 = vector.shape_cast %29 : vector<1x8x8xf32> to vector<8x8xf32>
    %c0_28 = arith.constant 0 : index
    %c32 = arith.constant 32 : index
    %31 = vector.load %arg1[%c0_28, %c32] : memref<8x1280xf32, #tpu.memory_space<vmem>>, vector<8x1152xf32>
    %cst_29 = arith.constant dense<0.000000e+00> : vector<8x1152xf32>
    %32 = tpu.matmul %30, %31, %cst_29 {dimension_numbers = #tpu.dot_dimension_numbers<[1], [0], [0], [1], [0, 0, 1, 1], [], []>} : vector<8x8xf32>, vector<8x1152xf32>, vector<8x1152xf32> -> vector<8x1152xf32>
    %33 = arith.addf %28, %32 : vector<8x1152xf32>
    %c7 = arith.constant 7 : index
    %c0_30 = arith.constant 0 : index
    %c0_31 = arith.constant 0 : index
    %34 = vector.load %arg2[%c7, %c0_30, %c0_31] : memref<9x8x8xf32, #tpu.memory_space<vmem>>, vector<1x8x8xf32>
    %35 = vector.shape_cast %34 : vector<1x8x8xf32> to vector<8x8xf32>
    %c0_32 = arith.constant 0 : index
    %c33 = arith.constant 33 : index
    %36 = vector.load %arg1[%c0_32, %c33] : memref<8x1280xf32, #tpu.memory_space<vmem>>, vector<8x1152xf32>
    %cst_33 = arith.constant dense<0.000000e+00> : vector<8x1152xf32>
    %37 = tpu.matmul %35, %36, %cst_33 {dimension_numbers = #tpu.dot_dimension_numbers<[1], [0], [0], [1], [0, 0, 1, 1], [], []>} : vector<8x8xf32>, vector<8x1152xf32>, vector<8x1152xf32> -> vector<8x1152xf32>
    %38 = arith.addf %33, %37 : vector<8x1152xf32>
    %c8 = arith.constant 8 : index
    %c0_34 = arith.constant 0 : index
    %c0_35 = arith.constant 0 : index
    %39 = vector.load %arg2[%c8, %c0_34, %c0_35] : memref<9x8x8xf32, #tpu.memory_space<vmem>>, vector<1x8x8xf32>
    %40 = vector.shape_cast %39 : vector<1x8x8xf32> to vector<8x8xf32>
    %c0_36 = arith.constant 0 : index
    %c34 = arith.constant 34 : index
    %41 = vector.load %arg1[%c0_36, %c34] : memref<8x1280xf32, #tpu.memory_space<vmem>>, vector<8x1152xf32>
    %cst_37 = arith.constant dense<0.000000e+00> : vector<8x1152xf32>
    %42 = tpu.matmul %40, %41, %cst_37 {dimension_numbers = #tpu.dot_dimension_numbers<[1], [0], [0], [1], [0, 0, 1, 1], [], []>} : vector<8x8xf32>, vector<8x1152xf32>, vector<8x1152xf32> -> vector<8x1152xf32>
    %43 = arith.addf %38, %42 : vector<8x1152xf32>
    %c0_38 = arith.constant 0 : index
    %c0_39 = arith.constant 0 : index
    %44 = vector.load %arg3[%c0_38, %c0_39] : memref<8x1xf32, #tpu.memory_space<vmem>>, vector<8x1xf32>
    %45 = vector.broadcast %44 : vector<8x1xf32> to vector<8x1152xf32>
    %46 = arith.mulf %43, %45 : vector<8x1152xf32>
    %c0_40 = arith.constant 0 : index
    %c0_41 = arith.constant 0 : index
    %47 = vector.load %arg4[%c0_40, %c0_41] : memref<8x1xf32, #tpu.memory_space<vmem>>, vector<8x1xf32>
    %48 = vector.broadcast %47 : vector<8x1xf32> to vector<8x1152xf32>
    %49 = arith.addf %46, %48 : vector<8x1152xf32>
    %cst_42 = arith.constant 0.000000e+00 : f32
    %50 = vector.broadcast %cst_42 : f32 to vector<8x1152xf32>
    %51 = arith.maximumf %49, %50 : vector<8x1152xf32>
    %c0_43 = arith.constant 0 : index
    %c0_44 = arith.constant 0 : index
    %52 = vector.load %arg25[%c0_43, %c0_44] : memref<8x1152xf32, #tpu.memory_space<vmem>>, vector<8x1152xf32>
    tpu.vector_store %arg25[%c0_43, %c0_44], %51 {strides = array<i32>} : memref<8x1152xf32, #tpu.memory_space<vmem>>, vector<8x1152xf32>,
    %c0_45 = arith.constant 0 : index
    %c0_46 = arith.constant 0 : index
    %53 = vector.load %arg25[%c0_45, %c0_46] : memref<8x1152xf32, #tpu.memory_space<vmem>>, vector<8x1024xf32>
    %c0_47 = arith.constant 0 : index
    %c1_48 = arith.constant 1 : index
    %54 = vector.load %arg25[%c0_47, %c1_48] : memref<8x1152xf32, #tpu.memory_space<vmem>>, vector<8x1024xf32>
    %55 = arith.maximumf %53, %54 : vector<8x1024xf32>
    %c0_49 = arith.constant 0 : index
    %c16_50 = arith.constant 16 : index
    %56 = vector.load %arg25[%c0_49, %c16_50] : memref<8x1152xf32, #tpu.memory_space<vmem>>, vector<8x1024xf32>
    %57 = arith.maximumf %55, %56 : vector<8x1024xf32>
    %c0_51 = arith.constant 0 : index
    %c17_52 = arith.constant 17 : index
    %58 = vector.load %arg25[%c0_51, %c17_52] : memref<8x1152xf32, #tpu.memory_space<vmem>>, vector<8x1024xf32>
    %59 = arith.maximumf %57, %58 : vector<8x1024xf32>
    %c0_53 = arith.constant 0 : index
    %c0_54 = arith.constant 0 : index
    %60 = vector.load %arg5[%c0_53, %c0_54] : memref<1024x384xf32, #tpu.memory_space<vmem>>, vector<1024x384xf32>
    %cst_55 = arith.constant dense<0.000000e+00> : vector<8x384xf32>
    %61 = tpu.matmul %59, %60, %cst_55 {dimension_numbers = #tpu.dot_dimension_numbers<[1], [0], [0], [1], [0, 0, 1, 1], [], []>} : vector<8x1024xf32>, vector<1024x384xf32>, vector<8x384xf32> -> vector<8x384xf32>
    %c0_56 = arith.constant 0 : index
    %c0_57 = arith.constant 0 : index
    %62 = vector.load %arg26[%c0_56, %c0_57] : memref<8x384xf32, #tpu.memory_space<vmem>>, vector<8x384xf32>
    tpu.vector_store %arg26[%c0_56, %c0_57], %61 {strides = array<i32>} : memref<8x384xf32, #tpu.memory_space<vmem>>, vector<8x384xf32>,
    %c0_58 = arith.constant 0 : index
    %c0_59 = arith.constant 0 : index
    %c0_60 = arith.constant 0 : index
    %63 = vector.load %arg6[%c0_58, %c0_59, %c0_60] : memref<9x16x8xf32, #tpu.memory_space<vmem>>, vector<1x16x8xf32>
    %64 = vector.shape_cast %63 : vector<1x16x8xf32> to vector<16x8xf32>
    %c0_61 = arith.constant 0 : index
    %c0_62 = arith.constant 0 : index
    %65 = vector.load %arg26[%c0_61, %c0_62] : memref<8x384xf32, #tpu.memory_space<vmem>>, vector<8x256xf32>
    %cst_63 = arith.constant dense<0.000000e+00> : vector<16x256xf32>
    %66 = tpu.matmul %64, %65, %cst_63 {dimension_numbers = #tpu.dot_dimension_numbers<[1], [0], [0], [1], [0, 0, 1, 1], [], []>} : vector<16x8xf32>, vector<8x256xf32>, vector<16x256xf32> -> vector<16x256xf32>
    %c1_64 = arith.constant 1 : index
    %c0_65 = arith.constant 0 : index
    %c0_66 = arith.constant 0 : index
    %67 = vector.load %arg6[%c1_64, %c0_65, %c0_66] : memref<9x16x8xf32, #tpu.memory_space<vmem>>, vector<1x16x8xf32>
    %68 = vector.shape_cast %67 : vector<1x16x8xf32> to vector<16x8xf32>
    %c0_67 = arith.constant 0 : index
    %c1_68 = arith.constant 1 : index
    %69 = vector.load %arg26[%c0_67, %c1_68] : memref<8x384xf32, #tpu.memory_space<vmem>>, vector<8x256xf32>
    %cst_69 = arith.constant dense<0.000000e+00> : vector<16x256xf32>
    %70 = tpu.matmul %68, %69, %cst_69 {dimension_numbers = #tpu.dot_dimension_numbers<[1], [0], [0], [1], [0, 0, 1, 1], [], []>} : vector<16x8xf32>, vector<8x256xf32>, vector<16x256xf32> -> vector<16x256xf32>
    %71 = arith.addf %66, %70 : vector<16x256xf32>
    %c2_70 = arith.constant 2 : index
    %c0_71 = arith.constant 0 : index
    %c0_72 = arith.constant 0 : index
    %72 = vector.load %arg6[%c2_70, %c0_71, %c0_72] : memref<9x16x8xf32, #tpu.memory_space<vmem>>, vector<1x16x8xf32>
    %73 = vector.shape_cast %72 : vector<1x16x8xf32> to vector<16x8xf32>
    %c0_73 = arith.constant 0 : index
    %c2_74 = arith.constant 2 : index
    %74 = vector.load %arg26[%c0_73, %c2_74] : memref<8x384xf32, #tpu.memory_space<vmem>>, vector<8x256xf32>
    %cst_75 = arith.constant dense<0.000000e+00> : vector<16x256xf32>
    %75 = tpu.matmul %73, %74, %cst_75 {dimension_numbers = #tpu.dot_dimension_numbers<[1], [0], [0], [1], [0, 0, 1, 1], [], []>} : vector<16x8xf32>, vector<8x256xf32>, vector<16x256xf32> -> vector<16x256xf32>
    %76 = arith.addf %71, %75 : vector<16x256xf32>
    %c3_76 = arith.constant 3 : index
    %c0_77 = arith.constant 0 : index
    %c0_78 = arith.constant 0 : index
    %77 = vector.load %arg6[%c3_76, %c0_77, %c0_78] : memref<9x16x8xf32, #tpu.memory_space<vmem>>, vector<1x16x8xf32>
    %78 = vector.shape_cast %77 : vector<1x16x8xf32> to vector<16x8xf32>
    %c0_79 = arith.constant 0 : index
    %c7_80 = arith.constant 7 : index
    %79 = vector.load %arg26[%c0_79, %c7_80] : memref<8x384xf32, #tpu.memory_space<vmem>>, vector<8x256xf32>
    %cst_81 = arith.constant dense<0.000000e+00> : vector<16x256xf32>
    %80 = tpu.matmul %78, %79, %cst_81 {dimension_numbers = #tpu.dot_dimension_numbers<[1], [0], [0], [1], [0, 0, 1, 1], [], []>} : vector<16x8xf32>, vector<8x256xf32>, vector<16x256xf32> -> vector<16x256xf32>
    %81 = arith.addf %76, %80 : vector<16x256xf32>
    %c4_82 = arith.constant 4 : index
    %c0_83 = arith.constant 0 : index
    %c0_84 = arith.constant 0 : index
    %82 = vector.load %arg6[%c4_82, %c0_83, %c0_84] : memref<9x16x8xf32, #tpu.memory_space<vmem>>, vector<1x16x8xf32>
    %83 = vector.shape_cast %82 : vector<1x16x8xf32> to vector<16x8xf32>
    %c0_85 = arith.constant 0 : index
    %c8_86 = arith.constant 8 : index
    %84 = vector.load %arg26[%c0_85, %c8_86] : memref<8x384xf32, #tpu.memory_space<vmem>>, vector<8x256xf32>
    %cst_87 = arith.constant dense<0.000000e+00> : vector<16x256xf32>
    %85 = tpu.matmul %83, %84, %cst_87 {dimension_numbers = #tpu.dot_dimension_numbers<[1], [0], [0], [1], [0, 0, 1, 1], [], []>} : vector<16x8xf32>, vector<8x256xf32>, vector<16x256xf32> -> vector<16x256xf32>
    %86 = arith.addf %81, %85 : vector<16x256xf32>
    %c5_88 = arith.constant 5 : index
    %c0_89 = arith.constant 0 : index
    %c0_90 = arith.constant 0 : index
    %87 = vector.load %arg6[%c5_88, %c0_89, %c0_90] : memref<9x16x8xf32, #tpu.memory_space<vmem>>, vector<1x16x8xf32>
    %88 = vector.shape_cast %87 : vector<1x16x8xf32> to vector<16x8xf32>
    %c0_91 = arith.constant 0 : index
    %c9 = arith.constant 9 : index
    %89 = vector.load %arg26[%c0_91, %c9] : memref<8x384xf32, #tpu.memory_space<vmem>>, vector<8x256xf32>
    %cst_92 = arith.constant dense<0.000000e+00> : vector<16x256xf32>
    %90 = tpu.matmul %88, %89, %cst_92 {dimension_numbers = #tpu.dot_dimension_numbers<[1], [0], [0], [1], [0, 0, 1, 1], [], []>} : vector<16x8xf32>, vector<8x256xf32>, vector<16x256xf32> -> vector<16x256xf32>
    %91 = arith.addf %86, %90 : vector<16x256xf32>
    %c6_93 = arith.constant 6 : index
    %c0_94 = arith.constant 0 : index
    %c0_95 = arith.constant 0 : index
    %92 = vector.load %arg6[%c6_93, %c0_94, %c0_95] : memref<9x16x8xf32, #tpu.memory_space<vmem>>, vector<1x16x8xf32>
    %93 = vector.shape_cast %92 : vector<1x16x8xf32> to vector<16x8xf32>
    %c0_96 = arith.constant 0 : index
    %c14 = arith.constant 14 : index
    %94 = vector.load %arg26[%c0_96, %c14] : memref<8x384xf32, #tpu.memory_space<vmem>>, vector<8x256xf32>
    %cst_97 = arith.constant dense<0.000000e+00> : vector<16x256xf32>
    %95 = tpu.matmul %93, %94, %cst_97 {dimension_numbers = #tpu.dot_dimension_numbers<[1], [0], [0], [1], [0, 0, 1, 1], [], []>} : vector<16x8xf32>, vector<8x256xf32>, vector<16x256xf32> -> vector<16x256xf32>
    %96 = arith.addf %91, %95 : vector<16x256xf32>
    %c7_98 = arith.constant 7 : index
    %c0_99 = arith.constant 0 : index
    %c0_100 = arith.constant 0 : index
    %97 = vector.load %arg6[%c7_98, %c0_99, %c0_100] : memref<9x16x8xf32, #tpu.memory_space<vmem>>, vector<1x16x8xf32>
    %98 = vector.shape_cast %97 : vector<1x16x8xf32> to vector<16x8xf32>
    %c0_101 = arith.constant 0 : index
    %c15 = arith.constant 15 : index
    %99 = vector.load %arg26[%c0_101, %c15] : memref<8x384xf32, #tpu.memory_space<vmem>>, vector<8x256xf32>
    %cst_102 = arith.constant dense<0.000000e+00> : vector<16x256xf32>
    %100 = tpu.matmul %98, %99, %cst_102 {dimension_numbers = #tpu.dot_dimension_numbers<[1], [0], [0], [1], [0, 0, 1, 1], [], []>} : vector<16x8xf32>, vector<8x256xf32>, vector<16x256xf32> -> vector<16x256xf32>
    %101 = arith.addf %96, %100 : vector<16x256xf32>
    %c8_103 = arith.constant 8 : index
    %c0_104 = arith.constant 0 : index
    %c0_105 = arith.constant 0 : index
    %102 = vector.load %arg6[%c8_103, %c0_104, %c0_105] : memref<9x16x8xf32, #tpu.memory_space<vmem>>, vector<1x16x8xf32>
    %103 = vector.shape_cast %102 : vector<1x16x8xf32> to vector<16x8xf32>
    %c0_106 = arith.constant 0 : index
    %c16_107 = arith.constant 16 : index
    %104 = vector.load %arg26[%c0_106, %c16_107] : memref<8x384xf32, #tpu.memory_space<vmem>>, vector<8x256xf32>
    %cst_108 = arith.constant dense<0.000000e+00> : vector<16x256xf32>
    %105 = tpu.matmul %103, %104, %cst_108 {dimension_numbers = #tpu.dot_dimension_numbers<[1], [0], [0], [1], [0, 0, 1, 1], [], []>} : vector<16x8xf32>, vector<8x256xf32>, vector<16x256xf32> -> vector<16x256xf32>
    %106 = arith.addf %101, %105 : vector<16x256xf32>
    %c0_109 = arith.constant 0 : index
    %c0_110 = arith.constant 0 : index
    %107 = vector.load %arg7[%c0_109, %c0_110] : memref<16x1xf32, #tpu.memory_space<vmem>>, vector<16x1xf32>
    %108 = vector.broadcast %107 : vector<16x1xf32> to vector<16x256xf32>
    %109 = arith.mulf %106, %108 : vector<16x256xf32>
    %c0_111 = arith.constant 0 : index
    %c0_112 = arith.constant 0 : index
    %110 = vector.load %arg8[%c0_111, %c0_112] : memref<16x1xf32, #tpu.memory_space<vmem>>, vector<16x1xf32>
    %111 = vector.broadcast %110 : vector<16x1xf32> to vector<16x256xf32>
    %112 = arith.addf %109, %111 : vector<16x256xf32>
    %cst_113 = arith.constant 0.000000e+00 : f32
    %113 = vector.broadcast %cst_113 : f32 to vector<16x256xf32>
    %114 = arith.maximumf %112, %113 : vector<16x256xf32>
    %c0_114 = arith.constant 0 : index
    %c0_115 = arith.constant 0 : index
    %115 = vector.load %arg27[%c0_114, %c0_115] : memref<16x256xf32, #tpu.memory_space<vmem>>, vector<16x256xf32>
    tpu.vector_store %arg27[%c0_114, %c0_115], %114 {strides = array<i32>} : memref<16x256xf32, #tpu.memory_space<vmem>>, vector<16x256xf32>,
    %c0_116 = arith.constant 0 : index
    %c0_117 = arith.constant 0 : index
    %116 = vector.load %arg27[%c0_116, %c0_117] : memref<16x256xf32, #tpu.memory_space<vmem>>, vector<16x210xf32>
    %c0_118 = arith.constant 0 : index
    %c1_119 = arith.constant 1 : index
    %117 = vector.load %arg27[%c0_118, %c1_119] : memref<16x256xf32, #tpu.memory_space<vmem>>, vector<16x210xf32>
    %118 = arith.maximumf %116, %117 : vector<16x210xf32>
    %c0_120 = arith.constant 0 : index
    %c7_121 = arith.constant 7 : index
    %119 = vector.load %arg27[%c0_120, %c7_121] : memref<16x256xf32, #tpu.memory_space<vmem>>, vector<16x210xf32>
    %120 = arith.maximumf %118, %119 : vector<16x210xf32>
    %c0_122 = arith.constant 0 : index
    %c8_123 = arith.constant 8 : index
    %121 = vector.load %arg27[%c0_122, %c8_123] : memref<16x256xf32, #tpu.memory_space<vmem>>, vector<16x210xf32>
    %122 = arith.maximumf %120, %121 : vector<16x210xf32>
    %c0_124 = arith.constant 0 : index
    %c0_125 = arith.constant 0 : index
    %123 = vector.load %arg9[%c0_124, %c0_125] : memref<210x256xf32, #tpu.memory_space<vmem>>, vector<210x256xf32>
    %cst_126 = arith.constant dense<0.000000e+00> : vector<16x256xf32>
    %124 = tpu.matmul %122, %123, %cst_126 {dimension_numbers = #tpu.dot_dimension_numbers<[1], [0], [0], [1], [0, 0, 1, 1], [], []>} : vector<16x210xf32>, vector<210x256xf32>, vector<16x256xf32> -> vector<16x256xf32>
    %c0_127 = arith.constant 0 : index
    %c0_128 = arith.constant 0 : index
    %125 = vector.load %arg28[%c0_127, %c0_128] : memref<16x256xf32, #tpu.memory_space<vmem>>, vector<16x256xf32>
    tpu.vector_store %arg28[%c0_127, %c0_128], %124 {strides = array<i32>} : memref<16x256xf32, #tpu.memory_space<vmem>>, vector<16x256xf32>,
    %c0_129 = arith.constant 0 : index
    %c0_130 = arith.constant 0 : index
    %c0_131 = arith.constant 0 : index
    %126 = vector.load %arg10[%c0_129, %c0_130, %c0_131] : memref<4x32x16xf32, #tpu.memory_space<vmem>>, vector<1x32x16xf32>
    %127 = vector.shape_cast %126 : vector<1x32x16xf32> to vector<32x16xf32>
    %c0_132 = arith.constant 0 : index
    %c0_133 = arith.constant 0 : index
    %128 = vector.load %arg28[%c0_132, %c0_133] : memref<16x256xf32, #tpu.memory_space<vmem>>, vector<16x128xf32>
    %cst_134 = arith.constant dense<0.000000e+00> : vector<32x128xf32>
    %129 = tpu.matmul %127, %128, %cst_134 {dimension_numbers = #tpu.dot_dimension_numbers<[1], [0], [0], [1], [0, 0, 1, 1], [], []>} : vector<32x16xf32>, vector<16x128xf32>, vector<32x128xf32> -> vector<32x128xf32>
    %c1_135 = arith.constant 1 : index
    %c0_136 = arith.constant 0 : index
    %c0_137 = arith.constant 0 : index
    %130 = vector.load %arg10[%c1_135, %c0_136, %c0_137] : memref<4x32x16xf32, #tpu.memory_space<vmem>>, vector<1x32x16xf32>
    %131 = vector.shape_cast %130 : vector<1x32x16xf32> to vector<32x16xf32>
    %c0_138 = arith.constant 0 : index
    %c1_139 = arith.constant 1 : index
    %132 = vector.load %arg28[%c0_138, %c1_139] : memref<16x256xf32, #tpu.memory_space<vmem>>, vector<16x128xf32>
    %cst_140 = arith.constant dense<0.000000e+00> : vector<32x128xf32>
    %133 = tpu.matmul %131, %132, %cst_140 {dimension_numbers = #tpu.dot_dimension_numbers<[1], [0], [0], [1], [0, 0, 1, 1], [], []>} : vector<32x16xf32>, vector<16x128xf32>, vector<32x128xf32> -> vector<32x128xf32>
    %134 = arith.addf %129, %133 : vector<32x128xf32>
    %c2_141 = arith.constant 2 : index
    %c0_142 = arith.constant 0 : index
    %c0_143 = arith.constant 0 : index
    %135 = vector.load %arg10[%c2_141, %c0_142, %c0_143] : memref<4x32x16xf32, #tpu.memory_space<vmem>>, vector<1x32x16xf32>
    %136 = vector.shape_cast %135 : vector<1x32x16xf32> to vector<32x16xf32>
    %c0_144 = arith.constant 0 : index
    %c2_145 = arith.constant 2 : index
    %137 = vector.load %arg28[%c0_144, %c2_145] : memref<16x256xf32, #tpu.memory_space<vmem>>, vector<16x128xf32>
    %cst_146 = arith.constant dense<0.000000e+00> : vector<32x128xf32>
    %138 = tpu.matmul %136, %137, %cst_146 {dimension_numbers = #tpu.dot_dimension_numbers<[1], [0], [0], [1], [0, 0, 1, 1], [], []>} : vector<32x16xf32>, vector<16x128xf32>, vector<32x128xf32> -> vector<32x128xf32>
    %139 = arith.addf %134, %138 : vector<32x128xf32>
    %c3_147 = arith.constant 3 : index
    %c0_148 = arith.constant 0 : index
    %c0_149 = arith.constant 0 : index
    %140 = vector.load %arg10[%c3_147, %c0_148, %c0_149] : memref<4x32x16xf32, #tpu.memory_space<vmem>>, vector<1x32x16xf32>
    %141 = vector.shape_cast %140 : vector<1x32x16xf32> to vector<32x16xf32>
    %c0_150 = arith.constant 0 : index
    %c3_151 = arith.constant 3 : index
    %142 = vector.load %arg28[%c0_150, %c3_151] : memref<16x256xf32, #tpu.memory_space<vmem>>, vector<16x128xf32>
    %cst_152 = arith.constant dense<0.000000e+00> : vector<32x128xf32>
    %143 = tpu.matmul %141, %142, %cst_152 {dimension_numbers = #tpu.dot_dimension_numbers<[1], [0], [0], [1], [0, 0, 1, 1], [], []>} : vector<32x16xf32>, vector<16x128xf32>, vector<32x128xf32> -> vector<32x128xf32>
    %144 = arith.addf %139, %143 : vector<32x128xf32>
    %c0_153 = arith.constant 0 : index
    %c0_154 = arith.constant 0 : index
    %145 = vector.load %arg11[%c0_153, %c0_154] : memref<32x1xf32, #tpu.memory_space<vmem>>, vector<32x1xf32>
    %146 = vector.broadcast %145 : vector<32x1xf32> to vector<32x128xf32>
    %147 = arith.mulf %144, %146 : vector<32x128xf32>
    %c0_155 = arith.constant 0 : index
    %c0_156 = arith.constant 0 : index
    %148 = vector.load %arg12[%c0_155, %c0_156] : memref<32x1xf32, #tpu.memory_space<vmem>>, vector<32x1xf32>
    %149 = vector.broadcast %148 : vector<32x1xf32> to vector<32x128xf32>
    %150 = arith.addf %147, %149 : vector<32x128xf32>
    %cst_157 = arith.constant 0.000000e+00 : f32
    %151 = vector.broadcast %cst_157 : f32 to vector<32x128xf32>
    %152 = arith.maximumf %150, %151 : vector<32x128xf32>
    %c0_158 = arith.constant 0 : index
    %c0_159 = arith.constant 0 : index
    %153 = vector.load %arg13[%c0_158, %c0_159] : memref<128x16xf32, #tpu.memory_space<vmem>>, vector<128x16xf32>
    %cst_160 = arith.constant dense<0.000000e+00> : vector<32x16xf32>
    %154 = tpu.matmul %152, %153, %cst_160 {dimension_numbers = #tpu.dot_dimension_numbers<[1], [0], [0], [1], [0, 0, 1, 1], [], []>} : vector<32x128xf32>, vector<128x16xf32>, vector<32x16xf32> -> vector<32x16xf32>
    %c0_161 = arith.constant 0 : index
    %c0_162 = arith.constant 0 : index
    %155 = vector.load %arg14[%c0_161, %c0_162] : memref<128x32xf32, #tpu.memory_space<vmem>>, vector<128x32xf32>
    %cst_163 = arith.constant dense<0.000000e+00> : vector<128x16xf32>
    %156 = tpu.matmul %155, %154, %cst_163 {dimension_numbers = #tpu.dot_dimension_numbers<[1], [0], [0], [1], [0, 0, 1, 1], [], []>} : vector<128x32xf32>, vector<32x16xf32>, vector<128x16xf32> -> vector<128x16xf32>
    %c0_164 = arith.constant 0 : index
    %c0_165 = arith.constant 0 : index
    %157 = vector.load %arg16[%c0_164, %c0_165] : memref<128x1xf32, #tpu.memory_space<vmem>>, vector<128x1xf32>
    %158 = vector.broadcast %157 : vector<128x1xf32> to vector<128x16xf32>
    %159 = arith.addf %156, %158 : vector<128x16xf32>
    %c0_166 = arith.constant 0 : index
    %c0_167 = arith.constant 0 : index
    %160 = vector.load %arg29[%c0_166, %c0_167] : memref<128x16xf32, #tpu.memory_space<vmem>>, vector<128x16xf32>
    tpu.vector_store %arg29[%c0_166, %c0_167], %159 {strides = array<i32>} : memref<128x16xf32, #tpu.memory_space<vmem>>, vector<128x16xf32>,
    %c0_168 = arith.constant 0 : index
    %c0_169 = arith.constant 0 : index
    %161 = vector.load %arg17[%c0_168, %c0_169] : memref<128x32xf32, #tpu.memory_space<vmem>>, vector<128x32xf32>
    %cst_170 = arith.constant dense<0.000000e+00> : vector<128x16xf32>
    %162 = tpu.matmul %161, %154, %cst_170 {dimension_numbers = #tpu.dot_dimension_numbers<[1], [0], [0], [1], [0, 0, 1, 1], [], []>} : vector<128x32xf32>, vector<32x16xf32>, vector<128x16xf32> -> vector<128x16xf32>
    %c0_171 = arith.constant 0 : index
    %c0_172 = arith.constant 0 : index
    %163 = vector.load %arg19[%c0_171, %c0_172] : memref<128x1xf32, #tpu.memory_space<vmem>>, vector<128x1xf32>
    %164 = vector.broadcast %163 : vector<128x1xf32> to vector<128x16xf32>
    %165 = arith.addf %162, %164 : vector<128x16xf32>
    %c0_173 = arith.constant 0 : index
    %c0_174 = arith.constant 0 : index
    %166 = vector.load %arg30[%c0_173, %c0_174] : memref<128x16xf32, #tpu.memory_space<vmem>>, vector<128x16xf32>
    tpu.vector_store %arg30[%c0_173, %c0_174], %165 {strides = array<i32>} : memref<128x16xf32, #tpu.memory_space<vmem>>, vector<128x16xf32>,
    %c0_175 = arith.constant 0 : index
    %c0_176 = arith.constant 0 : index
    %167 = vector.load %arg15[%c0_175, %c0_176] : memref<128x32xf32, #tpu.memory_space<vmem>>, vector<128x32xf32>
    %c0_177 = arith.constant 0 : index
    %c0_178 = arith.constant 0 : index
    %168 = vector.load %arg18[%c0_177, %c0_178] : memref<128x32xf32, #tpu.memory_space<vmem>>, vector<128x32xf32>
    %cst_179 = arith.constant 0.000000e+00 : f32
    %169 = vector.broadcast %cst_179 : f32 to vector<32x2xf32>
    %cst_180 = arith.constant 0.000000e+00 : f32
    %170 = vector.broadcast %cst_180 : f32 to vector<32x2xf32>
    %cst_181 = arith.constant 0.000000e+00 : f32
    %171 = vector.broadcast %cst_181 : f32 to vector<32x2xf32>
    %cst_182 = arith.constant 0.000000e+00 : f32
    %172 = vector.broadcast %cst_182 : f32 to vector<32x2xf32>
    %c0_183 = arith.constant 0 : index
    %c0_184 = arith.constant 0 : index
    %173 = vector.load %arg29[%c0_183, %c0_184] : memref<128x16xf32, #tpu.memory_space<vmem>>, vector<128x2xf32>
    %cst_185 = arith.constant dense<0.000000e+00> : vector<128x2xf32>
    %174 = tpu.matmul %167, %169, %cst_185 {dimension_numbers = #tpu.dot_dimension_numbers<[1], [0], [0], [1], [0, 0, 1, 1], [], []>} : vector<128x32xf32>, vector<32x2xf32>, vector<128x2xf32> -> vector<128x2xf32>
    %175 = arith.addf %173, %174 : vector<128x2xf32>
    %176 = vector.extract_strided_slice %175 {offsets = [0, 0], sizes = [32, 2], strides = [1, 1]} : vector<128x2xf32> to vector<32x2xf32>
    %cst_186 = arith.constant 0.000000e+00 : f32
    %177 = vector.broadcast %cst_186 : f32 to vector<32x2xf32>
    %178 = arith.subf %177, %176 : vector<32x2xf32>
    %179 = math.exp %178 : vector<32x2xf32>
    %cst_187 = arith.constant 1.000000e+00 : f32
    %180 = vector.broadcast %cst_187 : f32 to vector<32x2xf32>
    %181 = arith.addf %180, %179 : vector<32x2xf32>
    %cst_188 = arith.constant 1.000000e+00 : f32
    %182 = vector.broadcast %cst_188 : f32 to vector<32x2xf32>
    %183 = arith.divf %182, %181 : vector<32x2xf32>
    %184 = vector.extract_strided_slice %175 {offsets = [32, 0], sizes = [32, 2], strides = [1, 1]} : vector<128x2xf32> to vector<32x2xf32>
    %cst_189 = arith.constant 0.000000e+00 : f32
    %185 = vector.broadcast %cst_189 : f32 to vector<32x2xf32>
    %186 = arith.subf %185, %184 : vector<32x2xf32>
    %187 = math.exp %186 : vector<32x2xf32>
    %cst_190 = arith.constant 1.000000e+00 : f32
    %188 = vector.broadcast %cst_190 : f32 to vector<32x2xf32>
    %189 = arith.addf %188, %187 : vector<32x2xf32>
    %cst_191 = arith.constant 1.000000e+00 : f32
    %190 = vector.broadcast %cst_191 : f32 to vector<32x2xf32>
    %191 = arith.divf %190, %189 : vector<32x2xf32>
    %192 = vector.extract_strided_slice %175 {offsets = [64, 0], sizes = [32, 2], strides = [1, 1]} : vector<128x2xf32> to vector<32x2xf32>
    %193 = math.tanh %192 : vector<32x2xf32>
    %194 = vector.extract_strided_slice %175 {offsets = [96, 0], sizes = [32, 2], strides = [1, 1]} : vector<128x2xf32> to vector<32x2xf32>
    %cst_192 = arith.constant 0.000000e+00 : f32
    %195 = vector.broadcast %cst_192 : f32 to vector<32x2xf32>
    %196 = arith.subf %195, %194 : vector<32x2xf32>
    %197 = math.exp %196 : vector<32x2xf32>
    %cst_193 = arith.constant 1.000000e+00 : f32
    %198 = vector.broadcast %cst_193 : f32 to vector<32x2xf32>
    %199 = arith.addf %198, %197 : vector<32x2xf32>
    %cst_194 = arith.constant 1.000000e+00 : f32
    %200 = vector.broadcast %cst_194 : f32 to vector<32x2xf32>
    %201 = arith.divf %200, %199 : vector<32x2xf32>
    %202 = arith.mulf %191, %170 : vector<32x2xf32>
    %203 = arith.mulf %183, %193 : vector<32x2xf32>
    %204 = arith.addf %202, %203 : vector<32x2xf32>
    %205 = math.tanh %204 : vector<32x2xf32>
    %206 = arith.mulf %201, %205 : vector<32x2xf32>
    %c0_195 = arith.constant 0 : index
    %c8_196 = arith.constant 8 : index
    %207 = vector.load %arg30[%c0_195, %c8_196] : memref<128x16xf32, #tpu.memory_space<vmem>>, vector<128x2xf32>
    %cst_197 = arith.constant dense<0.000000e+00> : vector<128x2xf32>
    %208 = tpu.matmul %168, %171, %cst_197 {dimension_numbers = #tpu.dot_dimension_numbers<[1], [0], [0], [1], [0, 0, 1, 1], [], []>} : vector<128x32xf32>, vector<32x2xf32>, vector<128x2xf32> -> vector<128x2xf32>
    %209 = arith.addf %207, %208 : vector<128x2xf32>
    %210 = vector.extract_strided_slice %209 {offsets = [0, 0], sizes = [32, 2], strides = [1, 1]} : vector<128x2xf32> to vector<32x2xf32>
    %cst_198 = arith.constant 0.000000e+00 : f32
    %211 = vector.broadcast %cst_198 : f32 to vector<32x2xf32>
    %212 = arith.subf %211, %210 : vector<32x2xf32>
    %213 = math.exp %212 : vector<32x2xf32>
    %cst_199 = arith.constant 1.000000e+00 : f32
    %214 = vector.broadcast %cst_199 : f32 to vector<32x2xf32>
    %215 = arith.addf %214, %213 : vector<32x2xf32>
    %cst_200 = arith.constant 1.000000e+00 : f32
    %216 = vector.broadcast %cst_200 : f32 to vector<32x2xf32>
    %217 = arith.divf %216, %215 : vector<32x2xf32>
    %218 = vector.extract_strided_slice %209 {offsets = [32, 0], sizes = [32, 2], strides = [1, 1]} : vector<128x2xf32> to vector<32x2xf32>
    %cst_201 = arith.constant 0.000000e+00 : f32
    %219 = vector.broadcast %cst_201 : f32 to vector<32x2xf32>
    %220 = arith.subf %219, %218 : vector<32x2xf32>
    %221 = math.exp %220 : vector<32x2xf32>
    %cst_202 = arith.constant 1.000000e+00 : f32
    %222 = vector.broadcast %cst_202 : f32 to vector<32x2xf32>
    %223 = arith.addf %222, %221 : vector<32x2xf32>
    %cst_203 = arith.constant 1.000000e+00 : f32
    %224 = vector.broadcast %cst_203 : f32 to vector<32x2xf32>
    %225 = arith.divf %224, %223 : vector<32x2xf32>
    %226 = vector.extract_strided_slice %209 {offsets = [64, 0], sizes = [32, 2], strides = [1, 1]} : vector<128x2xf32> to vector<32x2xf32>
    %227 = math.tanh %226 : vector<32x2xf32>
    %228 = vector.extract_strided_slice %209 {offsets = [96, 0], sizes = [32, 2], strides = [1, 1]} : vector<128x2xf32> to vector<32x2xf32>
    %cst_204 = arith.constant 0.000000e+00 : f32
    %229 = vector.broadcast %cst_204 : f32 to vector<32x2xf32>
    %230 = arith.subf %229, %228 : vector<32x2xf32>
    %231 = math.exp %230 : vector<32x2xf32>
    %cst_205 = arith.constant 1.000000e+00 : f32
    %232 = vector.broadcast %cst_205 : f32 to vector<32x2xf32>
    %233 = arith.addf %232, %231 : vector<32x2xf32>
    %cst_206 = arith.constant 1.000000e+00 : f32
    %234 = vector.broadcast %cst_206 : f32 to vector<32x2xf32>
    %235 = arith.divf %234, %233 : vector<32x2xf32>
    %236 = arith.mulf %225, %172 : vector<32x2xf32>
    %237 = arith.mulf %217, %227 : vector<32x2xf32>
    %238 = arith.addf %236, %237 : vector<32x2xf32>
    %239 = math.tanh %238 : vector<32x2xf32>
    %240 = arith.mulf %235, %239 : vector<32x2xf32>
    %c0_207 = arith.constant 0 : index
    %c2_208 = arith.constant 2 : index
    %241 = vector.load %arg29[%c0_207, %c2_208] : memref<128x16xf32, #tpu.memory_space<vmem>>, vector<128x2xf32>
    %cst_209 = arith.constant dense<0.000000e+00> : vector<128x2xf32>
    %242 = tpu.matmul %167, %206, %cst_209 {dimension_numbers = #tpu.dot_dimension_numbers<[1], [0], [0], [1], [0, 0, 1, 1], [], []>} : vector<128x32xf32>, vector<32x2xf32>, vector<128x2xf32> -> vector<128x2xf32>
    %243 = arith.addf %241, %242 : vector<128x2xf32>
    %244 = vector.extract_strided_slice %243 {offsets = [0, 0], sizes = [32, 2], strides = [1, 1]} : vector<128x2xf32> to vector<32x2xf32>
    %cst_210 = arith.constant 0.000000e+00 : f32
    %245 = vector.broadcast %cst_210 : f32 to vector<32x2xf32>
    %246 = arith.subf %245, %244 : vector<32x2xf32>
    %247 = math.exp %246 : vector<32x2xf32>
    %cst_211 = arith.constant 1.000000e+00 : f32
    %248 = vector.broadcast %cst_211 : f32 to vector<32x2xf32>
    %249 = arith.addf %248, %247 : vector<32x2xf32>
    %cst_212 = arith.constant 1.000000e+00 : f32
    %250 = vector.broadcast %cst_212 : f32 to vector<32x2xf32>
    %251 = arith.divf %250, %249 : vector<32x2xf32>
    %252 = vector.extract_strided_slice %243 {offsets = [32, 0], sizes = [32, 2], strides = [1, 1]} : vector<128x2xf32> to vector<32x2xf32>
    %cst_213 = arith.constant 0.000000e+00 : f32
    %253 = vector.broadcast %cst_213 : f32 to vector<32x2xf32>
    %254 = arith.subf %253, %252 : vector<32x2xf32>
    %255 = math.exp %254 : vector<32x2xf32>
    %cst_214 = arith.constant 1.000000e+00 : f32
    %256 = vector.broadcast %cst_214 : f32 to vector<32x2xf32>
    %257 = arith.addf %256, %255 : vector<32x2xf32>
    %cst_215 = arith.constant 1.000000e+00 : f32
    %258 = vector.broadcast %cst_215 : f32 to vector<32x2xf32>
    %259 = arith.divf %258, %257 : vector<32x2xf32>
    %260 = vector.extract_strided_slice %243 {offsets = [64, 0], sizes = [32, 2], strides = [1, 1]} : vector<128x2xf32> to vector<32x2xf32>
    %261 = math.tanh %260 : vector<32x2xf32>
    %262 = vector.extract_strided_slice %243 {offsets = [96, 0], sizes = [32, 2], strides = [1, 1]} : vector<128x2xf32> to vector<32x2xf32>
    %cst_216 = arith.constant 0.000000e+00 : f32
    %263 = vector.broadcast %cst_216 : f32 to vector<32x2xf32>
    %264 = arith.subf %263, %262 : vector<32x2xf32>
    %265 = math.exp %264 : vector<32x2xf32>
    %cst_217 = arith.constant 1.000000e+00 : f32
    %266 = vector.broadcast %cst_217 : f32 to vector<32x2xf32>
    %267 = arith.addf %266, %265 : vector<32x2xf32>
    %cst_218 = arith.constant 1.000000e+00 : f32
    %268 = vector.broadcast %cst_218 : f32 to vector<32x2xf32>
    %269 = arith.divf %268, %267 : vector<32x2xf32>
    %270 = arith.mulf %259, %204 : vector<32x2xf32>
    %271 = arith.mulf %251, %261 : vector<32x2xf32>
    %272 = arith.addf %270, %271 : vector<32x2xf32>
    %273 = math.tanh %272 : vector<32x2xf32>
    %274 = arith.mulf %269, %273 : vector<32x2xf32>
    %c0_219 = arith.constant 0 : index
    %c6_220 = arith.constant 6 : index
    %275 = vector.load %arg30[%c0_219, %c6_220] : memref<128x16xf32, #tpu.memory_space<vmem>>, vector<128x2xf32>
    %cst_221 = arith.constant dense<0.000000e+00> : vector<128x2xf32>
    %276 = tpu.matmul %168, %240, %cst_221 {dimension_numbers = #tpu.dot_dimension_numbers<[1], [0], [0], [1], [0, 0, 1, 1], [], []>} : vector<128x32xf32>, vector<32x2xf32>, vector<128x2xf32> -> vector<128x2xf32>
    %277 = arith.addf %275, %276 : vector<128x2xf32>
    %278 = vector.extract_strided_slice %277 {offsets = [0, 0], sizes = [32, 2], strides = [1, 1]} : vector<128x2xf32> to vector<32x2xf32>
    %cst_222 = arith.constant 0.000000e+00 : f32
    %279 = vector.broadcast %cst_222 : f32 to vector<32x2xf32>
    %280 = arith.subf %279, %278 : vector<32x2xf32>
    %281 = math.exp %280 : vector<32x2xf32>
    %cst_223 = arith.constant 1.000000e+00 : f32
    %282 = vector.broadcast %cst_223 : f32 to vector<32x2xf32>
    %283 = arith.addf %282, %281 : vector<32x2xf32>
    %cst_224 = arith.constant 1.000000e+00 : f32
    %284 = vector.broadcast %cst_224 : f32 to vector<32x2xf32>
    %285 = arith.divf %284, %283 : vector<32x2xf32>
    %286 = vector.extract_strided_slice %277 {offsets = [32, 0], sizes = [32, 2], strides = [1, 1]} : vector<128x2xf32> to vector<32x2xf32>
    %cst_225 = arith.constant 0.000000e+00 : f32
    %287 = vector.broadcast %cst_225 : f32 to vector<32x2xf32>
    %288 = arith.subf %287, %286 : vector<32x2xf32>
    %289 = math.exp %288 : vector<32x2xf32>
    %cst_226 = arith.constant 1.000000e+00 : f32
    %290 = vector.broadcast %cst_226 : f32 to vector<32x2xf32>
    %291 = arith.addf %290, %289 : vector<32x2xf32>
    %cst_227 = arith.constant 1.000000e+00 : f32
    %292 = vector.broadcast %cst_227 : f32 to vector<32x2xf32>
    %293 = arith.divf %292, %291 : vector<32x2xf32>
    %294 = vector.extract_strided_slice %277 {offsets = [64, 0], sizes = [32, 2], strides = [1, 1]} : vector<128x2xf32> to vector<32x2xf32>
    %295 = math.tanh %294 : vector<32x2xf32>
    %296 = vector.extract_strided_slice %277 {offsets = [96, 0], sizes = [32, 2], strides = [1, 1]} : vector<128x2xf32> to vector<32x2xf32>
    %cst_228 = arith.constant 0.000000e+00 : f32
    %297 = vector.broadcast %cst_228 : f32 to vector<32x2xf32>
    %298 = arith.subf %297, %296 : vector<32x2xf32>
    %299 = math.exp %298 : vector<32x2xf32>
    %cst_229 = arith.constant 1.000000e+00 : f32
    %300 = vector.broadcast %cst_229 : f32 to vector<32x2xf32>
    %301 = arith.addf %300, %299 : vector<32x2xf32>
    %cst_230 = arith.constant 1.000000e+00 : f32
    %302 = vector.broadcast %cst_230 : f32 to vector<32x2xf32>
    %303 = arith.divf %302, %301 : vector<32x2xf32>
    %304 = arith.mulf %293, %238 : vector<32x2xf32>
    %305 = arith.mulf %285, %295 : vector<32x2xf32>
    %306 = arith.addf %304, %305 : vector<32x2xf32>
    %307 = math.tanh %306 : vector<32x2xf32>
    %308 = arith.mulf %303, %307 : vector<32x2xf32>
    %c0_231 = arith.constant 0 : index
    %c4_232 = arith.constant 4 : index
    %309 = vector.load %arg29[%c0_231, %c4_232] : memref<128x16xf32, #tpu.memory_space<vmem>>, vector<128x2xf32>
    %cst_233 = arith.constant dense<0.000000e+00> : vector<128x2xf32>
    %310 = tpu.matmul %167, %274, %cst_233 {dimension_numbers = #tpu.dot_dimension_numbers<[1], [0], [0], [1], [0, 0, 1, 1], [], []>} : vector<128x32xf32>, vector<32x2xf32>, vector<128x2xf32> -> vector<128x2xf32>
    %311 = arith.addf %309, %310 : vector<128x2xf32>
    %312 = vector.extract_strided_slice %311 {offsets = [0, 0], sizes = [32, 2], strides = [1, 1]} : vector<128x2xf32> to vector<32x2xf32>
    %cst_234 = arith.constant 0.000000e+00 : f32
    %313 = vector.broadcast %cst_234 : f32 to vector<32x2xf32>
    %314 = arith.subf %313, %312 : vector<32x2xf32>
    %315 = math.exp %314 : vector<32x2xf32>
    %cst_235 = arith.constant 1.000000e+00 : f32
    %316 = vector.broadcast %cst_235 : f32 to vector<32x2xf32>
    %317 = arith.addf %316, %315 : vector<32x2xf32>
    %cst_236 = arith.constant 1.000000e+00 : f32
    %318 = vector.broadcast %cst_236 : f32 to vector<32x2xf32>
    %319 = arith.divf %318, %317 : vector<32x2xf32>
    %320 = vector.extract_strided_slice %311 {offsets = [32, 0], sizes = [32, 2], strides = [1, 1]} : vector<128x2xf32> to vector<32x2xf32>
    %cst_237 = arith.constant 0.000000e+00 : f32
    %321 = vector.broadcast %cst_237 : f32 to vector<32x2xf32>
    %322 = arith.subf %321, %320 : vector<32x2xf32>
    %323 = math.exp %322 : vector<32x2xf32>
    %cst_238 = arith.constant 1.000000e+00 : f32
    %324 = vector.broadcast %cst_238 : f32 to vector<32x2xf32>
    %325 = arith.addf %324, %323 : vector<32x2xf32>
    %cst_239 = arith.constant 1.000000e+00 : f32
    %326 = vector.broadcast %cst_239 : f32 to vector<32x2xf32>
    %327 = arith.divf %326, %325 : vector<32x2xf32>
    %328 = vector.extract_strided_slice %311 {offsets = [64, 0], sizes = [32, 2], strides = [1, 1]} : vector<128x2xf32> to vector<32x2xf32>
    %329 = math.tanh %328 : vector<32x2xf32>
    %330 = vector.extract_strided_slice %311 {offsets = [96, 0], sizes = [32, 2], strides = [1, 1]} : vector<128x2xf32> to vector<32x2xf32>
    %cst_240 = arith.constant 0.000000e+00 : f32
    %331 = vector.broadcast %cst_240 : f32 to vector<32x2xf32>
    %332 = arith.subf %331, %330 : vector<32x2xf32>
    %333 = math.exp %332 : vector<32x2xf32>
    %cst_241 = arith.constant 1.000000e+00 : f32
    %334 = vector.broadcast %cst_241 : f32 to vector<32x2xf32>
    %335 = arith.addf %334, %333 : vector<32x2xf32>
    %cst_242 = arith.constant 1.000000e+00 : f32
    %336 = vector.broadcast %cst_242 : f32 to vector<32x2xf32>
    %337 = arith.divf %336, %335 : vector<32x2xf32>
    %338 = arith.mulf %327, %272 : vector<32x2xf32>
    %339 = arith.mulf %319, %329 : vector<32x2xf32>
    %340 = arith.addf %338, %339 : vector<32x2xf32>
    %341 = math.tanh %340 : vector<32x2xf32>
    %342 = arith.mulf %337, %341 : vector<32x2xf32>
    %c0_243 = arith.constant 0 : index
    %c4_244 = arith.constant 4 : index
    %343 = vector.load %arg30[%c0_243, %c4_244] : memref<128x16xf32, #tpu.memory_space<vmem>>, vector<128x2xf32>
    %cst_245 = arith.constant dense<0.000000e+00> : vector<128x2xf32>
    %344 = tpu.matmul %168, %308, %cst_245 {dimension_numbers = #tpu.dot_dimension_numbers<[1], [0], [0], [1], [0, 0, 1, 1], [], []>} : vector<128x32xf32>, vector<32x2xf32>, vector<128x2xf32> -> vector<128x2xf32>
    %345 = arith.addf %343, %344 : vector<128x2xf32>
    %346 = vector.extract_strided_slice %345 {offsets = [0, 0], sizes = [32, 2], strides = [1, 1]} : vector<128x2xf32> to vector<32x2xf32>
    %cst_246 = arith.constant 0.000000e+00 : f32
    %347 = vector.broadcast %cst_246 : f32 to vector<32x2xf32>
    %348 = arith.subf %347, %346 : vector<32x2xf32>
    %349 = math.exp %348 : vector<32x2xf32>
    %cst_247 = arith.constant 1.000000e+00 : f32
    %350 = vector.broadcast %cst_247 : f32 to vector<32x2xf32>
    %351 = arith.addf %350, %349 : vector<32x2xf32>
    %cst_248 = arith.constant 1.000000e+00 : f32
    %352 = vector.broadcast %cst_248 : f32 to vector<32x2xf32>
    %353 = arith.divf %352, %351 : vector<32x2xf32>
    %354 = vector.extract_strided_slice %345 {offsets = [32, 0], sizes = [32, 2], strides = [1, 1]} : vector<128x2xf32> to vector<32x2xf32>
    %cst_249 = arith.constant 0.000000e+00 : f32
    %355 = vector.broadcast %cst_249 : f32 to vector<32x2xf32>
    %356 = arith.subf %355, %354 : vector<32x2xf32>
    %357 = math.exp %356 : vector<32x2xf32>
    %cst_250 = arith.constant 1.000000e+00 : f32
    %358 = vector.broadcast %cst_250 : f32 to vector<32x2xf32>
    %359 = arith.addf %358, %357 : vector<32x2xf32>
    %cst_251 = arith.constant 1.000000e+00 : f32
    %360 = vector.broadcast %cst_251 : f32 to vector<32x2xf32>
    %361 = arith.divf %360, %359 : vector<32x2xf32>
    %362 = vector.extract_strided_slice %345 {offsets = [64, 0], sizes = [32, 2], strides = [1, 1]} : vector<128x2xf32> to vector<32x2xf32>
    %363 = math.tanh %362 : vector<32x2xf32>
    %364 = vector.extract_strided_slice %345 {offsets = [96, 0], sizes = [32, 2], strides = [1, 1]} : vector<128x2xf32> to vector<32x2xf32>
    %cst_252 = arith.constant 0.000000e+00 : f32
    %365 = vector.broadcast %cst_252 : f32 to vector<32x2xf32>
    %366 = arith.subf %365, %364 : vector<32x2xf32>
    %367 = math.exp %366 : vector<32x2xf32>
    %cst_253 = arith.constant 1.000000e+00 : f32
    %368 = vector.broadcast %cst_253 : f32 to vector<32x2xf32>
    %369 = arith.addf %368, %367 : vector<32x2xf32>
    %cst_254 = arith.constant 1.000000e+00 : f32
    %370 = vector.broadcast %cst_254 : f32 to vector<32x2xf32>
    %371 = arith.divf %370, %369 : vector<32x2xf32>
    %372 = arith.mulf %361, %306 : vector<32x2xf32>
    %373 = arith.mulf %353, %363 : vector<32x2xf32>
    %374 = arith.addf %372, %373 : vector<32x2xf32>
    %375 = math.tanh %374 : vector<32x2xf32>
    %376 = arith.mulf %371, %375 : vector<32x2xf32>
    %c0_255 = arith.constant 0 : index
    %c6_256 = arith.constant 6 : index
    %377 = vector.load %arg29[%c0_255, %c6_256] : memref<128x16xf32, #tpu.memory_space<vmem>>, vector<128x2xf32>
    %cst_257 = arith.constant dense<0.000000e+00> : vector<128x2xf32>
    %378 = tpu.matmul %167, %342, %cst_257 {dimension_numbers = #tpu.dot_dimension_numbers<[1], [0], [0], [1], [0, 0, 1, 1], [], []>} : vector<128x32xf32>, vector<32x2xf32>, vector<128x2xf32> -> vector<128x2xf32>
    %379 = arith.addf %377, %378 : vector<128x2xf32>
    %380 = vector.extract_strided_slice %379 {offsets = [0, 0], sizes = [32, 2], strides = [1, 1]} : vector<128x2xf32> to vector<32x2xf32>
    %cst_258 = arith.constant 0.000000e+00 : f32
    %381 = vector.broadcast %cst_258 : f32 to vector<32x2xf32>
    %382 = arith.subf %381, %380 : vector<32x2xf32>
    %383 = math.exp %382 : vector<32x2xf32>
    %cst_259 = arith.constant 1.000000e+00 : f32
    %384 = vector.broadcast %cst_259 : f32 to vector<32x2xf32>
    %385 = arith.addf %384, %383 : vector<32x2xf32>
    %cst_260 = arith.constant 1.000000e+00 : f32
    %386 = vector.broadcast %cst_260 : f32 to vector<32x2xf32>
    %387 = arith.divf %386, %385 : vector<32x2xf32>
    %388 = vector.extract_strided_slice %379 {offsets = [32, 0], sizes = [32, 2], strides = [1, 1]} : vector<128x2xf32> to vector<32x2xf32>
    %cst_261 = arith.constant 0.000000e+00 : f32
    %389 = vector.broadcast %cst_261 : f32 to vector<32x2xf32>
    %390 = arith.subf %389, %388 : vector<32x2xf32>
    %391 = math.exp %390 : vector<32x2xf32>
    %cst_262 = arith.constant 1.000000e+00 : f32
    %392 = vector.broadcast %cst_262 : f32 to vector<32x2xf32>
    %393 = arith.addf %392, %391 : vector<32x2xf32>
    %cst_263 = arith.constant 1.000000e+00 : f32
    %394 = vector.broadcast %cst_263 : f32 to vector<32x2xf32>
    %395 = arith.divf %394, %393 : vector<32x2xf32>
    %396 = vector.extract_strided_slice %379 {offsets = [64, 0], sizes = [32, 2], strides = [1, 1]} : vector<128x2xf32> to vector<32x2xf32>
    %397 = math.tanh %396 : vector<32x2xf32>
    %398 = vector.extract_strided_slice %379 {offsets = [96, 0], sizes = [32, 2], strides = [1, 1]} : vector<128x2xf32> to vector<32x2xf32>
    %cst_264 = arith.constant 0.000000e+00 : f32
    %399 = vector.broadcast %cst_264 : f32 to vector<32x2xf32>
    %400 = arith.subf %399, %398 : vector<32x2xf32>
    %401 = math.exp %400 : vector<32x2xf32>
    %cst_265 = arith.constant 1.000000e+00 : f32
    %402 = vector.broadcast %cst_265 : f32 to vector<32x2xf32>
    %403 = arith.addf %402, %401 : vector<32x2xf32>
    %cst_266 = arith.constant 1.000000e+00 : f32
    %404 = vector.broadcast %cst_266 : f32 to vector<32x2xf32>
    %405 = arith.divf %404, %403 : vector<32x2xf32>
    %406 = arith.mulf %395, %340 : vector<32x2xf32>
    %407 = arith.mulf %387, %397 : vector<32x2xf32>
    %408 = arith.addf %406, %407 : vector<32x2xf32>
    %409 = math.tanh %408 : vector<32x2xf32>
    %410 = arith.mulf %405, %409 : vector<32x2xf32>
    %c0_267 = arith.constant 0 : index
    %c2_268 = arith.constant 2 : index
    %411 = vector.load %arg30[%c0_267, %c2_268] : memref<128x16xf32, #tpu.memory_space<vmem>>, vector<128x2xf32>
    %cst_269 = arith.constant dense<0.000000e+00> : vector<128x2xf32>
    %412 = tpu.matmul %168, %376, %cst_269 {dimension_numbers = #tpu.dot_dimension_numbers<[1], [0], [0], [1], [0, 0, 1, 1], [], []>} : vector<128x32xf32>, vector<32x2xf32>, vector<128x2xf32> -> vector<128x2xf32>
    %413 = arith.addf %411, %412 : vector<128x2xf32>
    %414 = vector.extract_strided_slice %413 {offsets = [0, 0], sizes = [32, 2], strides = [1, 1]} : vector<128x2xf32> to vector<32x2xf32>
    %cst_270 = arith.constant 0.000000e+00 : f32
    %415 = vector.broadcast %cst_270 : f32 to vector<32x2xf32>
    %416 = arith.subf %415, %414 : vector<32x2xf32>
    %417 = math.exp %416 : vector<32x2xf32>
    %cst_271 = arith.constant 1.000000e+00 : f32
    %418 = vector.broadcast %cst_271 : f32 to vector<32x2xf32>
    %419 = arith.addf %418, %417 : vector<32x2xf32>
    %cst_272 = arith.constant 1.000000e+00 : f32
    %420 = vector.broadcast %cst_272 : f32 to vector<32x2xf32>
    %421 = arith.divf %420, %419 : vector<32x2xf32>
    %422 = vector.extract_strided_slice %413 {offsets = [32, 0], sizes = [32, 2], strides = [1, 1]} : vector<128x2xf32> to vector<32x2xf32>
    %cst_273 = arith.constant 0.000000e+00 : f32
    %423 = vector.broadcast %cst_273 : f32 to vector<32x2xf32>
    %424 = arith.subf %423, %422 : vector<32x2xf32>
    %425 = math.exp %424 : vector<32x2xf32>
    %cst_274 = arith.constant 1.000000e+00 : f32
    %426 = vector.broadcast %cst_274 : f32 to vector<32x2xf32>
    %427 = arith.addf %426, %425 : vector<32x2xf32>
    %cst_275 = arith.constant 1.000000e+00 : f32
    %428 = vector.broadcast %cst_275 : f32 to vector<32x2xf32>
    %429 = arith.divf %428, %427 : vector<32x2xf32>
    %430 = vector.extract_strided_slice %413 {offsets = [64, 0], sizes = [32, 2], strides = [1, 1]} : vector<128x2xf32> to vector<32x2xf32>
    %431 = math.tanh %430 : vector<32x2xf32>
    %432 = vector.extract_strided_slice %413 {offsets = [96, 0], sizes = [32, 2], strides = [1, 1]} : vector<128x2xf32> to vector<32x2xf32>
    %cst_276 = arith.constant 0.000000e+00 : f32
    %433 = vector.broadcast %cst_276 : f32 to vector<32x2xf32>
    %434 = arith.subf %433, %432 : vector<32x2xf32>
    %435 = math.exp %434 : vector<32x2xf32>
    %cst_277 = arith.constant 1.000000e+00 : f32
    %436 = vector.broadcast %cst_277 : f32 to vector<32x2xf32>
    %437 = arith.addf %436, %435 : vector<32x2xf32>
    %cst_278 = arith.constant 1.000000e+00 : f32
    %438 = vector.broadcast %cst_278 : f32 to vector<32x2xf32>
    %439 = arith.divf %438, %437 : vector<32x2xf32>
    %440 = arith.mulf %429, %374 : vector<32x2xf32>
    %441 = arith.mulf %421, %431 : vector<32x2xf32>
    %442 = arith.addf %440, %441 : vector<32x2xf32>
    %443 = math.tanh %442 : vector<32x2xf32>
    %444 = arith.mulf %439, %443 : vector<32x2xf32>
    %c0_279 = arith.constant 0 : index
    %c8_280 = arith.constant 8 : index
    %445 = vector.load %arg29[%c0_279, %c8_280] : memref<128x16xf32, #tpu.memory_space<vmem>>, vector<128x2xf32>
    %cst_281 = arith.constant dense<0.000000e+00> : vector<128x2xf32>
    %446 = tpu.matmul %167, %410, %cst_281 {dimension_numbers = #tpu.dot_dimension_numbers<[1], [0], [0], [1], [0, 0, 1, 1], [], []>} : vector<128x32xf32>, vector<32x2xf32>, vector<128x2xf32> -> vector<128x2xf32>
    %447 = arith.addf %445, %446 : vector<128x2xf32>
    %448 = vector.extract_strided_slice %447 {offsets = [0, 0], sizes = [32, 2], strides = [1, 1]} : vector<128x2xf32> to vector<32x2xf32>
    %cst_282 = arith.constant 0.000000e+00 : f32
    %449 = vector.broadcast %cst_282 : f32 to vector<32x2xf32>
    %450 = arith.subf %449, %448 : vector<32x2xf32>
    %451 = math.exp %450 : vector<32x2xf32>
    %cst_283 = arith.constant 1.000000e+00 : f32
    %452 = vector.broadcast %cst_283 : f32 to vector<32x2xf32>
    %453 = arith.addf %452, %451 : vector<32x2xf32>
    %cst_284 = arith.constant 1.000000e+00 : f32
    %454 = vector.broadcast %cst_284 : f32 to vector<32x2xf32>
    %455 = arith.divf %454, %453 : vector<32x2xf32>
    %456 = vector.extract_strided_slice %447 {offsets = [32, 0], sizes = [32, 2], strides = [1, 1]} : vector<128x2xf32> to vector<32x2xf32>
    %cst_285 = arith.constant 0.000000e+00 : f32
    %457 = vector.broadcast %cst_285 : f32 to vector<32x2xf32>
    %458 = arith.subf %457, %456 : vector<32x2xf32>
    %459 = math.exp %458 : vector<32x2xf32>
    %cst_286 = arith.constant 1.000000e+00 : f32
    %460 = vector.broadcast %cst_286 : f32 to vector<32x2xf32>
    %461 = arith.addf %460, %459 : vector<32x2xf32>
    %cst_287 = arith.constant 1.000000e+00 : f32
    %462 = vector.broadcast %cst_287 : f32 to vector<32x2xf32>
    %463 = arith.divf %462, %461 : vector<32x2xf32>
    %464 = vector.extract_strided_slice %447 {offsets = [64, 0], sizes = [32, 2], strides = [1, 1]} : vector<128x2xf32> to vector<32x2xf32>
    %465 = math.tanh %464 : vector<32x2xf32>
    %466 = vector.extract_strided_slice %447 {offsets = [96, 0], sizes = [32, 2], strides = [1, 1]} : vector<128x2xf32> to vector<32x2xf32>
    %cst_288 = arith.constant 0.000000e+00 : f32
    %467 = vector.broadcast %cst_288 : f32 to vector<32x2xf32>
    %468 = arith.subf %467, %466 : vector<32x2xf32>
    %469 = math.exp %468 : vector<32x2xf32>
    %cst_289 = arith.constant 1.000000e+00 : f32
    %470 = vector.broadcast %cst_289 : f32 to vector<32x2xf32>
    %471 = arith.addf %470, %469 : vector<32x2xf32>
    %cst_290 = arith.constant 1.000000e+00 : f32
    %472 = vector.broadcast %cst_290 : f32 to vector<32x2xf32>
    %473 = arith.divf %472, %471 : vector<32x2xf32>
    %474 = arith.mulf %463, %408 : vector<32x2xf32>
    %475 = arith.mulf %455, %465 : vector<32x2xf32>
    %476 = arith.addf %474, %475 : vector<32x2xf32>
    %477 = math.tanh %476 : vector<32x2xf32>
    %478 = arith.mulf %473, %477 : vector<32x2xf32>
    %c0_291 = arith.constant 0 : index
    %c0_292 = arith.constant 0 : index
    %479 = vector.load %arg30[%c0_291, %c0_292] : memref<128x16xf32, #tpu.memory_space<vmem>>, vector<128x2xf32>
    %cst_293 = arith.constant dense<0.000000e+00> : vector<128x2xf32>
    %480 = tpu.matmul %168, %444, %cst_293 {dimension_numbers = #tpu.dot_dimension_numbers<[1], [0], [0], [1], [0, 0, 1, 1], [], []>} : vector<128x32xf32>, vector<32x2xf32>, vector<128x2xf32> -> vector<128x2xf32>
    %481 = arith.addf %479, %480 : vector<128x2xf32>
    %482 = vector.extract_strided_slice %481 {offsets = [0, 0], sizes = [32, 2], strides = [1, 1]} : vector<128x2xf32> to vector<32x2xf32>
    %cst_294 = arith.constant 0.000000e+00 : f32
    %483 = vector.broadcast %cst_294 : f32 to vector<32x2xf32>
    %484 = arith.subf %483, %482 : vector<32x2xf32>
    %485 = math.exp %484 : vector<32x2xf32>
    %cst_295 = arith.constant 1.000000e+00 : f32
    %486 = vector.broadcast %cst_295 : f32 to vector<32x2xf32>
    %487 = arith.addf %486, %485 : vector<32x2xf32>
    %cst_296 = arith.constant 1.000000e+00 : f32
    %488 = vector.broadcast %cst_296 : f32 to vector<32x2xf32>
    %489 = arith.divf %488, %487 : vector<32x2xf32>
    %490 = vector.extract_strided_slice %481 {offsets = [32, 0], sizes = [32, 2], strides = [1, 1]} : vector<128x2xf32> to vector<32x2xf32>
    %cst_297 = arith.constant 0.000000e+00 : f32
    %491 = vector.broadcast %cst_297 : f32 to vector<32x2xf32>
    %492 = arith.subf %491, %490 : vector<32x2xf32>
    %493 = math.exp %492 : vector<32x2xf32>
    %cst_298 = arith.constant 1.000000e+00 : f32
    %494 = vector.broadcast %cst_298 : f32 to vector<32x2xf32>
    %495 = arith.addf %494, %493 : vector<32x2xf32>
    %cst_299 = arith.constant 1.000000e+00 : f32
    %496 = vector.broadcast %cst_299 : f32 to vector<32x2xf32>
    %497 = arith.divf %496, %495 : vector<32x2xf32>
    %498 = vector.extract_strided_slice %481 {offsets = [64, 0], sizes = [32, 2], strides = [1, 1]} : vector<128x2xf32> to vector<32x2xf32>
    %499 = math.tanh %498 : vector<32x2xf32>
    %500 = vector.extract_strided_slice %481 {offsets = [96, 0], sizes = [32, 2], strides = [1, 1]} : vector<128x2xf32> to vector<32x2xf32>
    %cst_300 = arith.constant 0.000000e+00 : f32
    %501 = vector.broadcast %cst_300 : f32 to vector<32x2xf32>
    %502 = arith.subf %501, %500 : vector<32x2xf32>
    %503 = math.exp %502 : vector<32x2xf32>
    %cst_301 = arith.constant 1.000000e+00 : f32
    %504 = vector.broadcast %cst_301 : f32 to vector<32x2xf32>
    %505 = arith.addf %504, %503 : vector<32x2xf32>
    %cst_302 = arith.constant 1.000000e+00 : f32
    %506 = vector.broadcast %cst_302 : f32 to vector<32x2xf32>
    %507 = arith.divf %506, %505 : vector<32x2xf32>
    %508 = arith.mulf %497, %442 : vector<32x2xf32>
    %509 = arith.mulf %489, %499 : vector<32x2xf32>
    %510 = arith.addf %508, %509 : vector<32x2xf32>
    %511 = math.tanh %510 : vector<32x2xf32>
    %512 = arith.mulf %507, %511 : vector<32x2xf32>
    %513 = tpu.concatenate %478, %512 in 0 : vector<32x2xf32>, vector<32x2xf32> -> vector<64x2xf32>
    %c0_303 = arith.constant 0 : index
    %c0_304 = arith.constant 0 : index
    %514 = vector.load %arg20[%c0_303, %c0_304] : memref<32x64xf32, #tpu.memory_space<vmem>>, vector<32x64xf32>
    %cst_305 = arith.constant dense<0.000000e+00> : vector<32x2xf32>
    %515 = tpu.matmul %514, %513, %cst_305 {dimension_numbers = #tpu.dot_dimension_numbers<[1], [0], [0], [1], [0, 0, 1, 1], [], []>} : vector<32x64xf32>, vector<64x2xf32>, vector<32x2xf32> -> vector<32x2xf32>
    %c0_306 = arith.constant 0 : index
    %c0_307 = arith.constant 0 : index
    %516 = vector.load %arg21[%c0_306, %c0_307] : memref<32x1xf32, #tpu.memory_space<vmem>>, vector<32x1xf32>
    %517 = vector.broadcast %516 : vector<32x1xf32> to vector<32x2xf32>
    %518 = arith.addf %515, %517 : vector<32x2xf32>
    %cst_308 = arith.constant 0.000000e+00 : f32
    %519 = vector.broadcast %cst_308 : f32 to vector<32x2xf32>
    %520 = arith.maximumf %518, %519 : vector<32x2xf32>
    %c0_309 = arith.constant 0 : index
    %c0_310 = arith.constant 0 : index
    %521 = vector.load %arg22[%c0_309, %c0_310] : memref<4x32xf32, #tpu.memory_space<vmem>>, vector<4x32xf32>
    %cst_311 = arith.constant dense<0.000000e+00> : vector<4x2xf32>
    %522 = tpu.matmul %521, %520, %cst_311 {dimension_numbers = #tpu.dot_dimension_numbers<[1], [0], [0], [1], [0, 0, 1, 1], [], []>} : vector<4x32xf32>, vector<32x2xf32>, vector<4x2xf32> -> vector<4x2xf32>
    %c0_312 = arith.constant 0 : index
    %c0_313 = arith.constant 0 : index
    %523 = vector.load %arg23[%c0_312, %c0_313] : memref<4x1xf32, #tpu.memory_space<vmem>>, vector<4x1xf32>
    %524 = vector.broadcast %523 : vector<4x1xf32> to vector<4x2xf32>
    %525 = arith.addf %522, %524 : vector<4x2xf32>
    %c0_314 = arith.constant 0 : index
    %c0_315 = arith.constant 0 : index
    %526 = vector.load %arg24[%c0_314, %c0_315] : memref<4x2xf32, #tpu.memory_space<vmem>>, vector<4x2xf32>
    tpu.vector_store %arg24[%c0_314, %c0_315], %525 {strides = array<i32>} : memref<4x2xf32, #tpu.memory_space<vmem>>, vector<4x2xf32>,
    return
  }
  func.func @transform_0(%arg0: i32) -> (i32, i32) {
    %c0_i32 = arith.constant 0 : i32
    %c0_i32_0 = arith.constant 0 : i32
    %c0_i32_1 = arith.constant 0 : i32
    return %c0_i32, %c0_i32_0 : i32, i32
  }
  func.func @transform_1(%arg0: i32) -> (i32, i32, i32) {
    %c0_i32 = arith.constant 0 : i32
    %c0_i32_0 = arith.constant 0 : i32
    %c0_i32_1 = arith.constant 0 : i32
    %c0_i32_2 = arith.constant 0 : i32
    return %c0_i32, %c0_i32_0, %c0_i32_1 : i32, i32, i32
  }
  func.func @transform_2(%arg0: i32) -> (i32, i32) {
    %c0_i32 = arith.constant 0 : i32
    %c0_i32_0 = arith.constant 0 : i32
    %c0_i32_1 = arith.constant 0 : i32
    return %c0_i32, %c0_i32_0 : i32, i32
  }
  func.func @transform_3(%arg0: i32) -> (i32, i32) {
    %c0_i32 = arith.constant 0 : i32
    %c0_i32_0 = arith.constant 0 : i32
    %c0_i32_1 = arith.constant 0 : i32
    return %c0_i32, %c0_i32_0 : i32, i32
  }
  func.func @transform_4(%arg0: i32) -> (i32, i32) {
    %c0_i32 = arith.constant 0 : i32
    %c0_i32_0 = arith.constant 0 : i32
    %c0_i32_1 = arith.constant 0 : i32
    return %c0_i32, %c0_i32_0 : i32, i32
  }
  func.func @transform_5(%arg0: i32) -> (i32, i32, i32) {
    %c0_i32 = arith.constant 0 : i32
    %c0_i32_0 = arith.constant 0 : i32
    %c0_i32_1 = arith.constant 0 : i32
    %c0_i32_2 = arith.constant 0 : i32
    return %c0_i32, %c0_i32_0, %c0_i32_1 : i32, i32, i32
  }
  func.func @transform_6(%arg0: i32) -> (i32, i32) {
    %c0_i32 = arith.constant 0 : i32
    %c0_i32_0 = arith.constant 0 : i32
    %c0_i32_1 = arith.constant 0 : i32
    return %c0_i32, %c0_i32_0 : i32, i32
  }
  func.func @transform_7(%arg0: i32) -> (i32, i32) {
    %c0_i32 = arith.constant 0 : i32
    %c0_i32_0 = arith.constant 0 : i32
    %c0_i32_1 = arith.constant 0 : i32
    return %c0_i32, %c0_i32_0 : i32, i32
  }
  func.func @transform_8(%arg0: i32) -> (i32, i32) {
    %c0_i32 = arith.constant 0 : i32
    %c0_i32_0 = arith.constant 0 : i32
    %c0_i32_1 = arith.constant 0 : i32
    return %c0_i32, %c0_i32_0 : i32, i32
  }
  func.func @transform_9(%arg0: i32) -> (i32, i32, i32) {
    %c0_i32 = arith.constant 0 : i32
    %c0_i32_0 = arith.constant 0 : i32
    %c0_i32_1 = arith.constant 0 : i32
    %c0_i32_2 = arith.constant 0 : i32
    return %c0_i32, %c0_i32_0, %c0_i32_1 : i32, i32, i32
  }
  func.func @transform_10(%arg0: i32) -> (i32, i32) {
    %c0_i32 = arith.constant 0 : i32
    %c0_i32_0 = arith.constant 0 : i32
    %c0_i32_1 = arith.constant 0 : i32
    return %c0_i32, %c0_i32_0 : i32, i32
  }
  func.func @transform_11(%arg0: i32) -> (i32, i32) {
    %c0_i32 = arith.constant 0 : i32
    %c0_i32_0 = arith.constant 0 : i32
    %c0_i32_1 = arith.constant 0 : i32
    return %c0_i32, %c0_i32_0 : i32, i32
  }
  func.func @transform_12(%arg0: i32) -> (i32, i32) {
    %c0_i32 = arith.constant 0 : i32
    %c0_i32_0 = arith.constant 0 : i32
    %c0_i32_1 = arith.constant 0 : i32
    return %c0_i32, %c0_i32_0 : i32, i32
  }
  func.func @transform_13(%arg0: i32) -> (i32, i32) {
    %c0_i32 = arith.constant 0 : i32
    %c0_i32_0 = arith.constant 0 : i32
    %c0_i32_1 = arith.constant 0 : i32
    return %c0_i32, %c0_i32_0 : i32, i32
  }
  func.func @transform_14(%arg0: i32) -> (i32, i32) {
    %c0_i32 = arith.constant 0 : i32
    %c0_i32_0 = arith.constant 0 : i32
    %c0_i32_1 = arith.constant 0 : i32
    return %c0_i32, %c0_i32_0 : i32, i32
  }
  func.func @transform_15(%arg0: i32) -> (i32, i32) {
    %c0_i32 = arith.constant 0 : i32
    %c0_i32_0 = arith.constant 0 : i32
    %c0_i32_1 = arith.constant 0 : i32
    return %c0_i32, %c0_i32_0 : i32, i32
  }
  func.func @transform_16(%arg0: i32) -> (i32, i32) {
    %c0_i32 = arith.constant 0 : i32
    %c0_i32_0 = arith.constant 0 : i32
    %c0_i32_1 = arith.constant 0 : i32
    return %c0_i32, %c0_i32_0 : i32, i32
  }
  func.func @transform_17(%arg0: i32) -> (i32, i32) {
    %c0_i32 = arith.constant 0 : i32
    %c0_i32_0 = arith.constant 0 : i32
    %c0_i32_1 = arith.constant 0 : i32
    return %c0_i32, %c0_i32_0 : i32, i32
  }
  func.func @transform_18(%arg0: i32) -> (i32, i32) {
    %c0_i32 = arith.constant 0 : i32
    %c0_i32_0 = arith.constant 0 : i32
    %c0_i32_1 = arith.constant 0 : i32
    return %c0_i32, %c0_i32_0 : i32, i32
  }
  func.func @transform_19(%arg0: i32) -> (i32, i32) {
    %c0_i32 = arith.constant 0 : i32
    %c0_i32_0 = arith.constant 0 : i32
    %c0_i32_1 = arith.constant 0 : i32
    return %c0_i32, %c0_i32_0 : i32, i32
  }
  func.func @transform_20(%arg0: i32) -> (i32, i32) {
    %c0_i32 = arith.constant 0 : i32
    %c0_i32_0 = arith.constant 0 : i32
    %c0_i32_1 = arith.constant 0 : i32
    return %c0_i32, %c0_i32_0 : i32, i32
  }
  func.func @transform_21(%arg0: i32) -> (i32, i32) {
    %c0_i32 = arith.constant 0 : i32
    %c0_i32_0 = arith.constant 0 : i32
    %c0_i32_1 = arith.constant 0 : i32
    return %c0_i32, %c0_i32_0 : i32, i32
  }
  func.func @transform_22(%arg0: i32) -> (i32, i32) {
    %c0_i32 = arith.constant 0 : i32
    %c0_i32_0 = arith.constant 0 : i32
    %c0_i32_1 = arith.constant 0 : i32
    return %c0_i32, %c0_i32_0 : i32, i32
  }
  func.func @transform_23(%arg0: i32) -> (i32, i32) {
    %c0_i32 = arith.constant 0 : i32
    %c0_i32_0 = arith.constant 0 : i32
    %c0_i32_1 = arith.constant 0 : i32
    return %c0_i32, %c0_i32_0 : i32, i32
  }
}

</mosaic_0001>

<llo_original>
// kernel: fwd.1
$region0: #{fwd.1}
  #allocation0 [shape = 'u32[]', space=smem, size = 0x4, offset = 0x4, fixed_abs, tag = 'smem constant byte address 0x4 - core index']
  #allocation1 [shape = 'u32[144,128]{1,0:T(1,128)}', space=vmem, size = 0x12000, scoped, tag = 'internal scratch']
  #allocation2 [shape = 'f32[8,1152]{1,0:T(8,128)}', space=vmem, size = 0x9000, scoped, tag = 'scratch operand']
  #allocation3 [shape = 'f32[8,384]{1,0:T(8,128)}', space=vmem, size = 0x3000, scoped, tag = 'scratch operand']
  #allocation4 [shape = 'f32[16,256]{1,0:T(8,128)}', space=vmem, size = 0x4000, scoped, tag = 'scratch operand']
  #allocation5 [shape = 'f32[16,256]{1,0:T(8,128)}', space=vmem, size = 0x4000, scoped, tag = 'scratch operand']
  #allocation6 [shape = 'f32[128,16]{1,0:T(8,128)}', space=vmem, size = 0x10000, scoped, tag = 'scratch operand']
  #allocation7 [shape = 'f32[128,16]{1,0:T(8,128)}', space=vmem, size = 0x10000, scoped, tag = 'scratch operand']
  %s0 = inlined_call_operand.vmem [shape: f32[8,1280], index: 0, kind: input, shape index: {}]
  %s1 = inlined_call_operand.vmem [shape: f32[9,8,8], index: 1, kind: input, shape index: {}]
  %s2 = inlined_call_operand.vmem [shape: f32[8,1], index: 2, kind: input, shape index: {}]
  %s3 = inlined_call_operand.vmem [shape: f32[8,1], index: 3, kind: input, shape index: {}]
  %s4 = inlined_call_operand.hbm [shape: f32[1024,384], index: 4, kind: input, shape index: {}]
  %s5 = inlined_call_operand.vmem [shape: f32[9,16,8], index: 5, kind: input, shape index: {}]
  %s6 = inlined_call_operand.vmem [shape: f32[16,1], index: 6, kind: input, shape index: {}]
  %s7 = inlined_call_operand.vmem [shape: f32[16,1], index: 7, kind: input, shape index: {}]
  %s8 = inlined_call_operand.hbm [shape: f32[210,256], index: 8, kind: input, shape index: {}]
  %s9 = inlined_call_operand.vmem [shape: f32[4,32,16], index: 9, kind: input, shape index: {}]
  %s10 = inlined_call_operand.vmem [shape: f32[32,1], index: 10, kind: input, shape index: {}]
  %s11 = inlined_call_operand.vmem [shape: f32[32,1], index: 11, kind: input, shape index: {}]
  %s12 = inlined_call_operand.vmem [shape: f32[128,16], index: 12, kind: input, shape index: {}]
  %s13 = inlined_call_operand.vmem [shape: f32[128,32], index: 13, kind: input, shape index: {}]
  %s14 = inlined_call_operand.vmem [shape: f32[128,32], index: 14, kind: input, shape index: {}]
  %s15 = inlined_call_operand.vmem [shape: f32[128,1], index: 15, kind: input, shape index: {}]
  %s16 = inlined_call_operand.vmem [shape: f32[128,32], index: 16, kind: input, shape index: {}]
  %s17 = inlined_call_operand.vmem [shape: f32[128,32], index: 17, kind: input, shape index: {}]
  %s18 = inlined_call_operand.vmem [shape: f32[128,1], index: 18, kind: input, shape index: {}]
  %s19 = inlined_call_operand.hbm [shape: f32[32,64], index: 19, kind: input, shape index: {}]
  %s20 = inlined_call_operand.vmem [shape: f32[32,1], index: 20, kind: input, shape index: {}]
  %s21 = inlined_call_operand.hbm [shape: f32[4,32], index: 21, kind: input, shape index: {}]
  %s22 = inlined_call_operand.vmem [shape: f32[4,1], index: 22, kind: input, shape index: {}]
  %s23 = inlined_call_operand.vmem [shape: f32[4,2], index: 23, kind: output, shape index: {}]
  %s24 = sld [smem:[#allocation0]]
  $region118: #{fwd.1} parent=0
    _
  %s26 = ssub.s32 1, %s24
  %s27 = scalar_select 0, %s26, %s24
  $region1: #{fwd.1} parent=0
    #allocation8 [shape = 'u8[1572864]{0}', space=vmem, size = 0x180000, scoped, tag = 'input window, operand 4, single buffered']
    #allocation9 [shape = 's32[1]{0}', space=sflag, size = 0x4, scoped, tag = 'scoped memory for fwd.1']
    #allocation10 [shape = 'u8[221184]{0}', space=vmem, size = 0x36000, scoped, tag = 'input window, operand 8, single buffered']
    #allocation11 [shape = 's32[1]{0}', space=sflag, size = 0x4, scoped, tag = 'scoped memory for fwd.1']
    #allocation12 [shape = 'u8[16384]{0}', space=vmem, size = 0x4000, scoped, tag = 'input window, operand 19, single buffered']
    #allocation13 [shape = 'u8[2048]{0}', space=vmem, size = 0x800, scoped, tag = 'input window, operand 21, single buffered']
    #allocation14 [shape = 's32[1]{0}', space=sflag, size = 0x4, scoped, tag = 'scoped memory for fwd.1']
    %28 = vsyncpa [#allocation9], 0
    %29 = vsyncpa [#allocation11], 0
    %30 = vsyncpa [#allocation14], 0
    // Predicated region
    $region2: #{fwd.1} parent=1 // pred_check
      _
    $region3: #{fwd.1} parent=1 // pred_check_branch
      %32 = sbr.rel (0) target = $region5
    $region4: #{fwd.1} parent=1 // pred_region
      _
    $region5: #{fwd.1} parent=1 // pred_fallthru
      _
    // Predicated region
    $region6: #{fwd.1} parent=1 // pred_check
      _
    $region7: #{fwd.1} parent=1 // pred_check_branch
      %34 = sbr.rel (0) target = $region9
    $region8: #{fwd.1} parent=1 // pred_region
      _
    $region9: #{fwd.1} parent=1 // pred_fallthru
      _
    // Predicated region
    $region10: #{fwd.1} parent=1 // pred_check
      _
    $region11: #{fwd.1} parent=1 // pred_check_branch
      %36 = sbr.rel (0) target = $region13
    $region12: #{fwd.1} parent=1 // pred_region
      _
    $region13: #{fwd.1} parent=1 // pred_fallthru
      _
    // Predicated region
    $region14: #{fwd.1} parent=1 // pred_check
      _
    $region15: #{fwd.1} parent=1 // pred_check_branch
      %38 = sbr.rel (0) target = $region17
    $region16: #{fwd.1} parent=1 // pred_region
      _
    $region17: #{fwd.1} parent=1 // pred_fallthru
      _
    // Predicated region
    $region18: #{fwd.1} parent=1 // pred_check
      _
    $region19: #{fwd.1} parent=1 // pred_check_branch
      %40 = sbr.rel (0) target = $region21
    $region20: #{fwd.1} parent=1 // pred_region
      %s42 = ssub.s32 49152, 49152
      %43 = vsyncadd [#allocation9], %s42
      %s44 = sshll.u32 [#allocation8], 4
      %s45 = int_to_ptr.vmem [resolvable:$true] %s44
      %50 = dma.hbm_to_vmem [thread:$0]  %s4, 49152, %s45, [#allocation9], 384, 384, 24
    $region21: #{fwd.1} parent=1 // pred_fallthru
      _
    // Predicated region
    $region22: #{fwd.1} parent=1 // pred_check
      _
    $region23: #{fwd.1} parent=1 // pred_check_branch
      %52 = sbr.rel (0) target = $region25
    $region24: #{fwd.1} parent=1 // pred_region
      _
    $region25: #{fwd.1} parent=1 // pred_fallthru
      _
    // Predicated region
    $region26: #{fwd.1} parent=1 // pred_check
      _
    $region27: #{fwd.1} parent=1 // pred_check_branch
      %54 = sbr.rel (0) target = $region29
    $region28: #{fwd.1} parent=1 // pred_region
      _
    $region29: #{fwd.1} parent=1 // pred_fallthru
      _
    // Predicated region
    $region30: #{fwd.1} parent=1 // pred_check
      _
    $region31: #{fwd.1} parent=1 // pred_check_branch
      %56 = sbr.rel (0) target = $region33
    $region32: #{fwd.1} parent=1 // pred_region
      _
    $region33: #{fwd.1} parent=1 // pred_fallthru
      _
    // Predicated region
    $region34: #{fwd.1} parent=1 // pred_check
      _
    $region35: #{fwd.1} parent=1 // pred_check_branch
      %58 = sbr.rel (0) target = $region37
    $region36: #{fwd.1} parent=1 // pred_region
      %s60 = ssub.s32 6912, 6912
      %61 = vsyncadd [#allocation11], %s60
      %s62 = sshll.u32 [#allocation10], 4
      %s63 = int_to_ptr.vmem [resolvable:$true] %s62
      %68 = dma.hbm_to_vmem [thread:$0]  %s8, 6912, %s63, [#allocation11], 256, 256, 16
    $region37: #{fwd.1} parent=1 // pred_fallthru
      _
    // Predicated region
    $region38: #{fwd.1} parent=1 // pred_check
      _
    $region39: #{fwd.1} parent=1 // pred_check_branch
      %70 = sbr.rel (0) target = $region41
    $region40: #{fwd.1} parent=1 // pred_region
      _
    $region41: #{fwd.1} parent=1 // pred_fallthru
      _
    // Predicated region
    $region42: #{fwd.1} parent=1 // pred_check
      _
    $region43: #{fwd.1} parent=1 // pred_check_branch
      %72 = sbr.rel (0) target = $region45
    $region44: #{fwd.1} parent=1 // pred_region
      _
    $region45: #{fwd.1} parent=1 // pred_fallthru
      _
    // Predicated region
    $region46: #{fwd.1} parent=1 // pred_check
      _
    $region47: #{fwd.1} parent=1 // pred_check_branch
      %74 = sbr.rel (0) target = $region49
    $region48: #{fwd.1} parent=1 // pred_region
      _
    $region49: #{fwd.1} parent=1 // pred_fallthru
      _
    // Predicated region
    $region50: #{fwd.1} parent=1 // pred_check
      _
    $region51: #{fwd.1} parent=1 // pred_check_branch
      %76 = sbr.rel (0) target = $region53
    $region52: #{fwd.1} parent=1 // pred_region
      _
    $region53: #{fwd.1} parent=1 // pred_fallthru
      _
    // Predicated region
    $region54: #{fwd.1} parent=1 // pred_check
      _
    $region55: #{fwd.1} parent=1 // pred_check_branch
      %78 = sbr.rel (0) target = $region57
    $region56: #{fwd.1} parent=1 // pred_region
      _
    $region57: #{fwd.1} parent=1 // pred_fallthru
      _
    // Predicated region
    $region58: #{fwd.1} parent=1 // pred_check
      _
    $region59: #{fwd.1} parent=1 // pred_check_branch
      %80 = sbr.rel (0) target = $region61
    $region60: #{fwd.1} parent=1 // pred_region
      _
    $region61: #{fwd.1} parent=1 // pred_fallthru
      _
    // Predicated region
    $region62: #{fwd.1} parent=1 // pred_check
      _
    $region63: #{fwd.1} parent=1 // pred_check_branch
      %82 = sbr.rel (0) target = $region65
    $region64: #{fwd.1} parent=1 // pred_region
      _
    $region65: #{fwd.1} parent=1 // pred_fallthru
      _
    // Predicated region
    $region66: #{fwd.1} parent=1 // pred_check
      _
    $region67: #{fwd.1} parent=1 // pred_check_branch
      %84 = sbr.rel (0) target = $region69
    $region68: #{fwd.1} parent=1 // pred_region
      _
    $region69: #{fwd.1} parent=1 // pred_fallthru
      _
    // Predicated region
    $region70: #{fwd.1} parent=1 // pred_check
      _
    $region71: #{fwd.1} parent=1 // pred_check_branch
      %86 = sbr.rel (0) target = $region73
    $region72: #{fwd.1} parent=1 // pred_region
      _
    $region73: #{fwd.1} parent=1 // pred_fallthru
      _
    // Predicated region
    $region74: #{fwd.1} parent=1 // pred_check
      _
    $region75: #{fwd.1} parent=1 // pred_check_branch
      %88 = sbr.rel (0) target = $region77
    $region76: #{fwd.1} parent=1 // pred_region
      _
    $region77: #{fwd.1} parent=1 // pred_fallthru
      _
    // Predicated region
    $region78: #{fwd.1} parent=1 // pred_check
      _
    $region79: #{fwd.1} parent=1 // pred_check_branch
      %90 = sbr.rel (0) target = $region81
    $region80: #{fwd.1} parent=1 // pred_region
      %s92 = ssub.s32 512, 512
      %93 = vsyncadd [#allocation11], %s92
      %s94 = sshll.u32 [#allocation12], 4
      %s95 = int_to_ptr.vmem [resolvable:$true] %s94
      %100 = dma.hbm_to_vmem [thread:$0]  %s19, 512, %s95, [#allocation11], 128, 128, 8
    $region81: #{fwd.1} parent=1 // pred_fallthru
      _
    // Predicated region
    $region82: #{fwd.1} parent=1 // pred_check
      _
    $region83: #{fwd.1} parent=1 // pred_check_branch
      %102 = sbr.rel (0) target = $region85
    $region84: #{fwd.1} parent=1 // pred_region
      _
    $region85: #{fwd.1} parent=1 // pred_fallthru
      _
    // Predicated region
    $region86: #{fwd.1} parent=1 // pred_check
      _
    $region87: #{fwd.1} parent=1 // pred_check_branch
      %104 = sbr.rel (0) target = $region89
    $region88: #{fwd.1} parent=1 // pred_region
      %s106 = ssub.s32 64, 64
      %107 = vsyncadd [#allocation14], %s106
      %s109 = sshll.u32 [#allocation13], 4
      %s110 = int_to_ptr.vmem [resolvable:$true] %s109
      %112 = dma.hbm_to_vmem [thread:$0]  %s21, 64, %s110, [#allocation14]
    $region89: #{fwd.1} parent=1 // pred_fallthru
      _
    // Predicated region
    $region90: #{fwd.1} parent=1 // pred_check
      _
    $region91: #{fwd.1} parent=1 // pred_check_branch
      %114 = sbr.rel (0) target = $region93
    $region92: #{fwd.1} parent=1 // pred_region
      _
    $region93: #{fwd.1} parent=1 // pred_fallthru
      _
    // Predicated region
    $region94: #{fwd.1} parent=1 // pred_check
      _
    $region95: #{fwd.1} parent=1 // pred_check_branch
      %116 = sbr.rel (0) target = $region97
    $region96: #{fwd.1} parent=1 // pred_region
      %117 = dma.done [#allocation9], 49152
    $region97: #{fwd.1} parent=1 // pred_fallthru
      _
    // Predicated region
    $region98: #{fwd.1} parent=1 // pred_check
      _
    $region99: #{fwd.1} parent=1 // pred_check_branch
      %119 = sbr.rel (0) target = $region101
    $region100: #{fwd.1} parent=1 // pred_region
      %120 = dma.done [#allocation11], 6912
    $region101: #{fwd.1} parent=1 // pred_fallthru
      _
    // Predicated region
    $region102: #{fwd.1} parent=1 // pred_check
      _
    $region103: #{fwd.1} parent=1 // pred_check_branch
      %122 = sbr.rel (0) target = $region105
    $region104: #{fwd.1} parent=1 // pred_region
      %123 = dma.done [#allocation11], 512
    $region105: #{fwd.1} parent=1 // pred_fallthru
      _
    // Predicated region
    $region106: #{fwd.1} parent=1 // pred_check
      _
    $region107: #{fwd.1} parent=1 // pred_check_branch
      %125 = sbr.rel (0) target = $region109
    $region108: #{fwd.1} parent=1 // pred_region
      %126 = dma.done [#allocation14], 64
    $region109: #{fwd.1} parent=1 // pred_fallthru
      _
    %v127 = vld [vmem:[%s1] sm:$0xff]
    %v128 = vld [vmem:[%s0] sm:$0xff]
    %v129 = vld [vmem:[%s0 + $0x8] sm:$0xff]
    %v130 = vld [vmem:[%s0 + $0x10] sm:$0xff]
    %v131 = vld [vmem:[%s0 + $0x18] sm:$0xff]
    %v132 = vld [vmem:[%s0 + $0x20] sm:$0xff]
    %v133 = vld [vmem:[%s0 + $0x28] sm:$0xff]
    %v134 = vld [vmem:[%s0 + $0x30] sm:$0xff]
    %v135 = vld [vmem:[%s0 + $0x38] sm:$0xff]
    %v136 = vld [vmem:[%s0 + $0x40] sm:$0xff]
    %s137 = scalar_lea.vmem %s1, 8
    %v138 = vld [vmem:[%s137] sm:$0xff]
    %v139 = vld [vmem:[%s0] sm:$0xff]
    %v140 = vld [vmem:[%s0 + $0x8] sm:$0xff]
    %v141 = vld [vmem:[%s0 + $0x10] sm:$0xff]
    %v142 = vld [vmem:[%s0 + $0x18] sm:$0xff]
    %v143 = vld [vmem:[%s0 + $0x20] sm:$0xff]
    %v144 = vld [vmem:[%s0 + $0x28] sm:$0xff]
    %v145 = vld [vmem:[%s0 + $0x30] sm:$0xff]
    %v146 = vld [vmem:[%s0 + $0x38] sm:$0xff]
    %v147 = vld [vmem:[%s0 + $0x40] sm:$0xff]
    %v148 = vld [vmem:[%s0 + $0x48] sm:$0xff]
    %159 = vrot.lane.b32.xlu0 %v139, 127
    %v160 = vpop.permute.xlu0 %159
    %161 = vrot.lane.b32.xlu0 %v140, 127
    %v162 = vpop.permute.xlu0 %161
    %163 = vrot.lane.b32.xlu0 %v141, 127
    %v164 = vpop.permute.xlu0 %163
    %165 = vrot.lane.b32.xlu0 %v142, 127
    %v166 = vpop.permute.xlu0 %165
    %167 = vrot.lane.b32.xlu0 %v143, 127
    %v168 = vpop.permute.xlu0 %167
    %169 = vrot.lane.b32.xlu0 %v144, 127
    %v170 = vpop.permute.xlu0 %169
    %171 = vrot.lane.b32.xlu0 %v145, 127
    %v172 = vpop.permute.xlu0 %171
    %173 = vrot.lane.b32.xlu0 %v146, 127
    %v174 = vpop.permute.xlu0 %173
    %175 = vrot.lane.b32.xlu0 %v147, 127
    %v176 = vpop.permute.xlu0 %175
    %177 = vrot.lane.b32.xlu0 %v148, 127
    %v178 = vpop.permute.xlu0 %177
    %vm179 = vcmask 1039360
    %v180 = vsel %vm179, %v160, %v162
    %v181 = vsel %vm179, %v162, %v164
    %v182 = vsel %vm179, %v164, %v166
    %v183 = vsel %vm179, %v166, %v168
    %v184 = vsel %vm179, %v168, %v170
    %v185 = vsel %vm179, %v170, %v172
    %v186 = vsel %vm179, %v172, %v174
    %v187 = vsel %vm179, %v174, %v176
    %v188 = vsel %vm179, %v176, %v178
    %vm198 = vcmask 64512
    %v200 = vsel %vm198, %v138, 0
    %202 = vmatprep.subr.mxu0 %v181
    %203 = vmatpush1.msra.mxu0 %v180
    %204 = vmatprep.subr.mxu0 0.0
    %205 = vmatpush1.msra.mxu0 0.0
    %206 = vmatprep.subr.mxu0 0.0
    %207 = vmatpush1.msra.mxu0 0.0
    %208 = vmatprep.subr.mxu0 0.0
    %209 = vmatpush1.msra.mxu0 0.0
    %210 = vmatprep.subr.mxu0 0.0
    %211 = vmatpush1.msra.mxu0 0.0
    %212 = vmatprep.subr.mxu0 0.0
    %213 = vmatpush1.msra.mxu0 0.0
    %214 = vmatprep.subr.mxu0 0.0
    %215 = vmatpush1.msra.mxu0 0.0
    %216 = vmatprep.subr.mxu0 0.0
    %217 = vmatpush1.msra.mxu0 0.0
    %218 = vmatprep.subr.mxu0 0.0
    %219 = vmatpush1.msra.mxu0 0.0
    %220 = vmatprep.subr.mxu0 0.0
    %221 = vmatpush1.msra.mxu0 0.0
    %222 = vmatprep.subr.mxu0 0.0
    %223 = vmatpush1.msra.mxu0 0.0
    %224 = vmatprep.subr.mxu0 0.0
    %225 = vmatpush1.msra.mxu0 0.0
    %226 = vmatprep.subr.mxu0 0.0
    %227 = vmatpush1.msra.mxu0 0.0
    %228 = vmatprep.subr.mxu0 0.0
    %229 = vmatpush1.msra.mxu0 0.0
    %230 = vmatprep.subr.mxu0 0.0
    %231 = vmatpush1.msra.mxu0 0.0
    %232 = vmatprep.subr.mxu0 0.0
    %233 = vmatpush1.msra.mxu0 0.0
    %234 = vmatprep.subr.mxu0 0.0
    %235 = vmatpush1.msra.mxu0 0.0
    %236 = vmatprep.subr.mxu0 0.0
    %237 = vmatpush1.msra.mxu0 0.0
    %238 = vmatprep.subr.mxu0 0.0
    %239 = vmatpush1.msra.mxu0 0.0
    %240 = vmatprep.subr.mxu0 0.0
    %241 = vmatpush1.msra.mxu0 0.0
    %242 = vmatprep.subr.mxu0 0.0
    %243 = vmatpush1.msra.mxu0 0.0
    %244 = vmatprep.subr.mxu0 0.0
    %245 = vmatpush1.msra.mxu0 0.0
    %246 = vmatprep.subr.mxu0 0.0
    %247 = vmatpush1.msra.mxu0 0.0
    %248 = vmatprep.subr.mxu0 0.0
    %249 = vmatpush1.msra.mxu0 0.0
    %250 = vmatprep.subr.mxu0 0.0
    %251 = vmatpush1.msra.mxu0 0.0
    %252 = vmatprep.subr.mxu0 0.0
    %253 = vmatpush1.msra.mxu0 0.0
    %254 = vmatprep.subr.mxu0 0.0
    %255 = vmatpush1.msra.mxu0 0.0
    %256 = vmatprep.subr.mxu0 0.0
    %257 = vmatpush1.msra.mxu0 0.0
    %258 = vmatprep.subr.mxu0 0.0
    %259 = vmatpush1.msra.mxu0 0.0
    %260 = vmatprep.subr.mxu0 0.0
    %261 = vmatpush1.msra.mxu0 0.0
    %262 = vmatprep.subr.mxu0 0.0
    %263 = vmatpush1.msra.mxu0 0.0
    %264 = vmatprep.subr.mxu0 0.0
    %265 = vmatpush1.msra.mxu0 0.0
    %266 = vmatprep.mubr.f32.mxu0 0.0
    %267 = vmatmul.mubr.f32.gmra.mrb[0].mxu0 %v200
    %v268 = vpop.f32.mrb[0].mxu0
    %v269 = vadd.f32 0.0, %v268
    %v270 = vpop.f32.mrb[0].mxu0
    %v271 = vadd.f32 0.0, %v270
    %272 = vdwg.mxu0
    %273 = vmatprep.subr.mxu0 %v183
    %274 = vmatpush1.msra.mxu0 %v182
    %275 = vmatprep.subr.mxu0 0.0
    %276 = vmatpush1.msra.mxu0 0.0
    %277 = vmatprep.subr.mxu0 0.0
    %278 = vmatpush1.msra.mxu0 0.0
    %279 = vmatprep.subr.mxu0 0.0
    %280 = vmatpush1.msra.mxu0 0.0
    %281 = vmatprep.subr.mxu0 0.0
    %282 = vmatpush1.msra.mxu0 0.0
    %283 = vmatprep.subr.mxu0 0.0
    %284 = vmatpush1.msra.mxu0 0.0
    %285 = vmatprep.subr.mxu0 0.0
    %286 = vmatpush1.msra.mxu0 0.0
    %287 = vmatprep.subr.mxu0 0.0
    %288 = vmatpush1.msra.mxu0 0.0
    %289 = vmatprep.subr.mxu0 0.0
    %290 = vmatpush1.msra.mxu0 0.0
    %291 = vmatprep.subr.mxu0 0.0
    %292 = vmatpush1.msra.mxu0 0.0
    %293 = vmatprep.subr.mxu0 0.0
    %294 = vmatpush1.msra.mxu0 0.0
    %295 = vmatprep.subr.mxu0 0.0
    %296 = vmatpush1.msra.mxu0 0.0
    %297 = vmatprep.subr.mxu0 0.0
    %298 = vmatpush1.msra.mxu0 0.0
    %299 = vmatprep.subr.mxu0 0.0
    %300 = vmatpush1.msra.mxu0 0.0
    %301 = vmatprep.subr.mxu0 0.0
    %302 = vmatpush1.msra.mxu0 0.0
    %303 = vmatprep.subr.mxu0 0.0
    %304 = vmatpush1.msra.mxu0 0.0
    %305 = vmatprep.subr.mxu0 0.0
    %306 = vmatpush1.msra.mxu0 0.0
    %307 = vmatprep.subr.mxu0 0.0
    %308 = vmatpush1.msra.mxu0 0.0
    %309 = vmatprep.subr.mxu0 0.0
    %310 = vmatpush1.msra.mxu0 0.0
    %311 = vmatprep.subr.mxu0 0.0
    %312 = vmatpush1.msra.mxu0 0.0
    %313 = vmatprep.subr.mxu0 0.0
    %314 = vmatpush1.msra.mxu0 0.0
    %315 = vmatprep.subr.mxu0 0.0
    %316 = vmatpush1.msra.mxu0 0.0
    %317 = vmatprep.subr.mxu0 0.0
    %318 = vmatpush1.msra.mxu0 0.0
    %319 = vmatprep.subr.mxu0 0.0
    %320 = vmatpush1.msra.mxu0 0.0
    %321 = vmatprep.subr.mxu0 0.0
    %322 = vmatpush1.msra.mxu0 0.0
    %323 = vmatprep.subr.mxu0 0.0
    %324 = vmatpush1.msra.mxu0 0.0
    %325 = vmatprep.subr.mxu0 0.0
    %326 = vmatpush1.msra.mxu0 0.0
    %327 = vmatprep.subr.mxu0 0.0
    %328 = vmatpush1.msra.mxu0 0.0
    %329 = vmatprep.subr.mxu0 0.0
    %330 = vmatpush1.msra.mxu0 0.0
    %331 = vmatprep.subr.mxu0 0.0
    %332 = vmatpush1.msra.mxu0 0.0
    %333 = vmatprep.subr.mxu0 0.0
    %334 = vmatpush1.msra.mxu0 0.0
    %335 = vmatprep.subr.mxu0 0.0
    %336 = vmatpush1.msra.mxu0 0.0
    %337 = vmatprep.mubr.f32.mxu0 0.0
    %338 = vmatmul.mubr.f32.gmra.mrb[0].mxu0 %v200
    %v339 = vpop.f32.mrb[0].mxu0
    %v340 = vadd.f32 0.0, %v339
    %v341 = vpop.f32.mrb[0].mxu0
    %v342 = vadd.f32 0.0, %v341
    %343 = vdwg.mxu0
    %344 = vmatprep.subr.mxu0 %v185
    %345 = vmatpush1.msra.mxu0 %v184
    %346 = vmatprep.subr.mxu0 0.0
    %347 = vmatpush1.msra.mxu0 0.0
    %348 = vmatprep.subr.mxu0 0.0
    %349 = vmatpush1.msra.mxu0 0.0
    %350 = vmatprep.subr.mxu0 0.0
    %351 = vmatpush1.msra.mxu0 0.0
    %352 = vmatprep.subr.mxu0 0.0
    %353 = vmatpush1.msra.mxu0 0.0
    %354 = vmatprep.subr.mxu0 0.0
    %355 = vmatpush1.msra.mxu0 0.0
    %356 = vmatprep.subr.mxu0 0.0
    %357 = vmatpush1.msra.mxu0 0.0
    %358 = vmatprep.subr.mxu0 0.0
    %359 = vmatpush1.msra.mxu0 0.0
    %360 = vmatprep.subr.mxu0 0.0
    %361 = vmatpush1.msra.mxu0 0.0
    %362 = vmatprep.subr.mxu0 0.0
    %363 = vmatpush1.msra.mxu0 0.0
    %364 = vmatprep.subr.mxu0 0.0
    %365 = vmatpush1.msra.mxu0 0.0
    %366 = vmatprep.subr.mxu0 0.0
    %367 = vmatpush1.msra.mxu0 0.0
    %368 = vmatprep.subr.mxu0 0.0
    %369 = vmatpush1.msra.mxu0 0.0
    %370 = vmatprep.subr.mxu0 0.0
    %371 = vmatpush1.msra.mxu0 0.0
    %372 = vmatprep.subr.mxu0 0.0
    %373 = vmatpush1.msra.mxu0 0.0
    %374 = vmatprep.subr.mxu0 0.0
    %375 = vmatpush1.msra.mxu0 0.0
    %376 = vmatprep.subr.mxu0 0.0
    %377 = vmatpush1.msra.mxu0 0.0
    %378 = vmatprep.subr.mxu0 0.0
    %379 = vmatpush1.msra.mxu0 0.0
    %380 = vmatprep.subr.mxu0 0.0
    %381 = vmatpush1.msra.mxu0 0.0
    %382 = vmatprep.subr.mxu0 0.0
    %383 = vmatpush1.msra.mxu0 0.0
    %384 = vmatprep.subr.mxu0 0.0
    %385 = vmatpush1.msra.mxu0 0.0
    %386 = vmatprep.subr.mxu0 0.0
    %387 = vmatpush1.msra.mxu0 0.0
    %388 = vmatprep.subr.mxu0 0.0
    %389 = vmatpush1.msra.mxu0 0.0
    %390 = vmatprep.subr.mxu0 0.0
    %391 = vmatpush1.msra.mxu0 0.0
    %392 = vmatprep.subr.mxu0 0.0
    %393 = vmatpush1.msra.mxu0 0.0
    %394 = vmatprep.subr.mxu0 0.0
    %395 = vmatpush1.msra.mxu0 0.0
    %396 = vmatprep.subr.mxu0 0.0
    %397 = vmatpush1.msra.mxu0 0.0
    %398 = vmatprep.subr.mxu0 0.0
    %399 = vmatpush1.msra.mxu0 0.0
    %400 = vmatprep.subr.mxu0 0.0
    %401 = vmatpush1.msra.mxu0 0.0
    %402 = vmatprep.subr.mxu0 0.0
    %403 = vmatpush1.msra.mxu0 0.0
    %404 = vmatprep.subr.mxu0 0.0
    %405 = vmatpush1.msra.mxu0 0.0
    %406 = vmatprep.subr.mxu0 0.0
    %407 = vmatpush1.msra.mxu0 0.0
    %408 = vmatprep.mubr.f32.mxu0 0.0
    %409 = vmatmul.mubr.f32.gmra.mrb[0].mxu0 %v200
    %v410 = vpop.f32.mrb[0].mxu0
    %v411 = vadd.f32 0.0, %v410
    %v412 = vpop.f32.mrb[0].mxu0
    %v413 = vadd.f32 0.0, %v412
    %414 = vdwg.mxu0
    %415 = vmatprep.subr.mxu0 %v187
    %416 = vmatpush1.msra.mxu0 %v186
    %417 = vmatprep.subr.mxu0 0.0
    %418 = vmatpush1.msra.mxu0 0.0
    %419 = vmatprep.subr.mxu0 0.0
    %420 = vmatpush1.msra.mxu0 0.0
    %421 = vmatprep.subr.mxu0 0.0
    %422 = vmatpush1.msra.mxu0 0.0
    %423 = vmatprep.subr.mxu0 0.0
    %424 = vmatpush1.msra.mxu0 0.0
    %425 = vmatprep.subr.mxu0 0.0
    %426 = vmatpush1.msra.mxu0 0.0
    %427 = vmatprep.subr.mxu0 0.0
    %428 = vmatpush1.msra.mxu0 0.0
    %429 = vmatprep.subr.mxu0 0.0
    %430 = vmatpush1.msra.mxu0 0.0
    %431 = vmatprep.subr.mxu0 0.0
    %432 = vmatpush1.msra.mxu0 0.0
    %433 = vmatprep.subr.mxu0 0.0
    %434 = vmatpush1.msra.mxu0 0.0
    %435 = vmatprep.subr.mxu0 0.0
    %436 = vmatpush1.msra.mxu0 0.0
    %437 = vmatprep.subr.mxu0 0.0
    %438 = vmatpush1.msra.mxu0 0.0
    %439 = vmatprep.subr.mxu0 0.0
    %440 = vmatpush1.msra.mxu0 0.0
    %441 = vmatprep.subr.mxu0 0.0
    %442 = vmatpush1.msra.mxu0 0.0
    %443 = vmatprep.subr.mxu0 0.0
    %444 = vmatpush1.msra.mxu0 0.0
    %445 = vmatprep.subr.mxu0 0.0
    %446 = vmatpush1.msra.mxu0 0.0
    %447 = vmatprep.subr.mxu0 0.0
    %448 = vmatpush1.msra.mxu0 0.0
    %449 = vmatprep.subr.mxu0 0.0
    %450 = vmatpush1.msra.mxu0 0.0
    %451 = vmatprep.subr.mxu0 0.0
    %452 = vmatpush1.msra.mxu0 0.0
    %453 = vmatprep.subr.mxu0 0.0
    %454 = vmatpush1.msra.mxu0 0.0
    %455 = vmatprep.subr.mxu0 0.0
    %456 = vmatpush1.msra.mxu0 0.0
    %457 = vmatprep.subr.mxu0 0.0
    %458 = vmatpush1.msra.mxu0 0.0
    %459 = vmatprep.subr.mxu0 0.0
    %460 = vmatpush1.msra.mxu0 0.0
    %461 = vmatprep.subr.mxu0 0.0
    %462 = vmatpush1.msra.mxu0 0.0
    %463 = vmatprep.subr.mxu0 0.0
    %464 = vmatpush1.msra.mxu0 0.0
    %465 = vmatprep.subr.mxu0 0.0
    %466 = vmatpush1.msra.mxu0 0.0
    %467 = vmatprep.subr.mxu0 0.0
    %468 = vmatpush1.msra.mxu0 0.0
    %469 = vmatprep.subr.mxu0 0.0
    %470 = vmatpush1.msra.mxu0 0.0
    %471 = vmatprep.subr.mxu0 0.0
    %472 = vmatpush1.msra.mxu0 0.0
    %473 = vmatprep.subr.mxu0 0.0
    %474 = vmatpush1.msra.mxu0 0.0
    %475 = vmatprep.subr.mxu0 0.0
    %476 = vmatpush1.msra.mxu0 0.0
    %477 = vmatprep.subr.mxu0 0.0
    %478 = vmatpush1.msra.mxu0 0.0
    %479 = vmatprep.mubr.f32.mxu0 0.0
    %480 = vmatmul.mubr.f32.gmra.mrb[0].mxu0 %v200
    %v481 = vpop.f32.mrb[0].mxu0
    %v482 = vadd.f32 0.0, %v481
    %v483 = vpop.f32.mrb[0].mxu0
    %v484 = vadd.f32 0.0, %v483
    %485 = vdwg.mxu0
    %486 = vmatprep.subr.mxu0 0.0
    %487 = vmatpush1.msra.mxu0 %v188
    %488 = vmatprep.subr.mxu0 0.0
    %489 = vmatpush1.msra.mxu0 0.0
    %490 = vmatprep.subr.mxu0 0.0
    %491 = vmatpush1.msra.mxu0 0.0
    %492 = vmatprep.subr.mxu0 0.0
    %493 = vmatpush1.msra.mxu0 0.0
    %494 = vmatprep.subr.mxu0 0.0
    %495 = vmatpush1.msra.mxu0 0.0
    %496 = vmatprep.subr.mxu0 0.0
    %497 = vmatpush1.msra.mxu0 0.0
    %498 = vmatprep.subr.mxu0 0.0
    %499 = vmatpush1.msra.mxu0 0.0
    %500 = vmatprep.subr.mxu0 0.0
    %501 = vmatpush1.msra.mxu0 0.0
    %502 = vmatprep.subr.mxu0 0.0
    %503 = vmatpush1.msra.mxu0 0.0
    %504 = vmatprep.subr.mxu0 0.0
    %505 = vmatpush1.msra.mxu0 0.0
    %506 = vmatprep.subr.mxu0 0.0
    %507 = vmatpush1.msra.mxu0 0.0
    %508 = vmatprep.subr.mxu0 0.0
    %509 = vmatpush1.msra.mxu0 0.0
    %510 = vmatprep.subr.mxu0 0.0
    %511 = vmatpush1.msra.mxu0 0.0
    %512 = vmatprep.subr.mxu0 0.0
    %513 = vmatpush1.msra.mxu0 0.0
    %514 = vmatprep.subr.mxu0 0.0
    %515 = vmatpush1.msra.mxu0 0.0
    %516 = vmatprep.subr.mxu0 0.0
    %517 = vmatpush1.msra.mxu0 0.0
    %518 = vmatprep.subr.mxu0 0.0
    %519 = vmatpush1.msra.mxu0 0.0
    %520 = vmatprep.subr.mxu0 0.0
    %521 = vmatpush1.msra.mxu0 0.0
    %522 = vmatprep.subr.mxu0 0.0
    %523 = vmatpush1.msra.mxu0 0.0
    %524 = vmatprep.subr.mxu0 0.0
    %525 = vmatpush1.msra.mxu0 0.0
    %526 = vmatprep.subr.mxu0 0.0
    %527 = vmatpush1.msra.mxu0 0.0
    %528 = vmatprep.subr.mxu0 0.0
    %529 = vmatpush1.msra.mxu0 0.0
    %530 = vmatprep.subr.mxu0 0.0
    %531 = vmatpush1.msra.mxu0 0.0
    %532 = vmatprep.subr.mxu0 0.0
    %533 = vmatpush1.msra.mxu0 0.0
    %534 = vmatprep.subr.mxu0 0.0
    %535 = vmatpush1.msra.mxu0 0.0
    %536 = vmatprep.subr.mxu0 0.0
    %537 = vmatpush1.msra.mxu0 0.0
    %538 = vmatprep.subr.mxu0 0.0
    %539 = vmatpush1.msra.mxu0 0.0
    %540 = vmatprep.subr.mxu0 0.0
    %541 = vmatpush1.msra.mxu0 0.0
    %542 = vmatprep.subr.mxu0 0.0
    %543 = vmatpush1.msra.mxu0 0.0
    %544 = vmatprep.subr.mxu0 0.0
    %545 = vmatpush1.msra.mxu0 0.0
    %546 = vmatprep.subr.mxu0 0.0
    %547 = vmatpush1.msra.mxu0 0.0
    %548 = vmatprep.subr.mxu0 0.0
    %549 = vmatpush1.msra.mxu0 0.0
    %550 = vmatprep.mubr.f32.mxu0 0.0
    %551 = vmatmul.mubr.f32.gmra.mrb[0].mxu0 %v200
    %v552 = vpop.f32.mrb[0].mxu0
    %v553 = vadd.f32 0.0, %v552
    %v554 = vpop.f32.mrb[0].mxu0
    %555 = vdwg.mxu0
    %v557 = vsel %vm198, %v127, 0
    %559 = vmatprep.subr.mxu0 %v129
    %560 = vmatpush1.msra.mxu0 %v128
    %561 = vmatprep.subr.mxu0 0.0
    %562 = vmatpush1.msra.mxu0 0.0
    %563 = vmatprep.subr.mxu0 0.0
    %564 = vmatpush1.msra.mxu0 0.0
    %565 = vmatprep.subr.mxu0 0.0
    %566 = vmatpush1.msra.mxu0 0.0
    %567 = vmatprep.subr.mxu0 0.0
    %568 = vmatpush1.msra.mxu0 0.0
    %569 = vmatprep.subr.mxu0 0.0
    %570 = vmatpush1.msra.mxu0 0.0
    %571 = vmatprep.subr.mxu0 0.0
    %572 = vmatpush1.msra.mxu0 0.0
    %573 = vmatprep.subr.mxu0 0.0
    %574 = vmatpush1.msra.mxu0 0.0
    %575 = vmatprep.subr.mxu0 0.0
    %576 = vmatpush1.msra.mxu0 0.0
    %577 = vmatprep.subr.mxu0 0.0
    %578 = vmatpush1.msra.mxu0 0.0
    %579 = vmatprep.subr.mxu0 0.0
    %580 = vmatpush1.msra.mxu0 0.0
    %581 = vmatprep.subr.mxu0 0.0
    %582 = vmatpush1.msra.mxu0 0.0
    %583 = vmatprep.subr.mxu0 0.0
    %584 = vmatpush1.msra.mxu0 0.0
    %585 = vmatprep.subr.mxu0 0.0
    %586 = vmatpush1.msra.mxu0 0.0
    %587 = vmatprep.subr.mxu0 0.0
    %588 = vmatpush1.msra.mxu0 0.0
    %589 = vmatprep.subr.mxu0 0.0
    %590 = vmatpush1.msra.mxu0 0.0
    %591 = vmatprep.subr.mxu0 0.0
    %592 = vmatpush1.msra.mxu0 0.0
    %593 = vmatprep.subr.mxu0 0.0
    %594 = vmatpush1.msra.mxu0 0.0
    %595 = vmatprep.subr.mxu0 0.0
    %596 = vmatpush1.msra.mxu0 0.0
    %597 = vmatprep.subr.mxu0 0.0
    %598 = vmatpush1.msra.mxu0 0.0
    %599 = vmatprep.subr.mxu0 0.0
    %600 = vmatpush1.msra.mxu0 0.0
    %601 = vmatprep.subr.mxu0 0.0
    %602 = vmatpush1.msra.mxu0 0.0
    %603 = vmatprep.subr.mxu0 0.0
    %604 = vmatpush1.msra.mxu0 0.0
    %605 = vmatprep.subr.mxu0 0.0
    %606 = vmatpush1.msra.mxu0 0.0
    %607 = vmatprep.subr.mxu0 0.0
    %608 = vmatpush1.msra.mxu0 0.0
    %609 = vmatprep.subr.mxu0 0.0
    %610 = vmatpush1.msra.mxu0 0.0
    %611 = vmatprep.subr.mxu0 0.0
    %612 = vmatpush1.msra.mxu0 0.0
    %613 = vmatprep.subr.mxu0 0.0
    %614 = vmatpush1.msra.mxu0 0.0
    %615 = vmatprep.subr.mxu0 0.0
    %616 = vmatpush1.msra.mxu0 0.0
    %617 = vmatprep.subr.mxu0 0.0
    %618 = vmatpush1.msra.mxu0 0.0
    %619 = vmatprep.subr.mxu0 0.0
    %620 = vmatpush1.msra.mxu0 0.0
    %621 = vmatprep.subr.mxu0 0.0
    %622 = vmatpush1.msra.mxu0 0.0
    %623 = vmatprep.mubr.f32.mxu0 0.0
    %624 = vmatmul.mubr.f32.gmra.mrb[0].mxu0 %v557
    %v625 = vpop.f32.mrb[0].mxu0
    %v626 = vadd.f32 %v269, %v625
    %v627 = vpop.f32.mrb[0].mxu0
    %v628 = vadd.f32 %v271, %v627
    %629 = vdwg.mxu0
    %630 = vmatprep.subr.mxu0 %v131
    %631 = vmatpush1.msra.mxu0 %v130
    %632 = vmatprep.subr.mxu0 0.0
    %633 = vmatpush1.msra.mxu0 0.0
    %634 = vmatprep.subr.mxu0 0.0
    %635 = vmatpush1.msra.mxu0 0.0
    %636 = vmatprep.subr.mxu0 0.0
    %637 = vmatpush1.msra.mxu0 0.0
    %638 = vmatprep.subr.mxu0 0.0
    %639 = vmatpush1.msra.mxu0 0.0
    %640 = vmatprep.subr.mxu0 0.0
    %641 = vmatpush1.msra.mxu0 0.0
    %642 = vmatprep.subr.mxu0 0.0
    %643 = vmatpush1.msra.mxu0 0.0
    %644 = vmatprep.subr.mxu0 0.0
    %645 = vmatpush1.msra.mxu0 0.0
    %646 = vmatprep.subr.mxu0 0.0
    %647 = vmatpush1.msra.mxu0 0.0
    %648 = vmatprep.subr.mxu0 0.0
    %649 = vmatpush1.msra.mxu0 0.0
    %650 = vmatprep.subr.mxu0 0.0
    %651 = vmatpush1.msra.mxu0 0.0
    %652 = vmatprep.subr.mxu0 0.0
    %653 = vmatpush1.msra.mxu0 0.0
    %654 = vmatprep.subr.mxu0 0.0
    %655 = vmatpush1.msra.mxu0 0.0
    %656 = vmatprep.subr.mxu0 0.0
    %657 = vmatpush1.msra.mxu0 0.0
    %658 = vmatprep.subr.mxu0 0.0
    %659 = vmatpush1.msra.mxu0 0.0
    %660 = vmatprep.subr.mxu0 0.0
    %661 = vmatpush1.msra.mxu0 0.0
    %662 = vmatprep.subr.mxu0 0.0
    %663 = vmatpush1.msra.mxu0 0.0
    %664 = vmatprep.subr.mxu0 0.0
    %665 = vmatpush1.msra.mxu0 0.0
    %666 = vmatprep.subr.mxu0 0.0
    %667 = vmatpush1.msra.mxu0 0.0
    %668 = vmatprep.subr.mxu0 0.0
    %669 = vmatpush1.msra.mxu0 0.0
    %670 = vmatprep.subr.mxu0 0.0
    %671 = vmatpush1.msra.mxu0 0.0
    %672 = vmatprep.subr.mxu0 0.0
    %673 = vmatpush1.msra.mxu0 0.0
    %674 = vmatprep.subr.mxu0 0.0
    %675 = vmatpush1.msra.mxu0 0.0
    %676 = vmatprep.subr.mxu0 0.0
    %677 = vmatpush1.msra.mxu0 0.0
    %678 = vmatprep.subr.mxu0 0.0
    %679 = vmatpush1.msra.mxu0 0.0
    %680 = vmatprep.subr.mxu0 0.0
    %681 = vmatpush1.msra.mxu0 0.0
    %682 = vmatprep.subr.mxu0 0.0
    %683 = vmatpush1.msra.mxu0 0.0
    %684 = vmatprep.subr.mxu0 0.0
    %685 = vmatpush1.msra.mxu0 0.0
    %686 = vmatprep.subr.mxu0 0.0
    %687 = vmatpush1.msra.mxu0 0.0
    %688 = vmatprep.subr.mxu0 0.0
    %689 = vmatpush1.msra.mxu0 0.0
    %690 = vmatprep.subr.mxu0 0.0
    %691 = vmatpush1.msra.mxu0 0.0
    %692 = vmatprep.subr.mxu0 0.0
    %693 = vmatpush1.msra.mxu0 0.0
    %694 = vmatprep.mubr.f32.mxu0 0.0
    %695 = vmatmul.mubr.f32.gmra.mrb[0].mxu0 %v557
    %v696 = vpop.f32.mrb[0].mxu0
    %v697 = vadd.f32 %v340, %v696
    %v698 = vpop.f32.mrb[0].mxu0
    %v699 = vadd.f32 %v342, %v698
    %700 = vdwg.mxu0
    %701 = vmatprep.subr.mxu0 %v133
    %702 = vmatpush1.msra.mxu0 %v132
    %703 = vmatprep.subr.mxu0 0.0
    %704 = vmatpush1.msra.mxu0 0.0
    %705 = vmatprep.subr.mxu0 0.0
    %706 = vmatpush1.msra.mxu0 0.0
    %707 = vmatprep.subr.mxu0 0.0
    %708 = vmatpush1.msra.mxu0 0.0
    %709 = vmatprep.subr.mxu0 0.0
    %710 = vmatpush1.msra.mxu0 0.0
    %711 = vmatprep.subr.mxu0 0.0
    %712 = vmatpush1.msra.mxu0 0.0
    %713 = vmatprep.subr.mxu0 0.0
    %714 = vmatpush1.msra.mxu0 0.0
    %715 = vmatprep.subr.mxu0 0.0
    %716 = vmatpush1.msra.mxu0 0.0
    %717 = vmatprep.subr.mxu0 0.0
    %718 = vmatpush1.msra.mxu0 0.0
    %719 = vmatprep.subr.mxu0 0.0
    %720 = vmatpush1.msra.mxu0 0.0
    %721 = vmatprep.subr.mxu0 0.0
    %722 = vmatpush1.msra.mxu0 0.0
    %723 = vmatprep.subr.mxu0 0.0
    %724 = vmatpush1.msra.mxu0 0.0
    %725 = vmatprep.subr.mxu0 0.0
    %726 = vmatpush1.msra.mxu0 0.0
    %727 = vmatprep.subr.mxu0 0.0
    %728 = vmatpush1.msra.mxu0 0.0
    %729 = vmatprep.subr.mxu0 0.0
    %730 = vmatpush1.msra.mxu0 0.0
    %731 = vmatprep.subr.mxu0 0.0
    %732 = vmatpush1.msra.mxu0 0.0
    %733 = vmatprep.subr.mxu0 0.0
    %734 = vmatpush1.msra.mxu0 0.0
    %735 = vmatprep.subr.mxu0 0.0
    %736 = vmatpush1.msra.mxu0 0.0
    %737 = vmatprep.subr.mxu0 0.0
    %738 = vmatpush1.msra.mxu0 0.0
    %739 = vmatprep.subr.mxu0 0.0
    %740 = vmatpush1.msra.mxu0 0.0
    %741 = vmatprep.subr.mxu0 0.0
    %742 = vmatpush1.msra.mxu0 0.0
    %743 = vmatprep.subr.mxu0 0.0
    %744 = vmatpush1.msra.mxu0 0.0
    %745 = vmatprep.subr.mxu0 0.0
    %746 = vmatpush1.msra.mxu0 0.0
    %747 = vmatprep.subr.mxu0 0.0
    %748 = vmatpush1.msra.mxu0 0.0
    %749 = vmatprep.subr.mxu0 0.0
    %750 = vmatpush1.msra.mxu0 0.0
    %751 = vmatprep.subr.mxu0 0.0
    %752 = vmatpush1.msra.mxu0 0.0
    %753 = vmatprep.subr.mxu0 0.0
    %754 = vmatpush1.msra.mxu0 0.0
    %755 = vmatprep.subr.mxu0 0.0
    %756 = vmatpush1.msra.mxu0 0.0
    %757 = vmatprep.subr.mxu0 0.0
    %758 = vmatpush1.msra.mxu0 0.0
    %759 = vmatprep.subr.mxu0 0.0
    %760 = vmatpush1.msra.mxu0 0.0
    %761 = vmatprep.subr.mxu0 0.0
    %762 = vmatpush1.msra.mxu0 0.0
    %763 = vmatprep.subr.mxu0 0.0
    %764 = vmatpush1.msra.mxu0 0.0
    %765 = vmatprep.mubr.f32.mxu0 0.0
    %766 = vmatmul.mubr.f32.gmra.mrb[0].mxu0 %v557
    %v767 = vpop.f32.mrb[0].mxu0
    %v768 = vadd.f32 %v411, %v767
    %v769 = vpop.f32.mrb[0].mxu0
    %v770 = vadd.f32 %v413, %v769
    %771 = vdwg.mxu0
    %772 = vmatprep.subr.mxu0 %v135
    %773 = vmatpush1.msra.mxu0 %v134
    %774 = vmatprep.subr.mxu0 0.0
    %775 = vmatpush1.msra.mxu0 0.0
    %776 = vmatprep.subr.mxu0 0.0
    %777 = vmatpush1.msra.mxu0 0.0
    %778 = vmatprep.subr.mxu0 0.0
    %779 = vmatpush1.msra.mxu0 0.0
    %780 = vmatprep.subr.mxu0 0.0
    %781 = vmatpush1.msra.mxu0 0.0
    %782 = vmatprep.subr.mxu0 0.0
    %783 = vmatpush1.msra.mxu0 0.0
    %784 = vmatprep.subr.mxu0 0.0
    %785 = vmatpush1.msra.mxu0 0.0
    %786 = vmatprep.subr.mxu0 0.0
    %787 = vmatpush1.msra.mxu0 0.0
    %788 = vmatprep.subr.mxu0 0.0
    %789 = vmatpush1.msra.mxu0 0.0
    %790 = vmatprep.subr.mxu0 0.0
    %791 = vmatpush1.msra.mxu0 0.0
    %792 = vmatprep.subr.mxu0 0.0
    %793 = vmatpush1.msra.mxu0 0.0
    %794 = vmatprep.subr.mxu0 0.0
    %795 = vmatpush1.msra.mxu0 0.0
    %796 = vmatprep.subr.mxu0 0.0
    %797 = vmatpush1.msra.mxu0 0.0
    %798 = vmatprep.subr.mxu0 0.0
    %799 = vmatpush1.msra.mxu0 0.0
    %800 = vmatprep.subr.mxu0 0.0
    %801 = vmatpush1.msra.mxu0 0.0
    %802 = vmatprep.subr.mxu0 0.0
    %803 = vmatpush1.msra.mxu0 0.0
    %804 = vmatprep.subr.mxu0 0.0
    %805 = vmatpush1.msra.mxu0 0.0
    %806 = vmatprep.subr.mxu0 0.0
    %807 = vmatpush1.msra.mxu0 0.0
    %808 = vmatprep.subr.mxu0 0.0
    %809 = vmatpush1.msra.mxu0 0.0
    %810 = vmatprep.subr.mxu0 0.0
    %811 = vmatpush1.msra.mxu0 0.0
    %812 = vmatprep.subr.mxu0 0.0
    %813 = vmatpush1.msra.mxu0 0.0
    %814 = vmatprep.subr.mxu0 0.0
    %815 = vmatpush1.msra.mxu0 0.0
    %816 = vmatprep.subr.mxu0 0.0
    %817 = vmatpush1.msra.mxu0 0.0
    %818 = vmatprep.subr.mxu0 0.0
    %819 = vmatpush1.msra.mxu0 0.0
    %820 = vmatprep.subr.mxu0 0.0
    %821 = vmatpush1.msra.mxu0 0.0
    %822 = vmatprep.subr.mxu0 0.0
    %823 = vmatpush1.msra.mxu0 0.0
    %824 = vmatprep.subr.mxu0 0.0
    %825 = vmatpush1.msra.mxu0 0.0
    %826 = vmatprep.subr.mxu0 0.0
    %827 = vmatpush1.msra.mxu0 0.0
    %828 = vmatprep.subr.mxu0 0.0
    %829 = vmatpush1.msra.mxu0 0.0
    %830 = vmatprep.subr.mxu0 0.0
    %831 = vmatpush1.msra.mxu0 0.0
    %832 = vmatprep.subr.mxu0 0.0
    %833 = vmatpush1.msra.mxu0 0.0
    %834 = vmatprep.subr.mxu0 0.0
    %835 = vmatpush1.msra.mxu0 0.0
    %836 = vmatprep.mubr.f32.mxu0 0.0
    %837 = vmatmul.mubr.f32.gmra.mrb[0].mxu0 %v557
    %v838 = vpop.f32.mrb[0].mxu0
    %v839 = vadd.f32 %v482, %v838
    %v840 = vpop.f32.mrb[0].mxu0
    %v841 = vadd.f32 %v484, %v840
    %842 = vdwg.mxu0
    %843 = vmatprep.subr.mxu0 0.0
    %844 = vmatpush1.msra.mxu0 %v136
    %845 = vmatprep.subr.mxu0 0.0
    %846 = vmatpush1.msra.mxu0 0.0
    %847 = vmatprep.subr.mxu0 0.0
    %848 = vmatpush1.msra.mxu0 0.0
    %849 = vmatprep.subr.mxu0 0.0
    %850 = vmatpush1.msra.mxu0 0.0
    %851 = vmatprep.subr.mxu0 0.0
    %852 = vmatpush1.msra.mxu0 0.0
    %853 = vmatprep.subr.mxu0 0.0
    %854 = vmatpush1.msra.mxu0 0.0
    %855 = vmatprep.subr.mxu0 0.0
    %856 = vmatpush1.msra.mxu0 0.0
    %857 = vmatprep.subr.mxu0 0.0
    %858 = vmatpush1.msra.mxu0 0.0
    %859 = vmatprep.subr.mxu0 0.0
    %860 = vmatpush1.msra.mxu0 0.0
    %861 = vmatprep.subr.mxu0 0.0
    %862 = vmatpush1.msra.mxu0 0.0
    %863 = vmatprep.subr.mxu0 0.0
    %864 = vmatpush1.msra.mxu0 0.0
    %865 = vmatprep.subr.mxu0 0.0
    %866 = vmatpush1.msra.mxu0 0.0
    %867 = vmatprep.subr.mxu0 0.0
    %868 = vmatpush1.msra.mxu0 0.0
    %869 = vmatprep.subr.mxu0 0.0
    %870 = vmatpush1.msra.mxu0 0.0
    %871 = vmatprep.subr.mxu0 0.0
    %872 = vmatpush1.msra.mxu0 0.0
    %873 = vmatprep.subr.mxu0 0.0
    %874 = vmatpush1.msra.mxu0 0.0
    %875 = vmatprep.subr.mxu0 0.0
    %876 = vmatpush1.msra.mxu0 0.0
    %877 = vmatprep.subr.mxu0 0.0
    %878 = vmatpush1.msra.mxu0 0.0
    %879 = vmatprep.subr.mxu0 0.0
    %880 = vmatpush1.msra.mxu0 0.0
    %881 = vmatprep.subr.mxu0 0.0
    %882 = vmatpush1.msra.mxu0 0.0
    %883 = vmatprep.subr.mxu0 0.0
    %884 = vmatpush1.msra.mxu0 0.0
    %885 = vmatprep.subr.mxu0 0.0
    %886 = vmatpush1.msra.mxu0 0.0
    %887 = vmatprep.subr.mxu0 0.0
    %888 = vmatpush1.msra.mxu0 0.0
    %889 = vmatprep.subr.mxu0 0.0
    %890 = vmatpush1.msra.mxu0 0.0
    %891 = vmatprep.subr.mxu0 0.0
    %892 = vmatpush1.msra.mxu0 0.0
    %893 = vmatprep.subr.mxu0 0.0
    %894 = vmatpush1.msra.mxu0 0.0
    %895 = vmatprep.subr.mxu0 0.0
    %896 = vmatpush1.msra.mxu0 0.0
    %897 = vmatprep.subr.mxu0 0.0
    %898 = vmatpush1.msra.mxu0 0.0
    %899 = vmatprep.subr.mxu0 0.0
    %900 = vmatpush1.msra.mxu0 0.0
    %901 = vmatprep.subr.mxu0 0.0
    %902 = vmatpush1.msra.mxu0 0.0
    %903 = vmatprep.subr.mxu0 0.0
    %904 = vmatpush1.msra.mxu0 0.0
    %905 = vmatprep.subr.mxu0 0.0
    %906 = vmatpush1.msra.mxu0 0.0
    %907 = vmatprep.mubr.f32.mxu0 0.0
    %908 = vmatmul.mubr.f32.gmra.mrb[0].mxu0 %v557
    %v909 = vpop.f32.mrb[0].mxu0
    %v910 = vadd.f32 %v553, %v909
    %v911 = vpop.f32.mrb[0].mxu0
    %912 = vdwg.mxu0
    %s913 = scalar_lea.vmem %s1, 16
    %v914 = vld [vmem:[%s913] sm:$0xff]
    %915 = vrot.lane.b32.xlu0 %v139, 126
    %v916 = vpop.permute.xlu0 %915
    %917 = vrot.lane.b32.xlu0 %v140, 126
    %v918 = vpop.permute.xlu0 %917
    %919 = vrot.lane.b32.xlu0 %v141, 126
    %v920 = vpop.permute.xlu0 %919
    %921 = vrot.lane.b32.xlu0 %v142, 126
    %v922 = vpop.permute.xlu0 %921
    %923 = vrot.lane.b32.xlu0 %v143, 126
    %v924 = vpop.permute.xlu0 %923
    %925 = vrot.lane.b32.xlu0 %v144, 126
    %v926 = vpop.permute.xlu0 %925
    %927 = vrot.lane.b32.xlu0 %v145, 126
    %v928 = vpop.permute.xlu0 %927
    %929 = vrot.lane.b32.xlu0 %v146, 126
    %v930 = vpop.permute.xlu0 %929
    %931 = vrot.lane.b32.xlu0 %v147, 126
    %v932 = vpop.permute.xlu0 %931
    %933 = vrot.lane.b32.xlu0 %v148, 126
    %v934 = vpop.permute.xlu0 %933
    %vm935 = vcmask 1031168
    %v936 = vsel %vm935, %v916, %v918
    %v937 = vsel %vm935, %v918, %v920
    %v938 = vsel %vm935, %v920, %v922
    %v939 = vsel %vm935, %v922, %v924
    %v940 = vsel %vm935, %v924, %v926
    %v941 = vsel %vm935, %v926, %v928
    %v942 = vsel %vm935, %v928, %v930
    %v943 = vsel %vm935, %v930, %v932
    %v944 = vsel %vm935, %v932, %v934
    %v955 = vsel %vm198, %v914, 0
    %957 = vmatprep.subr.mxu0 %v937
    %958 = vmatpush1.msra.mxu0 %v936
    %959 = vmatprep.subr.mxu0 0.0
    %960 = vmatpush1.msra.mxu0 0.0
    %961 = vmatprep.subr.mxu0 0.0
    %962 = vmatpush1.msra.mxu0 0.0
    %963 = vmatprep.subr.mxu0 0.0
    %964 = vmatpush1.msra.mxu0 0.0
    %965 = vmatprep.subr.mxu0 0.0
    %966 = vmatpush1.msra.mxu0 0.0
    %967 = vmatprep.subr.mxu0 0.0
    %968 = vmatpush1.msra.mxu0 0.0
    %969 = vmatprep.subr.mxu0 0.0
    %970 = vmatpush1.msra.mxu0 0.0
    %971 = vmatprep.subr.mxu0 0.0
    %972 = vmatpush1.msra.mxu0 0.0
    %973 = vmatprep.subr.mxu0 0.0
    %974 = vmatpush1.msra.mxu0 0.0
    %975 = vmatprep.subr.mxu0 0.0
    %976 = vmatpush1.msra.mxu0 0.0
    %977 = vmatprep.subr.mxu0 0.0
    %978 = vmatpush1.msra.mxu0 0.0
    %979 = vmatprep.subr.mxu0 0.0
    %980 = vmatpush1.msra.mxu0 0.0
    %981 = vmatprep.subr.mxu0 0.0
    %982 = vmatpush1.msra.mxu0 0.0
    %983 = vmatprep.subr.mxu0 0.0
    %984 = vmatpush1.msra.mxu0 0.0
    %985 = vmatprep.subr.mxu0 0.0
    %986 = vmatpush1.msra.mxu0 0.0
    %987 = vmatprep.subr.mxu0 0.0
    %988 = vmatpush1.msra.mxu0 0.0
    %989 = vmatprep.subr.mxu0 0.0
    %990 = vmatpush1.msra.mxu0 0.0
    %991 = vmatprep.subr.mxu0 0.0
    %992 = vmatpush1.msra.mxu0 0.0
    %993 = vmatprep.subr.mxu0 0.0
    %994 = vmatpush1.msra.mxu0 0.0
    %995 = vmatprep.subr.mxu0 0.0
    %996 = vmatpush1.msra.mxu0 0.0
    %997 = vmatprep.subr.mxu0 0.0
    %998 = vmatpush1.msra.mxu0 0.0
    %999 = vmatprep.subr.mxu0 0.0
    %1000 = vmatpush1.msra.mxu0 0.0
    %1001 = vmatprep.subr.mxu0 0.0
    %1002 = vmatpush1.msra.mxu0 0.0
    %1003 = vmatprep.subr.mxu0 0.0
    %1004 = vmatpush1.msra.mxu0 0.0
    %1005 = vmatprep.subr.mxu0 0.0
    %1006 = vmatpush1.msra.mxu0 0.0
    %1007 = vmatprep.subr.mxu0 0.0
    %1008 = vmatpush1.msra.mxu0 0.0
    %1009 = vmatprep.subr.mxu0 0.0
    %1010 = vmatpush1.msra.mxu0 0.0
    %1011 = vmatprep.subr.mxu0 0.0
    %1012 = vmatpush1.msra.mxu0 0.0
    %1013 = vmatprep.subr.mxu0 0.0
    %1014 = vmatpush1.msra.mxu0 0.0
    %1015 = vmatprep.subr.mxu0 0.0
    %1016 = vmatpush1.msra.mxu0 0.0
    %1017 = vmatprep.subr.mxu0 0.0
    %1018 = vmatpush1.msra.mxu0 0.0
    %1019 = vmatprep.subr.mxu0 0.0
    %1020 = vmatpush1.msra.mxu0 0.0
    %1021 = vmatprep.mubr.f32.mxu0 0.0
    %1022 = vmatmul.mubr.f32.gmra.mrb[0].mxu0 %v955
    %v1023 = vpop.f32.mrb[0].mxu0
    %v1024 = vadd.f32 0.0, %v1023
    %v1025 = vpop.f32.mrb[0].mxu0
    %v1026 = vadd.f32 0.0, %v1025
    %1027 = vdwg.mxu0
    %1028 = vmatprep.subr.mxu0 %v939
    %1029 = vmatpush1.msra.mxu0 %v938
    %1030 = vmatprep.subr.mxu0 0.0
    %1031 = vmatpush1.msra.mxu0 0.0
    %1032 = vmatprep.subr.mxu0 0.0
    %1033 = vmatpush1.msra.mxu0 0.0
    %1034 = vmatprep.subr.mxu0 0.0
    %1035 = vmatpush1.msra.mxu0 0.0
    %1036 = vmatprep.subr.mxu0 0.0
    %1037 = vmatpush1.msra.mxu0 0.0
    %1038 = vmatprep.subr.mxu0 0.0
    %1039 = vmatpush1.msra.mxu0 0.0
    %1040 = vmatprep.subr.mxu0 0.0
    %1041 = vmatpush1.msra.mxu0 0.0
    %1042 = vmatprep.subr.mxu0 0.0
    %1043 = vmatpush1.msra.mxu0 0.0
    %1044 = vmatprep.subr.mxu0 0.0
    %1045 = vmatpush1.msra.mxu0 0.0
    %1046 = vmatprep.subr.mxu0 0.0
    %1047 = vmatpush1.msra.mxu0 0.0
    %1048 = vmatprep.subr.mxu0 0.0
    %1049 = vmatpush1.msra.mxu0 0.0
    %1050 = vmatprep.subr.mxu0 0.0
    %1051 = vmatpush1.msra.mxu0 0.0
    %1052 = vmatprep.subr.mxu0 0.0
    %1053 = vmatpush1.msra.mxu0 0.0
    %1054 = vmatprep.subr.mxu0 0.0
    %1055 = vmatpush1.msra.mxu0 0.0
    %1056 = vmatprep.subr.mxu0 0.0
    %1057 = vmatpush1.msra.mxu0 0.0
    %1058 = vmatprep.subr.mxu0 0.0
    %1059 = vmatpush1.msra.mxu0 0.0
    %1060 = vmatprep.subr.mxu0 0.0
    %1061 = vmatpush1.msra.mxu0 0.0
    %1062 = vmatprep.subr.mxu0 0.0
    %1063 = vmatpush1.msra.mxu0 0.0
    %1064 = vmatprep.subr.mxu0 0.0
    %1065 = vmatpush1.msra.mxu0 0.0
    %1066 = vmatprep.subr.mxu0 0.0
    %1067 = vmatpush1.msra.mxu0 0.0
    %1068 = vmatprep.subr.mxu0 0.0
    %1069 = vmatpush1.msra.mxu0 0.0
    %1070 = vmatprep.subr.mxu0 0.0
    %1071 = vmatpush1.msra.mxu0 0.0
    %1072 = vmatprep.subr.mxu0 0.0
    %1073 = vmatpush1.msra.mxu0 0.0
    %1074 = vmatprep.subr.mxu0 0.0
    %1075 = vmatpush1.msra.mxu0 0.0
    %1076 = vmatprep.subr.mxu0 0.0
    %1077 = vmatpush1.msra.mxu0 0.0
    %1078 = vmatprep.subr.mxu0 0.0
    %1079 = vmatpush1.msra.mxu0 0.0
    %1080 = vmatprep.subr.mxu0 0.0
    %1081 = vmatpush1.msra.mxu0 0.0
    %1082 = vmatprep.subr.mxu0 0.0
    %1083 = vmatpush1.msra.mxu0 0.0
    %1084 = vmatprep.subr.mxu0 0.0
    %1085 = vmatpush1.msra.mxu0 0.0
    %1086 = vmatprep.subr.mxu0 0.0
    %1087 = vmatpush1.msra.mxu0 0.0
    %1088 = vmatprep.subr.mxu0 0.0
    %1089 = vmatpush1.msra.mxu0 0.0
    %1090 = vmatprep.subr.mxu0 0.0
    %1091 = vmatpush1.msra.mxu0 0.0
    %1092 = vmatprep.mubr.f32.mxu0 0.0
    %1093 = vmatmul.mubr.f32.gmra.mrb[0].mxu0 %v955
    %v1094 = vpop.f32.mrb[0].mxu0
    %v1095 = vadd.f32 0.0, %v1094
    %v1096 = vpop.f32.mrb[0].mxu0
    %v1097 = vadd.f32 0.0, %v1096
    %1098 = vdwg.mxu0
    %1099 = vmatprep.subr.mxu0 %v941
    %1100 = vmatpush1.msra.mxu0 %v940
    %1101 = vmatprep.subr.mxu0 0.0
    %1102 = vmatpush1.msra.mxu0 0.0
    %1103 = vmatprep.subr.mxu0 0.0
    %1104 = vmatpush1.msra.mxu0 0.0
    %1105 = vmatprep.subr.mxu0 0.0
    %1106 = vmatpush1.msra.mxu0 0.0
    %1107 = vmatprep.subr.mxu0 0.0
    %1108 = vmatpush1.msra.mxu0 0.0
    %1109 = vmatprep.subr.mxu0 0.0
    %1110 = vmatpush1.msra.mxu0 0.0
    %1111 = vmatprep.subr.mxu0 0.0
    %1112 = vmatpush1.msra.mxu0 0.0
    %1113 = vmatprep.subr.mxu0 0.0
    %1114 = vmatpush1.msra.mxu0 0.0
    %1115 = vmatprep.subr.mxu0 0.0
    %1116 = vmatpush1.msra.mxu0 0.0
    %1117 = vmatprep.subr.mxu0 0.0
    %1118 = vmatpush1.msra.mxu0 0.0
    %1119 = vmatprep.subr.mxu0 0.0
    %1120 = vmatpush1.msra.mxu0 0.0
    %1121 = vmatprep.subr.mxu0 0.0
    %1122 = vmatpush1.msra.mxu0 0.0
    %1123 = vmatprep.subr.mxu0 0.0
    %1124 = vmatpush1.msra.mxu0 0.0
    %1125 = vmatprep.subr.mxu0 0.0
    %1126 = vmatpush1.msra.mxu0 0.0
    %1127 = vmatprep.subr.mxu0 0.0
    %1128 = vmatpush1.msra.mxu0 0.0
    %1129 = vmatprep.subr.mxu0 0.0
    %1130 = vmatpush1.msra.mxu0 0.0
    %1131 = vmatprep.subr.mxu0 0.0
    %1132 = vmatpush1.msra.mxu0 0.0
    %1133 = vmatprep.subr.mxu0 0.0
    %1134 = vmatpush1.msra.mxu0 0.0
    %1135 = vmatprep.subr.mxu0 0.0
    %1136 = vmatpush1.msra.mxu0 0.0
    %1137 = vmatprep.subr.mxu0 0.0
    %1138 = vmatpush1.msra.mxu0 0.0
    %1139 = vmatprep.subr.mxu0 0.0
    %1140 = vmatpush1.msra.mxu0 0.0
    %1141 = vmatprep.subr.mxu0 0.0
    %1142 = vmatpush1.msra.mxu0 0.0
    %1143 = vmatprep.subr.mxu0 0.0
    %1144 = vmatpush1.msra.mxu0 0.0
    %1145 = vmatprep.subr.mxu0 0.0
    %1146 = vmatpush1.msra.mxu0 0.0
    %1147 = vmatprep.subr.mxu0 0.0
    %1148 = vmatpush1.msra.mxu0 0.0
    %1149 = vmatprep.subr.mxu0 0.0
    %1150 = vmatpush1.msra.mxu0 0.0
    %1151 = vmatprep.subr.mxu0 0.0
    %1152 = vmatpush1.msra.mxu0 0.0
    %1153 = vmatprep.subr.mxu0 0.0
    %1154 = vmatpush1.msra.mxu0 0.0
    %1155 = vmatprep.subr.mxu0 0.0
    %1156 = vmatpush1.msra.mxu0 0.0
    %1157 = vmatprep.subr.mxu0 0.0
    %1158 = vmatpush1.msra.mxu0 0.0
    %1159 = vmatprep.subr.mxu0 0.0
    %1160 = vmatpush1.msra.mxu0 0.0
    %1161 = vmatprep.subr.mxu0 0.0
    %1162 = vmatpush1.msra.mxu0 0.0
    %1163 = vmatprep.mubr.f32.mxu0 0.0
    %1164 = vmatmul.mubr.f32.gmra.mrb[0].mxu0 %v955
    %v1165 = vpop.f32.mrb[0].mxu0
    %v1166 = vadd.f32 0.0, %v1165
    %v1167 = vpop.f32.mrb[0].mxu0
    %v1168 = vadd.f32 0.0, %v1167
    %1169 = vdwg.mxu0
    %1170 = vmatprep.subr.mxu0 %v943
    %1171 = vmatpush1.msra.mxu0 %v942
    %1172 = vmatprep.subr.mxu0 0.0
    %1173 = vmatpush1.msra.mxu0 0.0
    %1174 = vmatprep.subr.mxu0 0.0
    %1175 = vmatpush1.msra.mxu0 0.0
    %1176 = vmatprep.subr.mxu0 0.0
    %1177 = vmatpush1.msra.mxu0 0.0
    %1178 = vmatprep.subr.mxu0 0.0
    %1179 = vmatpush1.msra.mxu0 0.0
    %1180 = vmatprep.subr.mxu0 0.0
    %1181 = vmatpush1.msra.mxu0 0.0
    %1182 = vmatprep.subr.mxu0 0.0
    %1183 = vmatpush1.msra.mxu0 0.0
    %1184 = vmatprep.subr.mxu0 0.0
    %1185 = vmatpush1.msra.mxu0 0.0
    %1186 = vmatprep.subr.mxu0 0.0
    %1187 = vmatpush1.msra.mxu0 0.0
    %1188 = vmatprep.subr.mxu0 0.0
    %1189 = vmatpush1.msra.mxu0 0.0
    %1190 = vmatprep.subr.mxu0 0.0
    %1191 = vmatpush1.msra.mxu0 0.0
    %1192 = vmatprep.subr.mxu0 0.0
    %1193 = vmatpush1.msra.mxu0 0.0
    %1194 = vmatprep.subr.mxu0 0.0
    %1195 = vmatpush1.msra.mxu0 0.0
    %1196 = vmatprep.subr.mxu0 0.0
    %1197 = vmatpush1.msra.mxu0 0.0
    %1198 = vmatprep.subr.mxu0 0.0
    %1199 = vmatpush1.msra.mxu0 0.0
    %1200 = vmatprep.subr.mxu0 0.0
    %1201 = vmatpush1.msra.mxu0 0.0
    %1202 = vmatprep.subr.mxu0 0.0
    %1203 = vmatpush1.msra.mxu0 0.0
    %1204 = vmatprep.subr.mxu0 0.0
    %1205 = vmatpush1.msra.mxu0 0.0
    %1206 = vmatprep.subr.mxu0 0.0
    %1207 = vmatpush1.msra.mxu0 0.0
    %1208 = vmatprep.subr.mxu0 0.0
    %1209 = vmatpush1.msra.mxu0 0.0
    %1210 = vmatprep.subr.mxu0 0.0
    %1211 = vmatpush1.msra.mxu0 0.0
    %1212 = vmatprep.subr.mxu0 0.0
    %1213 = vmatpush1.msra.mxu0 0.0
    %1214 = vmatprep.subr.mxu0 0.0
    %1215 = vmatpush1.msra.mxu0 0.0
    %1216 = vmatprep.subr.mxu0 0.0
    %1217 = vmatpush1.msra.mxu0 0.0
    %1218 = vmatprep.subr.mxu0 0.0
    %1219 = vmatpush1.msra.mxu0 0.0
    %1220 = vmatprep.subr.mxu0 0.0
    %1221 = vmatpush1.msra.mxu0 0.0
    %1222 = vmatprep.subr.mxu0 0.0
    %1223 = vmatpush1.msra.mxu0 0.0
    %1224 = vmatprep.subr.mxu0 0.0
    %1225 = vmatpush1.msra.mxu0 0.0
    %1226 = vmatprep.subr.mxu0 0.0
    %1227 = vmatpush1.msra.mxu0 0.0
    %1228 = vmatprep.subr.mxu0 0.0
    %1229 = vmatpush1.msra.mxu0 0.0
    %1230 = vmatprep.subr.mxu0 0.0
    %1231 = vmatpush1.msra.mxu0 0.0
    %1232 = vmatprep.subr.mxu0 0.0
    %1233 = vmatpush1.msra.mxu0 0.0
    %1234 = vmatprep.mubr.f32.mxu0 0.0
    %1235 = vmatmul.mubr.f32.gmra.mrb[0].mxu0 %v955
    %v1236 = vpop.f32.mrb[0].mxu0
    %v1237 = vadd.f32 0.0, %v1236
    %v1238 = vpop.f32.mrb[0].mxu0
    %v1239 = vadd.f32 0.0, %v1238
    %1240 = vdwg.mxu0
    %1241 = vmatprep.subr.mxu0 0.0
    %1242 = vmatpush1.msra.mxu0 %v944
    %1243 = vmatprep.subr.mxu0 0.0
    %1244 = vmatpush1.msra.mxu0 0.0
    %1245 = vmatprep.subr.mxu0 0.0
    %1246 = vmatpush1.msra.mxu0 0.0
    %1247 = vmatprep.subr.mxu0 0.0
    %1248 = vmatpush1.msra.mxu0 0.0
    %1249 = vmatprep.subr.mxu0 0.0
    %1250 = vmatpush1.msra.mxu0 0.0
    %1251 = vmatprep.subr.mxu0 0.0
    %1252 = vmatpush1.msra.mxu0 0.0
    %1253 = vmatprep.subr.mxu0 0.0
    %1254 = vmatpush1.msra.mxu0 0.0
    %1255 = vmatprep.subr.mxu0 0.0
    %1256 = vmatpush1.msra.mxu0 0.0
    %1257 = vmatprep.subr.mxu0 0.0
    %1258 = vmatpush1.msra.mxu0 0.0
    %1259 = vmatprep.subr.mxu0 0.0
    %1260 = vmatpush1.msra.mxu0 0.0
    %1261 = vmatprep.subr.mxu0 0.0
    %1262 = vmatpush1.msra.mxu0 0.0
    %1263 = vmatprep.subr.mxu0 0.0
    %1264 = vmatpush1.msra.mxu0 0.0
    %1265 = vmatprep.subr.mxu0 0.0
    %1266 = vmatpush1.msra.mxu0 0.0
    %1267 = vmatprep.subr.mxu0 0.0
    %1268 = vmatpush1.msra.mxu0 0.0
    %1269 = vmatprep.subr.mxu0 0.0
    %1270 = vmatpush1.msra.mxu0 0.0
    %1271 = vmatprep.subr.mxu0 0.0
    %1272 = vmatpush1.msra.mxu0 0.0
    %1273 = vmatprep.subr.mxu0 0.0
    %1274 = vmatpush1.msra.mxu0 0.0
    %1275 = vmatprep.subr.mxu0 0.0
    %1276 = vmatpush1.msra.mxu0 0.0
    %1277 = vmatprep.subr.mxu0 0.0
    %1278 = vmatpush1.msra.mxu0 0.0
    %1279 = vmatprep.subr.mxu0 0.0
    %1280 = vmatpush1.msra.mxu0 0.0
    %1281 = vmatprep.subr.mxu0 0.0
    %1282 = vmatpush1.msra.mxu0 0.0
    %1283 = vmatprep.subr.mxu0 0.0
    %1284 = vmatpush1.msra.mxu0 0.0
    %1285 = vmatprep.subr.mxu0 0.0
    %1286 = vmatpush1.msra.mxu0 0.0
    %1287 = vmatprep.subr.mxu0 0.0
    %1288 = vmatpush1.msra.mxu0 0.0
    %1289 = vmatprep.subr.mxu0 0.0
    %1290 = vmatpush1.msra.mxu0 0.0
    %1291 = vmatprep.subr.mxu0 0.0
    %1292 = vmatpush1.msra.mxu0 0.0
    %1293 = vmatprep.subr.mxu0 0.0
    %1294 = vmatpush1.msra.mxu0 0.0
    %1295 = vmatprep.subr.mxu0 0.0
    %1296 = vmatpush1.msra.mxu0 0.0
    %1297 = vmatprep.subr.mxu0 0.0
    %1298 = vmatpush1.msra.mxu0 0.0
    %1299 = vmatprep.subr.mxu0 0.0
    %1300 = vmatpush1.msra.mxu0 0.0
    %1301 = vmatprep.subr.mxu0 0.0
    %1302 = vmatpush1.msra.mxu0 0.0
    %1303 = vmatprep.subr.mxu0 0.0
    %1304 = vmatpush1.msra.mxu0 0.0
    %1305 = vmatprep.mubr.f32.mxu0 0.0
    %1306 = vmatmul.mubr.f32.gmra.mrb[0].mxu0 %v955
    %v1307 = vpop.f32.mrb[0].mxu0
    %v1308 = vadd.f32 0.0, %v1307
    %v1309 = vpop.f32.mrb[0].mxu0
    %1310 = vdwg.mxu0
    %v1311 = vadd.f32 %v626, %v1024
    %v1312 = vadd.f32 %v628, %v1026
    %v1313 = vadd.f32 %v697, %v1095
    %v1314 = vadd.f32 %v699, %v1097
    %v1315 = vadd.f32 %v768, %v1166
    %v1316 = vadd.f32 %v770, %v1168
    %v1317 = vadd.f32 %v839, %v1237
    %v1318 = vadd.f32 %v841, %v1239
    %v1319 = vadd.f32 %v910, %v1308
    %s1320 = scalar_lea.vmem %s1, 24
    %v1321 = vld [vmem:[%s1320] sm:$0xff]
    %1322 = vrot.lane.b32.xlu0 %v139, 112
    %v1323 = vpop.permute.xlu0 %1322
    %1324 = vrot.lane.b32.xlu0 %v140, 112
    %v1325 = vpop.permute.xlu0 %1324
    %1326 = vrot.lane.b32.xlu0 %v141, 112
    %v1327 = vpop.permute.xlu0 %1326
    %1328 = vrot.lane.b32.xlu0 %v142, 112
    %v1329 = vpop.permute.xlu0 %1328
    %1330 = vrot.lane.b32.xlu0 %v143, 112
    %v1331 = vpop.permute.xlu0 %1330
    %1332 = vrot.lane.b32.xlu0 %v144, 112
    %v1333 = vpop.permute.xlu0 %1332
    %1334 = vrot.lane.b32.xlu0 %v145, 112
    %v1335 = vpop.permute.xlu0 %1334
    %1336 = vrot.lane.b32.xlu0 %v146, 112
    %v1337 = vpop.permute.xlu0 %1336
    %1338 = vrot.lane.b32.xlu0 %v147, 112
    %v1339 = vpop.permute.xlu0 %1338
    %1340 = vrot.lane.b32.xlu0 %v148, 112
    %v1341 = vpop.permute.xlu0 %1340
    %vm1342 = vcmask 916480
    %v1343 = vsel %vm1342, %v1323, %v1325
    %v1344 = vsel %vm1342, %v1325, %v1327
    %v1345 = vsel %vm1342, %v1327, %v1329
    %v1346 = vsel %vm1342, %v1329, %v1331
    %v1347 = vsel %vm1342, %v1331, %v1333
    %v1348 = vsel %vm1342, %v1333, %v1335
    %v1349 = vsel %vm1342, %v1335, %v1337
    %v1350 = vsel %vm1342, %v1337, %v1339
    %v1351 = vsel %vm1342, %v1339, %v1341
    %v1362 = vsel %vm198, %v1321, 0
    %1364 = vmatprep.subr.mxu0 %v1344
    %1365 = vmatpush1.msra.mxu0 %v1343
    %1366 = vmatprep.subr.mxu0 0.0
    %1367 = vmatpush1.msra.mxu0 0.0
    %1368 = vmatprep.subr.mxu0 0.0
    %1369 = vmatpush1.msra.mxu0 0.0
    %1370 = vmatprep.subr.mxu0 0.0
    %1371 = vmatpush1.msra.mxu0 0.0
    %1372 = vmatprep.subr.mxu0 0.0
    %1373 = vmatpush1.msra.mxu0 0.0
    %1374 = vmatprep.subr.mxu0 0.0
    %1375 = vmatpush1.msra.mxu0 0.0
    %1376 = vmatprep.subr.mxu0 0.0
    %1377 = vmatpush1.msra.mxu0 0.0
    %1378 = vmatprep.subr.mxu0 0.0
    %1379 = vmatpush1.msra.mxu0 0.0
    %1380 = vmatprep.subr.mxu0 0.0
    %1381 = vmatpush1.msra.mxu0 0.0
    %1382 = vmatprep.subr.mxu0 0.0
    %1383 = vmatpush1.msra.mxu0 0.0
    %1384 = vmatprep.subr.mxu0 0.0
    %1385 = vmatpush1.msra.mxu0 0.0
    %1386 = vmatprep.subr.mxu0 0.0
    %1387 = vmatpush1.msra.mxu0 0.0
    %1388 = vmatprep.subr.mxu0 0.0
    %1389 = vmatpush1.msra.mxu0 0.0
    %1390 = vmatprep.subr.mxu0 0.0
    %1391 = vmatpush1.msra.mxu0 0.0
    %1392 = vmatprep.subr.mxu0 0.0
    %1393 = vmatpush1.msra.mxu0 0.0
    %1394 = vmatprep.subr.mxu0 0.0
    %1395 = vmatpush1.msra.mxu0 0.0
    %1396 = vmatprep.subr.mxu0 0.0
    %1397 = vmatpush1.msra.mxu0 0.0
    %1398 = vmatprep.subr.mxu0 0.0
    %1399 = vmatpush1.msra.mxu0 0.0
    %1400 = vmatprep.subr.mxu0 0.0
    %1401 = vmatpush1.msra.mxu0 0.0
    %1402 = vmatprep.subr.mxu0 0.0
    %1403 = vmatpush1.msra.mxu0 0.0
    %1404 = vmatprep.subr.mxu0 0.0
    %1405 = vmatpush1.msra.mxu0 0.0
    %1406 = vmatprep.subr.mxu0 0.0
    %1407 = vmatpush1.msra.mxu0 0.0
    %1408 = vmatprep.subr.mxu0 0.0
    %1409 = vmatpush1.msra.mxu0 0.0
    %1410 = vmatprep.subr.mxu0 0.0
    %1411 = vmatpush1.msra.mxu0 0.0
    %1412 = vmatprep.subr.mxu0 0.0
    %1413 = vmatpush1.msra.mxu0 0.0
    %1414 = vmatprep.subr.mxu0 0.0
    %1415 = vmatpush1.msra.mxu0 0.0
    %1416 = vmatprep.subr.mxu0 0.0
    %1417 = vmatpush1.msra.mxu0 0.0
    %1418 = vmatprep.subr.mxu0 0.0
    %1419 = vmatpush1.msra.mxu0 0.0
    %1420 = vmatprep.subr.mxu0 0.0
    %1421 = vmatpush1.msra.mxu0 0.0
    %1422 = vmatprep.subr.mxu0 0.0
    %1423 = vmatpush1.msra.mxu0 0.0
    %1424 = vmatprep.subr.mxu0 0.0
    %1425 = vmatpush1.msra.mxu0 0.0
    %1426 = vmatprep.subr.mxu0 0.0
    %1427 = vmatpush1.msra.mxu0 0.0
    %1428 = vmatprep.mubr.f32.mxu0 0.0
    %1429 = vmatmul.mubr.f32.gmra.mrb[0].mxu0 %v1362
    %v1430 = vpop.f32.mrb[0].mxu0
    %v1431 = vadd.f32 0.0, %v1430
    %v1432 = vpop.f32.mrb[0].mxu0
    %v1433 = vadd.f32 0.0, %v1432
    %1434 = vdwg.mxu0
    %1435 = vmatprep.subr.mxu0 %v1346
    %1436 = vmatpush1.msra.mxu0 %v1345
    %1437 = vmatprep.subr.mxu0 0.0
    %1438 = vmatpush1.msra.mxu0 0.0
    %1439 = vmatprep.subr.mxu0 0.0
    %1440 = vmatpush1.msra.mxu0 0.0
    %1441 = vmatprep.subr.mxu0 0.0
    %1442 = vmatpush1.msra.mxu0 0.0
    %1443 = vmatprep.subr.mxu0 0.0
    %1444 = vmatpush1.msra.mxu0 0.0
    %1445 = vmatprep.subr.mxu0 0.0
    %1446 = vmatpush1.msra.mxu0 0.0
    %1447 = vmatprep.subr.mxu0 0.0
    %1448 = vmatpush1.msra.mxu0 0.0
    %1449 = vmatprep.subr.mxu0 0.0
    %1450 = vmatpush1.msra.mxu0 0.0
    %1451 = vmatprep.subr.mxu0 0.0
    %1452 = vmatpush1.msra.mxu0 0.0
    %1453 = vmatprep.subr.mxu0 0.0
    %1454 = vmatpush1.msra.mxu0 0.0
    %1455 = vmatprep.subr.mxu0 0.0
    %1456 = vmatpush1.msra.mxu0 0.0
    %1457 = vmatprep.subr.mxu0 0.0
    %1458 = vmatpush1.msra.mxu0 0.0
    %1459 = vmatprep.subr.mxu0 0.0
    %1460 = vmatpush1.msra.mxu0 0.0
    %1461 = vmatprep.subr.mxu0 0.0
    %1462 = vmatpush1.msra.mxu0 0.0
    %1463 = vmatprep.subr.mxu0 0.0
    %1464 = vmatpush1.msra.mxu0 0.0
    %1465 = vmatprep.subr.mxu0 0.0
    %1466 = vmatpush1.msra.mxu0 0.0
    %1467 = vmatprep.subr.mxu0 0.0
    %1468 = vmatpush1.msra.mxu0 0.0
    %1469 = vmatprep.subr.mxu0 0.0
    %1470 = vmatpush1.msra.mxu0 0.0
    %1471 = vmatprep.subr.mxu0 0.0
    %1472 = vmatpush1.msra.mxu0 0.0
    %1473 = vmatprep.subr.mxu0 0.0
    %1474 = vmatpush1.msra.mxu0 0.0
    %1475 = vmatprep.subr.mxu0 0.0
    %1476 = vmatpush1.msra.mxu0 0.0
    %1477 = vmatprep.subr.mxu0 0.0
    %1478 = vmatpush1.msra.mxu0 0.0
    %1479 = vmatprep.subr.mxu0 0.0
    %1480 = vmatpush1.msra.mxu0 0.0
    %1481 = vmatprep.subr.mxu0 0.0
    %1482 = vmatpush1.msra.mxu0 0.0
    %1483 = vmatprep.subr.mxu0 0.0
    %1484 = vmatpush1.msra.mxu0 0.0
    %1485 = vmatprep.subr.mxu0 0.0
    %1486 = vmatpush1.msra.mxu0 0.0
    %1487 = vmatprep.subr.mxu0 0.0
    %1488 = vmatpush1.msra.mxu0 0.0
    %1489 = vmatprep.subr.mxu0 0.0
    %1490 = vmatpush1.msra.mxu0 0.0
    %1491 = vmatprep.subr.mxu0 0.0
    %1492 = vmatpush1.msra.mxu0 0.0
    %1493 = vmatprep.subr.mxu0 0.0
    %1494 = vmatpush1.msra.mxu0 0.0
    %1495 = vmatprep.subr.mxu0 0.0
    %1496 = vmatpush1.msra.mxu0 0.0
    %1497 = vmatprep.subr.mxu0 0.0
    %1498 = vmatpush1.msra.mxu0 0.0
    %1499 = vmatprep.mubr.f32.mxu0 0.0
    %1500 = vmatmul.mubr.f32.gmra.mrb[0].mxu0 %v1362
    %v1501 = vpop.f32.mrb[0].mxu0
    %v1502 = vadd.f32 0.0, %v1501
    %v1503 = vpop.f32.mrb[0].mxu0
    %v1504 = vadd.f32 0.0, %v1503
    %1505 = vdwg.mxu0
    %1506 = vmatprep.subr.mxu0 %v1348
    %1507 = vmatpush1.msra.mxu0 %v1347
    %1508 = vmatprep.subr.mxu0 0.0
    %1509 = vmatpush1.msra.mxu0 0.0
    %1510 = vmatprep.subr.mxu0 0.0
    %1511 = vmatpush1.msra.mxu0 0.0
    %1512 = vmatprep.subr.mxu0 0.0
    %1513 = vmatpush1.msra.mxu0 0.0
    %1514 = vmatprep.subr.mxu0 0.0
    %1515 = vmatpush1.msra.mxu0 0.0
    %1516 = vmatprep.subr.mxu0 0.0
    %1517 = vmatpush1.msra.mxu0 0.0
    %1518 = vmatprep.subr.mxu0 0.0
    %1519 = vmatpush1.msra.mxu0 0.0
    %1520 = vmatprep.subr.mxu0 0.0
    %1521 = vmatpush1.msra.mxu0 0.0
    %1522 = vmatprep.subr.mxu0 0.0
    %1523 = vmatpush1.msra.mxu0 0.0
    %1524 = vmatprep.subr.mxu0 0.0
    %1525 = vmatpush1.msra.mxu0 0.0
    %1526 = vmatprep.subr.mxu0 0.0
    %1527 = vmatpush1.msra.mxu0 0.0
    %1528 = vmatprep.subr.mxu0 0.0
    %1529 = vmatpush1.msra.mxu0 0.0
    %1530 = vmatprep.subr.mxu0 0.0
    %1531 = vmatpush1.msra.mxu0 0.0
    %1532 = vmatprep.subr.mxu0 0.0
    %1533 = vmatpush1.msra.mxu0 0.0
    %1534 = vmatprep.subr.mxu0 0.0
    %1535 = vmatpush1.msra.mxu0 0.0
    %1536 = vmatprep.subr.mxu0 0.0
    %1537 = vmatpush1.msra.mxu0 0.0
    %1538 = vmatprep.subr.mxu0 0.0
    %1539 = vmatpush1.msra.mxu0 0.0
    %1540 = vmatprep.subr.mxu0 0.0
    %1541 = vmatpush1.msra.mxu0 0.0
    %1542 = vmatprep.subr.mxu0 0.0
    %1543 = vmatpush1.msra.mxu0 0.0
    %1544 = vmatprep.subr.mxu0 0.0
    %1545 = vmatpush1.msra.mxu0 0.0
    %1546 = vmatprep.subr.mxu0 0.0
    %1547 = vmatpush1.msra.mxu0 0.0
    %1548 = vmatprep.subr.mxu0 0.0
    %1549 = vmatpush1.msra.mxu0 0.0
    %1550 = vmatprep.subr.mxu0 0.0
    %1551 = vmatpush1.msra.mxu0 0.0
    %1552 = vmatprep.subr.mxu0 0.0
    %1553 = vmatpush1.msra.mxu0 0.0
    %1554 = vmatprep.subr.mxu0 0.0
    %1555 = vmatpush1.msra.mxu0 0.0
    %1556 = vmatprep.subr.mxu0 0.0
    %1557 = vmatpush1.msra.mxu0 0.0
    %1558 = vmatprep.subr.mxu0 0.0
    %1559 = vmatpush1.msra.mxu0 0.0
    %1560 = vmatprep.subr.mxu0 0.0
    %1561 = vmatpush1.msra.mxu0 0.0
    %1562 = vmatprep.subr.mxu0 0.0
    %1563 = vmatpush1.msra.mxu0 0.0
    %1564 = vmatprep.subr.mxu0 0.0
    %1565 = vmatpush1.msra.mxu0 0.0
    %1566 = vmatprep.subr.mxu0 0.0
    %1567 = vmatpush1.msra.mxu0 0.0
    %1568 = vmatprep.subr.mxu0 0.0
    %1569 = vmatpush1.msra.mxu0 0.0
    %1570 = vmatprep.mubr.f32.mxu0 0.0
    %1571 = vmatmul.mubr.f32.gmra.mrb[0].mxu0 %v1362
    %v1572 = vpop.f32.mrb[0].mxu0
    %v1573 = vadd.f32 0.0, %v1572
    %v1574 = vpop.f32.mrb[0].mxu0
    %v1575 = vadd.f32 0.0, %v1574
    %1576 = vdwg.mxu0
    %1577 = vmatprep.subr.mxu0 %v1350
    %1578 = vmatpush1.msra.mxu0 %v1349
    %1579 = vmatprep.subr.mxu0 0.0
    %1580 = vmatpush1.msra.mxu0 0.0
    %1581 = vmatprep.subr.mxu0 0.0
    %1582 = vmatpush1.msra.mxu0 0.0
    %1583 = vmatprep.subr.mxu0 0.0
    %1584 = vmatpush1.msra.mxu0 0.0
    %1585 = vmatprep.subr.mxu0 0.0
    %1586 = vmatpush1.msra.mxu0 0.0
    %1587 = vmatprep.subr.mxu0 0.0
    %1588 = vmatpush1.msra.mxu0 0.0
    %1589 = vmatprep.subr.mxu0 0.0
    %1590 = vmatpush1.msra.mxu0 0.0
    %1591 = vmatprep.subr.mxu0 0.0
    %1592 = vmatpush1.msra.mxu0 0.0
    %1593 = vmatprep.subr.mxu0 0.0
    %1594 = vmatpush1.msra.mxu0 0.0
    %1595 = vmatprep.subr.mxu0 0.0
    %1596 = vmatpush1.msra.mxu0 0.0
    %1597 = vmatprep.subr.mxu0 0.0
    %1598 = vmatpush1.msra.mxu0 0.0
    %1599 = vmatprep.subr.mxu0 0.0
    %1600 = vmatpush1.msra.mxu0 0.0
    %1601 = vmatprep.subr.mxu0 0.0
    %1602 = vmatpush1.msra.mxu0 0.0
    %1603 = vmatprep.subr.mxu0 0.0
    %1604 = vmatpush1.msra.mxu0 0.0
    %1605 = vmatprep.subr.mxu0 0.0
    %1606 = vmatpush1.msra.mxu0 0.0
    %1607 = vmatprep.subr.mxu0 0.0
    %1608 = vmatpush1.msra.mxu0 0.0
    %1609 = vmatprep.subr.mxu0 0.0
    %1610 = vmatpush1.msra.mxu0 0.0
    %1611 = vmatprep.subr.mxu0 0.0
    %1612 = vmatpush1.msra.mxu0 0.0
    %1613 = vmatprep.subr.mxu0 0.0
    %1614 = vmatpush1.msra.mxu0 0.0
    %1615 = vmatprep.subr.mxu0 0.0
    %1616 = vmatpush1.msra.mxu0 0.0
    %1617 = vmatprep.subr.mxu0 0.0
    %1618 = vmatpush1.msra.mxu0 0.0
    %1619 = vmatprep.subr.mxu0 0.0
    %1620 = vmatpush1.msra.mxu0 0.0
    %1621 = vmatprep.subr.mxu0 0.0
    %1622 = vmatpush1.msra.mxu0 0.0
    %1623 = vmatprep.subr.mxu0 0.0
    %1624 = vmatpush1.msra.mxu0 0.0
    %1625 = vmatprep.subr.mxu0 0.0
    %1626 = vmatpush1.msra.mxu0 0.0
    %1627 = vmatprep.subr.mxu0 0.0
    %1628 = vmatpush1.msra.mxu0 0.0
    %1629 = vmatprep.subr.mxu0 0.0
    %1630 = vmatpush1.msra.mxu0 0.0
    %1631 = vmatprep.subr.mxu0 0.0
    %1632 = vmatpush1.msra.mxu0 0.0
    %1633 = vmatprep.subr.mxu0 0.0
    %1634 = vmatpush1.msra.mxu0 0.0
    %1635 = vmatprep.subr.mxu0 0.0
    %1636 = vmatpush1.msra.mxu0 0.0
    %1637 = vmatprep.subr.mxu0 0.0
    %1638 = vmatpush1.msra.mxu0 0.0
    %1639 = vmatprep.subr.mxu0 0.0
    %1640 = vmatpush1.msra.mxu0 0.0
    %1641 = vmatprep.mubr.f32.mxu0 0.0
    %1642 = vmatmul.mubr.f32.gmra.mrb[0].mxu0 %v1362
    %v1643 = vpop.f32.mrb[0].mxu0
    %v1644 = vadd.f32 0.0, %v1643
    %v1645 = vpop.f32.mrb[0].mxu0
    %v1646 = vadd.f32 0.0, %v1645
    %1647 = vdwg.mxu0
    %1648 = vmatprep.subr.mxu0 0.0
    %1649 = vmatpush1.msra.mxu0 %v1351
    %1650 = vmatprep.subr.mxu0 0.0
    %1651 = vmatpush1.msra.mxu0 0.0
    %1652 = vmatprep.subr.mxu0 0.0
    %1653 = vmatpush1.msra.mxu0 0.0
    %1654 = vmatprep.subr.mxu0 0.0
    %1655 = vmatpush1.msra.mxu0 0.0
    %1656 = vmatprep.subr.mxu0 0.0
    %1657 = vmatpush1.msra.mxu0 0.0
    %1658 = vmatprep.subr.mxu0 0.0
    %1659 = vmatpush1.msra.mxu0 0.0
    %1660 = vmatprep.subr.mxu0 0.0
    %1661 = vmatpush1.msra.mxu0 0.0
    %1662 = vmatprep.subr.mxu0 0.0
    %1663 = vmatpush1.msra.mxu0 0.0
    %1664 = vmatprep.subr.mxu0 0.0
    %1665 = vmatpush1.msra.mxu0 0.0
    %1666 = vmatprep.subr.mxu0 0.0
    %1667 = vmatpush1.msra.mxu0 0.0
    %1668 = vmatprep.subr.mxu0 0.0
    %1669 = vmatpush1.msra.mxu0 0.0
    %1670 = vmatprep.subr.mxu0 0.0
    %1671 = vmatpush1.msra.mxu0 0.0
    %1672 = vmatprep.subr.mxu0 0.0
    %1673 = vmatpush1.msra.mxu0 0.0
    %1674 = vmatprep.subr.mxu0 0.0
    %1675 = vmatpush1.msra.mxu0 0.0
    %1676 = vmatprep.subr.mxu0 0.0
    %1677 = vmatpush1.msra.mxu0 0.0
    %1678 = vmatprep.subr.mxu0 0.0
    %1679 = vmatpush1.msra.mxu0 0.0
    %1680 = vmatprep.subr.mxu0 0.0
    %1681 = vmatpush1.msra.mxu0 0.0
    %1682 = vmatprep.subr.mxu0 0.0
    %1683 = vmatpush1.msra.mxu0 0.0
    %1684 = vmatprep.subr.mxu0 0.0
    %1685 = vmatpush1.msra.mxu0 0.0
    %1686 = vmatprep.subr.mxu0 0.0
    %1687 = vmatpush1.msra.mxu0 0.0
    %1688 = vmatprep.subr.mxu0 0.0
    %1689 = vmatpush1.msra.mxu0 0.0
    %1690 = vmatprep.subr.mxu0 0.0
    %1691 = vmatpush1.msra.mxu0 0.0
    %1692 = vmatprep.subr.mxu0 0.0
    %1693 = vmatpush1.msra.mxu0 0.0
    %1694 = vmatprep.subr.mxu0 0.0
    %1695 = vmatpush1.msra.mxu0 0.0
    %1696 = vmatprep.subr.mxu0 0.0
    %1697 = vmatpush1.msra.mxu0 0.0
    %1698 = vmatprep.subr.mxu0 0.0
    %1699 = vmatpush1.msra.mxu0 0.0
    %1700 = vmatprep.subr.mxu0 0.0
    %1701 = vmatpush1.msra.mxu0 0.0
    %1702 = vmatprep.subr.mxu0 0.0
    %1703 = vmatpush1.msra.mxu0 0.0
    %1704 = vmatprep.subr.mxu0 0.0
    %1705 = vmatpush1.msra.mxu0 0.0
    %1706 = vmatprep.subr.mxu0 0.0
    %1707 = vmatpush1.msra.mxu0 0.0
    %1708 = vmatprep.subr.mxu0 0.0
    %1709 = vmatpush1.msra.mxu0 0.0
    %1710 = vmatprep.subr.mxu0 0.0
    %1711 = vmatpush1.msra.mxu0 0.0
    %1712 = vmatprep.mubr.f32.mxu0 0.0
    %1713 = vmatmul.mubr.f32.gmra.mrb[0].mxu0 %v1362
    %v1714 = vpop.f32.mrb[0].mxu0
    %v1715 = vadd.f32 0.0, %v1714
    %v1716 = vpop.f32.mrb[0].mxu0
    %1717 = vdwg.mxu0
    %v1718 = vadd.f32 %v1311, %v1431
    %v1719 = vadd.f32 %v1312, %v1433
    %v1720 = vadd.f32 %v1313, %v1502
    %v1721 = vadd.f32 %v1314, %v1504
    %v1722 = vadd.f32 %v1315, %v1573
    %v1723 = vadd.f32 %v1316, %v1575
    %v1724 = vadd.f32 %v1317, %v1644
    %v1725 = vadd.f32 %v1318, %v1646
    %v1726 = vadd.f32 %v1319, %v1715
    %s1727 = scalar_lea.vmem %s1, 32
    %v1728 = vld [vmem:[%s1727] sm:$0xff]
    %1729 = vrot.lane.b32.xlu0 %v139, 111
    %v1730 = vpop.permute.xlu0 %1729
    %1731 = vrot.lane.b32.xlu0 %v140, 111
    %v1732 = vpop.permute.xlu0 %1731
    %1733 = vrot.lane.b32.xlu0 %v141, 111
    %v1734 = vpop.permute.xlu0 %1733
    %1735 = vrot.lane.b32.xlu0 %v142, 111
    %v1736 = vpop.permute.xlu0 %1735
    %1737 = vrot.lane.b32.xlu0 %v143, 111
    %v1738 = vpop.permute.xlu0 %1737
    %1739 = vrot.lane.b32.xlu0 %v144, 111
    %v1740 = vpop.permute.xlu0 %1739
    %1741 = vrot.lane.b32.xlu0 %v145, 111
    %v1742 = vpop.permute.xlu0 %1741
    %1743 = vrot.lane.b32.xlu0 %v146, 111
    %v1744 = vpop.permute.xlu0 %1743
    %1745 = vrot.lane.b32.xlu0 %v147, 111
    %v1746 = vpop.permute.xlu0 %1745
    %1747 = vrot.lane.b32.xlu0 %v148, 111
    %v1748 = vpop.permute.xlu0 %1747
    %vm1749 = vcmask 908288
    %v1750 = vsel %vm1749, %v1730, %v1732
    %v1751 = vsel %vm1749, %v1732, %v1734
    %v1752 = vsel %vm1749, %v1734, %v1736
    %v1753 = vsel %vm1749, %v1736, %v1738
    %v1754 = vsel %vm1749, %v1738, %v1740
    %v1755 = vsel %vm1749, %v1740, %v1742
    %v1756 = vsel %vm1749, %v1742, %v1744
    %v1757 = vsel %vm1749, %v1744, %v1746
    %v1758 = vsel %vm1749, %v1746, %v1748
    %v1769 = vsel %vm198, %v1728, 0
    %1771 = vmatprep.subr.mxu0 %v1751
    %1772 = vmatpush1.msra.mxu0 %v1750
    %1773 = vmatprep.subr.mxu0 0.0
    %1774 = vmatpush1.msra.mxu0 0.0
    %1775 = vmatprep.subr.mxu0 0.0
    %1776 = vmatpush1.msra.mxu0 0.0
    %1777 = vmatprep.subr.mxu0 0.0
    %1778 = vmatpush1.msra.mxu0 0.0
    %1779 = vmatprep.subr.mxu0 0.0
    %1780 = vmatpush1.msra.mxu0 0.0
    %1781 = vmatprep.subr.mxu0 0.0
    %1782 = vmatpush1.msra.mxu0 0.0
    %1783 = vmatprep.subr.mxu0 0.0
    %1784 = vmatpush1.msra.mxu0 0.0
    %1785 = vmatprep.subr.mxu0 0.0
    %1786 = vmatpush1.msra.mxu0 0.0
    %1787 = vmatprep.subr.mxu0 0.0
    %1788 = vmatpush1.msra.mxu0 0.0
    %1789 = vmatprep.subr.mxu0 0.0
    %1790 = vmatpush1.msra.mxu0 0.0
    %1791 = vmatprep.subr.mxu0 0.0
    %1792 = vmatpush1.msra.mxu0 0.0
    %1793 = vmatprep.subr.mxu0 0.0
    %1794 = vmatpush1.msra.mxu0 0.0
    %1795 = vmatprep.subr.mxu0 0.0
    %1796 = vmatpush1.msra.mxu0 0.0
    %1797 = vmatprep.subr.mxu0 0.0
    %1798 = vmatpush1.msra.mxu0 0.0
    %1799 = vmatprep.subr.mxu0 0.0
    %1800 = vmatpush1.msra.mxu0 0.0
    %1801 = vmatprep.subr.mxu0 0.0
    %1802 = vmatpush1.msra.mxu0 0.0
    %1803 = vmatprep.subr.mxu0 0.0
    %1804 = vmatpush1.msra.mxu0 0.0
    %1805 = vmatprep.subr.mxu0 0.0
    %1806 = vmatpush1.msra.mxu0 0.0
    %1807 = vmatprep.subr.mxu0 0.0
    %1808 = vmatpush1.msra.mxu0 0.0
    %1809 = vmatprep.subr.mxu0 0.0
    %1810 = vmatpush1.msra.mxu0 0.0
    %1811 = vmatprep.subr.mxu0 0.0
    %1812 = vmatpush1.msra.mxu0 0.0
    %1813 = vmatprep.subr.mxu0 0.0
    %1814 = vmatpush1.msra.mxu0 0.0
    %1815 = vmatprep.subr.mxu0 0.0
    %1816 = vmatpush1.msra.mxu0 0.0
    %1817 = vmatprep.subr.mxu0 0.0
    %1818 = vmatpush1.msra.mxu0 0.0
    %1819 = vmatprep.subr.mxu0 0.0
    %1820 = vmatpush1.msra.mxu0 0.0
    %1821 = vmatprep.subr.mxu0 0.0
    %1822 = vmatpush1.msra.mxu0 0.0
    %1823 = vmatprep.subr.mxu0 0.0
    %1824 = vmatpush1.msra.mxu0 0.0
    %1825 = vmatprep.subr.mxu0 0.0
    %1826 = vmatpush1.msra.mxu0 0.0
    %1827 = vmatprep.subr.mxu0 0.0
    %1828 = vmatpush1.msra.mxu0 0.0
    %1829 = vmatprep.subr.mxu0 0.0
    %1830 = vmatpush1.msra.mxu0 0.0
    %1831 = vmatprep.subr.mxu0 0.0
    %1832 = vmatpush1.msra.mxu0 0.0
    %1833 = vmatprep.subr.mxu0 0.0
    %1834 = vmatpush1.msra.mxu0 0.0
    %1835 = vmatprep.mubr.f32.mxu0 0.0
    %1836 = vmatmul.mubr.f32.gmra.mrb[0].mxu0 %v1769
    %v1837 = vpop.f32.mrb[0].mxu0
    %v1838 = vadd.f32 0.0, %v1837
    %v1839 = vpop.f32.mrb[0].mxu0
    %v1840 = vadd.f32 0.0, %v1839
    %1841 = vdwg.mxu0
    %1842 = vmatprep.subr.mxu0 %v1753
    %1843 = vmatpush1.msra.mxu0 %v1752
    %1844 = vmatprep.subr.mxu0 0.0
    %1845 = vmatpush1.msra.mxu0 0.0
    %1846 = vmatprep.subr.mxu0 0.0
    %1847 = vmatpush1.msra.mxu0 0.0
    %1848 = vmatprep.subr.mxu0 0.0
    %1849 = vmatpush1.msra.mxu0 0.0
    %1850 = vmatprep.subr.mxu0 0.0
    %1851 = vmatpush1.msra.mxu0 0.0
    %1852 = vmatprep.subr.mxu0 0.0
    %1853 = vmatpush1.msra.mxu0 0.0
    %1854 = vmatprep.subr.mxu0 0.0
    %1855 = vmatpush1.msra.mxu0 0.0
    %1856 = vmatprep.subr.mxu0 0.0
    %1857 = vmatpush1.msra.mxu0 0.0
    %1858 = vmatprep.subr.mxu0 0.0
    %1859 = vmatpush1.msra.mxu0 0.0
    %1860 = vmatprep.subr.mxu0 0.0
    %1861 = vmatpush1.msra.mxu0 0.0
    %1862 = vmatprep.subr.mxu0 0.0
    %1863 = vmatpush1.msra.mxu0 0.0
    %1864 = vmatprep.subr.mxu0 0.0
    %1865 = vmatpush1.msra.mxu0 0.0
    %1866 = vmatprep.subr.mxu0 0.0
    %1867 = vmatpush1.msra.mxu0 0.0
    %1868 = vmatprep.subr.mxu0 0.0
    %1869 = vmatpush1.msra.mxu0 0.0
    %1870 = vmatprep.subr.mxu0 0.0
    %1871 = vmatpush1.msra.mxu0 0.0
    %1872 = vmatprep.subr.mxu0 0.0
    %1873 = vmatpush1.msra.mxu0 0.0
    %1874 = vmatprep.subr.mxu0 0.0
    %1875 = vmatpush1.msra.mxu0 0.0
    %1876 = vmatprep.subr.mxu0 0.0
    %1877 = vmatpush1.msra.mxu0 0.0
    %1878 = vmatprep.subr.mxu0 0.0
    %1879 = vmatpush1.msra.mxu0 0.0
    %1880 = vmatprep.subr.mxu0 0.0
    %1881 = vmatpush1.msra.mxu0 0.0
    %1882 = vmatprep.subr.mxu0 0.0
    %1883 = vmatpush1.msra.mxu0 0.0
    %1884 = vmatprep.subr.mxu0 0.0
    %1885 = vmatpush1.msra.mxu0 0.0
    %1886 = vmatprep.subr.mxu0 0.0
    %1887 = vmatpush1.msra.mxu0 0.0
    %1888 = vmatprep.subr.mxu0 0.0
    %1889 = vmatpush1.msra.mxu0 0.0
    %1890 = vmatprep.subr.mxu0 0.0
    %1891 = vmatpush1.msra.mxu0 0.0
    %1892 = vmatprep.subr.mxu0 0.0
    %1893 = vmatpush1.msra.mxu0 0.0
    %1894 = vmatprep.subr.mxu0 0.0
    %1895 = vmatpush1.msra.mxu0 0.0
    %1896 = vmatprep.subr.mxu0 0.0
    %1897 = vmatpush1.msra.mxu0 0.0
    %1898 = vmatprep.subr.mxu0 0.0
    %1899 = vmatpush1.msra.mxu0 0.0
    %1900 = vmatprep.subr.mxu0 0.0
    %1901 = vmatpush1.msra.mxu0 0.0
    %1902 = vmatprep.subr.mxu0 0.0
    %1903 = vmatpush1.msra.mxu0 0.0
    %1904 = vmatprep.subr.mxu0 0.0
    %1905 = vmatpush1.msra.mxu0 0.0
    %1906 = vmatprep.mubr.f32.mxu0 0.0
    %1907 = vmatmul.mubr.f32.gmra.mrb[0].mxu0 %v1769
    %v1908 = vpop.f32.mrb[0].mxu0
    %v1909 = vadd.f32 0.0, %v1908
    %v1910 = vpop.f32.mrb[0].mxu0
    %v1911 = vadd.f32 0.0, %v1910
    %1912 = vdwg.mxu0
    %1913 = vmatprep.subr.mxu0 %v1755
    %1914 = vmatpush1.msra.mxu0 %v1754
    %1915 = vmatprep.subr.mxu0 0.0
    %1916 = vmatpush1.msra.mxu0 0.0
    %1917 = vmatprep.subr.mxu0 0.0
    %1918 = vmatpush1.msra.mxu0 0.0
    %1919 = vmatprep.subr.mxu0 0.0
    %1920 = vmatpush1.msra.mxu0 0.0
    %1921 = vmatprep.subr.mxu0 0.0
    %1922 = vmatpush1.msra.mxu0 0.0
    %1923 = vmatprep.subr.mxu0 0.0
    %1924 = vmatpush1.msra.mxu0 0.0
    %1925 = vmatprep.subr.mxu0 0.0
    %1926 = vmatpush1.msra.mxu0 0.0
    %1927 = vmatprep.subr.mxu0 0.0
    %1928 = vmatpush1.msra.mxu0 0.0
    %1929 = vmatprep.subr.mxu0 0.0
    %1930 = vmatpush1.msra.mxu0 0.0
    %1931 = vmatprep.subr.mxu0 0.0
    %1932 = vmatpush1.msra.mxu0 0.0
    %1933 = vmatprep.subr.mxu0 0.0
    %1934 = vmatpush1.msra.mxu0 0.0
    %1935 = vmatprep.subr.mxu0 0.0
    %1936 = vmatpush1.msra.mxu0 0.0
    %1937 = vmatprep.subr.mxu0 0.0
    %1938 = vmatpush1.msra.mxu0 0.0
    %1939 = vmatprep.subr.mxu0 0.0
    %1940 = vmatpush1.msra.mxu0 0.0
    %1941 = vmatprep.subr.mxu0 0.0
    %1942 = vmatpush1.msra.mxu0 0.0
    %1943 = vmatprep.subr.mxu0 0.0
    %1944 = vmatpush1.msra.mxu0 0.0
    %1945 = vmatprep.subr.mxu0 0.0
    %1946 = vmatpush1.msra.mxu0 0.0
    %1947 = vmatprep.subr.mxu0 0.0
    %1948 = vmatpush1.msra.mxu0 0.0
    %1949 = vmatprep.subr.mxu0 0.0
    %1950 = vmatpush1.msra.mxu0 0.0
    %1951 = vmatprep.subr.mxu0 0.0
    %1952 = vmatpush1.msra.mxu0 0.0
    %1953 = vmatprep.subr.mxu0 0.0
    %1954 = vmatpush1.msra.mxu0 0.0
    %1955 = vmatprep.subr.mxu0 0.0
    %1956 = vmatpush1.msra.mxu0 0.0
    %1957 = vmatprep.subr.mxu0 0.0
    %1958 = vmatpush1.msra.mxu0 0.0
    %1959 = vmatprep.subr.mxu0 0.0
    %1960 = vmatpush1.msra.mxu0 0.0
    %1961 = vmatprep.subr.mxu0 0.0
    %1962 = vmatpush1.msra.mxu0 0.0
    %1963 = vmatprep.subr.mxu0 0.0
    %1964 = vmatpush1.msra.mxu0 0.0
    %1965 = vmatprep.subr.mxu0 0.0
    %1966 = vmatpush1.msra.mxu0 0.0
    %1967 = vmatprep.subr.mxu0 0.0
    %1968 = vmatpush1.msra.mxu0 0.0
    %1969 = vmatprep.subr.mxu0 0.0
    %1970 = vmatpush1.msra.mxu0 0.0
    %1971 = vmatprep.subr.mxu0 0.0
    %1972 = vmatpush1.msra.mxu0 0.0
    %1973 = vmatprep.subr.mxu0 0.0
    %1974 = vmatpush1.msra.mxu0 0.0
    %1975 = vmatprep.subr.mxu0 0.0
    %1976 = vmatpush1.msra.mxu0 0.0
    %1977 = vmatprep.mubr.f32.mxu0 0.0
    %1978 = vmatmul.mubr.f32.gmra.mrb[0].mxu0 %v1769
    %v1979 = vpop.f32.mrb[0].mxu0
    %v1980 = vadd.f32 0.0, %v1979
    %v1981 = vpop.f32.mrb[0].mxu0
    %v1982 = vadd.f32 0.0, %v1981
    %1983 = vdwg.mxu0
    %1984 = vmatprep.subr.mxu0 %v1757
    %1985 = vmatpush1.msra.mxu0 %v1756
    %1986 = vmatprep.subr.mxu0 0.0
    %1987 = vmatpush1.msra.mxu0 0.0
    %1988 = vmatprep.subr.mxu0 0.0
    %1989 = vmatpush1.msra.mxu0 0.0
    %1990 = vmatprep.subr.mxu0 0.0
    %1991 = vmatpush1.msra.mxu0 0.0
    %1992 = vmatprep.subr.mxu0 0.0
    %1993 = vmatpush1.msra.mxu0 0.0
    %1994 = vmatprep.subr.mxu0 0.0
    %1995 = vmatpush1.msra.mxu0 0.0
    %1996 = vmatprep.subr.mxu0 0.0
    %1997 = vmatpush1.msra.mxu0 0.0
    %1998 = vmatprep.subr.mxu0 0.0
    %1999 = vmatpush1.msra.mxu0 0.0
    %2000 = vmatprep.subr.mxu0 0.0
    %2001 = vmatpush1.msra.mxu0 0.0
    %2002 = vmatprep.subr.mxu0 0.0
    %2003 = vmatpush1.msra.mxu0 0.0
    %2004 = vmatprep.subr.mxu0 0.0
    %2005 = vmatpush1.msra.mxu0 0.0
    %2006 = vmatprep.subr.mxu0 0.0
    %2007 = vmatpush1.msra.mxu0 0.0
    %2008 = vmatprep.subr.mxu0 0.0
    %2009 = vmatpush1.msra.mxu0 0.0
    %2010 = vmatprep.subr.mxu0 0.0
    %2011 = vmatpush1.msra.mxu0 0.0
    %2012 = vmatprep.subr.mxu0 0.0
    %2013 = vmatpush1.msra.mxu0 0.0
    %2014 = vmatprep.subr.mxu0 0.0
    %2015 = vmatpush1.msra.mxu0 0.0
    %2016 = vmatprep.subr.mxu0 0.0
    %2017 = vmatpush1.msra.mxu0 0.0
    %2018 = vmatprep.subr.mxu0 0.0
    %2019 = vmatpush1.msra.mxu0 0.0
    %2020 = vmatprep.subr.mxu0 0.0
    %2021 = vmatpush1.msra.mxu0 0.0
    %2022 = vmatprep.subr.mxu0 0.0
    %2023 = vmatpush1.msra.mxu0 0.0
    %2024 = vmatprep.subr.mxu0 0.0
    %2025 = vmatpush1.msra.mxu0 0.0
    %2026 = vmatprep.subr.mxu0 0.0
    %2027 = vmatpush1.msra.mxu0 0.0
    %2028 = vmatprep.subr.mxu0 0.0
    %2029 = vmatpush1.msra.mxu0 0.0
    %2030 = vmatprep.subr.mxu0 0.0
    %2031 = vmatpush1.msra.mxu0 0.0
    %2032 = vmatprep.subr.mxu0 0.0
    %2033 = vmatpush1.msra.mxu0 0.0
    %2034 = vmatprep.subr.mxu0 0.0
    %2035 = vmatpush1.msra.mxu0 0.0
    %2036 = vmatprep.subr.mxu0 0.0
    %2037 = vmatpush1.msra.mxu0 0.0
    %2038 = vmatprep.subr.mxu0 0.0
    %2039 = vmatpush1.msra.mxu0 0.0
    %2040 = vmatprep.subr.mxu0 0.0
    %2041 = vmatpush1.msra.mxu0 0.0
    %2042 = vmatprep.subr.mxu0 0.0
    %2043 = vmatpush1.msra.mxu0 0.0
    %2044 = vmatprep.subr.mxu0 0.0
    %2045 = vmatpush1.msra.mxu0 0.0
    %2046 = vmatprep.subr.mxu0 0.0
    %2047 = vmatpush1.msra.mxu0 0.0
    %2048 = vmatprep.mubr.f32.mxu0 0.0
    %2049 = vmatmul.mubr.f32.gmra.mrb[0].mxu0 %v1769
    %v2050 = vpop.f32.mrb[0].mxu0
    %v2051 = vadd.f32 0.0, %v2050
    %v2052 = vpop.f32.mrb[0].mxu0
    %v2053 = vadd.f32 0.0, %v2052
    %2054 = vdwg.mxu0
    %2055 = vmatprep.subr.mxu0 0.0
    %2056 = vmatpush1.msra.mxu0 %v1758
    %2057 = vmatprep.subr.mxu0 0.0
    %2058 = vmatpush1.msra.mxu0 0.0
    %2059 = vmatprep.subr.mxu0 0.0
    %2060 = vmatpush1.msra.mxu0 0.0
    %2061 = vmatprep.subr.mxu0 0.0
    %2062 = vmatpush1.msra.mxu0 0.0
    %2063 = vmatprep.subr.mxu0 0.0
    %2064 = vmatpush1.msra.mxu0 0.0
    %2065 = vmatprep.subr.mxu0 0.0
    %2066 = vmatpush1.msra.mxu0 0.0
    %2067 = vmatprep.subr.mxu0 0.0
    %2068 = vmatpush1.msra.mxu0 0.0
    %2069 = vmatprep.subr.mxu0 0.0
    %2070 = vmatpush1.msra.mxu0 0.0
    %2071 = vmatprep.subr.mxu0 0.0
    %2072 = vmatpush1.msra.mxu0 0.0
    %2073 = vmatprep.subr.mxu0 0.0
    %2074 = vmatpush1.msra.mxu0 0.0
    %2075 = vmatprep.subr.mxu0 0.0
    %2076 = vmatpush1.msra.mxu0 0.0
    %2077 = vmatprep.subr.mxu0 0.0
    %2078 = vmatpush1.msra.mxu0 0.0
    %2079 = vmatprep.subr.mxu0 0.0
    %2080 = vmatpush1.msra.mxu0 0.0
    %2081 = vmatprep.subr.mxu0 0.0
    %2082 = vmatpush1.msra.mxu0 0.0
    %2083 = vmatprep.subr.mxu0 0.0
    %2084 = vmatpush1.msra.mxu0 0.0
    %2085 = vmatprep.subr.mxu0 0.0
    %2086 = vmatpush1.msra.mxu0 0.0
    %2087 = vmatprep.subr.mxu0 0.0
    %2088 = vmatpush1.msra.mxu0 0.0
    %2089 = vmatprep.subr.mxu0 0.0
    %2090 = vmatpush1.msra.mxu0 0.0
    %2091 = vmatprep.subr.mxu0 0.0
    %2092 = vmatpush1.msra.mxu0 0.0
    %2093 = vmatprep.subr.mxu0 0.0
    %2094 = vmatpush1.msra.mxu0 0.0
    %2095 = vmatprep.subr.mxu0 0.0
    %2096 = vmatpush1.msra.mxu0 0.0
    %2097 = vmatprep.subr.mxu0 0.0
    %2098 = vmatpush1.msra.mxu0 0.0
    %2099 = vmatprep.subr.mxu0 0.0
    %2100 = vmatpush1.msra.mxu0 0.0
    %2101 = vmatprep.subr.mxu0 0.0
    %2102 = vmatpush1.msra.mxu0 0.0
    %2103 = vmatprep.subr.mxu0 0.0
    %2104 = vmatpush1.msra.mxu0 0.0
    %2105 = vmatprep.subr.mxu0 0.0
    %2106 = vmatpush1.msra.mxu0 0.0
    %2107 = vmatprep.subr.mxu0 0.0
    %2108 = vmatpush1.msra.mxu0 0.0
    %2109 = vmatprep.subr.mxu0 0.0
    %2110 = vmatpush1.msra.mxu0 0.0
    %2111 = vmatprep.subr.mxu0 0.0
    %2112 = vmatpush1.msra.mxu0 0.0
    %2113 = vmatprep.subr.mxu0 0.0
    %2114 = vmatpush1.msra.mxu0 0.0
    %2115 = vmatprep.subr.mxu0 0.0
    %2116 = vmatpush1.msra.mxu0 0.0
    %2117 = vmatprep.subr.mxu0 0.0
    %2118 = vmatpush1.msra.mxu0 0.0
    %2119 = vmatprep.mubr.f32.mxu0 0.0
    %2120 = vmatmul.mubr.f32.gmra.mrb[0].mxu0 %v1769
    %v2121 = vpop.f32.mrb[0].mxu0
    %v2122 = vadd.f32 0.0, %v2121
    %v2123 = vpop.f32.mrb[0].mxu0
    %2124 = vdwg.mxu0
    %v2125 = vadd.f32 %v1718, %v1838
    %v2126 = vadd.f32 %v1719, %v1840
    %v2127 = vadd.f32 %v1720, %v1909
    %v2128 = vadd.f32 %v1721, %v1911
    %v2129 = vadd.f32 %v1722, %v1980
    %v2130 = vadd.f32 %v1723, %v1982
    %v2131 = vadd.f32 %v1724, %v2051
    %v2132 = vadd.f32 %v1725, %v2053
    %v2133 = vadd.f32 %v1726, %v2122
    %s2134 = scalar_lea.vmem %s1, 40
    %v2135 = vld [vmem:[%s2134] sm:$0xff]
    %2136 = vrot.lane.b32.xlu0 %v139, 110
    %v2137 = vpop.permute.xlu0 %2136
    %2138 = vrot.lane.b32.xlu0 %v140, 110
    %v2139 = vpop.permute.xlu0 %2138
    %2140 = vrot.lane.b32.xlu0 %v141, 110
    %v2141 = vpop.permute.xlu0 %2140
    %2142 = vrot.lane.b32.xlu0 %v142, 110
    %v2143 = vpop.permute.xlu0 %2142
    %2144 = vrot.lane.b32.xlu0 %v143, 110
    %v2145 = vpop.permute.xlu0 %2144
    %2146 = vrot.lane.b32.xlu0 %v144, 110
    %v2147 = vpop.permute.xlu0 %2146
    %2148 = vrot.lane.b32.xlu0 %v145, 110
    %v2149 = vpop.permute.xlu0 %2148
    %2150 = vrot.lane.b32.xlu0 %v146, 110
    %v2151 = vpop.permute.xlu0 %2150
    %2152 = vrot.lane.b32.xlu0 %v147, 110
    %v2153 = vpop.permute.xlu0 %2152
    %2154 = vrot.lane.b32.xlu0 %v148, 110
    %v2155 = vpop.permute.xlu0 %2154
    %vm2156 = vcmask 900096
    %v2157 = vsel %vm2156, %v2137, %v2139
    %v2158 = vsel %vm2156, %v2139, %v2141
    %v2159 = vsel %vm2156, %v2141, %v2143
    %v2160 = vsel %vm2156, %v2143, %v2145
    %v2161 = vsel %vm2156, %v2145, %v2147
    %v2162 = vsel %vm2156, %v2147, %v2149
    %v2163 = vsel %vm2156, %v2149, %v2151
    %v2164 = vsel %vm2156, %v2151, %v2153
    %v2165 = vsel %vm2156, %v2153, %v2155
    %v2176 = vsel %vm198, %v2135, 0
    %2178 = vmatprep.subr.mxu0 %v2158
    %2179 = vmatpush1.msra.mxu0 %v2157
    %2180 = vmatprep.subr.mxu0 0.0
    %2181 = vmatpush1.msra.mxu0 0.0
    %2182 = vmatprep.subr.mxu0 0.0
    %2183 = vmatpush1.msra.mxu0 0.0
    %2184 = vmatprep.subr.mxu0 0.0
    %2185 = vmatpush1.msra.mxu0 0.0
    %2186 = vmatprep.subr.mxu0 0.0
    %2187 = vmatpush1.msra.mxu0 0.0
    %2188 = vmatprep.subr.mxu0 0.0
    %2189 = vmatpush1.msra.mxu0 0.0
    %2190 = vmatprep.subr.mxu0 0.0
    %2191 = vmatpush1.msra.mxu0 0.0
    %2192 = vmatprep.subr.mxu0 0.0
    %2193 = vmatpush1.msra.mxu0 0.0
    %2194 = vmatprep.subr.mxu0 0.0
    %2195 = vmatpush1.msra.mxu0 0.0
    %2196 = vmatprep.subr.mxu0 0.0
    %2197 = vmatpush1.msra.mxu0 0.0
    %2198 = vmatprep.subr.mxu0 0.0
    %2199 = vmatpush1.msra.mxu0 0.0
    %2200 = vmatprep.subr.mxu0 0.0
    %2201 = vmatpush1.msra.mxu0 0.0
    %2202 = vmatprep.subr.mxu0 0.0
    %2203 = vmatpush1.msra.mxu0 0.0
    %2204 = vmatprep.subr.mxu0 0.0
    %2205 = vmatpush1.msra.mxu0 0.0
    %2206 = vmatprep.subr.mxu0 0.0
    %2207 = vmatpush1.msra.mxu0 0.0
    %2208 = vmatprep.subr.mxu0 0.0
    %2209 = vmatpush1.msra.mxu0 0.0
    %2210 = vmatprep.subr.mxu0 0.0
    %2211 = vmatpush1.msra.mxu0 0.0
    %2212 = vmatprep.subr.mxu0 0.0
    %2213 = vmatpush1.msra.mxu0 0.0
    %2214 = vmatprep.subr.mxu0 0.0
    %2215 = vmatpush1.msra.mxu0 0.0
    %2216 = vmatprep.subr.mxu0 0.0
    %2217 = vmatpush1.msra.mxu0 0.0
    %2218 = vmatprep.subr.mxu0 0.0
    %2219 = vmatpush1.msra.mxu0 0.0
    %2220 = vmatprep.subr.mxu0 0.0
    %2221 = vmatpush1.msra.mxu0 0.0
    %2222 = vmatprep.subr.mxu0 0.0
    %2223 = vmatpush1.msra.mxu0 0.0
    %2224 = vmatprep.subr.mxu0 0.0
    %2225 = vmatpush1.msra.mxu0 0.0
    %2226 = vmatprep.subr.mxu0 0.0
    %2227 = vmatpush1.msra.mxu0 0.0
    %2228 = vmatprep.subr.mxu0 0.0
    %2229 = vmatpush1.msra.mxu0 0.0
    %2230 = vmatprep.subr.mxu0 0.0
    %2231 = vmatpush1.msra.mxu0 0.0
    %2232 = vmatprep.subr.mxu0 0.0
    %2233 = vmatpush1.msra.mxu0 0.0
    %2234 = vmatprep.subr.mxu0 0.0
    %2235 = vmatpush1.msra.mxu0 0.0
    %2236 = vmatprep.subr.mxu0 0.0
    %2237 = vmatpush1.msra.mxu0 0.0
    %2238 = vmatprep.subr.mxu0 0.0
    %2239 = vmatpush1.msra.mxu0 0.0
    %2240 = vmatprep.subr.mxu0 0.0
    %2241 = vmatpush1.msra.mxu0 0.0
    %2242 = vmatprep.mubr.f32.mxu0 0.0
    %2243 = vmatmul.mubr.f32.gmra.mrb[0].mxu0 %v2176
    %v2244 = vpop.f32.mrb[0].mxu0
    %v2245 = vadd.f32 0.0, %v2244
    %v2246 = vpop.f32.mrb[0].mxu0
    %v2247 = vadd.f32 0.0, %v2246
    %2248 = vdwg.mxu0
    %2249 = vmatprep.subr.mxu0 %v2160
    %2250 = vmatpush1.msra.mxu0 %v2159
    %2251 = vmatprep.subr.mxu0 0.0
    %2252 = vmatpush1.msra.mxu0 0.0
    %2253 = vmatprep.subr.mxu0 0.0
    %2254 = vmatpush1.msra.mxu0 0.0
    %2255 = vmatprep.subr.mxu0 0.0
    %2256 = vmatpush1.msra.mxu0 0.0
    %2257 = vmatprep.subr.mxu0 0.0
    %2258 = vmatpush1.msra.mxu0 0.0
    %2259 = vmatprep.subr.mxu0 0.0
    %2260 = vmatpush1.msra.mxu0 0.0
    %2261 = vmatprep.subr.mxu0 0.0
    %2262 = vmatpush1.msra.mxu0 0.0
    %2263 = vmatprep.subr.mxu0 0.0
    %2264 = vmatpush1.msra.mxu0 0.0
    %2265 = vmatprep.subr.mxu0 0.0
    %2266 = vmatpush1.msra.mxu0 0.0
    %2267 = vmatprep.subr.mxu0 0.0
    %2268 = vmatpush1.msra.mxu0 0.0
    %2269 = vmatprep.subr.mxu0 0.0
    %2270 = vmatpush1.msra.mxu0 0.0
    %2271 = vmatprep.subr.mxu0 0.0
    %2272 = vmatpush1.msra.mxu0 0.0
    %2273 = vmatprep.subr.mxu0 0.0
    %2274 = vmatpush1.msra.mxu0 0.0
    %2275 = vmatprep.subr.mxu0 0.0
    %2276 = vmatpush1.msra.mxu0 0.0
    %2277 = vmatprep.subr.mxu0 0.0
    %2278 = vmatpush1.msra.mxu0 0.0
    %2279 = vmatprep.subr.mxu0 0.0
    %2280 = vmatpush1.msra.mxu0 0.0
    %2281 = vmatprep.subr.mxu0 0.0
    %2282 = vmatpush1.msra.mxu0 0.0
    %2283 = vmatprep.subr.mxu0 0.0
    %2284 = vmatpush1.msra.mxu0 0.0
    %2285 = vmatprep.subr.mxu0 0.0
    %2286 = vmatpush1.msra.mxu0 0.0
    %2287 = vmatprep.subr.mxu0 0.0
    %2288 = vmatpush1.msra.mxu0 0.0
    %2289 = vmatprep.subr.mxu0 0.0
    %2290 = vmatpush1.msra.mxu0 0.0
    %2291 = vmatprep.subr.mxu0 0.0
    %2292 = vmatpush1.msra.mxu0 0.0
    %2293 = vmatprep.subr.mxu0 0.0
    %2294 = vmatpush1.msra.mxu0 0.0
    %2295 = vmatprep.subr.mxu0 0.0
    %2296 = vmatpush1.msra.mxu0 0.0
    %2297 = vmatprep.subr.mxu0 0.0
    %2298 = vmatpush1.msra.mxu0 0.0
    %2299 = vmatprep.subr.mxu0 0.0
    %2300 = vmatpush1.msra.mxu0 0.0
    %2301 = vmatprep.subr.mxu0 0.0
    %2302 = vmatpush1.msra.mxu0 0.0
    %2303 = vmatprep.subr.mxu0 0.0
    %2304 = vmatpush1.msra.mxu0 0.0
    %2305 = vmatprep.subr.mxu0 0.0
    %2306 = vmatpush1.msra.mxu0 0.0
    %2307 = vmatprep.subr.mxu0 0.0
    %2308 = vmatpush1.msra.mxu0 0.0
    %2309 = vmatprep.subr.mxu0 0.0
    %2310 = vmatpush1.msra.mxu0 0.0
    %2311 = vmatprep.subr.mxu0 0.0
    %2312 = vmatpush1.msra.mxu0 0.0
    %2313 = vmatprep.mubr.f32.mxu0 0.0
    %2314 = vmatmul.mubr.f32.gmra.mrb[0].mxu0 %v2176
    %v2315 = vpop.f32.mrb[0].mxu0
    %v2316 = vadd.f32 0.0, %v2315
    %v2317 = vpop.f32.mrb[0].mxu0
    %v2318 = vadd.f32 0.0, %v2317
    %2319 = vdwg.mxu0
    %2320 = vmatprep.subr.mxu0 %v2162
    %2321 = vmatpush1.msra.mxu0 %v2161
    %2322 = vmatprep.subr.mxu0 0.0
    %2323 = vmatpush1.msra.mxu0 0.0
    %2324 = vmatprep.subr.mxu0 0.0
    %2325 = vmatpush1.msra.mxu0 0.0
    %2326 = vmatprep.subr.mxu0 0.0
    %2327 = vmatpush1.msra.mxu0 0.0
    %2328 = vmatprep.subr.mxu0 0.0
    %2329 = vmatpush1.msra.mxu0 0.0
    %2330 = vmatprep.subr.mxu0 0.0
    %2331 = vmatpush1.msra.mxu0 0.0
    %2332 = vmatprep.subr.mxu0 0.0
    %2333 = vmatpush1.msra.mxu0 0.0
    %2334 = vmatprep.subr.mxu0 0.0
    %2335 = vmatpush1.msra.mxu0 0.0
    %2336 = vmatprep.subr.mxu0 0.0
    %2337 = vmatpush1.msra.mxu0 0.0
    %2338 = vmatprep.subr.mxu0 0.0
    %2339 = vmatpush1.msra.mxu0 0.0
    %2340 = vmatprep.subr.mxu0 0.0
    %2341 = vmatpush1.msra.mxu0 0.0
    %2342 = vmatprep.subr.mxu0 0.0
    %2343 = vmatpush1.msra.mxu0 0.0
    %2344 = vmatprep.subr.mxu0 0.0
    %2345 = vmatpush1.msra.mxu0 0.0
    %2346 = vmatprep.subr.mxu0 0.0
    %2347 = vmatpush1.msra.mxu0 0.0
    %2348 = vmatprep.subr.mxu0 0.0
    %2349 = vmatpush1.msra.mxu0 0.0
    %2350 = vmatprep.subr.mxu0 0.0
    %2351 = vmatpush1.msra.mxu0 0.0
    %2352 = vmatprep.subr.mxu0 0.0
    %2353 = vmatpush1.msra.mxu0 0.0
    %2354 = vmatprep.subr.mxu0 0.0
    %2355 = vmatpush1.msra.mxu0 0.0
    %2356 = vmatprep.subr.mxu0 0.0
    %2357 = vmatpush1.msra.mxu0 0.0
    %2358 = vmatprep.subr.mxu0 0.0
    %2359 = vmatpush1.msra.mxu0 0.0
    %2360 = vmatprep.subr.mxu0 0.0
    %2361 = vmatpush1.msra.mxu0 0.0
    %2362 = vmatprep.subr.mxu0 0.0
    %2363 = vmatpush1.msra.mxu0 0.0
    %2364 = vmatprep.subr.mxu0 0.0
    %2365 = vmatpush1.msra.mxu0 0.0
    %2366 = vmatprep.subr.mxu0 0.0
    %2367 = vmatpush1.msra.mxu0 0.0
    %2368 = vmatprep.subr.mxu0 0.0
    %2369 = vmatpush1.msra.mxu0 0.0
    %2370 = vmatprep.subr.mxu0 0.0
    %2371 = vmatpush1.msra.mxu0 0.0
    %2372 = vmatprep.subr.mxu0 0.0
    %2373 = vmatpush1.msra.mxu0 0.0
    %2374 = vmatprep.subr.mxu0 0.0
    %2375 = vmatpush1.msra.mxu0 0.0
    %2376 = vmatprep.subr.mxu0 0.0
    %2377 = vmatpush1.msra.mxu0 0.0
    %2378 = vmatprep.subr.mxu0 0.0
    %2379 = vmatpush1.msra.mxu0 0.0
    %2380 = vmatprep.subr.mxu0 0.0
    %2381 = vmatpush1.msra.mxu0 0.0
    %2382 = vmatprep.subr.mxu0 0.0
    %2383 = vmatpush1.msra.mxu0 0.0
    %2384 = vmatprep.mubr.f32.mxu0 0.0
    %2385 = vmatmul.mubr.f32.gmra.mrb[0].mxu0 %v2176
    %v2386 = vpop.f32.mrb[0].mxu0
    %v2387 = vadd.f32 0.0, %v2386
    %v2388 = vpop.f32.mrb[0].mxu0
    %v2389 = vadd.f32 0.0, %v2388
    %2390 = vdwg.mxu0
    %2391 = vmatprep.subr.mxu0 %v2164
    %2392 = vmatpush1.msra.mxu0 %v2163
    %2393 = vmatprep.subr.mxu0 0.0
    %2394 = vmatpush1.msra.mxu0 0.0
    %2395 = vmatprep.subr.mxu0 0.0
    %2396 = vmatpush1.msra.mxu0 0.0
    %2397 = vmatprep.subr.mxu0 0.0
    %2398 = vmatpush1.msra.mxu0 0.0
    %2399 = vmatprep.subr.mxu0 0.0
    %2400 = vmatpush1.msra.mxu0 0.0
    %2401 = vmatprep.subr.mxu0 0.0
    %2402 = vmatpush1.msra.mxu0 0.0
    %2403 = vmatprep.subr.mxu0 0.0
    %2404 = vmatpush1.msra.mxu0 0.0
    %2405 = vmatprep.subr.mxu0 0.0
    %2406 = vmatpush1.msra.mxu0 0.0
    %2407 = vmatprep.subr.mxu0 0.0
    %2408 = vmatpush1.msra.mxu0 0.0
    %2409 = vmatprep.subr.mxu0 0.0
    %2410 = vmatpush1.msra.mxu0 0.0
    %2411 = vmatprep.subr.mxu0 0.0
    %2412 = vmatpush1.msra.mxu0 0.0
    %2413 = vmatprep.subr.mxu0 0.0
    %2414 = vmatpush1.msra.mxu0 0.0
    %2415 = vmatprep.subr.mxu0 0.0
    %2416 = vmatpush1.msra.mxu0 0.0
    %2417 = vmatprep.subr.mxu0 0.0
    %2418 = vmatpush1.msra.mxu0 0.0
    %2419 = vmatprep.subr.mxu0 0.0
    %2420 = vmatpush1.msra.mxu0 0.0
    %2421 = vmatprep.subr.mxu0 0.0
    %2422 = vmatpush1.msra.mxu0 0.0
    %2423 = vmatprep.subr.mxu0 0.0
    %2424 = vmatpush1.msra.mxu0 0.0
    %2425 = vmatprep.subr.mxu0 0.0
    %2426 = vmatpush1.msra.mxu0 0.0
    %2427 = vmatprep.subr.mxu0 0.0
    %2428 = vmatpush1.msra.mxu0 0.0
    %2429 = vmatprep.subr.mxu0 0.0
    %2430 = vmatpush1.msra.mxu0 0.0
    %2431 = vmatprep.subr.mxu0 0.0
    %2432 = vmatpush1.msra.mxu0 0.0
    %2433 = vmatprep.subr.mxu0 0.0
    %2434 = vmatpush1.msra.mxu0 0.0
    %2435 = vmatprep.subr.mxu0 0.0
    %2436 = vmatpush1.msra.mxu0 0.0
    %2437 = vmatprep.subr.mxu0 0.0
    %2438 = vmatpush1.msra.mxu0 0.0
    %2439 = vmatprep.subr.mxu0 0.0
    %2440 = vmatpush1.msra.mxu0 0.0
    %2441 = vmatprep.subr.mxu0 0.0
    %2442 = vmatpush1.msra.mxu0 0.0
    %2443 = vmatprep.subr.mxu0 0.0
    %2444 = vmatpush1.msra.mxu0 0.0
    %2445 = vmatprep.subr.mxu0 0.0
    %2446 = vmatpush1.msra.mxu0 0.0
    %2447 = vmatprep.subr.mxu0 0.0
    %2448 = vmatpush1.msra.mxu0 0.0
    %2449 = vmatprep.subr.mxu0 0.0
    %2450 = vmatpush1.msra.mxu0 0.0
    %2451 = vmatprep.subr.mxu0 0.0
    %2452 = vmatpush1.msra.mxu0 0.0
    %2453 = vmatprep.subr.mxu0 0.0
    %2454 = vmatpush1.msra.mxu0 0.0
    %2455 = vmatprep.mubr.f32.mxu0 0.0
    %2456 = vmatmul.mubr.f32.gmra.mrb[0].mxu0 %v2176
    %v2457 = vpop.f32.mrb[0].mxu0
    %v2458 = vadd.f32 0.0, %v2457
    %v2459 = vpop.f32.mrb[0].mxu0
    %v2460 = vadd.f32 0.0, %v2459
    %2461 = vdwg.mxu0
    %2462 = vmatprep.subr.mxu0 0.0
    %2463 = vmatpush1.msra.mxu0 %v2165
    %2464 = vmatprep.subr.mxu0 0.0
    %2465 = vmatpush1.msra.mxu0 0.0
    %2466 = vmatprep.subr.mxu0 0.0
    %2467 = vmatpush1.msra.mxu0 0.0
    %2468 = vmatprep.subr.mxu0 0.0
    %2469 = vmatpush1.msra.mxu0 0.0
    %2470 = vmatprep.subr.mxu0 0.0
    %2471 = vmatpush1.msra.mxu0 0.0
    %2472 = vmatprep.subr.mxu0 0.0
    %2473 = vmatpush1.msra.mxu0 0.0
    %2474 = vmatprep.subr.mxu0 0.0
    %2475 = vmatpush1.msra.mxu0 0.0
    %2476 = vmatprep.subr.mxu0 0.0
    %2477 = vmatpush1.msra.mxu0 0.0
    %2478 = vmatprep.subr.mxu0 0.0
    %2479 = vmatpush1.msra.mxu0 0.0
    %2480 = vmatprep.subr.mxu0 0.0
    %2481 = vmatpush1.msra.mxu0 0.0
    %2482 = vmatprep.subr.mxu0 0.0
    %2483 = vmatpush1.msra.mxu0 0.0
    %2484 = vmatprep.subr.mxu0 0.0
    %2485 = vmatpush1.msra.mxu0 0.0
    %2486 = vmatprep.subr.mxu0 0.0
    %2487 = vmatpush1.msra.mxu0 0.0
    %2488 = vmatprep.subr.mxu0 0.0
    %2489 = vmatpush1.msra.mxu0 0.0
    %2490 = vmatprep.subr.mxu0 0.0
    %2491 = vmatpush1.msra.mxu0 0.0
    %2492 = vmatprep.subr.mxu0 0.0
    %2493 = vmatpush1.msra.mxu0 0.0
    %2494 = vmatprep.subr.mxu0 0.0
    %2495 = vmatpush1.msra.mxu0 0.0
    %2496 = vmatprep.subr.mxu0 0.0
    %2497 = vmatpush1.msra.mxu0 0.0
    %2498 = vmatprep.subr.mxu0 0.0
    %2499 = vmatpush1.msra.mxu0 0.0
    %2500 = vmatprep.subr.mxu0 0.0
    %2501 = vmatpush1.msra.mxu0 0.0
    %2502 = vmatprep.subr.mxu0 0.0
    %2503 = vmatpush1.msra.mxu0 0.0
    %2504 = vmatprep.subr.mxu0 0.0
    %2505 = vmatpush1.msra.mxu0 0.0
    %2506 = vmatprep.subr.mxu0 0.0
    %2507 = vmatpush1.msra.mxu0 0.0
    %2508 = vmatprep.subr.mxu0 0.0
    %2509 = vmatpush1.msra.mxu0 0.0
    %2510 = vmatprep.subr.mxu0 0.0
    %2511 = vmatpush1.msra.mxu0 0.0
    %2512 = vmatprep.subr.mxu0 0.0
    %2513 = vmatpush1.msra.mxu0 0.0
    %2514 = vmatprep.subr.mxu0 0.0
    %2515 = vmatpush1.msra.mxu0 0.0
    %2516 = vmatprep.subr.mxu0 0.0
    %2517 = vmatpush1.msra.mxu0 0.0
    %2518 = vmatprep.subr.mxu0 0.0
    %2519 = vmatpush1.msra.mxu0 0.0
    %2520 = vmatprep.subr.mxu0 0.0
    %2521 = vmatpush1.msra.mxu0 0.0
    %2522 = vmatprep.subr.mxu0 0.0
    %2523 = vmatpush1.msra.mxu0 0.0
    %2524 = vmatprep.subr.mxu0 0.0
    %2525 = vmatpush1.msra.mxu0 0.0
    %2526 = vmatprep.mubr.f32.mxu0 0.0
    %2527 = vmatmul.mubr.f32.gmra.mrb[0].mxu0 %v2176
    %v2528 = vpop.f32.mrb[0].mxu0
    %v2529 = vadd.f32 0.0, %v2528
    %v2530 = vpop.f32.mrb[0].mxu0
    %2531 = vdwg.mxu0
    %v2532 = vadd.f32 %v2125, %v2245
    %v2533 = vadd.f32 %v2126, %v2247
    %v2534 = vadd.f32 %v2127, %v2316
    %v2535 = vadd.f32 %v2128, %v2318
    %v2536 = vadd.f32 %v2129, %v2387
    %v2537 = vadd.f32 %v2130, %v2389
    %v2538 = vadd.f32 %v2131, %v2458
    %v2539 = vadd.f32 %v2132, %v2460
    %v2540 = vadd.f32 %v2133, %v2529
    %s2541 = scalar_lea.vmem %s1, 48
    %v2542 = vld [vmem:[%s2541] sm:$0xff]
    %2543 = vrot.lane.b32.xlu0 %v139, 96
    %v2544 = vpop.permute.xlu0 %2543
    %2545 = vrot.lane.b32.xlu0 %v140, 96
    %v2546 = vpop.permute.xlu0 %2545
    %2547 = vrot.lane.b32.xlu0 %v141, 96
    %v2548 = vpop.permute.xlu0 %2547
    %2549 = vrot.lane.b32.xlu0 %v142, 96
    %v2550 = vpop.permute.xlu0 %2549
    %2551 = vrot.lane.b32.xlu0 %v143, 96
    %v2552 = vpop.permute.xlu0 %2551
    %2553 = vrot.lane.b32.xlu0 %v144, 96
    %v2554 = vpop.permute.xlu0 %2553
    %2555 = vrot.lane.b32.xlu0 %v145, 96
    %v2556 = vpop.permute.xlu0 %2555
    %2557 = vrot.lane.b32.xlu0 %v146, 96
    %v2558 = vpop.permute.xlu0 %2557
    %2559 = vrot.lane.b32.xlu0 %v147, 96
    %v2560 = vpop.permute.xlu0 %2559
    %2561 = vrot.lane.b32.xlu0 %v148, 96
    %v2562 = vpop.permute.xlu0 %2561
    %vm2563 = vcmask 785408
    %v2564 = vsel %vm2563, %v2544, %v2546
    %v2565 = vsel %vm2563, %v2546, %v2548
    %v2566 = vsel %vm2563, %v2548, %v2550
    %v2567 = vsel %vm2563, %v2550, %v2552
    %v2568 = vsel %vm2563, %v2552, %v2554
    %v2569 = vsel %vm2563, %v2554, %v2556
    %v2570 = vsel %vm2563, %v2556, %v2558
    %v2571 = vsel %vm2563, %v2558, %v2560
    %v2572 = vsel %vm2563, %v2560, %v2562
    %v2583 = vsel %vm198, %v2542, 0
    %2585 = vmatprep.subr.mxu0 %v2565
    %2586 = vmatpush1.msra.mxu0 %v2564
    %2587 = vmatprep.subr.mxu0 0.0
    %2588 = vmatpush1.msra.mxu0 0.0
    %2589 = vmatprep.subr.mxu0 0.0
    %2590 = vmatpush1.msra.mxu0 0.0
    %2591 = vmatprep.subr.mxu0 0.0
    %2592 = vmatpush1.msra.mxu0 0.0
    %2593 = vmatprep.subr.mxu0 0.0
    %2594 = vmatpush1.msra.mxu0 0.0
    %2595 = vmatprep.subr.mxu0 0.0
    %2596 = vmatpush1.msra.mxu0 0.0
    %2597 = vmatprep.subr.mxu0 0.0
    %2598 = vmatpush1.msra.mxu0 0.0
    %2599 = vmatprep.subr.mxu0 0.0
    %2600 = vmatpush1.msra.mxu0 0.0
    %2601 = vmatprep.subr.mxu0 0.0
    %2602 = vmatpush1.msra.mxu0 0.0
    %2603 = vmatprep.subr.mxu0 0.0
    %2604 = vmatpush1.msra.mxu0 0.0
    %2605 = vmatprep.subr.mxu0 0.0
    %2606 = vmatpush1.msra.mxu0 0.0
    %2607 = vmatprep.subr.mxu0 0.0
    %2608 = vmatpush1.msra.mxu0 0.0
    %2609 = vmatprep.subr.mxu0 0.0
    %2610 = vmatpush1.msra.mxu0 0.0
    %2611 = vmatprep.subr.mxu0 0.0
    %2612 = vmatpush1.msra.mxu0 0.0
    %2613 = vmatprep.subr.mxu0 0.0
    %2614 = vmatpush1.msra.mxu0 0.0
    %2615 = vmatprep.subr.mxu0 0.0
    %2616 = vmatpush1.msra.mxu0 0.0
    %2617 = vmatprep.subr.mxu0 0.0
    %2618 = vmatpush1.msra.mxu0 0.0
    %2619 = vmatprep.subr.mxu0 0.0
    %2620 = vmatpush1.msra.mxu0 0.0
    %2621 = vmatprep.subr.mxu0 0.0
    %2622 = vmatpush1.msra.mxu0 0.0
    %2623 = vmatprep.subr.mxu0 0.0
    %2624 = vmatpush1.msra.mxu0 0.0
    %2625 = vmatprep.subr.mxu0 0.0
    %2626 = vmatpush1.msra.mxu0 0.0
    %2627 = vmatprep.subr.mxu0 0.0
    %2628 = vmatpush1.msra.mxu0 0.0
    %2629 = vmatprep.subr.mxu0 0.0
    %2630 = vmatpush1.msra.mxu0 0.0
    %2631 = vmatprep.subr.mxu0 0.0
    %2632 = vmatpush1.msra.mxu0 0.0
    %2633 = vmatprep.subr.mxu0 0.0
    %2634 = vmatpush1.msra.mxu0 0.0
    %2635 = vmatprep.subr.mxu0 0.0
    %2636 = vmatpush1.msra.mxu0 0.0
    %2637 = vmatprep.subr.mxu0 0.0
    %2638 = vmatpush1.msra.mxu0 0.0
    %2639 = vmatprep.subr.mxu0 0.0
    %2640 = vmatpush1.msra.mxu0 0.0
    %2641 = vmatprep.subr.mxu0 0.0
    %2642 = vmatpush1.msra.mxu0 0.0
    %2643 = vmatprep.subr.mxu0 0.0
    %2644 = vmatpush1.msra.mxu0 0.0
    %2645 = vmatprep.subr.mxu0 0.0
    %2646 = vmatpush1.msra.mxu0 0.0
    %2647 = vmatprep.subr.mxu0 0.0
    %2648 = vmatpush1.msra.mxu0 0.0
    %2649 = vmatprep.mubr.f32.mxu0 0.0
    %2650 = vmatmul.mubr.f32.gmra.mrb[0].mxu0 %v2583
    %v2651 = vpop.f32.mrb[0].mxu0
    %v2652 = vadd.f32 0.0, %v2651
    %v2653 = vpop.f32.mrb[0].mxu0
    %v2654 = vadd.f32 0.0, %v2653
    %2655 = vdwg.mxu0
    %2656 = vmatprep.subr.mxu0 %v2567
    %2657 = vmatpush1.msra.mxu0 %v2566
    %2658 = vmatprep.subr.mxu0 0.0
    %2659 = vmatpush1.msra.mxu0 0.0
    %2660 = vmatprep.subr.mxu0 0.0
    %2661 = vmatpush1.msra.mxu0 0.0
    %2662 = vmatprep.subr.mxu0 0.0
    %2663 = vmatpush1.msra.mxu0 0.0
    %2664 = vmatprep.subr.mxu0 0.0
    %2665 = vmatpush1.msra.mxu0 0.0
    %2666 = vmatprep.subr.mxu0 0.0
    %2667 = vmatpush1.msra.mxu0 0.0
    %2668 = vmatprep.subr.mxu0 0.0
    %2669 = vmatpush1.msra.mxu0 0.0
    %2670 = vmatprep.subr.mxu0 0.0
    %2671 = vmatpush1.msra.mxu0 0.0
    %2672 = vmatprep.subr.mxu0 0.0
    %2673 = vmatpush1.msra.mxu0 0.0
    %2674 = vmatprep.subr.mxu0 0.0
    %2675 = vmatpush1.msra.mxu0 0.0
    %2676 = vmatprep.subr.mxu0 0.0
    %2677 = vmatpush1.msra.mxu0 0.0
    %2678 = vmatprep.subr.mxu0 0.0
    %2679 = vmatpush1.msra.mxu0 0.0
    %2680 = vmatprep.subr.mxu0 0.0
    %2681 = vmatpush1.msra.mxu0 0.0
    %2682 = vmatprep.subr.mxu0 0.0
    %2683 = vmatpush1.msra.mxu0 0.0
    %2684 = vmatprep.subr.mxu0 0.0
    %2685 = vmatpush1.msra.mxu0 0.0
    %2686 = vmatprep.subr.mxu0 0.0
    %2687 = vmatpush1.msra.mxu0 0.0
    %2688 = vmatprep.subr.mxu0 0.0
    %2689 = vmatpush1.msra.mxu0 0.0
    %2690 = vmatprep.subr.mxu0 0.0
    %2691 = vmatpush1.msra.mxu0 0.0
    %2692 = vmatprep.subr.mxu0 0.0
    %2693 = vmatpush1.msra.mxu0 0.0
    %2694 = vmatprep.subr.mxu0 0.0
    %2695 = vmatpush1.msra.mxu0 0.0
    %2696 = vmatprep.subr.mxu0 0.0
    %2697 = vmatpush1.msra.mxu0 0.0
    %2698 = vmatprep.subr.mxu0 0.0
    %2699 = vmatpush1.msra.mxu0 0.0
    %2700 = vmatprep.subr.mxu0 0.0
    %2701 = vmatpush1.msra.mxu0 0.0
    %2702 = vmatprep.subr.mxu0 0.0
    %2703 = vmatpush1.msra.mxu0 0.0
    %2704 = vmatprep.subr.mxu0 0.0
    %2705 = vmatpush1.msra.mxu0 0.0
    %2706 = vmatprep.subr.mxu0 0.0
    %2707 = vmatpush1.msra.mxu0 0.0
    %2708 = vmatprep.subr.mxu0 0.0
    %2709 = vmatpush1.msra.mxu0 0.0
    %2710 = vmatprep.subr.mxu0 0.0
    %2711 = vmatpush1.msra.mxu0 0.0
    %2712 = vmatprep.subr.mxu0 0.0
    %2713 = vmatpush1.msra.mxu0 0.0
    %2714 = vmatprep.subr.mxu0 0.0
    %2715 = vmatpush1.msra.mxu0 0.0
    %2716 = vmatprep.subr.mxu0 0.0
    %2717 = vmatpush1.msra.mxu0 0.0
    %2718 = vmatprep.subr.mxu0 0.0
    %2719 = vmatpush1.msra.mxu0 0.0
    %2720 = vmatprep.mubr.f32.mxu0 0.0
    %2721 = vmatmul.mubr.f32.gmra.mrb[0].mxu0 %v2583
    %v2722 = vpop.f32.mrb[0].mxu0
    %v2723 = vadd.f32 0.0, %v2722
    %v2724 = vpop.f32.mrb[0].mxu0
    %v2725 = vadd.f32 0.0, %v2724
    %2726 = vdwg.mxu0
    %2727 = vmatprep.subr.mxu0 %v2569
    %2728 = vmatpush1.msra.mxu0 %v2568
    %2729 = vmatprep.subr.mxu0 0.0
    %2730 = vmatpush1.msra.mxu0 0.0
    %2731 = vmatprep.subr.mxu0 0.0
    %2732 = vmatpush1.msra.mxu0 0.0
    %2733 = vmatprep.subr.mxu0 0.0
    %2734 = vmatpush1.msra.mxu0 0.0
    %2735 = vmatprep.subr.mxu0 0.0
    %2736 = vmatpush1.msra.mxu0 0.0
    %2737 = vmatprep.subr.mxu0 0.0
    %2738 = vmatpush1.msra.mxu0 0.0
    %2739 = vmatprep.subr.mxu0 0.0
    %2740 = vmatpush1.msra.mxu0 0.0
    %2741 = vmatprep.subr.mxu0 0.0
    %2742 = vmatpush1.msra.mxu0 0.0
    %2743 = vmatprep.subr.mxu0 0.0
    %2744 = vmatpush1.msra.mxu0 0.0
    %2745 = vmatprep.subr.mxu0 0.0
    %2746 = vmatpush1.msra.mxu0 0.0
    %2747 = vmatprep.subr.mxu0 0.0
    %2748 = vmatpush1.msra.mxu0 0.0
    %2749 = vmatprep.subr.mxu0 0.0
    %2750 = vmatpush1.msra.mxu0 0.0
    %2751 = vmatprep.subr.mxu0 0.0
    %2752 = vmatpush1.msra.mxu0 0.0
    %2753 = vmatprep.subr.mxu0 0.0
    %2754 = vmatpush1.msra.mxu0 0.0
    %2755 = vmatprep.subr.mxu0 0.0
    %2756 = vmatpush1.msra.mxu0 0.0
    %2757 = vmatprep.subr.mxu0 0.0
    %2758 = vmatpush1.msra.mxu0 0.0
    %2759 = vmatprep.subr.mxu0 0.0
    %2760 = vmatpush1.msra.mxu0 0.0
    %2761 = vmatprep.subr.mxu0 0.0
    %2762 = vmatpush1.msra.mxu0 0.0
    %2763 = vmatprep.subr.mxu0 0.0
    %2764 = vmatpush1.msra.mxu0 0.0
    %2765 = vmatprep.subr.mxu0 0.0
    %2766 = vmatpush1.msra.mxu0 0.0
    %2767 = vmatprep.subr.mxu0 0.0
    %2768 = vmatpush1.msra.mxu0 0.0
    %2769 = vmatprep.subr.mxu0 0.0
    %2770 = vmatpush1.msra.mxu0 0.0
    %2771 = vmatprep.subr.mxu0 0.0
    %2772 = vmatpush1.msra.mxu0 0.0
    %2773 = vmatprep.subr.mxu0 0.0
    %2774 = vmatpush1.msra.mxu0 0.0
    %2775 = vmatprep.subr.mxu0 0.0
    %2776 = vmatpush1.msra.mxu0 0.0
    %2777 = vmatprep.subr.mxu0 0.0
    %2778 = vmatpush1.msra.mxu0 0.0
    %2779 = vmatprep.subr.mxu0 0.0
    %2780 = vmatpush1.msra.mxu0 0.0
    %2781 = vmatprep.subr.mxu0 0.0
    %2782 = vmatpush1.msra.mxu0 0.0
    %2783 = vmatprep.subr.mxu0 0.0
    %2784 = vmatpush1.msra.mxu0 0.0
    %2785 = vmatprep.subr.mxu0 0.0
    %2786 = vmatpush1.msra.mxu0 0.0
    %2787 = vmatprep.subr.mxu0 0.0
    %2788 = vmatpush1.msra.mxu0 0.0
    %2789 = vmatprep.subr.mxu0 0.0
    %2790 = vmatpush1.msra.mxu0 0.0
    %2791 = vmatprep.mubr.f32.mxu0 0.0
    %2792 = vmatmul.mubr.f32.gmra.mrb[0].mxu0 %v2583
    %v2793 = vpop.f32.mrb[0].mxu0
    %v2794 = vadd.f32 0.0, %v2793
    %v2795 = vpop.f32.mrb[0].mxu0
    %v2796 = vadd.f32 0.0, %v2795
    %2797 = vdwg.mxu0
    %2798 = vmatprep.subr.mxu0 %v2571
    %2799 = vmatpush1.msra.mxu0 %v2570
    %2800 = vmatprep.subr.mxu0 0.0
    %2801 = vmatpush1.msra.mxu0 0.0
    %2802 = vmatprep.subr.mxu0 0.0
    %2803 = vmatpush1.msra.mxu0 0.0
    %2804 = vmatprep.subr.mxu0 0.0
    %2805 = vmatpush1.msra.mxu0 0.0
    %2806 = vmatprep.subr.mxu0 0.0
    %2807 = vmatpush1.msra.mxu0 0.0
    %2808 = vmatprep.subr.mxu0 0.0
    %2809 = vmatpush1.msra.mxu0 0.0
    %2810 = vmatprep.subr.mxu0 0.0
    %2811 = vmatpush1.msra.mxu0 0.0
    %2812 = vmatprep.subr.mxu0 0.0
    %2813 = vmatpush1.msra.mxu0 0.0
    %2814 = vmatprep.subr.mxu0 0.0
    %2815 = vmatpush1.msra.mxu0 0.0
    %2816 = vmatprep.subr.mxu0 0.0
    %2817 = vmatpush1.msra.mxu0 0.0
    %2818 = vmatprep.subr.mxu0 0.0
    %2819 = vmatpush1.msra.mxu0 0.0
    %2820 = vmatprep.subr.mxu0 0.0
    %2821 = vmatpush1.msra.mxu0 0.0
    %2822 = vmatprep.subr.mxu0 0.0
    %2823 = vmatpush1.msra.mxu0 0.0
    %2824 = vmatprep.subr.mxu0 0.0
    %2825 = vmatpush1.msra.mxu0 0.0
    %2826 = vmatprep.subr.mxu0 0.0
    %2827 = vmatpush1.msra.mxu0 0.0
    %2828 = vmatprep.subr.mxu0 0.0
    %2829 = vmatpush1.msra.mxu0 0.0
    %2830 = vmatprep.subr.mxu0 0.0
    %2831 = vmatpush1.msra.mxu0 0.0
    %2832 = vmatprep.subr.mxu0 0.0
    %2833 = vmatpush1.msra.mxu0 0.0
    %2834 = vmatprep.subr.mxu0 0.0
    %2835 = vmatpush1.msra.mxu0 0.0
    %2836 = vmatprep.subr.mxu0 0.0
    %2837 = vmatpush1.msra.mxu0 0.0
    %2838 = vmatprep.subr.mxu0 0.0
    %2839 = vmatpush1.msra.mxu0 0.0
    %2840 = vmatprep.subr.mxu0 0.0
    %2841 = vmatpush1.msra.mxu0 0.0
    %2842 = vmatprep.subr.mxu0 0.0
    %2843 = vmatpush1.msra.mxu0 0.0
    %2844 = vmatprep.subr.mxu0 0.0
    %2845 = vmatpush1.msra.mxu0 0.0
    %2846 = vmatprep.subr.mxu0 0.0
    %2847 = vmatpush1.msra.mxu0 0.0
    %2848 = vmatprep.subr.mxu0 0.0
    %2849 = vmatpush1.msra.mxu0 0.0
    %2850 = vmatprep.subr.mxu0 0.0
    %2851 = vmatpush1.msra.mxu0 0.0
    %2852 = vmatprep.subr.mxu0 0.0
    %2853 = vmatpush1.msra.mxu0 0.0
    %2854 = vmatprep.subr.mxu0 0.0
    %2855 = vmatpush1.msra.mxu0 0.0
    %2856 = vmatprep.subr.mxu0 0.0
    %2857 = vmatpush1.msra.mxu0 0.0
    %2858 = vmatprep.subr.mxu0 0.0
    %2859 = vmatpush1.msra.mxu0 0.0
    %2860 = vmatprep.subr.mxu0 0.0
    %2861 = vmatpush1.msra.mxu0 0.0
    %2862 = vmatprep.mubr.f32.mxu0 0.0
    %2863 = vmatmul.mubr.f32.gmra.mrb[0].mxu0 %v2583
    %v2864 = vpop.f32.mrb[0].mxu0
    %v2865 = vadd.f32 0.0, %v2864
    %v2866 = vpop.f32.mrb[0].mxu0
    %v2867 = vadd.f32 0.0, %v2866
    %2868 = vdwg.mxu0
    %2869 = vmatprep.subr.mxu0 0.0
    %2870 = vmatpush1.msra.mxu0 %v2572
    %2871 = vmatprep.subr.mxu0 0.0
    %2872 = vmatpush1.msra.mxu0 0.0
    %2873 = vmatprep.subr.mxu0 0.0
    %2874 = vmatpush1.msra.mxu0 0.0
    %2875 = vmatprep.subr.mxu0 0.0
    %2876 = vmatpush1.msra.mxu0 0.0
    %2877 = vmatprep.subr.mxu0 0.0
    %2878 = vmatpush1.msra.mxu0 0.0
    %2879 = vmatprep.subr.mxu0 0.0
    %2880 = vmatpush1.msra.mxu0 0.0
    %2881 = vmatprep.subr.mxu0 0.0
    %2882 = vmatpush1.msra.mxu0 0.0
    %2883 = vmatprep.subr.mxu0 0.0
    %2884 = vmatpush1.msra.mxu0 0.0
    %2885 = vmatprep.subr.mxu0 0.0
    %2886 = vmatpush1.msra.mxu0 0.0
    %2887 = vmatprep.subr.mxu0 0.0
    %2888 = vmatpush1.msra.mxu0 0.0
    %2889 = vmatprep.subr.mxu0 0.0
    %2890 = vmatpush1.msra.mxu0 0.0
    %2891 = vmatprep.subr.mxu0 0.0
    %2892 = vmatpush1.msra.mxu0 0.0
    %2893 = vmatprep.subr.mxu0 0.0
    %2894 = vmatpush1.msra.mxu0 0.0
    %2895 = vmatprep.subr.mxu0 0.0
    %2896 = vmatpush1.msra.mxu0 0.0
    %2897 = vmatprep.subr.mxu0 0.0
    %2898 = vmatpush1.msra.mxu0 0.0
    %2899 = vmatprep.subr.mxu0 0.0
    %2900 = vmatpush1.msra.mxu0 0.0
    %2901 = vmatprep.subr.mxu0 0.0
    %2902 = vmatpush1.msra.mxu0 0.0
    %2903 = vmatprep.subr.mxu0 0.0
    %2904 = vmatpush1.msra.mxu0 0.0
    %2905 = vmatprep.subr.mxu0 0.0
    %2906 = vmatpush1.msra.mxu0 0.0
    %2907 = vmatprep.subr.mxu0 0.0
    %2908 = vmatpush1.msra.mxu0 0.0
    %2909 = vmatprep.subr.mxu0 0.0
    %2910 = vmatpush1.msra.mxu0 0.0
    %2911 = vmatprep.subr.mxu0 0.0
    %2912 = vmatpush1.msra.mxu0 0.0
    %2913 = vmatprep.subr.mxu0 0.0
    %2914 = vmatpush1.msra.mxu0 0.0
    %2915 = vmatprep.subr.mxu0 0.0
    %2916 = vmatpush1.msra.mxu0 0.0
    %2917 = vmatprep.subr.mxu0 0.0
    %2918 = vmatpush1.msra.mxu0 0.0
    %2919 = vmatprep.subr.mxu0 0.0
    %2920 = vmatpush1.msra.mxu0 0.0
    %2921 = vmatprep.subr.mxu0 0.0
    %2922 = vmatpush1.msra.mxu0 0.0
    %2923 = vmatprep.subr.mxu0 0.0
    %2924 = vmatpush1.msra.mxu0 0.0
    %2925 = vmatprep.subr.mxu0 0.0
    %2926 = vmatpush1.msra.mxu0 0.0
    %2927 = vmatprep.subr.mxu0 0.0
    %2928 = vmatpush1.msra.mxu0 0.0
    %2929 = vmatprep.subr.mxu0 0.0
    %2930 = vmatpush1.msra.mxu0 0.0
    %2931 = vmatprep.subr.mxu0 0.0
    %2932 = vmatpush1.msra.mxu0 0.0
    %2933 = vmatprep.mubr.f32.mxu0 0.0
    %2934 = vmatmul.mubr.f32.gmra.mrb[0].mxu0 %v2583
    %v2935 = vpop.f32.mrb[0].mxu0
    %v2936 = vadd.f32 0.0, %v2935
    %v2937 = vpop.f32.mrb[0].mxu0
    %2938 = vdwg.mxu0
    %v2939 = vadd.f32 %v2532, %v2652
    %v2940 = vadd.f32 %v2533, %v2654
    %v2941 = vadd.f32 %v2534, %v2723
    %v2942 = vadd.f32 %v2535, %v2725
    %v2943 = vadd.f32 %v2536, %v2794
    %v2944 = vadd.f32 %v2537, %v2796
    %v2945 = vadd.f32 %v2538, %v2865
    %v2946 = vadd.f32 %v2539, %v2867
    %v2947 = vadd.f32 %v2540, %v2936
    %s2948 = scalar_lea.vmem %s1, 56
    %v2949 = vld [vmem:[%s2948] sm:$0xff]
    %2950 = vrot.lane.b32.xlu0 %v139, 95
    %v2951 = vpop.permute.xlu0 %2950
    %2952 = vrot.lane.b32.xlu0 %v140, 95
    %v2953 = vpop.permute.xlu0 %2952
    %2954 = vrot.lane.b32.xlu0 %v141, 95
    %v2955 = vpop.permute.xlu0 %2954
    %2956 = vrot.lane.b32.xlu0 %v142, 95
    %v2957 = vpop.permute.xlu0 %2956
    %2958 = vrot.lane.b32.xlu0 %v143, 95
    %v2959 = vpop.permute.xlu0 %2958
    %2960 = vrot.lane.b32.xlu0 %v144, 95
    %v2961 = vpop.permute.xlu0 %2960
    %2962 = vrot.lane.b32.xlu0 %v145, 95
    %v2963 = vpop.permute.xlu0 %2962
    %2964 = vrot.lane.b32.xlu0 %v146, 95
    %v2965 = vpop.permute.xlu0 %2964
    %2966 = vrot.lane.b32.xlu0 %v147, 95
    %v2967 = vpop.permute.xlu0 %2966
    %2968 = vrot.lane.b32.xlu0 %v148, 95
    %v2969 = vpop.permute.xlu0 %2968
    %vm2970 = vcmask 777216
    %v2971 = vsel %vm2970, %v2951, %v2953
    %v2972 = vsel %vm2970, %v2953, %v2955
    %v2973 = vsel %vm2970, %v2955, %v2957
    %v2974 = vsel %vm2970, %v2957, %v2959
    %v2975 = vsel %vm2970, %v2959, %v2961
    %v2976 = vsel %vm2970, %v2961, %v2963
    %v2977 = vsel %vm2970, %v2963, %v2965
    %v2978 = vsel %vm2970, %v2965, %v2967
    %v2979 = vsel %vm2970, %v2967, %v2969
    %v2990 = vsel %vm198, %v2949, 0
    %2992 = vmatprep.subr.mxu0 %v2972
    %2993 = vmatpush1.msra.mxu0 %v2971
    %2994 = vmatprep.subr.mxu0 0.0
    %2995 = vmatpush1.msra.mxu0 0.0
    %2996 = vmatprep.subr.mxu0 0.0
    %2997 = vmatpush1.msra.mxu0 0.0
    %2998 = vmatprep.subr.mxu0 0.0
    %2999 = vmatpush1.msra.mxu0 0.0
    %3000 = vmatprep.subr.mxu0 0.0
    %3001 = vmatpush1.msra.mxu0 0.0
    %3002 = vmatprep.subr.mxu0 0.0
    %3003 = vmatpush1.msra.mxu0 0.0
    %3004 = vmatprep.subr.mxu0 0.0
    %3005 = vmatpush1.msra.mxu0 0.0
    %3006 = vmatprep.subr.mxu0 0.0
    %3007 = vmatpush1.msra.mxu0 0.0
    %3008 = vmatprep.subr.mxu0 0.0
    %3009 = vmatpush1.msra.mxu0 0.0
    %3010 = vmatprep.subr.mxu0 0.0
    %3011 = vmatpush1.msra.mxu0 0.0
    %3012 = vmatprep.subr.mxu0 0.0
    %3013 = vmatpush1.msra.mxu0 0.0
    %3014 = vmatprep.subr.mxu0 0.0
    %3015 = vmatpush1.msra.mxu0 0.0
    %3016 = vmatprep.subr.mxu0 0.0
    %3017 = vmatpush1.msra.mxu0 0.0
    %3018 = vmatprep.subr.mxu0 0.0
    %3019 = vmatpush1.msra.mxu0 0.0
    %3020 = vmatprep.subr.mxu0 0.0
    %3021 = vmatpush1.msra.mxu0 0.0
    %3022 = vmatprep.subr.mxu0 0.0
    %3023 = vmatpush1.msra.mxu0 0.0
    %3024 = vmatprep.subr.mxu0 0.0
    %3025 = vmatpush1.msra.mxu0 0.0
    %3026 = vmatprep.subr.mxu0 0.0
    %3027 = vmatpush1.msra.mxu0 0.0
    %3028 = vmatprep.subr.mxu0 0.0
    %3029 = vmatpush1.msra.mxu0 0.0
    %3030 = vmatprep.subr.mxu0 0.0
    %3031 = vmatpush1.msra.mxu0 0.0
    %3032 = vmatprep.subr.mxu0 0.0
    %3033 = vmatpush1.msra.mxu0 0.0
    %3034 = vmatprep.subr.mxu0 0.0
    %3035 = vmatpush1.msra.mxu0 0.0
    %3036 = vmatprep.subr.mxu0 0.0
    %3037 = vmatpush1.msra.mxu0 0.0
    %3038 = vmatprep.subr.mxu0 0.0
    %3039 = vmatpush1.msra.mxu0 0.0
    %3040 = vmatprep.subr.mxu0 0.0
    %3041 = vmatpush1.msra.mxu0 0.0
    %3042 = vmatprep.subr.mxu0 0.0
    %3043 = vmatpush1.msra.mxu0 0.0
    %3044 = vmatprep.subr.mxu0 0.0
    %3045 = vmatpush1.msra.mxu0 0.0
    %3046 = vmatprep.subr.mxu0 0.0
    %3047 = vmatpush1.msra.mxu0 0.0
    %3048 = vmatprep.subr.mxu0 0.0
    %3049 = vmatpush1.msra.mxu0 0.0
    %3050 = vmatprep.subr.mxu0 0.0
    %3051 = vmatpush1.msra.mxu0 0.0
    %3052 = vmatprep.subr.mxu0 0.0
    %3053 = vmatpush1.msra.mxu0 0.0
    %3054 = vmatprep.subr.mxu0 0.0
    %3055 = vmatpush1.msra.mxu0 0.0
    %3056 = vmatprep.mubr.f32.mxu0 0.0
    %3057 = vmatmul.mubr.f32.gmra.mrb[0].mxu0 %v2990
    %v3058 = vpop.f32.mrb[0].mxu0
    %v3059 = vadd.f32 0.0, %v3058
    %v3060 = vpop.f32.mrb[0].mxu0
    %v3061 = vadd.f32 0.0, %v3060
    %3062 = vdwg.mxu0
    %3063 = vmatprep.subr.mxu0 %v2974
    %3064 = vmatpush1.msra.mxu0 %v2973
    %3065 = vmatprep.subr.mxu0 0.0
    %3066 = vmatpush1.msra.mxu0 0.0
    %3067 = vmatprep.subr.mxu0 0.0
    %3068 = vmatpush1.msra.mxu0 0.0
    %3069 = vmatprep.subr.mxu0 0.0
    %3070 = vmatpush1.msra.mxu0 0.0
    %3071 = vmatprep.subr.mxu0 0.0
    %3072 = vmatpush1.msra.mxu0 0.0
    %3073 = vmatprep.subr.mxu0 0.0
    %3074 = vmatpush1.msra.mxu0 0.0
    %3075 = vmatprep.subr.mxu0 0.0
    %3076 = vmatpush1.msra.mxu0 0.0
    %3077 = vmatprep.subr.mxu0 0.0
    %3078 = vmatpush1.msra.mxu0 0.0
    %3079 = vmatprep.subr.mxu0 0.0
    %3080 = vmatpush1.msra.mxu0 0.0
    %3081 = vmatprep.subr.mxu0 0.0
    %3082 = vmatpush1.msra.mxu0 0.0
    %3083 = vmatprep.subr.mxu0 0.0
    %3084 = vmatpush1.msra.mxu0 0.0
    %3085 = vmatprep.subr.mxu0 0.0
    %3086 = vmatpush1.msra.mxu0 0.0
    %3087 = vmatprep.subr.mxu0 0.0
    %3088 = vmatpush1.msra.mxu0 0.0
    %3089 = vmatprep.subr.mxu0 0.0
    %3090 = vmatpush1.msra.mxu0 0.0
    %3091 = vmatprep.subr.mxu0 0.0
    %3092 = vmatpush1.msra.mxu0 0.0
    %3093 = vmatprep.subr.mxu0 0.0
    %3094 = vmatpush1.msra.mxu0 0.0
    %3095 = vmatprep.subr.mxu0 0.0
    %3096 = vmatpush1.msra.mxu0 0.0
    %3097 = vmatprep.subr.mxu0 0.0
    %3098 = vmatpush1.msra.mxu0 0.0
    %3099 = vmatprep.subr.mxu0 0.0
    %3100 = vmatpush1.msra.mxu0 0.0
    %3101 = vmatprep.subr.mxu0 0.0
    %3102 = vmatpush1.msra.mxu0 0.0
    %3103 = vmatprep.subr.mxu0 0.0
    %3104 = vmatpush1.msra.mxu0 0.0
    %3105 = vmatprep.subr.mxu0 0.0
    %3106 = vmatpush1.msra.mxu0 0.0
    %3107 = vmatprep.subr.mxu0 0.0
    %3108 = vmatpush1.msra.mxu0 0.0
    %3109 = vmatprep.subr.mxu0 0.0
    %3110 = vmatpush1.msra.mxu0 0.0
    %3111 = vmatprep.subr.mxu0 0.0
    %3112 = vmatpush1.msra.mxu0 0.0
    %3113 = vmatprep.subr.mxu0 0.0
    %3114 = vmatpush1.msra.mxu0 0.0
    %3115 = vmatprep.subr.mxu0 0.0
    %3116 = vmatpush1.msra.mxu0 0.0
    %3117 = vmatprep.subr.mxu0 0.0
    %3118 = vmatpush1.msra.mxu0 0.0
    %3119 = vmatprep.subr.mxu0 0.0
    %3120 = vmatpush1.msra.mxu0 0.0
    %3121 = vmatprep.subr.mxu0 0.0
    %3122 = vmatpush1.msra.mxu0 0.0
    %3123 = vmatprep.subr.mxu0 0.0
    %3124 = vmatpush1.msra.mxu0 0.0
    %3125 = vmatprep.subr.mxu0 0.0
    %3126 = vmatpush1.msra.mxu0 0.0
    %3127 = vmatprep.mubr.f32.mxu0 0.0
    %3128 = vmatmul.mubr.f32.gmra.mrb[0].mxu0 %v2990
    %v3129 = vpop.f32.mrb[0].mxu0
    %v3130 = vadd.f32 0.0, %v3129
    %v3131 = vpop.f32.mrb[0].mxu0
    %v3132 = vadd.f32 0.0, %v3131
    %3133 = vdwg.mxu0
    %3134 = vmatprep.subr.mxu0 %v2976
    %3135 = vmatpush1.msra.mxu0 %v2975
    %3136 = vmatprep.subr.mxu0 0.0
    %3137 = vmatpush1.msra.mxu0 0.0
    %3138 = vmatprep.subr.mxu0 0.0
    %3139 = vmatpush1.msra.mxu0 0.0
    %3140 = vmatprep.subr.mxu0 0.0
    %3141 = vmatpush1.msra.mxu0 0.0
    %3142 = vmatprep.subr.mxu0 0.0
    %3143 = vmatpush1.msra.mxu0 0.0
    %3144 = vmatprep.subr.mxu0 0.0
    %3145 = vmatpush1.msra.mxu0 0.0
    %3146 = vmatprep.subr.mxu0 0.0
    %3147 = vmatpush1.msra.mxu0 0.0
    %3148 = vmatprep.subr.mxu0 0.0
    %3149 = vmatpush1.msra.mxu0 0.0
    %3150 = vmatprep.subr.mxu0 0.0
    %3151 = vmatpush1.msra.mxu0 0.0
    %3152 = vmatprep.subr.mxu0 0.0
    %3153 = vmatpush1.msra.mxu0 0.0
    %3154 = vmatprep.subr.mxu0 0.0
    %3155 = vmatpush1.msra.mxu0 0.0
    %3156 = vmatprep.subr.mxu0 0.0
    %3157 = vmatpush1.msra.mxu0 0.0
    %3158 = vmatprep.subr.mxu0 0.0
    %3159 = vmatpush1.msra.mxu0 0.0
    %3160 = vmatprep.subr.mxu0 0.0
    %3161 = vmatpush1.msra.mxu0 0.0
    %3162 = vmatprep.subr.mxu0 0.0
    %3163 = vmatpush1.msra.mxu0 0.0
    %3164 = vmatprep.subr.mxu0 0.0
    %3165 = vmatpush1.msra.mxu0 0.0
    %3166 = vmatprep.subr.mxu0 0.0
    %3167 = vmatpush1.msra.mxu0 0.0
    %3168 = vmatprep.subr.mxu0 0.0
    %3169 = vmatpush1.msra.mxu0 0.0
    %3170 = vmatprep.subr.mxu0 0.0
    %3171 = vmatpush1.msra.mxu0 0.0
    %3172 = vmatprep.subr.mxu0 0.0
    %3173 = vmatpush1.msra.mxu0 0.0
    %3174 = vmatprep.subr.mxu0 0.0
    %3175 = vmatpush1.msra.mxu0 0.0
    %3176 = vmatprep.subr.mxu0 0.0
    %3177 = vmatpush1.msra.mxu0 0.0
    %3178 = vmatprep.subr.mxu0 0.0
    %3179 = vmatpush1.msra.mxu0 0.0
    %3180 = vmatprep.subr.mxu0 0.0
    %3181 = vmatpush1.msra.mxu0 0.0
    %3182 = vmatprep.subr.mxu0 0.0
    %3183 = vmatpush1.msra.mxu0 0.0
    %3184 = vmatprep.subr.mxu0 0.0
    %3185 = vmatpush1.msra.mxu0 0.0
    %3186 = vmatprep.subr.mxu0 0.0
    %3187 = vmatpush1.msra.mxu0 0.0
    %3188 = vmatprep.subr.mxu0 0.0
    %3189 = vmatpush1.msra.mxu0 0.0
    %3190 = vmatprep.subr.mxu0 0.0
    %3191 = vmatpush1.msra.mxu0 0.0
    %3192 = vmatprep.subr.mxu0 0.0
    %3193 = vmatpush1.msra.mxu0 0.0
    %3194 = vmatprep.subr.mxu0 0.0
    %3195 = vmatpush1.msra.mxu0 0.0
    %3196 = vmatprep.subr.mxu0 0.0
    %3197 = vmatpush1.msra.mxu0 0.0
    %3198 = vmatprep.mubr.f32.mxu0 0.0
    %3199 = vmatmul.mubr.f32.gmra.mrb[0].mxu0 %v2990
    %v3200 = vpop.f32.mrb[0].mxu0
    %v3201 = vadd.f32 0.0, %v3200
    %v3202 = vpop.f32.mrb[0].mxu0
    %v3203 = vadd.f32 0.0, %v3202
    %3204 = vdwg.mxu0
    %3205 = vmatprep.subr.mxu0 %v2978
    %3206 = vmatpush1.msra.mxu0 %v2977
    %3207 = vmatprep.subr.mxu0 0.0
    %3208 = vmatpush1.msra.mxu0 0.0
    %3209 = vmatprep.subr.mxu0 0.0
    %3210 = vmatpush1.msra.mxu0 0.0
    %3211 = vmatprep.subr.mxu0 0.0
    %3212 = vmatpush1.msra.mxu0 0.0
    %3213 = vmatprep.subr.mxu0 0.0
    %3214 = vmatpush1.msra.mxu0 0.0
    %3215 = vmatprep.subr.mxu0 0.0
    %3216 = vmatpush1.msra.mxu0 0.0
    %3217 = vmatprep.subr.mxu0 0.0
    %3218 = vmatpush1.msra.mxu0 0.0
    %3219 = vmatprep.subr.mxu0 0.0
    %3220 = vmatpush1.msra.mxu0 0.0
    %3221 = vmatprep.subr.mxu0 0.0
    %3222 = vmatpush1.msra.mxu0 0.0
    %3223 = vmatprep.subr.mxu0 0.0
    %3224 = vmatpush1.msra.mxu0 0.0
    %3225 = vmatprep.subr.mxu0 0.0
    %3226 = vmatpush1.msra.mxu0 0.0
    %3227 = vmatprep.subr.mxu0 0.0
    %3228 = vmatpush1.msra.mxu0 0.0
    %3229 = vmatprep.subr.mxu0 0.0
    %3230 = vmatpush1.msra.mxu0 0.0
    %3231 = vmatprep.subr.mxu0 0.0
    %3232 = vmatpush1.msra.mxu0 0.0
    %3233 = vmatprep.subr.mxu0 0.0
    %3234 = vmatpush1.msra.mxu0 0.0
    %3235 = vmatprep.subr.mxu0 0.0
    %3236 = vmatpush1.msra.mxu0 0.0
    %3237 = vmatprep.subr.mxu0 0.0
    %3238 = vmatpush1.msra.mxu0 0.0
    %3239 = vmatprep.subr.mxu0 0.0
    %3240 = vmatpush1.msra.mxu0 0.0
    %3241 = vmatprep.subr.mxu0 0.0
    %3242 = vmatpush1.msra.mxu0 0.0
    %3243 = vmatprep.subr.mxu0 0.0
    %3244 = vmatpush1.msra.mxu0 0.0
    %3245 = vmatprep.subr.mxu0 0.0
    %3246 = vmatpush1.msra.mxu0 0.0
    %3247 = vmatprep.subr.mxu0 0.0
    %3248 = vmatpush1.msra.mxu0 0.0
    %3249 = vmatprep.subr.mxu0 0.0
    %3250 = vmatpush1.msra.mxu0 0.0
    %3251 = vmatprep.subr.mxu0 0.0
    %3252 = vmatpush1.msra.mxu0 0.0
    %3253 = vmatprep.subr.mxu0 0.0
    %3254 = vmatpush1.msra.mxu0 0.0
    %3255 = vmatprep.subr.mxu0 0.0
    %3256 = vmatpush1.msra.mxu0 0.0
    %3257 = vmatprep.subr.mxu0 0.0
    %3258 = vmatpush1.msra.mxu0 0.0
    %3259 = vmatprep.subr.mxu0 0.0
    %3260 = vmatpush1.msra.mxu0 0.0
    %3261 = vmatprep.subr.mxu0 0.0
    %3262 = vmatpush1.msra.mxu0 0.0
    %3263 = vmatprep.subr.mxu0 0.0
    %3264 = vmatpush1.msra.mxu0 0.0
    %3265 = vmatprep.subr.mxu0 0.0
    %3266 = vmatpush1.msra.mxu0 0.0
    %3267 = vmatprep.subr.mxu0 0.0
    %3268 = vmatpush1.msra.mxu0 0.0
    %3269 = vmatprep.mubr.f32.mxu0 0.0
    %3270 = vmatmul.mubr.f32.gmra.mrb[0].mxu0 %v2990
    %v3271 = vpop.f32.mrb[0].mxu0
    %v3272 = vadd.f32 0.0, %v3271
    %v3273 = vpop.f32.mrb[0].mxu0
    %v3274 = vadd.f32 0.0, %v3273
    %3275 = vdwg.mxu0
    %3276 = vmatprep.subr.mxu0 0.0
    %3277 = vmatpush1.msra.mxu0 %v2979
    %3278 = vmatprep.subr.mxu0 0.0
    %3279 = vmatpush1.msra.mxu0 0.0
    %3280 = vmatprep.subr.mxu0 0.0
    %3281 = vmatpush1.msra.mxu0 0.0
    %3282 = vmatprep.subr.mxu0 0.0
    %3283 = vmatpush1.msra.mxu0 0.0
    %3284 = vmatprep.subr.mxu0 0.0
    %3285 = vmatpush1.msra.mxu0 0.0
    %3286 = vmatprep.subr.mxu0 0.0
    %3287 = vmatpush1.msra.mxu0 0.0
    %3288 = vmatprep.subr.mxu0 0.0
    %3289 = vmatpush1.msra.mxu0 0.0
    %3290 = vmatprep.subr.mxu0 0.0
    %3291 = vmatpush1.msra.mxu0 0.0
    %3292 = vmatprep.subr.mxu0 0.0
    %3293 = vmatpush1.msra.mxu0 0.0
    %3294 = vmatprep.subr.mxu0 0.0
    %3295 = vmatpush1.msra.mxu0 0.0
    %3296 = vmatprep.subr.mxu0 0.0
    %3297 = vmatpush1.msra.mxu0 0.0
    %3298 = vmatprep.subr.mxu0 0.0
    %3299 = vmatpush1.msra.mxu0 0.0
    %3300 = vmatprep.subr.mxu0 0.0
    %3301 = vmatpush1.msra.mxu0 0.0
    %3302 = vmatprep.subr.mxu0 0.0
    %3303 = vmatpush1.msra.mxu0 0.0
    %3304 = vmatprep.subr.mxu0 0.0
    %3305 = vmatpush1.msra.mxu0 0.0
    %3306 = vmatprep.subr.mxu0 0.0
    %3307 = vmatpush1.msra.mxu0 0.0
    %3308 = vmatprep.subr.mxu0 0.0
    %3309 = vmatpush1.msra.mxu0 0.0
    %3310 = vmatprep.subr.mxu0 0.0
    %3311 = vmatpush1.msra.mxu0 0.0
    %3312 = vmatprep.subr.mxu0 0.0
    %3313 = vmatpush1.msra.mxu0 0.0
    %3314 = vmatprep.subr.mxu0 0.0
    %3315 = vmatpush1.msra.mxu0 0.0
    %3316 = vmatprep.subr.mxu0 0.0
    %3317 = vmatpush1.msra.mxu0 0.0
    %3318 = vmatprep.subr.mxu0 0.0
    %3319 = vmatpush1.msra.mxu0 0.0
    %3320 = vmatprep.subr.mxu0 0.0
    %3321 = vmatpush1.msra.mxu0 0.0
    %3322 = vmatprep.subr.mxu0 0.0
    %3323 = vmatpush1.msra.mxu0 0.0
    %3324 = vmatprep.subr.mxu0 0.0
    %3325 = vmatpush1.msra.mxu0 0.0
    %3326 = vmatprep.subr.mxu0 0.0
    %3327 = vmatpush1.msra.mxu0 0.0
    %3328 = vmatprep.subr.mxu0 0.0
    %3329 = vmatpush1.msra.mxu0 0.0
    %3330 = vmatprep.subr.mxu0 0.0
    %3331 = vmatpush1.msra.mxu0 0.0
    %3332 = vmatprep.subr.mxu0 0.0
    %3333 = vmatpush1.msra.mxu0 0.0
    %3334 = vmatprep.subr.mxu0 0.0
    %3335 = vmatpush1.msra.mxu0 0.0
    %3336 = vmatprep.subr.mxu0 0.0
    %3337 = vmatpush1.msra.mxu0 0.0
    %3338 = vmatprep.subr.mxu0 0.0
    %3339 = vmatpush1.msra.mxu0 0.0
    %3340 = vmatprep.mubr.f32.mxu0 0.0
    %3341 = vmatmul.mubr.f32.gmra.mrb[0].mxu0 %v2990
    %v3342 = vpop.f32.mrb[0].mxu0
    %v3343 = vadd.f32 0.0, %v3342
    %v3344 = vpop.f32.mrb[0].mxu0
    %3345 = vdwg.mxu0
    %v3346 = vadd.f32 %v2939, %v3059
    %v3347 = vadd.f32 %v2940, %v3061
    %v3348 = vadd.f32 %v2941, %v3130
    %v3349 = vadd.f32 %v2942, %v3132
    %v3350 = vadd.f32 %v2943, %v3201
    %v3351 = vadd.f32 %v2944, %v3203
    %v3352 = vadd.f32 %v2945, %v3272
    %v3353 = vadd.f32 %v2946, %v3274
    %v3354 = vadd.f32 %v2947, %v3343
    %s3355 = scalar_lea.vmem %s1, 64
    %v3356 = vld [vmem:[%s3355] sm:$0xff]
    %3357 = vrot.lane.b32.xlu0 %v139, 94
    %v3358 = vpop.permute.xlu0 %3357
    %3359 = vrot.lane.b32.xlu0 %v140, 94
    %v3360 = vpop.permute.xlu0 %3359
    %3361 = vrot.lane.b32.xlu0 %v141, 94
    %v3362 = vpop.permute.xlu0 %3361
    %3363 = vrot.lane.b32.xlu0 %v142, 94
    %v3364 = vpop.permute.xlu0 %3363
    %3365 = vrot.lane.b32.xlu0 %v143, 94
    %v3366 = vpop.permute.xlu0 %3365
    %3367 = vrot.lane.b32.xlu0 %v144, 94
    %v3368 = vpop.permute.xlu0 %3367
    %3369 = vrot.lane.b32.xlu0 %v145, 94
    %v3370 = vpop.permute.xlu0 %3369
    %3371 = vrot.lane.b32.xlu0 %v146, 94
    %v3372 = vpop.permute.xlu0 %3371
    %3373 = vrot.lane.b32.xlu0 %v147, 94
    %v3374 = vpop.permute.xlu0 %3373
    %3375 = vrot.lane.b32.xlu0 %v148, 94
    %v3376 = vpop.permute.xlu0 %3375
    %vm3377 = vcmask 769024
    %v3378 = vsel %vm3377, %v3358, %v3360
    %v3379 = vsel %vm3377, %v3360, %v3362
    %v3380 = vsel %vm3377, %v3362, %v3364
    %v3381 = vsel %vm3377, %v3364, %v3366
    %v3382 = vsel %vm3377, %v3366, %v3368
    %v3383 = vsel %vm3377, %v3368, %v3370
    %v3384 = vsel %vm3377, %v3370, %v3372
    %v3385 = vsel %vm3377, %v3372, %v3374
    %v3386 = vsel %vm3377, %v3374, %v3376
    %v3397 = vsel %vm198, %v3356, 0
    %3399 = vmatprep.subr.mxu0 %v3379
    %3400 = vmatpush1.msra.mxu0 %v3378
    %3401 = vmatprep.subr.mxu0 0.0
    %3402 = vmatpush1.msra.mxu0 0.0
    %3403 = vmatprep.subr.mxu0 0.0
    %3404 = vmatpush1.msra.mxu0 0.0
    %3405 = vmatprep.subr.mxu0 0.0
    %3406 = vmatpush1.msra.mxu0 0.0
    %3407 = vmatprep.subr.mxu0 0.0
    %3408 = vmatpush1.msra.mxu0 0.0
    %3409 = vmatprep.subr.mxu0 0.0
    %3410 = vmatpush1.msra.mxu0 0.0
    %3411 = vmatprep.subr.mxu0 0.0
    %3412 = vmatpush1.msra.mxu0 0.0
    %3413 = vmatprep.subr.mxu0 0.0
    %3414 = vmatpush1.msra.mxu0 0.0
    %3415 = vmatprep.subr.mxu0 0.0
    %3416 = vmatpush1.msra.mxu0 0.0
    %3417 = vmatprep.subr.mxu0 0.0
    %3418 = vmatpush1.msra.mxu0 0.0
    %3419 = vmatprep.subr.mxu0 0.0
    %3420 = vmatpush1.msra.mxu0 0.0
    %3421 = vmatprep.subr.mxu0 0.0
    %3422 = vmatpush1.msra.mxu0 0.0
    %3423 = vmatprep.subr.mxu0 0.0
    %3424 = vmatpush1.msra.mxu0 0.0
    %3425 = vmatprep.subr.mxu0 0.0
    %3426 = vmatpush1.msra.mxu0 0.0
    %3427 = vmatprep.subr.mxu0 0.0
    %3428 = vmatpush1.msra.mxu0 0.0
    %3429 = vmatprep.subr.mxu0 0.0
    %3430 = vmatpush1.msra.mxu0 0.0
    %3431 = vmatprep.subr.mxu0 0.0
    %3432 = vmatpush1.msra.mxu0 0.0
    %3433 = vmatprep.subr.mxu0 0.0
    %3434 = vmatpush1.msra.mxu0 0.0
    %3435 = vmatprep.subr.mxu0 0.0
    %3436 = vmatpush1.msra.mxu0 0.0
    %3437 = vmatprep.subr.mxu0 0.0
    %3438 = vmatpush1.msra.mxu0 0.0
    %3439 = vmatprep.subr.mxu0 0.0
    %3440 = vmatpush1.msra.mxu0 0.0
    %3441 = vmatprep.subr.mxu0 0.0
    %3442 = vmatpush1.msra.mxu0 0.0
    %3443 = vmatprep.subr.mxu0 0.0
    %3444 = vmatpush1.msra.mxu0 0.0
    %3445 = vmatprep.subr.mxu0 0.0
    %3446 = vmatpush1.msra.mxu0 0.0
    %3447 = vmatprep.subr.mxu0 0.0
    %3448 = vmatpush1.msra.mxu0 0.0
    %3449 = vmatprep.subr.mxu0 0.0
    %3450 = vmatpush1.msra.mxu0 0.0
    %3451 = vmatprep.subr.mxu0 0.0
    %3452 = vmatpush1.msra.mxu0 0.0
    %3453 = vmatprep.subr.mxu0 0.0
    %3454 = vmatpush1.msra.mxu0 0.0
    %3455 = vmatprep.subr.mxu0 0.0
    %3456 = vmatpush1.msra.mxu0 0.0
    %3457 = vmatprep.subr.mxu0 0.0
    %3458 = vmatpush1.msra.mxu0 0.0
    %3459 = vmatprep.subr.mxu0 0.0
    %3460 = vmatpush1.msra.mxu0 0.0
    %3461 = vmatprep.subr.mxu0 0.0
    %3462 = vmatpush1.msra.mxu0 0.0
    %3463 = vmatprep.mubr.f32.mxu0 0.0
    %3464 = vmatmul.mubr.f32.gmra.mrb[0].mxu0 %v3397
    %v3465 = vpop.f32.mrb[0].mxu0
    %v3466 = vadd.f32 0.0, %v3465
    %v3467 = vpop.f32.mrb[0].mxu0
    %v3468 = vadd.f32 0.0, %v3467
    %3469 = vdwg.mxu0
    %3470 = vmatprep.subr.mxu0 %v3381
    %3471 = vmatpush1.msra.mxu0 %v3380
    %3472 = vmatprep.subr.mxu0 0.0
    %3473 = vmatpush1.msra.mxu0 0.0
    %3474 = vmatprep.subr.mxu0 0.0
    %3475 = vmatpush1.msra.mxu0 0.0
    %3476 = vmatprep.subr.mxu0 0.0
    %3477 = vmatpush1.msra.mxu0 0.0
    %3478 = vmatprep.subr.mxu0 0.0
    %3479 = vmatpush1.msra.mxu0 0.0
    %3480 = vmatprep.subr.mxu0 0.0
    %3481 = vmatpush1.msra.mxu0 0.0
    %3482 = vmatprep.subr.mxu0 0.0
    %3483 = vmatpush1.msra.mxu0 0.0
    %3484 = vmatprep.subr.mxu0 0.0
    %3485 = vmatpush1.msra.mxu0 0.0
    %3486 = vmatprep.subr.mxu0 0.0
    %3487 = vmatpush1.msra.mxu0 0.0
    %3488 = vmatprep.subr.mxu0 0.0
    %3489 = vmatpush1.msra.mxu0 0.0
    %3490 = vmatprep.subr.mxu0 0.0
    %3491 = vmatpush1.msra.mxu0 0.0
    %3492 = vmatprep.subr.mxu0 0.0
    %3493 = vmatpush1.msra.mxu0 0.0
    %3494 = vmatprep.subr.mxu0 0.0
    %3495 = vmatpush1.msra.mxu0 0.0
    %3496 = vmatprep.subr.mxu0 0.0
    %3497 = vmatpush1.msra.mxu0 0.0
    %3498 = vmatprep.subr.mxu0 0.0
    %3499 = vmatpush1.msra.mxu0 0.0
    %3500 = vmatprep.subr.mxu0 0.0
    %3501 = vmatpush1.msra.mxu0 0.0
    %3502 = vmatprep.subr.mxu0 0.0
    %3503 = vmatpush1.msra.mxu0 0.0
    %3504 = vmatprep.subr.mxu0 0.0
    %3505 = vmatpush1.msra.mxu0 0.0
    %3506 = vmatprep.subr.mxu0 0.0
    %3507 = vmatpush1.msra.mxu0 0.0
    %3508 = vmatprep.subr.mxu0 0.0
    %3509 = vmatpush1.msra.mxu0 0.0
    %3510 = vmatprep.subr.mxu0 0.0
    %3511 = vmatpush1.msra.mxu0 0.0
    %3512 = vmatprep.subr.mxu0 0.0
    %3513 = vmatpush1.msra.mxu0 0.0
    %3514 = vmatprep.subr.mxu0 0.0
    %3515 = vmatpush1.msra.mxu0 0.0
    %3516 = vmatprep.subr.mxu0 0.0
    %3517 = vmatpush1.msra.mxu0 0.0
    %3518 = vmatprep.subr.mxu0 0.0
    %3519 = vmatpush1.msra.mxu0 0.0
    %3520 = vmatprep.subr.mxu0 0.0
    %3521 = vmatpush1.msra.mxu0 0.0
    %3522 = vmatprep.subr.mxu0 0.0
    %3523 = vmatpush1.msra.mxu0 0.0
    %3524 = vmatprep.subr.mxu0 0.0
    %3525 = vmatpush1.msra.mxu0 0.0
    %3526 = vmatprep.subr.mxu0 0.0
    %3527 = vmatpush1.msra.mxu0 0.0
    %3528 = vmatprep.subr.mxu0 0.0
    %3529 = vmatpush1.msra.mxu0 0.0
    %3530 = vmatprep.subr.mxu0 0.0
    %3531 = vmatpush1.msra.mxu0 0.0
    %3532 = vmatprep.subr.mxu0 0.0
    %3533 = vmatpush1.msra.mxu0 0.0
    %3534 = vmatprep.mubr.f32.mxu0 0.0
    %3535 = vmatmul.mubr.f32.gmra.mrb[0].mxu0 %v3397
    %v3536 = vpop.f32.mrb[0].mxu0
    %v3537 = vadd.f32 0.0, %v3536
    %v3538 = vpop.f32.mrb[0].mxu0
    %v3539 = vadd.f32 0.0, %v3538
    %3540 = vdwg.mxu0
    %3541 = vmatprep.subr.mxu0 %v3383
    %3542 = vmatpush1.msra.mxu0 %v3382
    %3543 = vmatprep.subr.mxu0 0.0
    %3544 = vmatpush1.msra.mxu0 0.0
    %3545 = vmatprep.subr.mxu0 0.0
    %3546 = vmatpush1.msra.mxu0 0.0
    %3547 = vmatprep.subr.mxu0 0.0
    %3548 = vmatpush1.msra.mxu0 0.0
    %3549 = vmatprep.subr.mxu0 0.0
    %3550 = vmatpush1.msra.mxu0 0.0
    %3551 = vmatprep.subr.mxu0 0.0
    %3552 = vmatpush1.msra.mxu0 0.0
    %3553 = vmatprep.subr.mxu0 0.0
    %3554 = vmatpush1.msra.mxu0 0.0
    %3555 = vmatprep.subr.mxu0 0.0
    %3556 = vmatpush1.msra.mxu0 0.0
    %3557 = vmatprep.subr.mxu0 0.0
    %3558 = vmatpush1.msra.mxu0 0.0
    %3559 = vmatprep.subr.mxu0 0.0
    %3560 = vmatpush1.msra.mxu0 0.0
    %3561 = vmatprep.subr.mxu0 0.0
    %3562 = vmatpush1.msra.mxu0 0.0
    %3563 = vmatprep.subr.mxu0 0.0
    %3564 = vmatpush1.msra.mxu0 0.0
    %3565 = vmatprep.subr.mxu0 0.0
    %3566 = vmatpush1.msra.mxu0 0.0
    %3567 = vmatprep.subr.mxu0 0.0
    %3568 = vmatpush1.msra.mxu0 0.0
    %3569 = vmatprep.subr.mxu0 0.0
    %3570 = vmatpush1.msra.mxu0 0.0
    %3571 = vmatprep.subr.mxu0 0.0
    %3572 = vmatpush1.msra.mxu0 0.0
    %3573 = vmatprep.subr.mxu0 0.0
    %3574 = vmatpush1.msra.mxu0 0.0
    %3575 = vmatprep.subr.mxu0 0.0
    %3576 = vmatpush1.msra.mxu0 0.0
    %3577 = vmatprep.subr.mxu0 0.0
    %3578 = vmatpush1.msra.mxu0 0.0
    %3579 = vmatprep.subr.mxu0 0.0
    %3580 = vmatpush1.msra.mxu0 0.0
    %3581 = vmatprep.subr.mxu0 0.0
    %3582 = vmatpush1.msra.mxu0 0.0
    %3583 = vmatprep.subr.mxu0 0.0
    %3584 = vmatpush1.msra.mxu0 0.0
    %3585 = vmatprep.subr.mxu0 0.0
    %3586 = vmatpush1.msra.mxu0 0.0
    %3587 = vmatprep.subr.mxu0 0.0
    %3588 = vmatpush1.msra.mxu0 0.0
    %3589 = vmatprep.subr.mxu0 0.0
    %3590 = vmatpush1.msra.mxu0 0.0
    %3591 = vmatprep.subr.mxu0 0.0
    %3592 = vmatpush1.msra.mxu0 0.0
    %3593 = vmatprep.subr.mxu0 0.0
    %3594 = vmatpush1.msra.mxu0 0.0
    %3595 = vmatprep.subr.mxu0 0.0
    %3596 = vmatpush1.msra.mxu0 0.0
    %3597 = vmatprep.subr.mxu0 0.0
    %3598 = vmatpush1.msra.mxu0 0.0
    %3599 = vmatprep.subr.mxu0 0.0
    %3600 = vmatpush1.msra.mxu0 0.0
    %3601 = vmatprep.subr.mxu0 0.0
    %3602 = vmatpush1.msra.mxu0 0.0
    %3603 = vmatprep.subr.mxu0 0.0
    %3604 = vmatpush1.msra.mxu0 0.0
    %3605 = vmatprep.mubr.f32.mxu0 0.0
    %3606 = vmatmul.mubr.f32.gmra.mrb[0].mxu0 %v3397
    %v3607 = vpop.f32.mrb[0].mxu0
    %v3608 = vadd.f32 0.0, %v3607
    %v3609 = vpop.f32.mrb[0].mxu0
    %v3610 = vadd.f32 0.0, %v3609
    %3611 = vdwg.mxu0
    %3612 = vmatprep.subr.mxu0 %v3385
    %3613 = vmatpush1.msra.mxu0 %v3384
    %3614 = vmatprep.subr.mxu0 0.0
    %3615 = vmatpush1.msra.mxu0 0.0
    %3616 = vmatprep.subr.mxu0 0.0
    %3617 = vmatpush1.msra.mxu0 0.0
    %3618 = vmatprep.subr.mxu0 0.0
    %3619 = vmatpush1.msra.mxu0 0.0
    %3620 = vmatprep.subr.mxu0 0.0
    %3621 = vmatpush1.msra.mxu0 0.0
    %3622 = vmatprep.subr.mxu0 0.0
    %3623 = vmatpush1.msra.mxu0 0.0
    %3624 = vmatprep.subr.mxu0 0.0
    %3625 = vmatpush1.msra.mxu0 0.0
    %3626 = vmatprep.subr.mxu0 0.0
    %3627 = vmatpush1.msra.mxu0 0.0
    %3628 = vmatprep.subr.mxu0 0.0
    %3629 = vmatpush1.msra.mxu0 0.0
    %3630 = vmatprep.subr.mxu0 0.0
    %3631 = vmatpush1.msra.mxu0 0.0
    %3632 = vmatprep.subr.mxu0 0.0
    %3633 = vmatpush1.msra.mxu0 0.0
    %3634 = vmatprep.subr.mxu0 0.0
    %3635 = vmatpush1.msra.mxu0 0.0
    %3636 = vmatprep.subr.mxu0 0.0
    %3637 = vmatpush1.msra.mxu0 0.0
    %3638 = vmatprep.subr.mxu0 0.0
    %3639 = vmatpush1.msra.mxu0 0.0
    %3640 = vmatprep.subr.mxu0 0.0
    %3641 = vmatpush1.msra.mxu0 0.0
    %3642 = vmatprep.subr.mxu0 0.0
    %3643 = vmatpush1.msra.mxu0 0.0
    %3644 = vmatprep.subr.mxu0 0.0
    %3645 = vmatpush1.msra.mxu0 0.0
    %3646 = vmatprep.subr.mxu0 0.0
    %3647 = vmatpush1.msra.mxu0 0.0
    %3648 = vmatprep.subr.mxu0 0.0
    %3649 = vmatpush1.msra.mxu0 0.0
    %3650 = vmatprep.subr.mxu0 0.0
    %3651 = vmatpush1.msra.mxu0 0.0
    %3652 = vmatprep.subr.mxu0 0.0
    %3653 = vmatpush1.msra.mxu0 0.0
    %3654 = vmatprep.subr.mxu0 0.0
    %3655 = vmatpush1.msra.mxu0 0.0
    %3656 = vmatprep.subr.mxu0 0.0
    %3657 = vmatpush1.msra.mxu0 0.0
    %3658 = vmatprep.subr.mxu0 0.0
    %3659 = vmatpush1.msra.mxu0 0.0
    %3660 = vmatprep.subr.mxu0 0.0
    %3661 = vmatpush1.msra.mxu0 0.0
    %3662 = vmatprep.subr.mxu0 0.0
    %3663 = vmatpush1.msra.mxu0 0.0
    %3664 = vmatprep.subr.mxu0 0.0
    %3665 = vmatpush1.msra.mxu0 0.0
    %3666 = vmatprep.subr.mxu0 0.0
    %3667 = vmatpush1.msra.mxu0 0.0
    %3668 = vmatprep.subr.mxu0 0.0
    %3669 = vmatpush1.msra.mxu0 0.0
    %3670 = vmatprep.subr.mxu0 0.0
    %3671 = vmatpush1.msra.mxu0 0.0
    %3672 = vmatprep.subr.mxu0 0.0
    %3673 = vmatpush1.msra.mxu0 0.0
    %3674 = vmatprep.subr.mxu0 0.0
    %3675 = vmatpush1.msra.mxu0 0.0
    %3676 = vmatprep.mubr.f32.mxu0 0.0
    %3677 = vmatmul.mubr.f32.gmra.mrb[0].mxu0 %v3397
    %v3678 = vpop.f32.mrb[0].mxu0
    %v3679 = vadd.f32 0.0, %v3678
    %v3680 = vpop.f32.mrb[0].mxu0
    %v3681 = vadd.f32 0.0, %v3680
    %3682 = vdwg.mxu0
    %3683 = vmatprep.subr.mxu0 0.0
    %3684 = vmatpush1.msra.mxu0 %v3386
    %3685 = vmatprep.subr.mxu0 0.0
    %3686 = vmatpush1.msra.mxu0 0.0
    %3687 = vmatprep.subr.mxu0 0.0
    %3688 = vmatpush1.msra.mxu0 0.0
    %3689 = vmatprep.subr.mxu0 0.0
    %3690 = vmatpush1.msra.mxu0 0.0
    %3691 = vmatprep.subr.mxu0 0.0
    %3692 = vmatpush1.msra.mxu0 0.0
    %3693 = vmatprep.subr.mxu0 0.0
    %3694 = vmatpush1.msra.mxu0 0.0
    %3695 = vmatprep.subr.mxu0 0.0
    %3696 = vmatpush1.msra.mxu0 0.0
    %3697 = vmatprep.subr.mxu0 0.0
    %3698 = vmatpush1.msra.mxu0 0.0
    %3699 = vmatprep.subr.mxu0 0.0
    %3700 = vmatpush1.msra.mxu0 0.0
    %3701 = vmatprep.subr.mxu0 0.0
    %3702 = vmatpush1.msra.mxu0 0.0
    %3703 = vmatprep.subr.mxu0 0.0
    %3704 = vmatpush1.msra.mxu0 0.0
    %3705 = vmatprep.subr.mxu0 0.0
    %3706 = vmatpush1.msra.mxu0 0.0
    %3707 = vmatprep.subr.mxu0 0.0
    %3708 = vmatpush1.msra.mxu0 0.0
    %3709 = vmatprep.subr.mxu0 0.0
    %3710 = vmatpush1.msra.mxu0 0.0
    %3711 = vmatprep.subr.mxu0 0.0
    %3712 = vmatpush1.msra.mxu0 0.0
    %3713 = vmatprep.subr.mxu0 0.0
    %3714 = vmatpush1.msra.mxu0 0.0
    %3715 = vmatprep.subr.mxu0 0.0
    %3716 = vmatpush1.msra.mxu0 0.0
    %3717 = vmatprep.subr.mxu0 0.0
    %3718 = vmatpush1.msra.mxu0 0.0
    %3719 = vmatprep.subr.mxu0 0.0
    %3720 = vmatpush1.msra.mxu0 0.0
    %3721 = vmatprep.subr.mxu0 0.0
    %3722 = vmatpush1.msra.mxu0 0.0
    %3723 = vmatprep.subr.mxu0 0.0
    %3724 = vmatpush1.msra.mxu0 0.0
    %3725 = vmatprep.subr.mxu0 0.0
    %3726 = vmatpush1.msra.mxu0 0.0
    %3727 = vmatprep.subr.mxu0 0.0
    %3728 = vmatpush1.msra.mxu0 0.0
    %3729 = vmatprep.subr.mxu0 0.0
    %3730 = vmatpush1.msra.mxu0 0.0
    %3731 = vmatprep.subr.mxu0 0.0
    %3732 = vmatpush1.msra.mxu0 0.0
    %3733 = vmatprep.subr.mxu0 0.0
    %3734 = vmatpush1.msra.mxu0 0.0
    %3735 = vmatprep.subr.mxu0 0.0
    %3736 = vmatpush1.msra.mxu0 0.0
    %3737 = vmatprep.subr.mxu0 0.0
    %3738 = vmatpush1.msra.mxu0 0.0
    %3739 = vmatprep.subr.mxu0 0.0
    %3740 = vmatpush1.msra.mxu0 0.0
    %3741 = vmatprep.subr.mxu0 0.0
    %3742 = vmatpush1.msra.mxu0 0.0
    %3743 = vmatprep.subr.mxu0 0.0
    %3744 = vmatpush1.msra.mxu0 0.0
    %3745 = vmatprep.subr.mxu0 0.0
    %3746 = vmatpush1.msra.mxu0 0.0
    %3747 = vmatprep.mubr.f32.mxu0 0.0
    %3748 = vmatmul.mubr.f32.gmra.mrb[0].mxu0 %v3397
    %v3749 = vpop.f32.mrb[0].mxu0
    %v3750 = vadd.f32 0.0, %v3749
    %v3751 = vpop.f32.mrb[0].mxu0
    %3752 = vdwg.mxu0
    %v3753 = vadd.f32 %v3346, %v3466
    %v3754 = vadd.f32 %v3347, %v3468
    %v3755 = vadd.f32 %v3348, %v3537
    %v3756 = vadd.f32 %v3349, %v3539
    %v3757 = vadd.f32 %v3350, %v3608
    %v3758 = vadd.f32 %v3351, %v3610
    %v3759 = vadd.f32 %v3352, %v3679
    %v3760 = vadd.f32 %v3353, %v3681
    %v3761 = vadd.f32 %v3354, %v3750
    %v3762 = vld [vmem:[%s2] sm:$0xff]
    %3764 = vset.pattern.permute.xlu0 0
    %3765 = vperm.xlu0 %3764, %v3762
    %v3766 = vpop.permute.xlu0 %3765
    %v3768 = vmul.f32 %v3753, %v3766
    %v3769 = vmul.f32 %v3754, %v3766
    %v3770 = vmul.f32 %v3755, %v3766
    %v3771 = vmul.f32 %v3756, %v3766
    %v3772 = vmul.f32 %v3757, %v3766
    %v3773 = vmul.f32 %v3758, %v3766
    %v3774 = vmul.f32 %v3759, %v3766
    %v3775 = vmul.f32 %v3760, %v3766
    %v3776 = vmul.f32 %v3761, %v3766
    %v3777 = vld [vmem:[%s3] sm:$0xff]
    %3779 = vset.pattern.permute.xlu0 0
    %3780 = vperm.xlu0 %3779, %v3777
    %v3781 = vpop.permute.xlu0 %3780
    %v3783 = vadd.f32 %v3768, %v3781
    %v3784 = vadd.f32 %v3769, %v3781
    %v3785 = vadd.f32 %v3770, %v3781
    %v3786 = vadd.f32 %v3771, %v3781
    %v3787 = vadd.f32 %v3772, %v3781
    %v3788 = vadd.f32 %v3773, %v3781
    %v3789 = vadd.f32 %v3774, %v3781
    %v3790 = vadd.f32 %v3775, %v3781
    %v3791 = vadd.f32 %v3776, %v3781
    %v3792 = vmax.f32 %v3783, 0.0
    %v3793 = vmax.f32 %v3784, 0.0
    %v3794 = vmax.f32 %v3785, 0.0
    %v3795 = vmax.f32 %v3786, 0.0
    %v3796 = vmax.f32 %v3787, 0.0
    %v3797 = vmax.f32 %v3788, 0.0
    %v3798 = vmax.f32 %v3789, 0.0
    %v3799 = vmax.f32 %v3790, 0.0
    %v3800 = vmax.f32 %v3791, 0.0
    %3801 = vst [vmem:[#allocation2] sm:$0xff] %v3792
    %3802 = vst [vmem:[#allocation2 + $0x8] sm:$0xff] %v3793
    %3803 = vst [vmem:[#allocation2 + $0x10] sm:$0xff] %v3794
    %3804 = vst [vmem:[#allocation2 + $0x18] sm:$0xff] %v3795
    %3805 = vst [vmem:[#allocation2 + $0x20] sm:$0xff] %v3796
    %3806 = vst [vmem:[#allocation2 + $0x28] sm:$0xff] %v3797
    %3807 = vst [vmem:[#allocation2 + $0x30] sm:$0xff] %v3798
    %3808 = vst [vmem:[#allocation2 + $0x38] sm:$0xff] %v3799
    %3809 = vst [vmem:[#allocation2 + $0x40] sm:$0xff] %v3800
    %v3810 = vld [vmem:[#allocation2] sm:$0xff]
    %v3811 = vld [vmem:[#allocation2 + $0x8] sm:$0xff]
    %v3812 = vld [vmem:[#allocation2 + $0x10] sm:$0xff]
    %v3813 = vld [vmem:[#allocation2 + $0x18] sm:$0xff]
    %v3814 = vld [vmem:[#allocation2 + $0x20] sm:$0xff]
    %v3815 = vld [vmem:[#allocation2 + $0x28] sm:$0xff]
    %v3816 = vld [vmem:[#allocation2 + $0x30] sm:$0xff]
    %v3817 = vld [vmem:[#allocation2 + $0x38] sm:$0xff]
    %v3818 = vld [vmem:[#allocation2] sm:$0xff]
    %v3819 = vld [vmem:[#allocation2 + $0x8] sm:$0xff]
    %v3820 = vld [vmem:[#allocation2 + $0x10] sm:$0xff]
    %v3821 = vld [vmem:[#allocation2 + $0x18] sm:$0xff]
    %v3822 = vld [vmem:[#allocation2 + $0x20] sm:$0xff]
    %v3823 = vld [vmem:[#allocation2 + $0x28] sm:$0xff]
    %v3824 = vld [vmem:[#allocation2 + $0x30] sm:$0xff]
    %v3825 = vld [vmem:[#allocation2 + $0x38] sm:$0xff]
    %v3826 = vld [vmem:[#allocation2 + $0x40] sm:$0xff]
    %3836 = vrot.lane.b32.xlu0 %v3818, 127
    %v3837 = vpop.permute.xlu0 %3836
    %3838 = vrot.lane.b32.xlu0 %v3819, 127
    %v3839 = vpop.permute.xlu0 %3838
    %3840 = vrot.lane.b32.xlu0 %v3820, 127
    %v3841 = vpop.permute.xlu0 %3840
    %3842 = vrot.lane.b32.xlu0 %v3821, 127
    %v3843 = vpop.permute.xlu0 %3842
    %3844 = vrot.lane.b32.xlu0 %v3822, 127
    %v3845 = vpop.permute.xlu0 %3844
    %3846 = vrot.lane.b32.xlu0 %v3823, 127
    %v3847 = vpop.permute.xlu0 %3846
    %3848 = vrot.lane.b32.xlu0 %v3824, 127
    %v3849 = vpop.permute.xlu0 %3848
    %3850 = vrot.lane.b32.xlu0 %v3825, 127
    %v3851 = vpop.permute.xlu0 %3850
    %3852 = vrot.lane.b32.xlu0 %v3826, 127
    %v3853 = vpop.permute.xlu0 %3852
    %v3854 = vsel %vm179, %v3837, %v3839
    %v3855 = vsel %vm179, %v3839, %v3841
    %v3856 = vsel %vm179, %v3841, %v3843
    %v3857 = vsel %vm179, %v3843, %v3845
    %v3858 = vsel %vm179, %v3845, %v3847
    %v3859 = vsel %vm179, %v3847, %v3849
    %v3860 = vsel %vm179, %v3849, %v3851
    %v3861 = vsel %vm179, %v3851, %v3853
    %v3870 = vmax.f32 %v3810, %v3854
    %v3871 = vmax.f32 %v3811, %v3855
    %v3872 = vmax.f32 %v3812, %v3856
    %v3873 = vmax.f32 %v3813, %v3857
    %v3874 = vmax.f32 %v3814, %v3858
    %v3875 = vmax.f32 %v3815, %v3859
    %v3876 = vmax.f32 %v3816, %v3860
    %v3877 = vmax.f32 %v3817, %v3861
    %3878 = vrot.lane.b32.xlu0 %v3818, 112
    %v3879 = vpop.permute.xlu0 %3878
    %3880 = vrot.lane.b32.xlu0 %v3819, 112
    %v3881 = vpop.permute.xlu0 %3880
    %3882 = vrot.lane.b32.xlu0 %v3820, 112
    %v3883 = vpop.permute.xlu0 %3882
    %3884 = vrot.lane.b32.xlu0 %v3821, 112
    %v3885 = vpop.permute.xlu0 %3884
    %3886 = vrot.lane.b32.xlu0 %v3822, 112
    %v3887 = vpop.permute.xlu0 %3886
    %3888 = vrot.lane.b32.xlu0 %v3823, 112
    %v3889 = vpop.permute.xlu0 %3888
    %3890 = vrot.lane.b32.xlu0 %v3824, 112
    %v3891 = vpop.permute.xlu0 %3890
    %3892 = vrot.lane.b32.xlu0 %v3825, 112
    %v3893 = vpop.permute.xlu0 %3892
    %3894 = vrot.lane.b32.xlu0 %v3826, 112
    %v3895 = vpop.permute.xlu0 %3894
    %v3896 = vsel %vm1342, %v3879, %v3881
    %v3897 = vsel %vm1342, %v3881, %v3883
    %v3898 = vsel %vm1342, %v3883, %v3885
    %v3899 = vsel %vm1342, %v3885, %v3887
    %v3900 = vsel %vm1342, %v3887, %v3889
    %v3901 = vsel %vm1342, %v3889, %v3891
    %v3902 = vsel %vm1342, %v3891, %v3893
    %v3903 = vsel %vm1342, %v3893, %v3895
    %v3912 = vmax.f32 %v3870, %v3896
    %v3913 = vmax.f32 %v3871, %v3897
    %v3914 = vmax.f32 %v3872, %v3898
    %v3915 = vmax.f32 %v3873, %v3899
    %v3916 = vmax.f32 %v3874, %v3900
    %v3917 = vmax.f32 %v3875, %v3901
    %v3918 = vmax.f32 %v3876, %v3902
    %v3919 = vmax.f32 %v3877, %v3903
    %3920 = vrot.lane.b32.xlu0 %v3818, 111
    %v3921 = vpop.permute.xlu0 %3920
    %3922 = vrot.lane.b32.xlu0 %v3819, 111
    %v3923 = vpop.permute.xlu0 %3922
    %3924 = vrot.lane.b32.xlu0 %v3820, 111
    %v3925 = vpop.permute.xlu0 %3924
    %3926 = vrot.lane.b32.xlu0 %v3821, 111
    %v3927 = vpop.permute.xlu0 %3926
    %3928 = vrot.lane.b32.xlu0 %v3822, 111
    %v3929 = vpop.permute.xlu0 %3928
    %3930 = vrot.lane.b32.xlu0 %v3823, 111
    %v3931 = vpop.permute.xlu0 %3930
    %3932 = vrot.lane.b32.xlu0 %v3824, 111
    %v3933 = vpop.permute.xlu0 %3932
    %3934 = vrot.lane.b32.xlu0 %v3825, 111
    %v3935 = vpop.permute.xlu0 %3934
    %3936 = vrot.lane.b32.xlu0 %v3826, 111
    %v3937 = vpop.permute.xlu0 %3936
    %v3938 = vsel %vm1749, %v3921, %v3923
    %v3939 = vsel %vm1749, %v3923, %v3925
    %v3940 = vsel %vm1749, %v3925, %v3927
    %v3941 = vsel %vm1749, %v3927, %v3929
    %v3942 = vsel %vm1749, %v3929, %v3931
    %v3943 = vsel %vm1749, %v3931, %v3933
    %v3944 = vsel %vm1749, %v3933, %v3935
    %v3945 = vsel %vm1749, %v3935, %v3937
    %v3954 = vmax.f32 %v3912, %v3938
    %v3955 = vmax.f32 %v3913, %v3939
    %v3956 = vmax.f32 %v3914, %v3940
    %v3957 = vmax.f32 %v3915, %v3941
    %v3958 = vmax.f32 %v3916, %v3942
    %v3959 = vmax.f32 %v3917, %v3943
    %v3960 = vmax.f32 %v3918, %v3944
    %v3961 = vmax.f32 %v3919, %v3945
    %v3962 = vld [vmem:[#allocation8] sm:$0xff]
    %v3963 = vld [vmem:[#allocation8 + $0x8] sm:$0xff]
    %v3964 = vld [vmem:[#allocation8 + $0x10] sm:$0xff]
    %v3965 = vld [vmem:[#allocation8 + $0x18] sm:$0xff]
    %v3966 = vld [vmem:[#allocation8 + $0x20] sm:$0xff]
    %v3967 = vld [vmem:[#allocation8 + $0x28] sm:$0xff]
    %v3968 = vld [vmem:[#allocation8 + $0x30] sm:$0xff]
    %v3969 = vld [vmem:[#allocation8 + $0x38] sm:$0xff]
    %v3970 = vld [vmem:[#allocation8 + $0x40] sm:$0xff]
    %v3971 = vld [vmem:[#allocation8 + $0x48] sm:$0xff]
    %v3972 = vld [vmem:[#allocation8 + $0x50] sm:$0xff]
    %v3973 = vld [vmem:[#allocation8 + $0x58] sm:$0xff]
    %v3974 = vld [vmem:[#allocation8 + $0x60] sm:$0xff]
    %v3975 = vld [vmem:[#allocation8 + $0x68] sm:$0xff]
    %v3976 = vld [vmem:[#allocation8 + $0x70] sm:$0xff]
    %v3977 = vld [vmem:[#allocation8 + $0x78] sm:$0xff]
    %v3978 = vld [vmem:[#allocation8 + $0x80] sm:$0xff]
    %v3979 = vld [vmem:[#allocation8 + $0x88] sm:$0xff]
    %v3980 = vld [vmem:[#allocation8 + $0x90] sm:$0xff]
    %v3981 = vld [vmem:[#allocation8 + $0x98] sm:$0xff]
    %v3982 = vld [vmem:[#allocation8 + $0xa0] sm:$0xff]
    %v3983 = vld [vmem:[#allocation8 + $0xa8] sm:$0xff]
    %v3984 = vld [vmem:[#allocation8 + $0xb0] sm:$0xff]
    %v3985 = vld [vmem:[#allocation8 + $0xb8] sm:$0xff]
    %v3986 = vld [vmem:[#allocation8 + $0xc0] sm:$0xff]
    %v3987 = vld [vmem:[#allocation8 + $0xc8] sm:$0xff]
    %v3988 = vld [vmem:[#allocation8 + $0xd0] sm:$0xff]
    %v3989 = vld [vmem:[#allocation8 + $0xd8] sm:$0xff]
    %v3990 = vld [vmem:[#allocation8 + $0xe0] sm:$0xff]
    %v3991 = vld [vmem:[#allocation8 + $0xe8] sm:$0xff]
    %v3992 = vld [vmem:[#allocation8 + $0xf0] sm:$0xff]
    %v3993 = vld [vmem:[#allocation8 + $0xf8] sm:$0xff]
    %v3994 = vld [vmem:[#allocation8 + $0x100] sm:$0xff]
    %v3995 = vld [vmem:[#allocation8 + $0x108] sm:$0xff]
    %v3996 = vld [vmem:[#allocation8 + $0x110] sm:$0xff]
    %v3997 = vld [vmem:[#allocation8 + $0x118] sm:$0xff]
    %v3998 = vld [vmem:[#allocation8 + $0x120] sm:$0xff]
    %v3999 = vld [vmem:[#allocation8 + $0x128] sm:$0xff]
    %v4000 = vld [vmem:[#allocation8 + $0x130] sm:$0xff]
    %v4001 = vld [vmem:[#allocation8 + $0x138] sm:$0xff]
    %v4002 = vld [vmem:[#allocation8 + $0x140] sm:$0xff]
    %v4003 = vld [vmem:[#allocation8 + $0x148] sm:$0xff]
    %v4004 = vld [vmem:[#allocation8 + $0x150] sm:$0xff]
    %v4005 = vld [vmem:[#allocation8 + $0x158] sm:$0xff]
    %v4006 = vld [vmem:[#allocation8 + $0x160] sm:$0xff]
    %v4007 = vld [vmem:[#allocation8 + $0x168] sm:$0xff]
    %v4008 = vld [vmem:[#allocation8 + $0x170] sm:$0xff]
    %v4009 = vld [vmem:[#allocation8 + $0x178] sm:$0xff]
    %v4010 = vld [vmem:[#allocation8 + $0x180] sm:$0xff]
    %v4011 = vld [vmem:[#allocation8 + $0x188] sm:$0xff]
    %v4012 = vld [vmem:[#allocation8 + $0x190] sm:$0xff]
    %v4013 = vld [vmem:[#allocation8 + $0x198] sm:$0xff]
    %v4014 = vld [vmem:[#allocation8 + $0x1a0] sm:$0xff]
    %v4015 = vld [vmem:[#allocation8 + $0x1a8] sm:$0xff]
    %v4016 = vld [vmem:[#allocation8 + $0x1b0] sm:$0xff]
    %v4017 = vld [vmem:[#allocation8 + $0x1b8] sm:$0xff]
    %v4018 = vld [vmem:[#allocation8 + $0x1c0] sm:$0xff]
    %v4019 = vld [vmem:[#allocation8 + $0x1c8] sm:$0xff]
    %v4020 = vld [vmem:[#allocation8 + $0x1d0] sm:$0xff]
    %v4021 = vld [vmem:[#allocation8 + $0x1d8] sm:$0xff]
    %v4022 = vld [vmem:[#allocation8 + $0x1e0] sm:$0xff]
    %v4023 = vld [vmem:[#allocation8 + $0x1e8] sm:$0xff]
    %v4024 = vld [vmem:[#allocation8 + $0x1f0] sm:$0xff]
    %v4025 = vld [vmem:[#allocation8 + $0x1f8] sm:$0xff]
    %v4026 = vld [vmem:[#allocation8 + $0x200] sm:$0xff]
    %v4027 = vld [vmem:[#allocation8 + $0x208] sm:$0xff]
    %v4028 = vld [vmem:[#allocation8 + $0x210] sm:$0xff]
    %v4029 = vld [vmem:[#allocation8 + $0x218] sm:$0xff]
    %v4030 = vld [vmem:[#allocation8 + $0x220] sm:$0xff]
    %v4031 = vld [vmem:[#allocation8 + $0x228] sm:$0xff]
    %v4032 = vld [vmem:[#allocation8 + $0x230] sm:$0xff]
    %v4033 = vld [vmem:[#allocation8 + $0x238] sm:$0xff]
    %v4034 = vld [vmem:[#allocation8 + $0x240] sm:$0xff]
    %v4035 = vld [vmem:[#allocation8 + $0x248] sm:$0xff]
    %v4036 = vld [vmem:[#allocation8 + $0x250] sm:$0xff]
    %v4037 = vld [vmem:[#allocation8 + $0x258] sm:$0xff]
    %v4038 = vld [vmem:[#allocation8 + $0x260] sm:$0xff]
    %v4039 = vld [vmem:[#allocation8 + $0x268] sm:$0xff]
    %v4040 = vld [vmem:[#allocation8 + $0x270] sm:$0xff]
    %v4041 = vld [vmem:[#allocation8 + $0x278] sm:$0xff]
    %v4042 = vld [vmem:[#allocation8 + $0x280] sm:$0xff]
    %v4043 = vld [vmem:[#allocation8 + $0x288] sm:$0xff]
    %v4044 = vld [vmem:[#allocation8 + $0x290] sm:$0xff]
    %v4045 = vld [vmem:[#allocation8 + $0x298] sm:$0xff]
    %v4046 = vld [vmem:[#allocation8 + $0x2a0] sm:$0xff]
    %v4047 = vld [vmem:[#allocation8 + $0x2a8] sm:$0xff]
    %v4048 = vld [vmem:[#allocation8 + $0x2b0] sm:$0xff]
    %v4049 = vld [vmem:[#allocation8 + $0x2b8] sm:$0xff]
    %v4050 = vld [vmem:[#allocation8 + $0x2c0] sm:$0xff]
    %v4051 = vld [vmem:[#allocation8 + $0x2c8] sm:$0xff]
    %v4052 = vld [vmem:[#allocation8 + $0x2d0] sm:$0xff]
    %v4053 = vld [vmem:[#allocation8 + $0x2d8] sm:$0xff]
    %v4054 = vld [vmem:[#allocation8 + $0x2e0] sm:$0xff]
    %v4055 = vld [vmem:[#allocation8 + $0x2e8] sm:$0xff]
    %v4056 = vld [vmem:[#allocation8 + $0x2f0] sm:$0xff]
    %v4057 = vld [vmem:[#allocation8 + $0x2f8] sm:$0xff]
    %v4058 = vld [vmem:[#allocation8 + $0x300] sm:$0xff]
    %v4059 = vld [vmem:[#allocation8 + $0x308] sm:$0xff]
    %v4060 = vld [vmem:[#allocation8 + $0x310] sm:$0xff]
    %v4061 = vld [vmem:[#allocation8 + $0x318] sm:$0xff]
    %v4062 = vld [vmem:[#allocation8 + $0x320] sm:$0xff]
    %v4063 = vld [vmem:[#allocation8 + $0x328] sm:$0xff]
    %v4064 = vld [vmem:[#allocation8 + $0x330] sm:$0xff]
    %v4065 = vld [vmem:[#allocation8 + $0x338] sm:$0xff]
    %v4066 = vld [vmem:[#allocation8 + $0x340] sm:$0xff]
    %v4067 = vld [vmem:[#allocation8 + $0x348] sm:$0xff]
    %v4068 = vld [vmem:[#allocation8 + $0x350] sm:$0xff]
    %v4069 = vld [vmem:[#allocation8 + $0x358] sm:$0xff]
    %v4070 = vld [vmem:[#allocation8 + $0x360] sm:$0xff]
    %v4071 = vld [vmem:[#allocation8 + $0x368] sm:$0xff]
    %v4072 = vld [vmem:[#allocation8 + $0x370] sm:$0xff]
    %v4073 = vld [vmem:[#allocation8 + $0x378] sm:$0xff]
    %v4074 = vld [vmem:[#allocation8 + $0x380] sm:$0xff]
    %v4075 = vld [vmem:[#allocation8 + $0x388] sm:$0xff]
    %v4076 = vld [vmem:[#allocation8 + $0x390] sm:$0xff]
    %v4077 = vld [vmem:[#allocation8 + $0x398] sm:$0xff]
    %v4078 = vld [vmem:[#allocation8 + $0x3a0] sm:$0xff]
    %v4079 = vld [vmem:[#allocation8 + $0x3a8] sm:$0xff]
    %v4080 = vld [vmem:[#allocation8 + $0x3b0] sm:$0xff]
    %v4081 = vld [vmem:[#allocation8 + $0x3b8] sm:$0xff]
    %v4082 = vld [vmem:[#allocation8 + $0x3c0] sm:$0xff]
    %v4083 = vld [vmem:[#allocation8 + $0x3c8] sm:$0xff]
    %v4084 = vld [vmem:[#allocation8 + $0x3d0] sm:$0xff]
    %v4085 = vld [vmem:[#allocation8 + $0x3d8] sm:$0xff]
    %v4086 = vld [vmem:[#allocation8 + $0x3e0] sm:$0xff]
    %v4087 = vld [vmem:[#allocation8 + $0x3e8] sm:$0xff]
    %v4088 = vld [vmem:[#allocation8 + $0x3f0] sm:$0xff]
    %v4089 = vld [vmem:[#allocation8 + $0x3f8] sm:$0xff]
    %v4090 = vld [vmem:[#allocation8 + $0x400] sm:$0xff]
    %v4091 = vld [vmem:[#allocation8 + $0x408] sm:$0xff]
    %v4092 = vld [vmem:[#allocation8 + $0x410] sm:$0xff]
    %v4093 = vld [vmem:[#allocation8 + $0x418] sm:$0xff]
    %v4094 = vld [vmem:[#allocation8 + $0x420] sm:$0xff]
    %v4095 = vld [vmem:[#allocation8 + $0x428] sm:$0xff]
    %v4096 = vld [vmem:[#allocation8 + $0x430] sm:$0xff]
    %v4097 = vld [vmem:[#allocation8 + $0x438] sm:$0xff]
    %v4098 = vld [vmem:[#allocation8 + $0x440] sm:$0xff]
    %v4099 = vld [vmem:[#allocation8 + $0x448] sm:$0xff]
    %v4100 = vld [vmem:[#allocation8 + $0x450] sm:$0xff]
    %v4101 = vld [vmem:[#allocation8 + $0x458] sm:$0xff]
    %v4102 = vld [vmem:[#allocation8 + $0x460] sm:$0xff]
    %v4103 = vld [vmem:[#allocation8 + $0x468] sm:$0xff]
    %v4104 = vld [vmem:[#allocation8 + $0x470] sm:$0xff]
    %v4105 = vld [vmem:[#allocation8 + $0x478] sm:$0xff]
    %v4106 = vld [vmem:[#allocation8 + $0x480] sm:$0xff]
    %v4107 = vld [vmem:[#allocation8 + $0x488] sm:$0xff]
    %v4108 = vld [vmem:[#allocation8 + $0x490] sm:$0xff]
    %v4109 = vld [vmem:[#allocation8 + $0x498] sm:$0xff]
    %v4110 = vld [vmem:[#allocation8 + $0x4a0] sm:$0xff]
    %v4111 = vld [vmem:[#allocation8 + $0x4a8] sm:$0xff]
    %v4112 = vld [vmem:[#allocation8 + $0x4b0] sm:$0xff]
    %v4113 = vld [vmem:[#allocation8 + $0x4b8] sm:$0xff]
    %v4114 = vld [vmem:[#allocation8 + $0x4c0] sm:$0xff]
    %v4115 = vld [vmem:[#allocation8 + $0x4c8] sm:$0xff]
    %v4116 = vld [vmem:[#allocation8 + $0x4d0] sm:$0xff]
    %v4117 = vld [vmem:[#allocation8 + $0x4d8] sm:$0xff]
    %v4118 = vld [vmem:[#allocation8 + $0x4e0] sm:$0xff]
    %v4119 = vld [vmem:[#allocation8 + $0x4e8] sm:$0xff]
    %v4120 = vld [vmem:[#allocation8 + $0x4f0] sm:$0xff]
    %v4121 = vld [vmem:[#allocation8 + $0x4f8] sm:$0xff]
    %v4122 = vld [vmem:[#allocation8 + $0x500] sm:$0xff]
    %v4123 = vld [vmem:[#allocation8 + $0x508] sm:$0xff]
    %v4124 = vld [vmem:[#allocation8 + $0x510] sm:$0xff]
    %v4125 = vld [vmem:[#allocation8 + $0x518] sm:$0xff]
    %v4126 = vld [vmem:[#allocation8 + $0x520] sm:$0xff]
    %v4127 = vld [vmem:[#allocation8 + $0x528] sm:$0xff]
    %v4128 = vld [vmem:[#allocation8 + $0x530] sm:$0xff]
    %v4129 = vld [vmem:[#allocation8 + $0x538] sm:$0xff]
    %v4130 = vld [vmem:[#allocation8 + $0x540] sm:$0xff]
    %v4131 = vld [vmem:[#allocation8 + $0x548] sm:$0xff]
    %v4132 = vld [vmem:[#allocation8 + $0x550] sm:$0xff]
    %v4133 = vld [vmem:[#allocation8 + $0x558] sm:$0xff]
    %v4134 = vld [vmem:[#allocation8 + $0x560] sm:$0xff]
    %v4135 = vld [vmem:[#allocation8 + $0x568] sm:$0xff]
    %v4136 = vld [vmem:[#allocation8 + $0x570] sm:$0xff]
    %v4137 = vld [vmem:[#allocation8 + $0x578] sm:$0xff]
    %v4138 = vld [vmem:[#allocation8 + $0x580] sm:$0xff]
    %v4139 = vld [vmem:[#allocation8 + $0x588] sm:$0xff]
    %v4140 = vld [vmem:[#allocation8 + $0x590] sm:$0xff]
    %v4141 = vld [vmem:[#allocation8 + $0x598] sm:$0xff]
    %v4142 = vld [vmem:[#allocation8 + $0x5a0] sm:$0xff]
    %v4143 = vld [vmem:[#allocation8 + $0x5a8] sm:$0xff]
    %v4144 = vld [vmem:[#allocation8 + $0x5b0] sm:$0xff]
    %v4145 = vld [vmem:[#allocation8 + $0x5b8] sm:$0xff]
    %v4146 = vld [vmem:[#allocation8 + $0x5c0] sm:$0xff]
    %v4147 = vld [vmem:[#allocation8 + $0x5c8] sm:$0xff]
    %v4148 = vld [vmem:[#allocation8 + $0x5d0] sm:$0xff]
    %v4149 = vld [vmem:[#allocation8 + $0x5d8] sm:$0xff]
    %v4150 = vld [vmem:[#allocation8 + $0x5e0] sm:$0xff]
    %v4151 = vld [vmem:[#allocation8 + $0x5e8] sm:$0xff]
    %v4152 = vld [vmem:[#allocation8 + $0x5f0] sm:$0xff]
    %v4153 = vld [vmem:[#allocation8 + $0x5f8] sm:$0xff]
    %v4154 = vld [vmem:[#allocation8 + $0x600] sm:$0xff]
    %v4155 = vld [vmem:[#allocation8 + $0x608] sm:$0xff]
    %v4156 = vld [vmem:[#allocation8 + $0x610] sm:$0xff]
    %v4157 = vld [vmem:[#allocation8 + $0x618] sm:$0xff]
    %v4158 = vld [vmem:[#allocation8 + $0x620] sm:$0xff]
    %v4159 = vld [vmem:[#allocation8 + $0x628] sm:$0xff]
    %v4160 = vld [vmem:[#allocation8 + $0x630] sm:$0xff]
    %v4161 = vld [vmem:[#allocation8 + $0x638] sm:$0xff]
    %v4162 = vld [vmem:[#allocation8 + $0x640] sm:$0xff]
    %v4163 = vld [vmem:[#allocation8 + $0x648] sm:$0xff]
    %v4164 = vld [vmem:[#allocation8 + $0x650] sm:$0xff]
    %v4165 = vld [vmem:[#allocation8 + $0x658] sm:$0xff]
    %v4166 = vld [vmem:[#allocation8 + $0x660] sm:$0xff]
    %v4167 = vld [vmem:[#allocation8 + $0x668] sm:$0xff]
    %v4168 = vld [vmem:[#allocation8 + $0x670] sm:$0xff]
    %v4169 = vld [vmem:[#allocation8 + $0x678] sm:$0xff]
    %v4170 = vld [vmem:[#allocation8 + $0x680] sm:$0xff]
    %v4171 = vld [vmem:[#allocation8 + $0x688] sm:$0xff]
    %v4172 = vld [vmem:[#allocation8 + $0x690] sm:$0xff]
    %v4173 = vld [vmem:[#allocation8 + $0x698] sm:$0xff]
    %v4174 = vld [vmem:[#allocation8 + $0x6a0] sm:$0xff]
    %v4175 = vld [vmem:[#allocation8 + $0x6a8] sm:$0xff]
    %v4176 = vld [vmem:[#allocation8 + $0x6b0] sm:$0xff]
    %v4177 = vld [vmem:[#allocation8 + $0x6b8] sm:$0xff]
    %v4178 = vld [vmem:[#allocation8 + $0x6c0] sm:$0xff]
    %v4179 = vld [vmem:[#allocation8 + $0x6c8] sm:$0xff]
    %v4180 = vld [vmem:[#allocation8 + $0x6d0] sm:$0xff]
    %v4181 = vld [vmem:[#allocation8 + $0x6d8] sm:$0xff]
    %v4182 = vld [vmem:[#allocation8 + $0x6e0] sm:$0xff]
    %v4183 = vld [vmem:[#allocation8 + $0x6e8] sm:$0xff]
    %v4184 = vld [vmem:[#allocation8 + $0x6f0] sm:$0xff]
    %v4185 = vld [vmem:[#allocation8 + $0x6f8] sm:$0xff]
    %v4186 = vld [vmem:[#allocation8 + $0x700] sm:$0xff]
    %v4187 = vld [vmem:[#allocation8 + $0x708] sm:$0xff]
    %v4188 = vld [vmem:[#allocation8 + $0x710] sm:$0xff]
    %v4189 = vld [vmem:[#allocation8 + $0x718] sm:$0xff]
    %v4190 = vld [vmem:[#allocation8 + $0x720] sm:$0xff]
    %v4191 = vld [vmem:[#allocation8 + $0x728] sm:$0xff]
    %v4192 = vld [vmem:[#allocation8 + $0x730] sm:$0xff]
    %v4193 = vld [vmem:[#allocation8 + $0x738] sm:$0xff]
    %v4194 = vld [vmem:[#allocation8 + $0x740] sm:$0xff]
    %v4195 = vld [vmem:[#allocation8 + $0x748] sm:$0xff]
    %v4196 = vld [vmem:[#allocation8 + $0x750] sm:$0xff]
    %v4197 = vld [vmem:[#allocation8 + $0x758] sm:$0xff]
    %v4198 = vld [vmem:[#allocation8 + $0x760] sm:$0xff]
    %v4199 = vld [vmem:[#allocation8 + $0x768] sm:$0xff]
    %v4200 = vld [vmem:[#allocation8 + $0x770] sm:$0xff]
    %v4201 = vld [vmem:[#allocation8 + $0x778] sm:$0xff]
    %v4202 = vld [vmem:[#allocation8 + $0x780] sm:$0xff]
    %v4203 = vld [vmem:[#allocation8 + $0x788] sm:$0xff]
    %v4204 = vld [vmem:[#allocation8 + $0x790] sm:$0xff]
    %v4205 = vld [vmem:[#allocation8 + $0x798] sm:$0xff]
    %v4206 = vld [vmem:[#allocation8 + $0x7a0] sm:$0xff]
    %v4207 = vld [vmem:[#allocation8 + $0x7a8] sm:$0xff]
    %v4208 = vld [vmem:[#allocation8 + $0x7b0] sm:$0xff]
    %v4209 = vld [vmem:[#allocation8 + $0x7b8] sm:$0xff]
    %v4210 = vld [vmem:[#allocation8 + $0x7c0] sm:$0xff]
    %v4211 = vld [vmem:[#allocation8 + $0x7c8] sm:$0xff]
    %v4212 = vld [vmem:[#allocation8 + $0x7d0] sm:$0xff]
    %v4213 = vld [vmem:[#allocation8 + $0x7d8] sm:$0xff]
    %v4214 = vld [vmem:[#allocation8 + $0x7e0] sm:$0xff]
    %v4215 = vld [vmem:[#allocation8 + $0x7e8] sm:$0xff]
    %v4216 = vld [vmem:[#allocation8 + $0x7f0] sm:$0xff]
    %v4217 = vld [vmem:[#allocation8 + $0x7f8] sm:$0xff]
    %v4218 = vld [vmem:[#allocation8 + $0x800] sm:$0xff]
    %v4219 = vld [vmem:[#allocation8 + $0x808] sm:$0xff]
    %v4220 = vld [vmem:[#allocation8 + $0x810] sm:$0xff]
    %v4221 = vld [vmem:[#allocation8 + $0x818] sm:$0xff]
    %v4222 = vld [vmem:[#allocation8 + $0x820] sm:$0xff]
    %v4223 = vld [vmem:[#allocation8 + $0x828] sm:$0xff]
    %v4224 = vld [vmem:[#allocation8 + $0x830] sm:$0xff]
    %v4225 = vld [vmem:[#allocation8 + $0x838] sm:$0xff]
    %v4226 = vld [vmem:[#allocation8 + $0x840] sm:$0xff]
    %v4227 = vld [vmem:[#allocation8 + $0x848] sm:$0xff]
    %v4228 = vld [vmem:[#allocation8 + $0x850] sm:$0xff]
    %v4229 = vld [vmem:[#allocation8 + $0x858] sm:$0xff]
    %v4230 = vld [vmem:[#allocation8 + $0x860] sm:$0xff]
    %v4231 = vld [vmem:[#allocation8 + $0x868] sm:$0xff]
    %v4232 = vld [vmem:[#allocation8 + $0x870] sm:$0xff]
    %v4233 = vld [vmem:[#allocation8 + $0x878] sm:$0xff]
    %v4234 = vld [vmem:[#allocation8 + $0x880] sm:$0xff]
    %v4235 = vld [vmem:[#allocation8 + $0x888] sm:$0xff]
    %v4236 = vld [vmem:[#allocation8 + $0x890] sm:$0xff]
    %v4237 = vld [vmem:[#allocation8 + $0x898] sm:$0xff]
    %v4238 = vld [vmem:[#allocation8 + $0x8a0] sm:$0xff]
    %v4239 = vld [vmem:[#allocation8 + $0x8a8] sm:$0xff]
    %v4240 = vld [vmem:[#allocation8 + $0x8b0] sm:$0xff]
    %v4241 = vld [vmem:[#allocation8 + $0x8b8] sm:$0xff]
    %v4242 = vld [vmem:[#allocation8 + $0x8c0] sm:$0xff]
    %v4243 = vld [vmem:[#allocation8 + $0x8c8] sm:$0xff]
    %v4244 = vld [vmem:[#allocation8 + $0x8d0] sm:$0xff]
    %v4245 = vld [vmem:[#allocation8 + $0x8d8] sm:$0xff]
    %v4246 = vld [vmem:[#allocation8 + $0x8e0] sm:$0xff]
    %v4247 = vld [vmem:[#allocation8 + $0x8e8] sm:$0xff]
    %v4248 = vld [vmem:[#allocation8 + $0x8f0] sm:$0xff]
    %v4249 = vld [vmem:[#allocation8 + $0x8f8] sm:$0xff]
    %v4250 = vld [vmem:[#allocation8 + $0x900] sm:$0xff]
    %v4251 = vld [vmem:[#allocation8 + $0x908] sm:$0xff]
    %v4252 = vld [vmem:[#allocation8 + $0x910] sm:$0xff]
    %v4253 = vld [vmem:[#allocation8 + $0x918] sm:$0xff]
    %v4254 = vld [vmem:[#allocation8 + $0x920] sm:$0xff]
    %v4255 = vld [vmem:[#allocation8 + $0x928] sm:$0xff]
    %v4256 = vld [vmem:[#allocation8 + $0x930] sm:$0xff]
    %v4257 = vld [vmem:[#allocation8 + $0x938] sm:$0xff]
    %v4258 = vld [vmem:[#allocation8 + $0x940] sm:$0xff]
    %v4259 = vld [vmem:[#allocation8 + $0x948] sm:$0xff]
    %v4260 = vld [vmem:[#allocation8 + $0x950] sm:$0xff]
    %v4261 = vld [vmem:[#allocation8 + $0x958] sm:$0xff]
    %v4262 = vld [vmem:[#allocation8 + $0x960] sm:$0xff]
    %v4263 = vld [vmem:[#allocation8 + $0x968] sm:$0xff]
    %v4264 = vld [vmem:[#allocation8 + $0x970] sm:$0xff]
    %v4265 = vld [vmem:[#allocation8 + $0x978] sm:$0xff]
    %v4266 = vld [vmem:[#allocation8 + $0x980] sm:$0xff]
    %v4267 = vld [vmem:[#allocation8 + $0x988] sm:$0xff]
    %v4268 = vld [vmem:[#allocation8 + $0x990] sm:$0xff]
    %v4269 = vld [vmem:[#allocation8 + $0x998] sm:$0xff]
    %v4270 = vld [vmem:[#allocation8 + $0x9a0] sm:$0xff]
    %v4271 = vld [vmem:[#allocation8 + $0x9a8] sm:$0xff]
    %v4272 = vld [vmem:[#allocation8 + $0x9b0] sm:$0xff]
    %v4273 = vld [vmem:[#allocation8 + $0x9b8] sm:$0xff]
    %v4274 = vld [vmem:[#allocation8 + $0x9c0] sm:$0xff]
    %v4275 = vld [vmem:[#allocation8 + $0x9c8] sm:$0xff]
    %v4276 = vld [vmem:[#allocation8 + $0x9d0] sm:$0xff]
    %v4277 = vld [vmem:[#allocation8 + $0x9d8] sm:$0xff]
    %v4278 = vld [vmem:[#allocation8 + $0x9e0] sm:$0xff]
    %v4279 = vld [vmem:[#allocation8 + $0x9e8] sm:$0xff]
    %v4280 = vld [vmem:[#allocation8 + $0x9f0] sm:$0xff]
    %v4281 = vld [vmem:[#allocation8 + $0x9f8] sm:$0xff]
    %v4282 = vld [vmem:[#allocation8 + $0xa00] sm:$0xff]
    %v4283 = vld [vmem:[#allocation8 + $0xa08] sm:$0xff]
    %v4284 = vld [vmem:[#allocation8 + $0xa10] sm:$0xff]
    %v4285 = vld [vmem:[#allocation8 + $0xa18] sm:$0xff]
    %v4286 = vld [vmem:[#allocation8 + $0xa20] sm:$0xff]
    %v4287 = vld [vmem:[#allocation8 + $0xa28] sm:$0xff]
    %v4288 = vld [vmem:[#allocation8 + $0xa30] sm:$0xff]
    %v4289 = vld [vmem:[#allocation8 + $0xa38] sm:$0xff]
    %v4290 = vld [vmem:[#allocation8 + $0xa40] sm:$0xff]
    %v4291 = vld [vmem:[#allocation8 + $0xa48] sm:$0xff]
    %v4292 = vld [vmem:[#allocation8 + $0xa50] sm:$0xff]
    %v4293 = vld [vmem:[#allocation8 + $0xa58] sm:$0xff]
    %v4294 = vld [vmem:[#allocation8 + $0xa60] sm:$0xff]
    %v4295 = vld [vmem:[#allocation8 + $0xa68] sm:$0xff]
    %v4296 = vld [vmem:[#allocation8 + $0xa70] sm:$0xff]
    %v4297 = vld [vmem:[#allocation8 + $0xa78] sm:$0xff]
    %v4298 = vld [vmem:[#allocation8 + $0xa80] sm:$0xff]
    %v4299 = vld [vmem:[#allocation8 + $0xa88] sm:$0xff]
    %v4300 = vld [vmem:[#allocation8 + $0xa90] sm:$0xff]
    %v4301 = vld [vmem:[#allocation8 + $0xa98] sm:$0xff]
    %v4302 = vld [vmem:[#allocation8 + $0xaa0] sm:$0xff]
    %v4303 = vld [vmem:[#allocation8 + $0xaa8] sm:$0xff]
    %v4304 = vld [vmem:[#allocation8 + $0xab0] sm:$0xff]
    %v4305 = vld [vmem:[#allocation8 + $0xab8] sm:$0xff]
    %v4306 = vld [vmem:[#allocation8 + $0xac0] sm:$0xff]
    %v4307 = vld [vmem:[#allocation8 + $0xac8] sm:$0xff]
    %v4308 = vld [vmem:[#allocation8 + $0xad0] sm:$0xff]
    %v4309 = vld [vmem:[#allocation8 + $0xad8] sm:$0xff]
    %v4310 = vld [vmem:[#allocation8 + $0xae0] sm:$0xff]
    %v4311 = vld [vmem:[#allocation8 + $0xae8] sm:$0xff]
    %v4312 = vld [vmem:[#allocation8 + $0xaf0] sm:$0xff]
    %v4313 = vld [vmem:[#allocation8 + $0xaf8] sm:$0xff]
    %v4314 = vld [vmem:[#allocation8 + $0xb00] sm:$0xff]
    %v4315 = vld [vmem:[#allocation8 + $0xb08] sm:$0xff]
    %v4316 = vld [vmem:[#allocation8 + $0xb10] sm:$0xff]
    %v4317 = vld [vmem:[#allocation8 + $0xb18] sm:$0xff]
    %v4318 = vld [vmem:[#allocation8 + $0xb20] sm:$0xff]
    %v4319 = vld [vmem:[#allocation8 + $0xb28] sm:$0xff]
    %v4320 = vld [vmem:[#allocation8 + $0xb30] sm:$0xff]
    %v4321 = vld [vmem:[#allocation8 + $0xb38] sm:$0xff]
    %v4322 = vld [vmem:[#allocation8 + $0xb40] sm:$0xff]
    %v4323 = vld [vmem:[#allocation8 + $0xb48] sm:$0xff]
    %v4324 = vld [vmem:[#allocation8 + $0xb50] sm:$0xff]
    %v4325 = vld [vmem:[#allocation8 + $0xb58] sm:$0xff]
    %v4326 = vld [vmem:[#allocation8 + $0xb60] sm:$0xff]
    %v4327 = vld [vmem:[#allocation8 + $0xb68] sm:$0xff]
    %v4328 = vld [vmem:[#allocation8 + $0xb70] sm:$0xff]
    %v4329 = vld [vmem:[#allocation8 + $0xb78] sm:$0xff]
    %v4330 = vld [vmem:[#allocation8 + $0xb80] sm:$0xff]
    %v4331 = vld [vmem:[#allocation8 + $0xb88] sm:$0xff]
    %v4332 = vld [vmem:[#allocation8 + $0xb90] sm:$0xff]
    %v4333 = vld [vmem:[#allocation8 + $0xb98] sm:$0xff]
    %v4334 = vld [vmem:[#allocation8 + $0xba0] sm:$0xff]
    %v4335 = vld [vmem:[#allocation8 + $0xba8] sm:$0xff]
    %v4336 = vld [vmem:[#allocation8 + $0xbb0] sm:$0xff]
    %v4337 = vld [vmem:[#allocation8 + $0xbb8] sm:$0xff]
    %v4338 = vld [vmem:[#allocation8 + $0xbc0] sm:$0xff]
    %v4339 = vld [vmem:[#allocation8 + $0xbc8] sm:$0xff]
    %v4340 = vld [vmem:[#allocation8 + $0xbd0] sm:$0xff]
    %v4341 = vld [vmem:[#allocation8 + $0xbd8] sm:$0xff]
    %v4342 = vld [vmem:[#allocation8 + $0xbe0] sm:$0xff]
    %v4343 = vld [vmem:[#allocation8 + $0xbe8] sm:$0xff]
    %v4344 = vld [vmem:[#allocation8 + $0xbf0] sm:$0xff]
    %v4345 = vld [vmem:[#allocation8 + $0xbf8] sm:$0xff]
    %4346 = vmatprep.subr.mxu0 %v3963
    %4347 = vmatpush1.msra.mxu0 %v3962
    %4348 = vmatprep.subr.mxu0 %v3966
    %4349 = vmatpush1.msra.mxu0 %v3965
    %4350 = vmatprep.subr.mxu0 %v3969
    %4351 = vmatpush1.msra.mxu0 %v3968
    %4352 = vmatprep.subr.mxu0 %v3972
    %4353 = vmatpush1.msra.mxu0 %v3971
    %4354 = vmatprep.subr.mxu0 %v3975
    %4355 = vmatpush1.msra.mxu0 %v3974
    %4356 = vmatprep.subr.mxu0 %v3978
    %4357 = vmatpush1.msra.mxu0 %v3977
    %4358 = vmatprep.subr.mxu0 %v3981
    %4359 = vmatpush1.msra.mxu0 %v3980
    %4360 = vmatprep.subr.mxu0 %v3984
    %4361 = vmatpush1.msra.mxu0 %v3983
    %4362 = vmatprep.subr.mxu0 %v3987
    %4363 = vmatpush1.msra.mxu0 %v3986
    %4364 = vmatprep.subr.mxu0 %v3990
    %4365 = vmatpush1.msra.mxu0 %v3989
    %4366 = vmatprep.subr.mxu0 %v3993
    %4367 = vmatpush1.msra.mxu0 %v3992
    %4368 = vmatprep.subr.mxu0 %v3996
    %4369 = vmatpush1.msra.mxu0 %v3995
    %4370 = vmatprep.subr.mxu0 %v3999
    %4371 = vmatpush1.msra.mxu0 %v3998
    %4372 = vmatprep.subr.mxu0 %v4002
    %4373 = vmatpush1.msra.mxu0 %v4001
    %4374 = vmatprep.subr.mxu0 %v4005
    %4375 = vmatpush1.msra.mxu0 %v4004
    %4376 = vmatprep.subr.mxu0 %v4008
    %4377 = vmatpush1.msra.mxu0 %v4007
    %4378 = vmatprep.subr.mxu0 %v4011
    %4379 = vmatpush1.msra.mxu0 %v4010
    %4380 = vmatprep.subr.mxu0 %v4014
    %4381 = vmatpush1.msra.mxu0 %v4013
    %4382 = vmatprep.subr.mxu0 %v4017
    %4383 = vmatpush1.msra.mxu0 %v4016
    %4384 = vmatprep.subr.mxu0 %v4020
    %4385 = vmatpush1.msra.mxu0 %v4019
    %4386 = vmatprep.subr.mxu0 %v4023
    %4387 = vmatpush1.msra.mxu0 %v4022
    %4388 = vmatprep.subr.mxu0 %v4026
    %4389 = vmatpush1.msra.mxu0 %v4025
    %4390 = vmatprep.subr.mxu0 %v4029
    %4391 = vmatpush1.msra.mxu0 %v4028
    %4392 = vmatprep.subr.mxu0 %v4032
    %4393 = vmatpush1.msra.mxu0 %v4031
    %4394 = vmatprep.subr.mxu0 %v4035
    %4395 = vmatpush1.msra.mxu0 %v4034
    %4396 = vmatprep.subr.mxu0 %v4038
    %4397 = vmatpush1.msra.mxu0 %v4037
    %4398 = vmatprep.subr.mxu0 %v4041
    %4399 = vmatpush1.msra.mxu0 %v4040
    %4400 = vmatprep.subr.mxu0 %v4044
    %4401 = vmatpush1.msra.mxu0 %v4043
    %4402 = vmatprep.subr.mxu0 %v4047
    %4403 = vmatpush1.msra.mxu0 %v4046
    %4404 = vmatprep.subr.mxu0 %v4050
    %4405 = vmatpush1.msra.mxu0 %v4049
    %4406 = vmatprep.subr.mxu0 %v4053
    %4407 = vmatpush1.msra.mxu0 %v4052
    %4408 = vmatprep.subr.mxu0 %v4056
    %4409 = vmatpush1.msra.mxu0 %v4055
    %4410 = vmatprep.mubr.f32.mxu0 %v3955
    %4411 = vmatmul.mubr.f32.gmra.mrb[0].mxu0 %v3954
    %v4412 = vpop.f32.mrb[0].mxu0
    %v4413 = vadd.f32 0.0, %v4412
    %v4414 = vpop.f32.mrb[0].mxu0
    %v4415 = vadd.f32 0.0, %v4414
    %4416 = vdwg.mxu0
    %4417 = vmatprep.subr.mxu0 %v4059
    %4418 = vmatpush1.msra.mxu0 %v4058
    %4419 = vmatprep.subr.mxu0 %v4062
    %4420 = vmatpush1.msra.mxu0 %v4061
    %4421 = vmatprep.subr.mxu0 %v4065
    %4422 = vmatpush1.msra.mxu0 %v4064
    %4423 = vmatprep.subr.mxu0 %v4068
    %4424 = vmatpush1.msra.mxu0 %v4067
    %4425 = vmatprep.subr.mxu0 %v4071
    %4426 = vmatpush1.msra.mxu0 %v4070
    %4427 = vmatprep.subr.mxu0 %v4074
    %4428 = vmatpush1.msra.mxu0 %v4073
    %4429 = vmatprep.subr.mxu0 %v4077
    %4430 = vmatpush1.msra.mxu0 %v4076
    %4431 = vmatprep.subr.mxu0 %v4080
    %4432 = vmatpush1.msra.mxu0 %v4079
    %4433 = vmatprep.subr.mxu0 %v4083
    %4434 = vmatpush1.msra.mxu0 %v4082
    %4435 = vmatprep.subr.mxu0 %v4086
    %4436 = vmatpush1.msra.mxu0 %v4085
    %4437 = vmatprep.subr.mxu0 %v4089
    %4438 = vmatpush1.msra.mxu0 %v4088
    %4439 = vmatprep.subr.mxu0 %v4092
    %4440 = vmatpush1.msra.mxu0 %v4091
    %4441 = vmatprep.subr.mxu0 %v4095
    %4442 = vmatpush1.msra.mxu0 %v4094
    %4443 = vmatprep.subr.mxu0 %v4098
    %4444 = vmatpush1.msra.mxu0 %v4097
    %4445 = vmatprep.subr.mxu0 %v4101
    %4446 = vmatpush1.msra.mxu0 %v4100
    %4447 = vmatprep.subr.mxu0 %v4104
    %4448 = vmatpush1.msra.mxu0 %v4103
    %4449 = vmatprep.subr.mxu0 %v4107
    %4450 = vmatpush1.msra.mxu0 %v4106
    %4451 = vmatprep.subr.mxu0 %v4110
    %4452 = vmatpush1.msra.mxu0 %v4109
    %4453 = vmatprep.subr.mxu0 %v4113
    %4454 = vmatpush1.msra.mxu0 %v4112
    %4455 = vmatprep.subr.mxu0 %v4116
    %4456 = vmatpush1.msra.mxu0 %v4115
    %4457 = vmatprep.subr.mxu0 %v4119
    %4458 = vmatpush1.msra.mxu0 %v4118
    %4459 = vmatprep.subr.mxu0 %v4122
    %4460 = vmatpush1.msra.mxu0 %v4121
    %4461 = vmatprep.subr.mxu0 %v4125
    %4462 = vmatpush1.msra.mxu0 %v4124
    %4463 = vmatprep.subr.mxu0 %v4128
    %4464 = vmatpush1.msra.mxu0 %v4127
    %4465 = vmatprep.subr.mxu0 %v4131
    %4466 = vmatpush1.msra.mxu0 %v4130
    %4467 = vmatprep.subr.mxu0 %v4134
    %4468 = vmatpush1.msra.mxu0 %v4133
    %4469 = vmatprep.subr.mxu0 %v4137
    %4470 = vmatpush1.msra.mxu0 %v4136
    %4471 = vmatprep.subr.mxu0 %v4140
    %4472 = vmatpush1.msra.mxu0 %v4139
    %4473 = vmatprep.subr.mxu0 %v4143
    %4474 = vmatpush1.msra.mxu0 %v4142
    %4475 = vmatprep.subr.mxu0 %v4146
    %4476 = vmatpush1.msra.mxu0 %v4145
    %4477 = vmatprep.subr.mxu0 %v4149
    %4478 = vmatpush1.msra.mxu0 %v4148
    %4479 = vmatprep.subr.mxu0 %v4152
    %4480 = vmatpush1.msra.mxu0 %v4151
    %4481 = vmatprep.mubr.f32.mxu0 %v3957
    %4482 = vmatmul.mubr.f32.gmra.mrb[0].mxu0 %v3956
    %v4483 = vpop.f32.mrb[0].mxu0
    %v4484 = vadd.f32 %v4413, %v4483
    %v4485 = vpop.f32.mrb[0].mxu0
    %v4486 = vadd.f32 %v4415, %v4485
    %4487 = vdwg.mxu0
    %4488 = vmatprep.subr.mxu0 %v4155
    %4489 = vmatpush1.msra.mxu0 %v4154
    %4490 = vmatprep.subr.mxu0 %v4158
    %4491 = vmatpush1.msra.mxu0 %v4157
    %4492 = vmatprep.subr.mxu0 %v4161
    %4493 = vmatpush1.msra.mxu0 %v4160
    %4494 = vmatprep.subr.mxu0 %v4164
    %4495 = vmatpush1.msra.mxu0 %v4163
    %4496 = vmatprep.subr.mxu0 %v4167
    %4497 = vmatpush1.msra.mxu0 %v4166
    %4498 = vmatprep.subr.mxu0 %v4170
    %4499 = vmatpush1.msra.mxu0 %v4169
    %4500 = vmatprep.subr.mxu0 %v4173
    %4501 = vmatpush1.msra.mxu0 %v4172
    %4502 = vmatprep.subr.mxu0 %v4176
    %4503 = vmatpush1.msra.mxu0 %v4175
    %4504 = vmatprep.subr.mxu0 %v4179
    %4505 = vmatpush1.msra.mxu0 %v4178
    %4506 = vmatprep.subr.mxu0 %v4182
    %4507 = vmatpush1.msra.mxu0 %v4181
    %4508 = vmatprep.subr.mxu0 %v4185
    %4509 = vmatpush1.msra.mxu0 %v4184
    %4510 = vmatprep.subr.mxu0 %v4188
    %4511 = vmatpush1.msra.mxu0 %v4187
    %4512 = vmatprep.subr.mxu0 %v4191
    %4513 = vmatpush1.msra.mxu0 %v4190
    %4514 = vmatprep.subr.mxu0 %v4194
    %4515 = vmatpush1.msra.mxu0 %v4193
    %4516 = vmatprep.subr.mxu0 %v4197
    %4517 = vmatpush1.msra.mxu0 %v4196
    %4518 = vmatprep.subr.mxu0 %v4200
    %4519 = vmatpush1.msra.mxu0 %v4199
    %4520 = vmatprep.subr.mxu0 %v4203
    %4521 = vmatpush1.msra.mxu0 %v4202
    %4522 = vmatprep.subr.mxu0 %v4206
    %4523 = vmatpush1.msra.mxu0 %v4205
    %4524 = vmatprep.subr.mxu0 %v4209
    %4525 = vmatpush1.msra.mxu0 %v4208
    %4526 = vmatprep.subr.mxu0 %v4212
    %4527 = vmatpush1.msra.mxu0 %v4211
    %4528 = vmatprep.subr.mxu0 %v4215
    %4529 = vmatpush1.msra.mxu0 %v4214
    %4530 = vmatprep.subr.mxu0 %v4218
    %4531 = vmatpush1.msra.mxu0 %v4217
    %4532 = vmatprep.subr.mxu0 %v4221
    %4533 = vmatpush1.msra.mxu0 %v4220
    %4534 = vmatprep.subr.mxu0 %v4224
    %4535 = vmatpush1.msra.mxu0 %v4223
    %4536 = vmatprep.subr.mxu0 %v4227
    %4537 = vmatpush1.msra.mxu0 %v4226
    %4538 = vmatprep.subr.mxu0 %v4230
    %4539 = vmatpush1.msra.mxu0 %v4229
    %4540 = vmatprep.subr.mxu0 %v4233
    %4541 = vmatpush1.msra.mxu0 %v4232
    %4542 = vmatprep.subr.mxu0 %v4236
    %4543 = vmatpush1.msra.mxu0 %v4235
    %4544 = vmatprep.subr.mxu0 %v4239
    %4545 = vmatpush1.msra.mxu0 %v4238
    %4546 = vmatprep.subr.mxu0 %v4242
    %4547 = vmatpush1.msra.mxu0 %v4241
    %4548 = vmatprep.subr.mxu0 %v4245
    %4549 = vmatpush1.msra.mxu0 %v4244
    %4550 = vmatprep.subr.mxu0 %v4248
    %4551 = vmatpush1.msra.mxu0 %v4247
    %4552 = vmatprep.mubr.f32.mxu0 %v3959
    %4553 = vmatmul.mubr.f32.gmra.mrb[0].mxu0 %v3958
    %v4554 = vpop.f32.mrb[0].mxu0
    %v4555 = vadd.f32 %v4484, %v4554
    %v4556 = vpop.f32.mrb[0].mxu0
    %v4557 = vadd.f32 %v4486, %v4556
    %4558 = vdwg.mxu0
    %4559 = vmatprep.subr.mxu0 %v4251
    %4560 = vmatpush1.msra.mxu0 %v4250
    %4561 = vmatprep.subr.mxu0 %v4254
    %4562 = vmatpush1.msra.mxu0 %v4253
    %4563 = vmatprep.subr.mxu0 %v4257
    %4564 = vmatpush1.msra.mxu0 %v4256
    %4565 = vmatprep.subr.mxu0 %v4260
    %4566 = vmatpush1.msra.mxu0 %v4259
    %4567 = vmatprep.subr.mxu0 %v4263
    %4568 = vmatpush1.msra.mxu0 %v4262
    %4569 = vmatprep.subr.mxu0 %v4266
    %4570 = vmatpush1.msra.mxu0 %v4265
    %4571 = vmatprep.subr.mxu0 %v4269
    %4572 = vmatpush1.msra.mxu0 %v4268
    %4573 = vmatprep.subr.mxu0 %v4272
    %4574 = vmatpush1.msra.mxu0 %v4271
    %4575 = vmatprep.subr.mxu0 %v4275
    %4576 = vmatpush1.msra.mxu0 %v4274
    %4577 = vmatprep.subr.mxu0 %v4278
    %4578 = vmatpush1.msra.mxu0 %v4277
    %4579 = vmatprep.subr.mxu0 %v4281
    %4580 = vmatpush1.msra.mxu0 %v4280
    %4581 = vmatprep.subr.mxu0 %v4284
    %4582 = vmatpush1.msra.mxu0 %v4283
    %4583 = vmatprep.subr.mxu0 %v4287
    %4584 = vmatpush1.msra.mxu0 %v4286
    %4585 = vmatprep.subr.mxu0 %v4290
    %4586 = vmatpush1.msra.mxu0 %v4289
    %4587 = vmatprep.subr.mxu0 %v4293
    %4588 = vmatpush1.msra.mxu0 %v4292
    %4589 = vmatprep.subr.mxu0 %v4296
    %4590 = vmatpush1.msra.mxu0 %v4295
    %4591 = vmatprep.subr.mxu0 %v4299
    %4592 = vmatpush1.msra.mxu0 %v4298
    %4593 = vmatprep.subr.mxu0 %v4302
    %4594 = vmatpush1.msra.mxu0 %v4301
    %4595 = vmatprep.subr.mxu0 %v4305
    %4596 = vmatpush1.msra.mxu0 %v4304
    %4597 = vmatprep.subr.mxu0 %v4308
    %4598 = vmatpush1.msra.mxu0 %v4307
    %4599 = vmatprep.subr.mxu0 %v4311
    %4600 = vmatpush1.msra.mxu0 %v4310
    %4601 = vmatprep.subr.mxu0 %v4314
    %4602 = vmatpush1.msra.mxu0 %v4313
    %4603 = vmatprep.subr.mxu0 %v4317
    %4604 = vmatpush1.msra.mxu0 %v4316
    %4605 = vmatprep.subr.mxu0 %v4320
    %4606 = vmatpush1.msra.mxu0 %v4319
    %4607 = vmatprep.subr.mxu0 %v4323
    %4608 = vmatpush1.msra.mxu0 %v4322
    %4609 = vmatprep.subr.mxu0 %v4326
    %4610 = vmatpush1.msra.mxu0 %v4325
    %4611 = vmatprep.subr.mxu0 %v4329
    %4612 = vmatpush1.msra.mxu0 %v4328
    %4613 = vmatprep.subr.mxu0 %v4332
    %4614 = vmatpush1.msra.mxu0 %v4331
    %4615 = vmatprep.subr.mxu0 %v4335
    %4616 = vmatpush1.msra.mxu0 %v4334
    %4617 = vmatprep.subr.mxu0 %v4338
    %4618 = vmatpush1.msra.mxu0 %v4337
    %4619 = vmatprep.subr.mxu0 %v4341
    %4620 = vmatpush1.msra.mxu0 %v4340
    %4621 = vmatprep.subr.mxu0 %v4344
    %4622 = vmatpush1.msra.mxu0 %v4343
    %4623 = vmatprep.mubr.f32.mxu0 %v3961
    %4624 = vmatmul.mubr.f32.gmra.mrb[0].mxu0 %v3960
    %v4625 = vpop.f32.mrb[0].mxu0
    %v4626 = vadd.f32 %v4555, %v4625
    %v4627 = vpop.f32.mrb[0].mxu0
    %v4628 = vadd.f32 %v4557, %v4627
    %4629 = vdwg.mxu0
    %4630 = vmatprep.subr.mxu0 0.0
    %4631 = vmatpush1.msra.mxu0 %v3964
    %4632 = vmatprep.subr.mxu0 0.0
    %4633 = vmatpush1.msra.mxu0 %v3967
    %4634 = vmatprep.subr.mxu0 0.0
    %4635 = vmatpush1.msra.mxu0 %v3970
    %4636 = vmatprep.subr.mxu0 0.0
    %4637 = vmatpush1.msra.mxu0 %v3973
    %4638 = vmatprep.subr.mxu0 0.0
    %4639 = vmatpush1.msra.mxu0 %v3976
    %4640 = vmatprep.subr.mxu0 0.0
    %4641 = vmatpush1.msra.mxu0 %v3979
    %4642 = vmatprep.subr.mxu0 0.0
    %4643 = vmatpush1.msra.mxu0 %v3982
    %4644 = vmatprep.subr.mxu0 0.0
    %4645 = vmatpush1.msra.mxu0 %v3985
    %4646 = vmatprep.subr.mxu0 0.0
    %4647 = vmatpush1.msra.mxu0 %v3988
    %4648 = vmatprep.subr.mxu0 0.0
    %4649 = vmatpush1.msra.mxu0 %v3991
    %4650 = vmatprep.subr.mxu0 0.0
    %4651 = vmatpush1.msra.mxu0 %v3994
    %4652 = vmatprep.subr.mxu0 0.0
    %4653 = vmatpush1.msra.mxu0 %v3997
    %4654 = vmatprep.subr.mxu0 0.0
    %4655 = vmatpush1.msra.mxu0 %v4000
    %4656 = vmatprep.subr.mxu0 0.0
    %4657 = vmatpush1.msra.mxu0 %v4003
    %4658 = vmatprep.subr.mxu0 0.0
    %4659 = vmatpush1.msra.mxu0 %v4006
    %4660 = vmatprep.subr.mxu0 0.0
    %4661 = vmatpush1.msra.mxu0 %v4009
    %4662 = vmatprep.subr.mxu0 0.0
    %4663 = vmatpush1.msra.mxu0 %v4012
    %4664 = vmatprep.subr.mxu0 0.0
    %4665 = vmatpush1.msra.mxu0 %v4015
    %4666 = vmatprep.subr.mxu0 0.0
    %4667 = vmatpush1.msra.mxu0 %v4018
    %4668 = vmatprep.subr.mxu0 0.0
    %4669 = vmatpush1.msra.mxu0 %v4021
    %4670 = vmatprep.subr.mxu0 0.0
    %4671 = vmatpush1.msra.mxu0 %v4024
    %4672 = vmatprep.subr.mxu0 0.0
    %4673 = vmatpush1.msra.mxu0 %v4027
    %4674 = vmatprep.subr.mxu0 0.0
    %4675 = vmatpush1.msra.mxu0 %v4030
    %4676 = vmatprep.subr.mxu0 0.0
    %4677 = vmatpush1.msra.mxu0 %v4033
    %4678 = vmatprep.subr.mxu0 0.0
    %4679 = vmatpush1.msra.mxu0 %v4036
    %4680 = vmatprep.subr.mxu0 0.0
    %4681 = vmatpush1.msra.mxu0 %v4039
    %4682 = vmatprep.subr.mxu0 0.0
    %4683 = vmatpush1.msra.mxu0 %v4042
    %4684 = vmatprep.subr.mxu0 0.0
    %4685 = vmatpush1.msra.mxu0 %v4045
    %4686 = vmatprep.subr.mxu0 0.0
    %4687 = vmatpush1.msra.mxu0 %v4048
    %4688 = vmatprep.subr.mxu0 0.0
    %4689 = vmatpush1.msra.mxu0 %v4051
    %4690 = vmatprep.subr.mxu0 0.0
    %4691 = vmatpush1.msra.mxu0 %v4054
    %4692 = vmatprep.subr.mxu0 0.0
    %4693 = vmatpush1.msra.mxu0 %v4057
    %4694 = vmatprep.mubr.f32.mxu0 %v3955
    %4695 = vmatmul.mubr.f32.gmra.mrb[0].mxu0 %v3954
    %v4696 = vpop.f32.mrb[0].mxu0
    %v4697 = vadd.f32 0.0, %v4696
    %v4698 = vpop.f32.mrb[0].mxu0
    %4699 = vdwg.mxu0
    %4700 = vmatprep.subr.mxu0 0.0
    %4701 = vmatpush1.msra.mxu0 %v4060
    %4702 = vmatprep.subr.mxu0 0.0
    %4703 = vmatpush1.msra.mxu0 %v4063
    %4704 = vmatprep.subr.mxu0 0.0
    %4705 = vmatpush1.msra.mxu0 %v4066
    %4706 = vmatprep.subr.mxu0 0.0
    %4707 = vmatpush1.msra.mxu0 %v4069
    %4708 = vmatprep.subr.mxu0 0.0
    %4709 = vmatpush1.msra.mxu0 %v4072
    %4710 = vmatprep.subr.mxu0 0.0
    %4711 = vmatpush1.msra.mxu0 %v4075
    %4712 = vmatprep.subr.mxu0 0.0
    %4713 = vmatpush1.msra.mxu0 %v4078
    %4714 = vmatprep.subr.mxu0 0.0
    %4715 = vmatpush1.msra.mxu0 %v4081
    %4716 = vmatprep.subr.mxu0 0.0
    %4717 = vmatpush1.msra.mxu0 %v4084
    %4718 = vmatprep.subr.mxu0 0.0
    %4719 = vmatpush1.msra.mxu0 %v4087
    %4720 = vmatprep.subr.mxu0 0.0
    %4721 = vmatpush1.msra.mxu0 %v4090
    %4722 = vmatprep.subr.mxu0 0.0
    %4723 = vmatpush1.msra.mxu0 %v4093
    %4724 = vmatprep.subr.mxu0 0.0
    %4725 = vmatpush1.msra.mxu0 %v4096
    %4726 = vmatprep.subr.mxu0 0.0
    %4727 = vmatpush1.msra.mxu0 %v4099
    %4728 = vmatprep.subr.mxu0 0.0
    %4729 = vmatpush1.msra.mxu0 %v4102
    %4730 = vmatprep.subr.mxu0 0.0
    %4731 = vmatpush1.msra.mxu0 %v4105
    %4732 = vmatprep.subr.mxu0 0.0
    %4733 = vmatpush1.msra.mxu0 %v4108
    %4734 = vmatprep.subr.mxu0 0.0
    %4735 = vmatpush1.msra.mxu0 %v4111
    %4736 = vmatprep.subr.mxu0 0.0
    %4737 = vmatpush1.msra.mxu0 %v4114
    %4738 = vmatprep.subr.mxu0 0.0
    %4739 = vmatpush1.msra.mxu0 %v4117
    %4740 = vmatprep.subr.mxu0 0.0
    %4741 = vmatpush1.msra.mxu0 %v4120
    %4742 = vmatprep.subr.mxu0 0.0
    %4743 = vmatpush1.msra.mxu0 %v4123
    %4744 = vmatprep.subr.mxu0 0.0
    %4745 = vmatpush1.msra.mxu0 %v4126
    %4746 = vmatprep.subr.mxu0 0.0
    %4747 = vmatpush1.msra.mxu0 %v4129
    %4748 = vmatprep.subr.mxu0 0.0
    %4749 = vmatpush1.msra.mxu0 %v4132
    %4750 = vmatprep.subr.mxu0 0.0
    %4751 = vmatpush1.msra.mxu0 %v4135
    %4752 = vmatprep.subr.mxu0 0.0
    %4753 = vmatpush1.msra.mxu0 %v4138
    %4754 = vmatprep.subr.mxu0 0.0
    %4755 = vmatpush1.msra.mxu0 %v4141
    %4756 = vmatprep.subr.mxu0 0.0
    %4757 = vmatpush1.msra.mxu0 %v4144
    %4758 = vmatprep.subr.mxu0 0.0
    %4759 = vmatpush1.msra.mxu0 %v4147
    %4760 = vmatprep.subr.mxu0 0.0
    %4761 = vmatpush1.msra.mxu0 %v4150
    %4762 = vmatprep.subr.mxu0 0.0
    %4763 = vmatpush1.msra.mxu0 %v4153
    %4764 = vmatprep.mubr.f32.mxu0 %v3957
    %4765 = vmatmul.mubr.f32.gmra.mrb[0].mxu0 %v3956
    %v4766 = vpop.f32.mrb[0].mxu0
    %v4767 = vadd.f32 %v4697, %v4766
    %v4768 = vpop.f32.mrb[0].mxu0
    %4769 = vdwg.mxu0
    %4770 = vmatprep.subr.mxu0 0.0
    %4771 = vmatpush1.msra.mxu0 %v4156
    %4772 = vmatprep.subr.mxu0 0.0
    %4773 = vmatpush1.msra.mxu0 %v4159
    %4774 = vmatprep.subr.mxu0 0.0
    %4775 = vmatpush1.msra.mxu0 %v4162
    %4776 = vmatprep.subr.mxu0 0.0
    %4777 = vmatpush1.msra.mxu0 %v4165
    %4778 = vmatprep.subr.mxu0 0.0
    %4779 = vmatpush1.msra.mxu0 %v4168
    %4780 = vmatprep.subr.mxu0 0.0
    %4781 = vmatpush1.msra.mxu0 %v4171
    %4782 = vmatprep.subr.mxu0 0.0
    %4783 = vmatpush1.msra.mxu0 %v4174
    %4784 = vmatprep.subr.mxu0 0.0
    %4785 = vmatpush1.msra.mxu0 %v4177
    %4786 = vmatprep.subr.mxu0 0.0
    %4787 = vmatpush1.msra.mxu0 %v4180
    %4788 = vmatprep.subr.mxu0 0.0
    %4789 = vmatpush1.msra.mxu0 %v4183
    %4790 = vmatprep.subr.mxu0 0.0
    %4791 = vmatpush1.msra.mxu0 %v4186
    %4792 = vmatprep.subr.mxu0 0.0
    %4793 = vmatpush1.msra.mxu0 %v4189
    %4794 = vmatprep.subr.mxu0 0.0
    %4795 = vmatpush1.msra.mxu0 %v4192
    %4796 = vmatprep.subr.mxu0 0.0
    %4797 = vmatpush1.msra.mxu0 %v4195
    %4798 = vmatprep.subr.mxu0 0.0
    %4799 = vmatpush1.msra.mxu0 %v4198
    %4800 = vmatprep.subr.mxu0 0.0
    %4801 = vmatpush1.msra.mxu0 %v4201
    %4802 = vmatprep.subr.mxu0 0.0
    %4803 = vmatpush1.msra.mxu0 %v4204
    %4804 = vmatprep.subr.mxu0 0.0
    %4805 = vmatpush1.msra.mxu0 %v4207
    %4806 = vmatprep.subr.mxu0 0.0
    %4807 = vmatpush1.msra.mxu0 %v4210
    %4808 = vmatprep.subr.mxu0 0.0
    %4809 = vmatpush1.msra.mxu0 %v4213
    %4810 = vmatprep.subr.mxu0 0.0
    %4811 = vmatpush1.msra.mxu0 %v4216
    %4812 = vmatprep.subr.mxu0 0.0
    %4813 = vmatpush1.msra.mxu0 %v4219
    %4814 = vmatprep.subr.mxu0 0.0
    %4815 = vmatpush1.msra.mxu0 %v4222
    %4816 = vmatprep.subr.mxu0 0.0
    %4817 = vmatpush1.msra.mxu0 %v4225
    %4818 = vmatprep.subr.mxu0 0.0
    %4819 = vmatpush1.msra.mxu0 %v4228
    %4820 = vmatprep.subr.mxu0 0.0
    %4821 = vmatpush1.msra.mxu0 %v4231
    %4822 = vmatprep.subr.mxu0 0.0
    %4823 = vmatpush1.msra.mxu0 %v4234
    %4824 = vmatprep.subr.mxu0 0.0
    %4825 = vmatpush1.msra.mxu0 %v4237
    %4826 = vmatprep.subr.mxu0 0.0
    %4827 = vmatpush1.msra.mxu0 %v4240
    %4828 = vmatprep.subr.mxu0 0.0
    %4829 = vmatpush1.msra.mxu0 %v4243
    %4830 = vmatprep.subr.mxu0 0.0
    %4831 = vmatpush1.msra.mxu0 %v4246
    %4832 = vmatprep.subr.mxu0 0.0
    %4833 = vmatpush1.msra.mxu0 %v4249
    %4834 = vmatprep.mubr.f32.mxu0 %v3959
    %4835 = vmatmul.mubr.f32.gmra.mrb[0].mxu0 %v3958
    %v4836 = vpop.f32.mrb[0].mxu0
    %v4837 = vadd.f32 %v4767, %v4836
    %v4838 = vpop.f32.mrb[0].mxu0
    %4839 = vdwg.mxu0
    %4840 = vmatprep.subr.mxu0 0.0
    %4841 = vmatpush1.msra.mxu0 %v4252
    %4842 = vmatprep.subr.mxu0 0.0
    %4843 = vmatpush1.msra.mxu0 %v4255
    %4844 = vmatprep.subr.mxu0 0.0
    %4845 = vmatpush1.msra.mxu0 %v4258
    %4846 = vmatprep.subr.mxu0 0.0
    %4847 = vmatpush1.msra.mxu0 %v4261
    %4848 = vmatprep.subr.mxu0 0.0
    %4849 = vmatpush1.msra.mxu0 %v4264
    %4850 = vmatprep.subr.mxu0 0.0
    %4851 = vmatpush1.msra.mxu0 %v4267
    %4852 = vmatprep.subr.mxu0 0.0
    %4853 = vmatpush1.msra.mxu0 %v4270
    %4854 = vmatprep.subr.mxu0 0.0
    %4855 = vmatpush1.msra.mxu0 %v4273
    %4856 = vmatprep.subr.mxu0 0.0
    %4857 = vmatpush1.msra.mxu0 %v4276
    %4858 = vmatprep.subr.mxu0 0.0
    %4859 = vmatpush1.msra.mxu0 %v4279
    %4860 = vmatprep.subr.mxu0 0.0
    %4861 = vmatpush1.msra.mxu0 %v4282
    %4862 = vmatprep.subr.mxu0 0.0
    %4863 = vmatpush1.msra.mxu0 %v4285
    %4864 = vmatprep.subr.mxu0 0.0
    %4865 = vmatpush1.msra.mxu0 %v4288
    %4866 = vmatprep.subr.mxu0 0.0
    %4867 = vmatpush1.msra.mxu0 %v4291
    %4868 = vmatprep.subr.mxu0 0.0
    %4869 = vmatpush1.msra.mxu0 %v4294
    %4870 = vmatprep.subr.mxu0 0.0
    %4871 = vmatpush1.msra.mxu0 %v4297
    %4872 = vmatprep.subr.mxu0 0.0
    %4873 = vmatpush1.msra.mxu0 %v4300
    %4874 = vmatprep.subr.mxu0 0.0
    %4875 = vmatpush1.msra.mxu0 %v4303
    %4876 = vmatprep.subr.mxu0 0.0
    %4877 = vmatpush1.msra.mxu0 %v4306
    %4878 = vmatprep.subr.mxu0 0.0
    %4879 = vmatpush1.msra.mxu0 %v4309
    %4880 = vmatprep.subr.mxu0 0.0
    %4881 = vmatpush1.msra.mxu0 %v4312
    %4882 = vmatprep.subr.mxu0 0.0
    %4883 = vmatpush1.msra.mxu0 %v4315
    %4884 = vmatprep.subr.mxu0 0.0
    %4885 = vmatpush1.msra.mxu0 %v4318
    %4886 = vmatprep.subr.mxu0 0.0
    %4887 = vmatpush1.msra.mxu0 %v4321
    %4888 = vmatprep.subr.mxu0 0.0
    %4889 = vmatpush1.msra.mxu0 %v4324
    %4890 = vmatprep.subr.mxu0 0.0
    %4891 = vmatpush1.msra.mxu0 %v4327
    %4892 = vmatprep.subr.mxu0 0.0
    %4893 = vmatpush1.msra.mxu0 %v4330
    %4894 = vmatprep.subr.mxu0 0.0
    %4895 = vmatpush1.msra.mxu0 %v4333
    %4896 = vmatprep.subr.mxu0 0.0
    %4897 = vmatpush1.msra.mxu0 %v4336
    %4898 = vmatprep.subr.mxu0 0.0
    %4899 = vmatpush1.msra.mxu0 %v4339
    %4900 = vmatprep.subr.mxu0 0.0
    %4901 = vmatpush1.msra.mxu0 %v4342
    %4902 = vmatprep.subr.mxu0 0.0
    %4903 = vmatpush1.msra.mxu0 %v4345
    %4904 = vmatprep.mubr.f32.mxu0 %v3961
    %4905 = vmatmul.mubr.f32.gmra.mrb[0].mxu0 %v3960
    %v4906 = vpop.f32.mrb[0].mxu0
    %v4907 = vadd.f32 %v4837, %v4906
    %v4908 = vpop.f32.mrb[0].mxu0
    %4909 = vdwg.mxu0
    %4910 = vst [vmem:[#allocation3] sm:$0xff] %v4626
    %4911 = vst [vmem:[#allocation3 + $0x8] sm:$0xff] %v4628
    %4912 = vst [vmem:[#allocation3 + $0x10] sm:$0xff] %v4907
    %v4913 = vld [vmem:[%s5] sm:$0xff]
    %v4914 = vld [vmem:[%s5 + $0x8] sm:$0xff]
    %v4915 = vld [vmem:[#allocation3] sm:$0xff]
    %v4916 = vld [vmem:[#allocation3 + $0x8] sm:$0xff]
    %s4917 = scalar_lea.vmem %s5, 16
    %v4918 = vld [vmem:[%s4917] sm:$0xff]
    %v4919 = vld [vmem:[%s4917 + $0x8] sm:$0xff]
    %v4920 = vld [vmem:[#allocation3] sm:$0xff]
    %v4921 = vld [vmem:[#allocation3 + $0x8] sm:$0xff]
    %v4922 = vld [vmem:[#allocation3 + $0x10] sm:$0xff]
    %4926 = vrot.lane.b32.xlu0 %v4920, 127
    %v4927 = vpop.permute.xlu0 %4926
    %4928 = vrot.lane.b32.xlu0 %v4921, 127
    %v4929 = vpop.permute.xlu0 %4928
    %4930 = vrot.lane.b32.xlu0 %v4922, 127
    %v4931 = vpop.permute.xlu0 %4930
    %v4932 = vsel %vm179, %v4927, %v4929
    %v4933 = vsel %vm179, %v4929, %v4931
    %v4937 = vsel %vm198, %v4918, 0
    %v4940 = vsel %vm198, %v4919, 0
    %4942 = vmatprep.subr.mxu0 %v4933
    %4943 = vmatpush1.msra.mxu0 %v4932
    %4944 = vmatprep.subr.mxu0 0.0
    %4945 = vmatpush1.msra.mxu0 0.0
    %4946 = vmatprep.subr.mxu0 0.0
    %4947 = vmatpush1.msra.mxu0 0.0
    %4948 = vmatprep.subr.mxu0 0.0
    %4949 = vmatpush1.msra.mxu0 0.0
    %4950 = vmatprep.subr.mxu0 0.0
    %4951 = vmatpush1.msra.mxu0 0.0
    %4952 = vmatprep.subr.mxu0 0.0
    %4953 = vmatpush1.msra.mxu0 0.0
    %4954 = vmatprep.subr.mxu0 0.0
    %4955 = vmatpush1.msra.mxu0 0.0
    %4956 = vmatprep.subr.mxu0 0.0
    %4957 = vmatpush1.msra.mxu0 0.0
    %4958 = vmatprep.subr.mxu0 0.0
    %4959 = vmatpush1.msra.mxu0 0.0
    %4960 = vmatprep.subr.mxu0 0.0
    %4961 = vmatpush1.msra.mxu0 0.0
    %4962 = vmatprep.subr.mxu0 0.0
    %4963 = vmatpush1.msra.mxu0 0.0
    %4964 = vmatprep.subr.mxu0 0.0
    %4965 = vmatpush1.msra.mxu0 0.0
    %4966 = vmatprep.subr.mxu0 0.0
    %4967 = vmatpush1.msra.mxu0 0.0
    %4968 = vmatprep.subr.mxu0 0.0
    %4969 = vmatpush1.msra.mxu0 0.0
    %4970 = vmatprep.subr.mxu0 0.0
    %4971 = vmatpush1.msra.mxu0 0.0
    %4972 = vmatprep.subr.mxu0 0.0
    %4973 = vmatpush1.msra.mxu0 0.0
    %4974 = vmatprep.subr.mxu0 0.0
    %4975 = vmatpush1.msra.mxu0 0.0
    %4976 = vmatprep.subr.mxu0 0.0
    %4977 = vmatpush1.msra.mxu0 0.0
    %4978 = vmatprep.subr.mxu0 0.0
    %4979 = vmatpush1.msra.mxu0 0.0
    %4980 = vmatprep.subr.mxu0 0.0
    %4981 = vmatpush1.msra.mxu0 0.0
    %4982 = vmatprep.subr.mxu0 0.0
    %4983 = vmatpush1.msra.mxu0 0.0
    %4984 = vmatprep.subr.mxu0 0.0
    %4985 = vmatpush1.msra.mxu0 0.0
    %4986 = vmatprep.subr.mxu0 0.0
    %4987 = vmatpush1.msra.mxu0 0.0
    %4988 = vmatprep.subr.mxu0 0.0
    %4989 = vmatpush1.msra.mxu0 0.0
    %4990 = vmatprep.subr.mxu0 0.0
    %4991 = vmatpush1.msra.mxu0 0.0
    %4992 = vmatprep.subr.mxu0 0.0
    %4993 = vmatpush1.msra.mxu0 0.0
    %4994 = vmatprep.subr.mxu0 0.0
    %4995 = vmatpush1.msra.mxu0 0.0
    %4996 = vmatprep.subr.mxu0 0.0
    %4997 = vmatpush1.msra.mxu0 0.0
    %4998 = vmatprep.subr.mxu0 0.0
    %4999 = vmatpush1.msra.mxu0 0.0
    %5000 = vmatprep.subr.mxu0 0.0
    %5001 = vmatpush1.msra.mxu0 0.0
    %5002 = vmatprep.subr.mxu0 0.0
    %5003 = vmatpush1.msra.mxu0 0.0
    %5004 = vmatprep.subr.mxu0 0.0
    %5005 = vmatpush1.msra.mxu0 0.0
    %5006 = vmatprep.mubr.f32.mxu0 0.0
    %5007 = vmatmul.mubr.f32.gmra.mrb[0].mxu0 %v4937
    %v5008 = vpop.f32.mrb[0].mxu0
    %v5009 = vadd.f32 0.0, %v5008
    %v5010 = vpop.f32.mrb[0].mxu0
    %v5011 = vadd.f32 0.0, %v5010
    %5012 = vmatprep.mubr.f32.mxu0 0.0
    %5013 = vmatmul.mubr.f32.gmra.mrb[0].mxu0 %v4940
    %v5014 = vpop.f32.mrb[0].mxu0
    %v5015 = vadd.f32 0.0, %v5014
    %v5016 = vpop.f32.mrb[0].mxu0
    %v5017 = vadd.f32 0.0, %v5016
    %5018 = vdwg.mxu0
    %v5020 = vsel %vm198, %v4913, 0
    %v5023 = vsel %vm198, %v4914, 0
    %5025 = vmatprep.subr.mxu0 %v4916
    %5026 = vmatpush1.msra.mxu0 %v4915
    %5027 = vmatprep.subr.mxu0 0.0
    %5028 = vmatpush1.msra.mxu0 0.0
    %5029 = vmatprep.subr.mxu0 0.0
    %5030 = vmatpush1.msra.mxu0 0.0
    %5031 = vmatprep.subr.mxu0 0.0
    %5032 = vmatpush1.msra.mxu0 0.0
    %5033 = vmatprep.subr.mxu0 0.0
    %5034 = vmatpush1.msra.mxu0 0.0
    %5035 = vmatprep.subr.mxu0 0.0
    %5036 = vmatpush1.msra.mxu0 0.0
    %5037 = vmatprep.subr.mxu0 0.0
    %5038 = vmatpush1.msra.mxu0 0.0
    %5039 = vmatprep.subr.mxu0 0.0
    %5040 = vmatpush1.msra.mxu0 0.0
    %5041 = vmatprep.subr.mxu0 0.0
    %5042 = vmatpush1.msra.mxu0 0.0
    %5043 = vmatprep.subr.mxu0 0.0
    %5044 = vmatpush1.msra.mxu0 0.0
    %5045 = vmatprep.subr.mxu0 0.0
    %5046 = vmatpush1.msra.mxu0 0.0
    %5047 = vmatprep.subr.mxu0 0.0
    %5048 = vmatpush1.msra.mxu0 0.0
    %5049 = vmatprep.subr.mxu0 0.0
    %5050 = vmatpush1.msra.mxu0 0.0
    %5051 = vmatprep.subr.mxu0 0.0
    %5052 = vmatpush1.msra.mxu0 0.0
    %5053 = vmatprep.subr.mxu0 0.0
    %5054 = vmatpush1.msra.mxu0 0.0
    %5055 = vmatprep.subr.mxu0 0.0
    %5056 = vmatpush1.msra.mxu0 0.0
    %5057 = vmatprep.subr.mxu0 0.0
    %5058 = vmatpush1.msra.mxu0 0.0
    %5059 = vmatprep.subr.mxu0 0.0
    %5060 = vmatpush1.msra.mxu0 0.0
    %5061 = vmatprep.subr.mxu0 0.0
    %5062 = vmatpush1.msra.mxu0 0.0
    %5063 = vmatprep.subr.mxu0 0.0
    %5064 = vmatpush1.msra.mxu0 0.0
    %5065 = vmatprep.subr.mxu0 0.0
    %5066 = vmatpush1.msra.mxu0 0.0
    %5067 = vmatprep.subr.mxu0 0.0
    %5068 = vmatpush1.msra.mxu0 0.0
    %5069 = vmatprep.subr.mxu0 0.0
    %5070 = vmatpush1.msra.mxu0 0.0
    %5071 = vmatprep.subr.mxu0 0.0
    %5072 = vmatpush1.msra.mxu0 0.0
    %5073 = vmatprep.subr.mxu0 0.0
    %5074 = vmatpush1.msra.mxu0 0.0
    %5075 = vmatprep.subr.mxu0 0.0
    %5076 = vmatpush1.msra.mxu0 0.0
    %5077 = vmatprep.subr.mxu0 0.0
    %5078 = vmatpush1.msra.mxu0 0.0
    %5079 = vmatprep.subr.mxu0 0.0
    %5080 = vmatpush1.msra.mxu0 0.0
    %5081 = vmatprep.subr.mxu0 0.0
    %5082 = vmatpush1.msra.mxu0 0.0
    %5083 = vmatprep.subr.mxu0 0.0
    %5084 = vmatpush1.msra.mxu0 0.0
    %5085 = vmatprep.subr.mxu0 0.0
    %5086 = vmatpush1.msra.mxu0 0.0
    %5087 = vmatprep.subr.mxu0 0.0
    %5088 = vmatpush1.msra.mxu0 0.0
    %5089 = vmatprep.mubr.f32.mxu0 0.0
    %5090 = vmatmul.mubr.f32.gmra.mrb[0].mxu0 %v5020
    %v5091 = vpop.f32.mrb[0].mxu0
    %v5092 = vadd.f32 %v5009, %v5091
    %v5093 = vpop.f32.mrb[0].mxu0
    %v5094 = vadd.f32 %v5011, %v5093
    %5095 = vmatprep.mubr.f32.mxu0 0.0
    %5096 = vmatmul.mubr.f32.gmra.mrb[0].mxu0 %v5023
    %v5097 = vpop.f32.mrb[0].mxu0
    %v5098 = vadd.f32 %v5015, %v5097
    %v5099 = vpop.f32.mrb[0].mxu0
    %v5100 = vadd.f32 %v5017, %v5099
    %5101 = vdwg.mxu0
    %s5102 = scalar_lea.vmem %s5, 32
    %v5103 = vld [vmem:[%s5102] sm:$0xff]
    %v5104 = vld [vmem:[%s5102 + $0x8] sm:$0xff]
    %5105 = vrot.lane.b32.xlu0 %v4920, 126
    %v5106 = vpop.permute.xlu0 %5105
    %5107 = vrot.lane.b32.xlu0 %v4921, 126
    %v5108 = vpop.permute.xlu0 %5107
    %5109 = vrot.lane.b32.xlu0 %v4922, 126
    %v5110 = vpop.permute.xlu0 %5109
    %v5111 = vsel %vm935, %v5106, %v5108
    %v5112 = vsel %vm935, %v5108, %v5110
    %v5116 = vsel %vm198, %v5103, 0
    %v5119 = vsel %vm198, %v5104, 0
    %5121 = vmatprep.subr.mxu0 %v5112
    %5122 = vmatpush1.msra.mxu0 %v5111
    %5123 = vmatprep.subr.mxu0 0.0
    %5124 = vmatpush1.msra.mxu0 0.0
    %5125 = vmatprep.subr.mxu0 0.0
    %5126 = vmatpush1.msra.mxu0 0.0
    %5127 = vmatprep.subr.mxu0 0.0
    %5128 = vmatpush1.msra.mxu0 0.0
    %5129 = vmatprep.subr.mxu0 0.0
    %5130 = vmatpush1.msra.mxu0 0.0
    %5131 = vmatprep.subr.mxu0 0.0
    %5132 = vmatpush1.msra.mxu0 0.0
    %5133 = vmatprep.subr.mxu0 0.0
    %5134 = vmatpush1.msra.mxu0 0.0
    %5135 = vmatprep.subr.mxu0 0.0
    %5136 = vmatpush1.msra.mxu0 0.0
    %5137 = vmatprep.subr.mxu0 0.0
    %5138 = vmatpush1.msra.mxu0 0.0
    %5139 = vmatprep.subr.mxu0 0.0
    %5140 = vmatpush1.msra.mxu0 0.0
    %5141 = vmatprep.subr.mxu0 0.0
    %5142 = vmatpush1.msra.mxu0 0.0
    %5143 = vmatprep.subr.mxu0 0.0
    %5144 = vmatpush1.msra.mxu0 0.0
    %5145 = vmatprep.subr.mxu0 0.0
    %5146 = vmatpush1.msra.mxu0 0.0
    %5147 = vmatprep.subr.mxu0 0.0
    %5148 = vmatpush1.msra.mxu0 0.0
    %5149 = vmatprep.subr.mxu0 0.0
    %5150 = vmatpush1.msra.mxu0 0.0
    %5151 = vmatprep.subr.mxu0 0.0
    %5152 = vmatpush1.msra.mxu0 0.0
    %5153 = vmatprep.subr.mxu0 0.0
    %5154 = vmatpush1.msra.mxu0 0.0
    %5155 = vmatprep.subr.mxu0 0.0
    %5156 = vmatpush1.msra.mxu0 0.0
    %5157 = vmatprep.subr.mxu0 0.0
    %5158 = vmatpush1.msra.mxu0 0.0
    %5159 = vmatprep.subr.mxu0 0.0
    %5160 = vmatpush1.msra.mxu0 0.0
    %5161 = vmatprep.subr.mxu0 0.0
    %5162 = vmatpush1.msra.mxu0 0.0
    %5163 = vmatprep.subr.mxu0 0.0
    %5164 = vmatpush1.msra.mxu0 0.0
    %5165 = vmatprep.subr.mxu0 0.0
    %5166 = vmatpush1.msra.mxu0 0.0
    %5167 = vmatprep.subr.mxu0 0.0
    %5168 = vmatpush1.msra.mxu0 0.0
    %5169 = vmatprep.subr.mxu0 0.0
    %5170 = vmatpush1.msra.mxu0 0.0
    %5171 = vmatprep.subr.mxu0 0.0
    %5172 = vmatpush1.msra.mxu0 0.0
    %5173 = vmatprep.subr.mxu0 0.0
    %5174 = vmatpush1.msra.mxu0 0.0
    %5175 = vmatprep.subr.mxu0 0.0
    %5176 = vmatpush1.msra.mxu0 0.0
    %5177 = vmatprep.subr.mxu0 0.0
    %5178 = vmatpush1.msra.mxu0 0.0
    %5179 = vmatprep.subr.mxu0 0.0
    %5180 = vmatpush1.msra.mxu0 0.0
    %5181 = vmatprep.subr.mxu0 0.0
    %5182 = vmatpush1.msra.mxu0 0.0
    %5183 = vmatprep.subr.mxu0 0.0
    %5184 = vmatpush1.msra.mxu0 0.0
    %5185 = vmatprep.mubr.f32.mxu0 0.0
    %5186 = vmatmul.mubr.f32.gmra.mrb[0].mxu0 %v5116
    %v5187 = vpop.f32.mrb[0].mxu0
    %v5188 = vadd.f32 0.0, %v5187
    %v5189 = vpop.f32.mrb[0].mxu0
    %v5190 = vadd.f32 0.0, %v5189
    %5191 = vmatprep.mubr.f32.mxu0 0.0
    %5192 = vmatmul.mubr.f32.gmra.mrb[0].mxu0 %v5119
    %v5193 = vpop.f32.mrb[0].mxu0
    %v5194 = vadd.f32 0.0, %v5193
    %v5195 = vpop.f32.mrb[0].mxu0
    %v5196 = vadd.f32 0.0, %v5195
    %5197 = vdwg.mxu0
    %v5198 = vadd.f32 %v5092, %v5188
    %v5199 = vadd.f32 %v5094, %v5190
    %v5200 = vadd.f32 %v5098, %v5194
    %v5201 = vadd.f32 %v5100, %v5196
    %s5202 = scalar_lea.vmem %s5, 48
    %v5203 = vld [vmem:[%s5202] sm:$0xff]
    %v5204 = vld [vmem:[%s5202 + $0x8] sm:$0xff]
    %5205 = vrot.lane.b32.xlu0 %v4920, 121
    %v5206 = vpop.permute.xlu0 %5205
    %5207 = vrot.lane.b32.xlu0 %v4921, 121
    %v5208 = vpop.permute.xlu0 %5207
    %5209 = vrot.lane.b32.xlu0 %v4922, 121
    %v5210 = vpop.permute.xlu0 %5209
    %vm5211 = vcmask 990208
    %v5212 = vsel %vm5211, %v5206, %v5208
    %v5213 = vsel %vm5211, %v5208, %v5210
    %v5217 = vsel %vm198, %v5203, 0
    %v5220 = vsel %vm198, %v5204, 0
    %5222 = vmatprep.subr.mxu0 %v5213
    %5223 = vmatpush1.msra.mxu0 %v5212
    %5224 = vmatprep.subr.mxu0 0.0
    %5225 = vmatpush1.msra.mxu0 0.0
    %5226 = vmatprep.subr.mxu0 0.0
    %5227 = vmatpush1.msra.mxu0 0.0
    %5228 = vmatprep.subr.mxu0 0.0
    %5229 = vmatpush1.msra.mxu0 0.0
    %5230 = vmatprep.subr.mxu0 0.0
    %5231 = vmatpush1.msra.mxu0 0.0
    %5232 = vmatprep.subr.mxu0 0.0
    %5233 = vmatpush1.msra.mxu0 0.0
    %5234 = vmatprep.subr.mxu0 0.0
    %5235 = vmatpush1.msra.mxu0 0.0
    %5236 = vmatprep.subr.mxu0 0.0
    %5237 = vmatpush1.msra.mxu0 0.0
    %5238 = vmatprep.subr.mxu0 0.0
    %5239 = vmatpush1.msra.mxu0 0.0
    %5240 = vmatprep.subr.mxu0 0.0
    %5241 = vmatpush1.msra.mxu0 0.0
    %5242 = vmatprep.subr.mxu0 0.0
    %5243 = vmatpush1.msra.mxu0 0.0
    %5244 = vmatprep.subr.mxu0 0.0
    %5245 = vmatpush1.msra.mxu0 0.0
    %5246 = vmatprep.subr.mxu0 0.0
    %5247 = vmatpush1.msra.mxu0 0.0
    %5248 = vmatprep.subr.mxu0 0.0
    %5249 = vmatpush1.msra.mxu0 0.0
    %5250 = vmatprep.subr.mxu0 0.0
    %5251 = vmatpush1.msra.mxu0 0.0
    %5252 = vmatprep.subr.mxu0 0.0
    %5253 = vmatpush1.msra.mxu0 0.0
    %5254 = vmatprep.subr.mxu0 0.0
    %5255 = vmatpush1.msra.mxu0 0.0
    %5256 = vmatprep.subr.mxu0 0.0
    %5257 = vmatpush1.msra.mxu0 0.0
    %5258 = vmatprep.subr.mxu0 0.0
    %5259 = vmatpush1.msra.mxu0 0.0
    %5260 = vmatprep.subr.mxu0 0.0
    %5261 = vmatpush1.msra.mxu0 0.0
    %5262 = vmatprep.subr.mxu0 0.0
    %5263 = vmatpush1.msra.mxu0 0.0
    %5264 = vmatprep.subr.mxu0 0.0
    %5265 = vmatpush1.msra.mxu0 0.0
    %5266 = vmatprep.subr.mxu0 0.0
    %5267 = vmatpush1.msra.mxu0 0.0
    %5268 = vmatprep.subr.mxu0 0.0
    %5269 = vmatpush1.msra.mxu0 0.0
    %5270 = vmatprep.subr.mxu0 0.0
    %5271 = vmatpush1.msra.mxu0 0.0
    %5272 = vmatprep.subr.mxu0 0.0
    %5273 = vmatpush1.msra.mxu0 0.0
    %5274 = vmatprep.subr.mxu0 0.0
    %5275 = vmatpush1.msra.mxu0 0.0
    %5276 = vmatprep.subr.mxu0 0.0
    %5277 = vmatpush1.msra.mxu0 0.0
    %5278 = vmatprep.subr.mxu0 0.0
    %5279 = vmatpush1.msra.mxu0 0.0
    %5280 = vmatprep.subr.mxu0 0.0
    %5281 = vmatpush1.msra.mxu0 0.0
    %5282 = vmatprep.subr.mxu0 0.0
    %5283 = vmatpush1.msra.mxu0 0.0
    %5284 = vmatprep.subr.mxu0 0.0
    %5285 = vmatpush1.msra.mxu0 0.0
    %5286 = vmatprep.mubr.f32.mxu0 0.0
    %5287 = vmatmul.mubr.f32.gmra.mrb[0].mxu0 %v5217
    %v5288 = vpop.f32.mrb[0].mxu0
    %v5289 = vadd.f32 0.0, %v5288
    %v5290 = vpop.f32.mrb[0].mxu0
    %v5291 = vadd.f32 0.0, %v5290
    %5292 = vmatprep.mubr.f32.mxu0 0.0
    %5293 = vmatmul.mubr.f32.gmra.mrb[0].mxu0 %v5220
    %v5294 = vpop.f32.mrb[0].mxu0
    %v5295 = vadd.f32 0.0, %v5294
    %v5296 = vpop.f32.mrb[0].mxu0
    %v5297 = vadd.f32 0.0, %v5296
    %5298 = vdwg.mxu0
    %v5299 = vadd.f32 %v5198, %v5289
    %v5300 = vadd.f32 %v5199, %v5291
    %v5301 = vadd.f32 %v5200, %v5295
    %v5302 = vadd.f32 %v5201, %v5297
    %s5303 = scalar_lea.vmem %s5, 64
    %v5304 = vld [vmem:[%s5303] sm:$0xff]
    %v5305 = vld [vmem:[%s5303 + $0x8] sm:$0xff]
    %5306 = vrot.lane.b32.xlu0 %v4920, 120
    %v5307 = vpop.permute.xlu0 %5306
    %5308 = vrot.lane.b32.xlu0 %v4921, 120
    %v5309 = vpop.permute.xlu0 %5308
    %5310 = vrot.lane.b32.xlu0 %v4922, 120
    %v5311 = vpop.permute.xlu0 %5310
    %vm5312 = vcmask 982016
    %v5313 = vsel %vm5312, %v5307, %v5309
    %v5314 = vsel %vm5312, %v5309, %v5311
    %v5318 = vsel %vm198, %v5304, 0
    %v5321 = vsel %vm198, %v5305, 0
    %5323 = vmatprep.subr.mxu0 %v5314
    %5324 = vmatpush1.msra.mxu0 %v5313
    %5325 = vmatprep.subr.mxu0 0.0
    %5326 = vmatpush1.msra.mxu0 0.0
    %5327 = vmatprep.subr.mxu0 0.0
    %5328 = vmatpush1.msra.mxu0 0.0
    %5329 = vmatprep.subr.mxu0 0.0
    %5330 = vmatpush1.msra.mxu0 0.0
    %5331 = vmatprep.subr.mxu0 0.0
    %5332 = vmatpush1.msra.mxu0 0.0
    %5333 = vmatprep.subr.mxu0 0.0
    %5334 = vmatpush1.msra.mxu0 0.0
    %5335 = vmatprep.subr.mxu0 0.0
    %5336 = vmatpush1.msra.mxu0 0.0
    %5337 = vmatprep.subr.mxu0 0.0
    %5338 = vmatpush1.msra.mxu0 0.0
    %5339 = vmatprep.subr.mxu0 0.0
    %5340 = vmatpush1.msra.mxu0 0.0
    %5341 = vmatprep.subr.mxu0 0.0
    %5342 = vmatpush1.msra.mxu0 0.0
    %5343 = vmatprep.subr.mxu0 0.0
    %5344 = vmatpush1.msra.mxu0 0.0
    %5345 = vmatprep.subr.mxu0 0.0
    %5346 = vmatpush1.msra.mxu0 0.0
    %5347 = vmatprep.subr.mxu0 0.0
    %5348 = vmatpush1.msra.mxu0 0.0
    %5349 = vmatprep.subr.mxu0 0.0
    %5350 = vmatpush1.msra.mxu0 0.0
    %5351 = vmatprep.subr.mxu0 0.0
    %5352 = vmatpush1.msra.mxu0 0.0
    %5353 = vmatprep.subr.mxu0 0.0
    %5354 = vmatpush1.msra.mxu0 0.0
    %5355 = vmatprep.subr.mxu0 0.0
    %5356 = vmatpush1.msra.mxu0 0.0
    %5357 = vmatprep.subr.mxu0 0.0
    %5358 = vmatpush1.msra.mxu0 0.0
    %5359 = vmatprep.subr.mxu0 0.0
    %5360 = vmatpush1.msra.mxu0 0.0
    %5361 = vmatprep.subr.mxu0 0.0
    %5362 = vmatpush1.msra.mxu0 0.0
    %5363 = vmatprep.subr.mxu0 0.0
    %5364 = vmatpush1.msra.mxu0 0.0
    %5365 = vmatprep.subr.mxu0 0.0
    %5366 = vmatpush1.msra.mxu0 0.0
    %5367 = vmatprep.subr.mxu0 0.0
    %5368 = vmatpush1.msra.mxu0 0.0
    %5369 = vmatprep.subr.mxu0 0.0
    %5370 = vmatpush1.msra.mxu0 0.0
    %5371 = vmatprep.subr.mxu0 0.0
    %5372 = vmatpush1.msra.mxu0 0.0
    %5373 = vmatprep.subr.mxu0 0.0
    %5374 = vmatpush1.msra.mxu0 0.0
    %5375 = vmatprep.subr.mxu0 0.0
    %5376 = vmatpush1.msra.mxu0 0.0
    %5377 = vmatprep.subr.mxu0 0.0
    %5378 = vmatpush1.msra.mxu0 0.0
    %5379 = vmatprep.subr.mxu0 0.0
    %5380 = vmatpush1.msra.mxu0 0.0
    %5381 = vmatprep.subr.mxu0 0.0
    %5382 = vmatpush1.msra.mxu0 0.0
    %5383 = vmatprep.subr.mxu0 0.0
    %5384 = vmatpush1.msra.mxu0 0.0
    %5385 = vmatprep.subr.mxu0 0.0
    %5386 = vmatpush1.msra.mxu0 0.0
    %5387 = vmatprep.mubr.f32.mxu0 0.0
    %5388 = vmatmul.mubr.f32.gmra.mrb[0].mxu0 %v5318
    %v5389 = vpop.f32.mrb[0].mxu0
    %v5390 = vadd.f32 0.0, %v5389
    %v5391 = vpop.f32.mrb[0].mxu0
    %v5392 = vadd.f32 0.0, %v5391
    %5393 = vmatprep.mubr.f32.mxu0 0.0
    %5394 = vmatmul.mubr.f32.gmra.mrb[0].mxu0 %v5321
    %v5395 = vpop.f32.mrb[0].mxu0
    %v5396 = vadd.f32 0.0, %v5395
    %v5397 = vpop.f32.mrb[0].mxu0
    %v5398 = vadd.f32 0.0, %v5397
    %5399 = vdwg.mxu0
    %v5400 = vadd.f32 %v5299, %v5390
    %v5401 = vadd.f32 %v5300, %v5392
    %v5402 = vadd.f32 %v5301, %v5396
    %v5403 = vadd.f32 %v5302, %v5398
    %s5404 = scalar_lea.vmem %s5, 80
    %v5405 = vld [vmem:[%s5404] sm:$0xff]
    %v5406 = vld [vmem:[%s5404 + $0x8] sm:$0xff]
    %5407 = vrot.lane.b32.xlu0 %v4920, 119
    %v5408 = vpop.permute.xlu0 %5407
    %5409 = vrot.lane.b32.xlu0 %v4921, 119
    %v5410 = vpop.permute.xlu0 %5409
    %5411 = vrot.lane.b32.xlu0 %v4922, 119
    %v5412 = vpop.permute.xlu0 %5411
    %vm5413 = vcmask 973824
    %v5414 = vsel %vm5413, %v5408, %v5410
    %v5415 = vsel %vm5413, %v5410, %v5412
    %v5419 = vsel %vm198, %v5405, 0
    %v5422 = vsel %vm198, %v5406, 0
    %5424 = vmatprep.subr.mxu0 %v5415
    %5425 = vmatpush1.msra.mxu0 %v5414
    %5426 = vmatprep.subr.mxu0 0.0
    %5427 = vmatpush1.msra.mxu0 0.0
    %5428 = vmatprep.subr.mxu0 0.0
    %5429 = vmatpush1.msra.mxu0 0.0
    %5430 = vmatprep.subr.mxu0 0.0
    %5431 = vmatpush1.msra.mxu0 0.0
    %5432 = vmatprep.subr.mxu0 0.0
    %5433 = vmatpush1.msra.mxu0 0.0
    %5434 = vmatprep.subr.mxu0 0.0
    %5435 = vmatpush1.msra.mxu0 0.0
    %5436 = vmatprep.subr.mxu0 0.0
    %5437 = vmatpush1.msra.mxu0 0.0
    %5438 = vmatprep.subr.mxu0 0.0
    %5439 = vmatpush1.msra.mxu0 0.0
    %5440 = vmatprep.subr.mxu0 0.0
    %5441 = vmatpush1.msra.mxu0 0.0
    %5442 = vmatprep.subr.mxu0 0.0
    %5443 = vmatpush1.msra.mxu0 0.0
    %5444 = vmatprep.subr.mxu0 0.0
    %5445 = vmatpush1.msra.mxu0 0.0
    %5446 = vmatprep.subr.mxu0 0.0
    %5447 = vmatpush1.msra.mxu0 0.0
    %5448 = vmatprep.subr.mxu0 0.0
    %5449 = vmatpush1.msra.mxu0 0.0
    %5450 = vmatprep.subr.mxu0 0.0
    %5451 = vmatpush1.msra.mxu0 0.0
    %5452 = vmatprep.subr.mxu0 0.0
    %5453 = vmatpush1.msra.mxu0 0.0
    %5454 = vmatprep.subr.mxu0 0.0
    %5455 = vmatpush1.msra.mxu0 0.0
    %5456 = vmatprep.subr.mxu0 0.0
    %5457 = vmatpush1.msra.mxu0 0.0
    %5458 = vmatprep.subr.mxu0 0.0
    %5459 = vmatpush1.msra.mxu0 0.0
    %5460 = vmatprep.subr.mxu0 0.0
    %5461 = vmatpush1.msra.mxu0 0.0
    %5462 = vmatprep.subr.mxu0 0.0
    %5463 = vmatpush1.msra.mxu0 0.0
    %5464 = vmatprep.subr.mxu0 0.0
    %5465 = vmatpush1.msra.mxu0 0.0
    %5466 = vmatprep.subr.mxu0 0.0
    %5467 = vmatpush1.msra.mxu0 0.0
    %5468 = vmatprep.subr.mxu0 0.0
    %5469 = vmatpush1.msra.mxu0 0.0
    %5470 = vmatprep.subr.mxu0 0.0
    %5471 = vmatpush1.msra.mxu0 0.0
    %5472 = vmatprep.subr.mxu0 0.0
    %5473 = vmatpush1.msra.mxu0 0.0
    %5474 = vmatprep.subr.mxu0 0.0
    %5475 = vmatpush1.msra.mxu0 0.0
    %5476 = vmatprep.subr.mxu0 0.0
    %5477 = vmatpush1.msra.mxu0 0.0
    %5478 = vmatprep.subr.mxu0 0.0
    %5479 = vmatpush1.msra.mxu0 0.0
    %5480 = vmatprep.subr.mxu0 0.0
    %5481 = vmatpush1.msra.mxu0 0.0
    %5482 = vmatprep.subr.mxu0 0.0
    %5483 = vmatpush1.msra.mxu0 0.0
    %5484 = vmatprep.subr.mxu0 0.0
    %5485 = vmatpush1.msra.mxu0 0.0
    %5486 = vmatprep.subr.mxu0 0.0
    %5487 = vmatpush1.msra.mxu0 0.0
    %5488 = vmatprep.mubr.f32.mxu0 0.0
    %5489 = vmatmul.mubr.f32.gmra.mrb[0].mxu0 %v5419
    %v5490 = vpop.f32.mrb[0].mxu0
    %v5491 = vadd.f32 0.0, %v5490
    %v5492 = vpop.f32.mrb[0].mxu0
    %v5493 = vadd.f32 0.0, %v5492
    %5494 = vmatprep.mubr.f32.mxu0 0.0
    %5495 = vmatmul.mubr.f32.gmra.mrb[0].mxu0 %v5422
    %v5496 = vpop.f32.mrb[0].mxu0
    %v5497 = vadd.f32 0.0, %v5496
    %v5498 = vpop.f32.mrb[0].mxu0
    %v5499 = vadd.f32 0.0, %v5498
    %5500 = vdwg.mxu0
    %v5501 = vadd.f32 %v5400, %v5491
    %v5502 = vadd.f32 %v5401, %v5493
    %v5503 = vadd.f32 %v5402, %v5497
    %v5504 = vadd.f32 %v5403, %v5499
    %s5505 = scalar_lea.vmem %s5, 96
    %v5506 = vld [vmem:[%s5505] sm:$0xff]
    %v5507 = vld [vmem:[%s5505 + $0x8] sm:$0xff]
    %5508 = vrot.lane.b32.xlu0 %v4920, 114
    %v5509 = vpop.permute.xlu0 %5508
    %5510 = vrot.lane.b32.xlu0 %v4921, 114
    %v5511 = vpop.permute.xlu0 %5510
    %5512 = vrot.lane.b32.xlu0 %v4922, 114
    %v5513 = vpop.permute.xlu0 %5512
    %vm5514 = vcmask 932864
    %v5515 = vsel %vm5514, %v5509, %v5511
    %v5516 = vsel %vm5514, %v5511, %v5513
    %v5520 = vsel %vm198, %v5506, 0
    %v5523 = vsel %vm198, %v5507, 0
    %5525 = vmatprep.subr.mxu0 %v5516
    %5526 = vmatpush1.msra.mxu0 %v5515
    %5527 = vmatprep.subr.mxu0 0.0
    %5528 = vmatpush1.msra.mxu0 0.0
    %5529 = vmatprep.subr.mxu0 0.0
    %5530 = vmatpush1.msra.mxu0 0.0
    %5531 = vmatprep.subr.mxu0 0.0
    %5532 = vmatpush1.msra.mxu0 0.0
    %5533 = vmatprep.subr.mxu0 0.0
    %5534 = vmatpush1.msra.mxu0 0.0
    %5535 = vmatprep.subr.mxu0 0.0
    %5536 = vmatpush1.msra.mxu0 0.0
    %5537 = vmatprep.subr.mxu0 0.0
    %5538 = vmatpush1.msra.mxu0 0.0
    %5539 = vmatprep.subr.mxu0 0.0
    %5540 = vmatpush1.msra.mxu0 0.0
    %5541 = vmatprep.subr.mxu0 0.0
    %5542 = vmatpush1.msra.mxu0 0.0
    %5543 = vmatprep.subr.mxu0 0.0
    %5544 = vmatpush1.msra.mxu0 0.0
    %5545 = vmatprep.subr.mxu0 0.0
    %5546 = vmatpush1.msra.mxu0 0.0
    %5547 = vmatprep.subr.mxu0 0.0
    %5548 = vmatpush1.msra.mxu0 0.0
    %5549 = vmatprep.subr.mxu0 0.0
    %5550 = vmatpush1.msra.mxu0 0.0
    %5551 = vmatprep.subr.mxu0 0.0
    %5552 = vmatpush1.msra.mxu0 0.0
    %5553 = vmatprep.subr.mxu0 0.0
    %5554 = vmatpush1.msra.mxu0 0.0
    %5555 = vmatprep.subr.mxu0 0.0
    %5556 = vmatpush1.msra.mxu0 0.0
    %5557 = vmatprep.subr.mxu0 0.0
    %5558 = vmatpush1.msra.mxu0 0.0
    %5559 = vmatprep.subr.mxu0 0.0
    %5560 = vmatpush1.msra.mxu0 0.0
    %5561 = vmatprep.subr.mxu0 0.0
    %5562 = vmatpush1.msra.mxu0 0.0
    %5563 = vmatprep.subr.mxu0 0.0
    %5564 = vmatpush1.msra.mxu0 0.0
    %5565 = vmatprep.subr.mxu0 0.0
    %5566 = vmatpush1.msra.mxu0 0.0
    %5567 = vmatprep.subr.mxu0 0.0
    %5568 = vmatpush1.msra.mxu0 0.0
    %5569 = vmatprep.subr.mxu0 0.0
    %5570 = vmatpush1.msra.mxu0 0.0
    %5571 = vmatprep.subr.mxu0 0.0
    %5572 = vmatpush1.msra.mxu0 0.0
    %5573 = vmatprep.subr.mxu0 0.0
    %5574 = vmatpush1.msra.mxu0 0.0
    %5575 = vmatprep.subr.mxu0 0.0
    %5576 = vmatpush1.msra.mxu0 0.0
    %5577 = vmatprep.subr.mxu0 0.0
    %5578 = vmatpush1.msra.mxu0 0.0
    %5579 = vmatprep.subr.mxu0 0.0
    %5580 = vmatpush1.msra.mxu0 0.0
    %5581 = vmatprep.subr.mxu0 0.0
    %5582 = vmatpush1.msra.mxu0 0.0
    %5583 = vmatprep.subr.mxu0 0.0
    %5584 = vmatpush1.msra.mxu0 0.0
    %5585 = vmatprep.subr.mxu0 0.0
    %5586 = vmatpush1.msra.mxu0 0.0
    %5587 = vmatprep.subr.mxu0 0.0
    %5588 = vmatpush1.msra.mxu0 0.0
    %5589 = vmatprep.mubr.f32.mxu0 0.0
    %5590 = vmatmul.mubr.f32.gmra.mrb[0].mxu0 %v5520
    %v5591 = vpop.f32.mrb[0].mxu0
    %v5592 = vadd.f32 0.0, %v5591
    %v5593 = vpop.f32.mrb[0].mxu0
    %v5594 = vadd.f32 0.0, %v5593
    %5595 = vmatprep.mubr.f32.mxu0 0.0
    %5596 = vmatmul.mubr.f32.gmra.mrb[0].mxu0 %v5523
    %v5597 = vpop.f32.mrb[0].mxu0
    %v5598 = vadd.f32 0.0, %v5597
    %v5599 = vpop.f32.mrb[0].mxu0
    %v5600 = vadd.f32 0.0, %v5599
    %5601 = vdwg.mxu0
    %v5602 = vadd.f32 %v5501, %v5592
    %v5603 = vadd.f32 %v5502, %v5594
    %v5604 = vadd.f32 %v5503, %v5598
    %v5605 = vadd.f32 %v5504, %v5600
    %s5606 = scalar_lea.vmem %s5, 112
    %v5607 = vld [vmem:[%s5606] sm:$0xff]
    %v5608 = vld [vmem:[%s5606 + $0x8] sm:$0xff]
    %5609 = vrot.lane.b32.xlu0 %v4920, 113
    %v5610 = vpop.permute.xlu0 %5609
    %5611 = vrot.lane.b32.xlu0 %v4921, 113
    %v5612 = vpop.permute.xlu0 %5611
    %5613 = vrot.lane.b32.xlu0 %v4922, 113
    %v5614 = vpop.permute.xlu0 %5613
    %vm5615 = vcmask 924672
    %v5616 = vsel %vm5615, %v5610, %v5612
    %v5617 = vsel %vm5615, %v5612, %v5614
    %v5621 = vsel %vm198, %v5607, 0
    %v5624 = vsel %vm198, %v5608, 0
    %5626 = vmatprep.subr.mxu0 %v5617
    %5627 = vmatpush1.msra.mxu0 %v5616
    %5628 = vmatprep.subr.mxu0 0.0
    %5629 = vmatpush1.msra.mxu0 0.0
    %5630 = vmatprep.subr.mxu0 0.0
    %5631 = vmatpush1.msra.mxu0 0.0
    %5632 = vmatprep.subr.mxu0 0.0
    %5633 = vmatpush1.msra.mxu0 0.0
    %5634 = vmatprep.subr.mxu0 0.0
    %5635 = vmatpush1.msra.mxu0 0.0
    %5636 = vmatprep.subr.mxu0 0.0
    %5637 = vmatpush1.msra.mxu0 0.0
    %5638 = vmatprep.subr.mxu0 0.0
    %5639 = vmatpush1.msra.mxu0 0.0
    %5640 = vmatprep.subr.mxu0 0.0
    %5641 = vmatpush1.msra.mxu0 0.0
    %5642 = vmatprep.subr.mxu0 0.0
    %5643 = vmatpush1.msra.mxu0 0.0
    %5644 = vmatprep.subr.mxu0 0.0
    %5645 = vmatpush1.msra.mxu0 0.0
    %5646 = vmatprep.subr.mxu0 0.0
    %5647 = vmatpush1.msra.mxu0 0.0
    %5648 = vmatprep.subr.mxu0 0.0
    %5649 = vmatpush1.msra.mxu0 0.0
    %5650 = vmatprep.subr.mxu0 0.0
    %5651 = vmatpush1.msra.mxu0 0.0
    %5652 = vmatprep.subr.mxu0 0.0
    %5653 = vmatpush1.msra.mxu0 0.0
    %5654 = vmatprep.subr.mxu0 0.0
    %5655 = vmatpush1.msra.mxu0 0.0
    %5656 = vmatprep.subr.mxu0 0.0
    %5657 = vmatpush1.msra.mxu0 0.0
    %5658 = vmatprep.subr.mxu0 0.0
    %5659 = vmatpush1.msra.mxu0 0.0
    %5660 = vmatprep.subr.mxu0 0.0
    %5661 = vmatpush1.msra.mxu0 0.0
    %5662 = vmatprep.subr.mxu0 0.0
    %5663 = vmatpush1.msra.mxu0 0.0
    %5664 = vmatprep.subr.mxu0 0.0
    %5665 = vmatpush1.msra.mxu0 0.0
    %5666 = vmatprep.subr.mxu0 0.0
    %5667 = vmatpush1.msra.mxu0 0.0
    %5668 = vmatprep.subr.mxu0 0.0
    %5669 = vmatpush1.msra.mxu0 0.0
    %5670 = vmatprep.subr.mxu0 0.0
    %5671 = vmatpush1.msra.mxu0 0.0
    %5672 = vmatprep.subr.mxu0 0.0
    %5673 = vmatpush1.msra.mxu0 0.0
    %5674 = vmatprep.subr.mxu0 0.0
    %5675 = vmatpush1.msra.mxu0 0.0
    %5676 = vmatprep.subr.mxu0 0.0
    %5677 = vmatpush1.msra.mxu0 0.0
    %5678 = vmatprep.subr.mxu0 0.0
    %5679 = vmatpush1.msra.mxu0 0.0
    %5680 = vmatprep.subr.mxu0 0.0
    %5681 = vmatpush1.msra.mxu0 0.0
    %5682 = vmatprep.subr.mxu0 0.0
    %5683 = vmatpush1.msra.mxu0 0.0
    %5684 = vmatprep.subr.mxu0 0.0
    %5685 = vmatpush1.msra.mxu0 0.0
    %5686 = vmatprep.subr.mxu0 0.0
    %5687 = vmatpush1.msra.mxu0 0.0
    %5688 = vmatprep.subr.mxu0 0.0
    %5689 = vmatpush1.msra.mxu0 0.0
    %5690 = vmatprep.mubr.f32.mxu0 0.0
    %5691 = vmatmul.mubr.f32.gmra.mrb[0].mxu0 %v5621
    %v5692 = vpop.f32.mrb[0].mxu0
    %v5693 = vadd.f32 0.0, %v5692
    %v5694 = vpop.f32.mrb[0].mxu0
    %v5695 = vadd.f32 0.0, %v5694
    %5696 = vmatprep.mubr.f32.mxu0 0.0
    %5697 = vmatmul.mubr.f32.gmra.mrb[0].mxu0 %v5624
    %v5698 = vpop.f32.mrb[0].mxu0
    %v5699 = vadd.f32 0.0, %v5698
    %v5700 = vpop.f32.mrb[0].mxu0
    %v5701 = vadd.f32 0.0, %v5700
    %5702 = vdwg.mxu0
    %v5703 = vadd.f32 %v5602, %v5693
    %v5704 = vadd.f32 %v5603, %v5695
    %v5705 = vadd.f32 %v5604, %v5699
    %v5706 = vadd.f32 %v5605, %v5701
    %s5707 = scalar_lea.vmem %s5, 128
    %v5708 = vld [vmem:[%s5707] sm:$0xff]
    %v5709 = vld [vmem:[%s5707 + $0x8] sm:$0xff]
    %5710 = vrot.lane.b32.xlu0 %v4920, 112
    %v5711 = vpop.permute.xlu0 %5710
    %5712 = vrot.lane.b32.xlu0 %v4921, 112
    %v5713 = vpop.permute.xlu0 %5712
    %5714 = vrot.lane.b32.xlu0 %v4922, 112
    %v5715 = vpop.permute.xlu0 %5714
    %v5716 = vsel %vm1342, %v5711, %v5713
    %v5717 = vsel %vm1342, %v5713, %v5715
    %v5721 = vsel %vm198, %v5708, 0
    %v5724 = vsel %vm198, %v5709, 0
    %5726 = vmatprep.subr.mxu0 %v5717
    %5727 = vmatpush1.msra.mxu0 %v5716
    %5728 = vmatprep.subr.mxu0 0.0
    %5729 = vmatpush1.msra.mxu0 0.0
    %5730 = vmatprep.subr.mxu0 0.0
    %5731 = vmatpush1.msra.mxu0 0.0
    %5732 = vmatprep.subr.mxu0 0.0
    %5733 = vmatpush1.msra.mxu0 0.0
    %5734 = vmatprep.subr.mxu0 0.0
    %5735 = vmatpush1.msra.mxu0 0.0
    %5736 = vmatprep.subr.mxu0 0.0
    %5737 = vmatpush1.msra.mxu0 0.0
    %5738 = vmatprep.subr.mxu0 0.0
    %5739 = vmatpush1.msra.mxu0 0.0
    %5740 = vmatprep.subr.mxu0 0.0
    %5741 = vmatpush1.msra.mxu0 0.0
    %5742 = vmatprep.subr.mxu0 0.0
    %5743 = vmatpush1.msra.mxu0 0.0
    %5744 = vmatprep.subr.mxu0 0.0
    %5745 = vmatpush1.msra.mxu0 0.0
    %5746 = vmatprep.subr.mxu0 0.0
    %5747 = vmatpush1.msra.mxu0 0.0
    %5748 = vmatprep.subr.mxu0 0.0
    %5749 = vmatpush1.msra.mxu0 0.0
    %5750 = vmatprep.subr.mxu0 0.0
    %5751 = vmatpush1.msra.mxu0 0.0
    %5752 = vmatprep.subr.mxu0 0.0
    %5753 = vmatpush1.msra.mxu0 0.0
    %5754 = vmatprep.subr.mxu0 0.0
    %5755 = vmatpush1.msra.mxu0 0.0
    %5756 = vmatprep.subr.mxu0 0.0
    %5757 = vmatpush1.msra.mxu0 0.0
    %5758 = vmatprep.subr.mxu0 0.0
    %5759 = vmatpush1.msra.mxu0 0.0
    %5760 = vmatprep.subr.mxu0 0.0
    %5761 = vmatpush1.msra.mxu0 0.0
    %5762 = vmatprep.subr.mxu0 0.0
    %5763 = vmatpush1.msra.mxu0 0.0
    %5764 = vmatprep.subr.mxu0 0.0
    %5765 = vmatpush1.msra.mxu0 0.0
    %5766 = vmatprep.subr.mxu0 0.0
    %5767 = vmatpush1.msra.mxu0 0.0
    %5768 = vmatprep.subr.mxu0 0.0
    %5769 = vmatpush1.msra.mxu0 0.0
    %5770 = vmatprep.subr.mxu0 0.0
    %5771 = vmatpush1.msra.mxu0 0.0
    %5772 = vmatprep.subr.mxu0 0.0
    %5773 = vmatpush1.msra.mxu0 0.0
    %5774 = vmatprep.subr.mxu0 0.0
    %5775 = vmatpush1.msra.mxu0 0.0
    %5776 = vmatprep.subr.mxu0 0.0
    %5777 = vmatpush1.msra.mxu0 0.0
    %5778 = vmatprep.subr.mxu0 0.0
    %5779 = vmatpush1.msra.mxu0 0.0
    %5780 = vmatprep.subr.mxu0 0.0
    %5781 = vmatpush1.msra.mxu0 0.0
    %5782 = vmatprep.subr.mxu0 0.0
    %5783 = vmatpush1.msra.mxu0 0.0
    %5784 = vmatprep.subr.mxu0 0.0
    %5785 = vmatpush1.msra.mxu0 0.0
    %5786 = vmatprep.subr.mxu0 0.0
    %5787 = vmatpush1.msra.mxu0 0.0
    %5788 = vmatprep.subr.mxu0 0.0
    %5789 = vmatpush1.msra.mxu0 0.0
    %5790 = vmatprep.mubr.f32.mxu0 0.0
    %5791 = vmatmul.mubr.f32.gmra.mrb[0].mxu0 %v5721
    %v5792 = vpop.f32.mrb[0].mxu0
    %v5793 = vadd.f32 0.0, %v5792
    %v5794 = vpop.f32.mrb[0].mxu0
    %v5795 = vadd.f32 0.0, %v5794
    %5796 = vmatprep.mubr.f32.mxu0 0.0
    %5797 = vmatmul.mubr.f32.gmra.mrb[0].mxu0 %v5724
    %v5798 = vpop.f32.mrb[0].mxu0
    %v5799 = vadd.f32 0.0, %v5798
    %v5800 = vpop.f32.mrb[0].mxu0
    %v5801 = vadd.f32 0.0, %v5800
    %5802 = vdwg.mxu0
    %v5803 = vadd.f32 %v5703, %v5793
    %v5804 = vadd.f32 %v5704, %v5795
    %v5805 = vadd.f32 %v5705, %v5799
    %v5806 = vadd.f32 %v5706, %v5801
    %v5807 = vld [vmem:[%s6] sm:$0xff]
    %v5808 = vld [vmem:[%s6 + $0x8] sm:$0xff]
    %5810 = vset.pattern.permute.xlu0 0
    %5811 = vperm.xlu0 %5810, %v5807
    %v5812 = vpop.permute.xlu0 %5811
    %5815 = vset.pattern.permute.xlu0 0
    %5816 = vperm.xlu0 %5815, %v5808
    %v5817 = vpop.permute.xlu0 %5816
    %v5819 = vmul.f32 %v5803, %v5812
    %v5820 = vmul.f32 %v5804, %v5812
    %v5821 = vmul.f32 %v5805, %v5817
    %v5822 = vmul.f32 %v5806, %v5817
    %v5823 = vld [vmem:[%s7] sm:$0xff]
    %v5824 = vld [vmem:[%s7 + $0x8] sm:$0xff]
    %5826 = vset.pattern.permute.xlu0 0
    %5827 = vperm.xlu0 %5826, %v5823
    %v5828 = vpop.permute.xlu0 %5827
    %5831 = vset.pattern.permute.xlu0 0
    %5832 = vperm.xlu0 %5831, %v5824
    %v5833 = vpop.permute.xlu0 %5832
    %v5835 = vadd.f32 %v5819, %v5828
    %v5836 = vadd.f32 %v5820, %v5828
    %v5837 = vadd.f32 %v5821, %v5833
    %v5838 = vadd.f32 %v5822, %v5833
    %v5839 = vmax.f32 %v5835, 0.0
    %v5840 = vmax.f32 %v5836, 0.0
    %v5841 = vmax.f32 %v5837, 0.0
    %v5842 = vmax.f32 %v5838, 0.0
    %5843 = vst [vmem:[#allocation4] sm:$0xff] %v5839
    %5844 = vst [vmem:[#allocation4 + $0x8] sm:$0xff] %v5840
    %5845 = vst [vmem:[#allocation4 + $0x10] sm:$0xff] %v5841
    %5846 = vst [vmem:[#allocation4 + $0x18] sm:$0xff] %v5842
    %v5847 = vld [vmem:[#allocation4] sm:$0xff]
    %v5848 = vld [vmem:[#allocation4 + $0x8] sm:$0xff]
    %v5849 = vld [vmem:[#allocation4 + $0x10] sm:$0xff]
    %v5850 = vld [vmem:[#allocation4 + $0x18] sm:$0xff]
    %5855 = vrot.lane.b32.xlu0 %v5847, 127
    %v5856 = vpop.permute.xlu0 %5855
    %5857 = vrot.lane.b32.xlu0 %v5848, 127
    %v5858 = vpop.permute.xlu0 %5857
    %5859 = vrot.lane.b32.xlu0 %v5849, 127
    %v5860 = vpop.permute.xlu0 %5859
    %5861 = vrot.lane.b32.xlu0 %v5850, 127
    %v5862 = vpop.permute.xlu0 %5861
    %v5863 = vsel %vm179, %v5856, %v5858
    %v5864 = vsel %vm179, %v5860, %v5862
    %v5869 = vmax.f32 %v5847, %v5863
    %v5870 = vmax.f32 %v5848, %v5858
    %v5871 = vmax.f32 %v5849, %v5864
    %v5872 = vmax.f32 %v5850, %v5862
    %5873 = vrot.lane.b32.xlu0 %v5847, 121
    %v5874 = vpop.permute.xlu0 %5873
    %5875 = vrot.lane.b32.xlu0 %v5848, 121
    %v5876 = vpop.permute.xlu0 %5875
    %5877 = vrot.lane.b32.xlu0 %v5849, 121
    %v5878 = vpop.permute.xlu0 %5877
    %5879 = vrot.lane.b32.xlu0 %v5850, 121
    %v5880 = vpop.permute.xlu0 %5879
    %v5881 = vsel %vm5211, %v5874, %v5876
    %v5882 = vsel %vm5211, %v5878, %v5880
    %v5887 = vmax.f32 %v5869, %v5881
    %v5888 = vmax.f32 %v5870, %v5876
    %v5889 = vmax.f32 %v5871, %v5882
    %v5890 = vmax.f32 %v5872, %v5880
    %5891 = vrot.lane.b32.xlu0 %v5847, 120
    %v5892 = vpop.permute.xlu0 %5891
    %5893 = vrot.lane.b32.xlu0 %v5848, 120
    %v5894 = vpop.permute.xlu0 %5893
    %5895 = vrot.lane.b32.xlu0 %v5849, 120
    %v5896 = vpop.permute.xlu0 %5895
    %5897 = vrot.lane.b32.xlu0 %v5850, 120
    %v5898 = vpop.permute.xlu0 %5897
    %v5899 = vsel %vm5312, %v5892, %v5894
    %v5900 = vsel %vm5312, %v5896, %v5898
    %v5905 = vmax.f32 %v5887, %v5899
    %v5906 = vmax.f32 %v5888, %v5894
    %v5907 = vmax.f32 %v5889, %v5900
    %v5908 = vmax.f32 %v5890, %v5898
    %v5909 = vld [vmem:[#allocation10] sm:$0xff]
    %v5910 = vld [vmem:[#allocation10 + $0x8] sm:$0xff]
    %v5911 = vld [vmem:[#allocation10 + $0x10] sm:$0xff]
    %v5912 = vld [vmem:[#allocation10 + $0x18] sm:$0xff]
    %v5913 = vld [vmem:[#allocation10 + $0x20] sm:$0xff]
    %v5914 = vld [vmem:[#allocation10 + $0x28] sm:$0xff]
    %v5915 = vld [vmem:[#allocation10 + $0x30] sm:$0xff]
    %v5916 = vld [vmem:[#allocation10 + $0x38] sm:$0xff]
    %v5917 = vld [vmem:[#allocation10 + $0x40] sm:$0xff]
    %v5918 = vld [vmem:[#allocation10 + $0x48] sm:$0xff]
    %v5919 = vld [vmem:[#allocation10 + $0x50] sm:$0xff]
    %v5920 = vld [vmem:[#allocation10 + $0x58] sm:$0xff]
    %v5921 = vld [vmem:[#allocation10 + $0x60] sm:$0xff]
    %v5922 = vld [vmem:[#allocation10 + $0x68] sm:$0xff]
    %v5923 = vld [vmem:[#allocation10 + $0x70] sm:$0xff]
    %v5924 = vld [vmem:[#allocation10 + $0x78] sm:$0xff]
    %v5925 = vld [vmem:[#allocation10 + $0x80] sm:$0xff]
    %v5926 = vld [vmem:[#allocation10 + $0x88] sm:$0xff]
    %v5927 = vld [vmem:[#allocation10 + $0x90] sm:$0xff]
    %v5928 = vld [vmem:[#allocation10 + $0x98] sm:$0xff]
    %v5929 = vld [vmem:[#allocation10 + $0xa0] sm:$0xff]
    %v5930 = vld [vmem:[#allocation10 + $0xa8] sm:$0xff]
    %v5931 = vld [vmem:[#allocation10 + $0xb0] sm:$0xff]
    %v5932 = vld [vmem:[#allocation10 + $0xb8] sm:$0xff]
    %v5933 = vld [vmem:[#allocation10 + $0xc0] sm:$0xff]
    %v5934 = vld [vmem:[#allocation10 + $0xc8] sm:$0xff]
    %v5935 = vld [vmem:[#allocation10 + $0xd0] sm:$0xff]
    %v5936 = vld [vmem:[#allocation10 + $0xd8] sm:$0xff]
    %v5937 = vld [vmem:[#allocation10 + $0xe0] sm:$0xff]
    %v5938 = vld [vmem:[#allocation10 + $0xe8] sm:$0xff]
    %v5939 = vld [vmem:[#allocation10 + $0xf0] sm:$0xff]
    %v5940 = vld [vmem:[#allocation10 + $0xf8] sm:$0xff]
    %v5941 = vld [vmem:[#allocation10 + $0x100] sm:$0xff]
    %v5942 = vld [vmem:[#allocation10 + $0x108] sm:$0xff]
    %v5943 = vld [vmem:[#allocation10 + $0x110] sm:$0xff]
    %v5944 = vld [vmem:[#allocation10 + $0x118] sm:$0xff]
    %v5945 = vld [vmem:[#allocation10 + $0x120] sm:$0xff]
    %v5946 = vld [vmem:[#allocation10 + $0x128] sm:$0xff]
    %v5947 = vld [vmem:[#allocation10 + $0x130] sm:$0xff]
    %v5948 = vld [vmem:[#allocation10 + $0x138] sm:$0xff]
    %v5949 = vld [vmem:[#allocation10 + $0x140] sm:$0xff]
    %v5950 = vld [vmem:[#allocation10 + $0x148] sm:$0xff]
    %v5951 = vld [vmem:[#allocation10 + $0x150] sm:$0xff]
    %v5952 = vld [vmem:[#allocation10 + $0x158] sm:$0xff]
    %v5953 = vld [vmem:[#allocation10 + $0x160] sm:$0xff]
    %v5954 = vld [vmem:[#allocation10 + $0x168] sm:$0xff]
    %v5955 = vld [vmem:[#allocation10 + $0x170] sm:$0xff]
    %v5956 = vld [vmem:[#allocation10 + $0x178] sm:$0xff]
    %v5957 = vld [vmem:[#allocation10 + $0x180] sm:$0xff]
    %v5958 = vld [vmem:[#allocation10 + $0x188] sm:$0xff]
    %v5959 = vld [vmem:[#allocation10 + $0x190] sm:$0xff]
    %v5960 = vld [vmem:[#allocation10 + $0x198] sm:$0xff]
    %v5961 = vld [vmem:[#allocation10 + $0x1a0] sm:$0x3]
    %v5962 = vld [vmem:[#allocation10 + $0x1a8] sm:$0x3]
    %vm5963 = vcmask 670720
    %v5965 = vsel %vm5963, %v5906, 0
    %v5968 = vsel %vm5963, %v5908, 0
    %vm5970 = vcmask 1041408
    %v5972 = vsel %vm5970, %v5961, 0
    %v5975 = vsel %vm5970, %v5962, 0
    %5977 = vmatprep.subr.mxu0 %v5910
    %5978 = vmatpush1.msra.mxu0 %v5909
    %5979 = vmatprep.subr.mxu0 %v5912
    %5980 = vmatpush1.msra.mxu0 %v5911
    %5981 = vmatprep.subr.mxu0 %v5914
    %5982 = vmatpush1.msra.mxu0 %v5913
    %5983 = vmatprep.subr.mxu0 %v5916
    %5984 = vmatpush1.msra.mxu0 %v5915
    %5985 = vmatprep.subr.mxu0 %v5918
    %5986 = vmatpush1.msra.mxu0 %v5917
    %5987 = vmatprep.subr.mxu0 %v5920
    %5988 = vmatpush1.msra.mxu0 %v5919
    %5989 = vmatprep.subr.mxu0 %v5922
    %5990 = vmatpush1.msra.mxu0 %v5921
    %5991 = vmatprep.subr.mxu0 %v5924
    %5992 = vmatpush1.msra.mxu0 %v5923
    %5993 = vmatprep.subr.mxu0 %v5926
    %5994 = vmatpush1.msra.mxu0 %v5925
    %5995 = vmatprep.subr.mxu0 %v5928
    %5996 = vmatpush1.msra.mxu0 %v5927
    %5997 = vmatprep.subr.mxu0 %v5930
    %5998 = vmatpush1.msra.mxu0 %v5929
    %5999 = vmatprep.subr.mxu0 %v5932
    %6000 = vmatpush1.msra.mxu0 %v5931
    %6001 = vmatprep.subr.mxu0 %v5934
    %6002 = vmatpush1.msra.mxu0 %v5933
    %6003 = vmatprep.subr.mxu0 %v5936
    %6004 = vmatpush1.msra.mxu0 %v5935
    %6005 = vmatprep.subr.mxu0 %v5938
    %6006 = vmatpush1.msra.mxu0 %v5937
    %6007 = vmatprep.subr.mxu0 %v5940
    %6008 = vmatpush1.msra.mxu0 %v5939
    %6009 = vmatprep.subr.mxu0 %v5942
    %6010 = vmatpush1.msra.mxu0 %v5941
    %6011 = vmatprep.subr.mxu0 %v5944
    %6012 = vmatpush1.msra.mxu0 %v5943
    %6013 = vmatprep.subr.mxu0 %v5946
    %6014 = vmatpush1.msra.mxu0 %v5945
    %6015 = vmatprep.subr.mxu0 %v5948
    %6016 = vmatpush1.msra.mxu0 %v5947
    %6017 = vmatprep.subr.mxu0 %v5950
    %6018 = vmatpush1.msra.mxu0 %v5949
    %6019 = vmatprep.subr.mxu0 %v5952
    %6020 = vmatpush1.msra.mxu0 %v5951
    %6021 = vmatprep.subr.mxu0 %v5954
    %6022 = vmatpush1.msra.mxu0 %v5953
    %6023 = vmatprep.subr.mxu0 %v5956
    %6024 = vmatpush1.msra.mxu0 %v5955
    %6025 = vmatprep.subr.mxu0 %v5958
    %6026 = vmatpush1.msra.mxu0 %v5957
    %6027 = vmatprep.subr.mxu0 %v5960
    %6028 = vmatpush1.msra.mxu0 %v5959
    %6029 = vmatprep.subr.mxu0 %v5975
    %6030 = vmatpush1.msra.mxu0 %v5972
    %6031 = vmatprep.subr.mxu0 0.0
    %6032 = vmatpush1.msra.mxu0 0.0
    %6033 = vmatprep.subr.mxu0 0.0
    %6034 = vmatpush1.msra.mxu0 0.0
    %6035 = vmatprep.subr.mxu0 0.0
    %6036 = vmatpush1.msra.mxu0 0.0
    %6037 = vmatprep.subr.mxu0 0.0
    %6038 = vmatpush1.msra.mxu0 0.0
    %6039 = vmatprep.subr.mxu0 0.0
    %6040 = vmatpush1.msra.mxu0 0.0
    %6041 = vmatprep.mubr.f32.mxu0 %v5965
    %6042 = vmatmul.mubr.f32.gmra.mrb[0].mxu0 %v5905
    %v6043 = vpop.f32.mrb[0].mxu0
    %v6044 = vadd.f32 0.0, %v6043
    %v6045 = vpop.f32.mrb[0].mxu0
    %v6046 = vadd.f32 0.0, %v6045
    %6047 = vmatprep.mubr.f32.mxu0 %v5968
    %6048 = vmatmul.mubr.f32.gmra.mrb[0].mxu0 %v5907
    %v6049 = vpop.f32.mrb[0].mxu0
    %v6050 = vadd.f32 0.0, %v6049
    %v6051 = vpop.f32.mrb[0].mxu0
    %v6052 = vadd.f32 0.0, %v6051
    %6053 = vdwg.mxu0
    %6054 = vst [vmem:[#allocation5] sm:$0xff] %v6044
    %6055 = vst [vmem:[#allocation5 + $0x8] sm:$0xff] %v6046
    %6056 = vst [vmem:[#allocation5 + $0x10] sm:$0xff] %v6050
    %6057 = vst [vmem:[#allocation5 + $0x18] sm:$0xff] %v6052
    %v6058 = vld [vmem:[%s9] sm:$0xff]
    %v6059 = vld [vmem:[%s9 + $0x8] sm:$0xff]
    %v6060 = vld [vmem:[%s9 + $0x10] sm:$0xff]
    %v6061 = vld [vmem:[%s9 + $0x18] sm:$0xff]
    %v6062 = vld [vmem:[#allocation5] sm:$0xff]
    %v6063 = vld [vmem:[#allocation5 + $0x10] sm:$0xff]
    %s6064 = scalar_lea.vmem %s9, 32
    %v6065 = vld [vmem:[%s6064] sm:$0xff]
    %v6066 = vld [vmem:[%s6064 + $0x8] sm:$0xff]
    %v6067 = vld [vmem:[%s6064 + $0x10] sm:$0xff]
    %v6068 = vld [vmem:[%s6064 + $0x18] sm:$0xff]
    %v6069 = vld [vmem:[#allocation5] sm:$0xff]
    %v6070 = vld [vmem:[#allocation5 + $0x8] sm:$0xff]
    %v6071 = vld [vmem:[#allocation5 + $0x10] sm:$0xff]
    %v6072 = vld [vmem:[#allocation5 + $0x18] sm:$0xff]
    %6077 = vrot.lane.b32.xlu0 %v6069, 127
    %v6078 = vpop.permute.xlu0 %6077
    %6079 = vrot.lane.b32.xlu0 %v6070, 127
    %v6080 = vpop.permute.xlu0 %6079
    %6081 = vrot.lane.b32.xlu0 %v6071, 127
    %v6082 = vpop.permute.xlu0 %6081
    %6083 = vrot.lane.b32.xlu0 %v6072, 127
    %v6084 = vpop.permute.xlu0 %6083
    %v6085 = vsel %vm179, %v6078, %v6080
    %v6086 = vsel %vm179, %v6082, %v6084
    %vm6089 = vcmask 130048
    %v6091 = vsel %vm6089, %v6065, 0
    %v6094 = vsel %vm6089, %v6066, 0
    %v6097 = vsel %vm6089, %v6067, 0
    %v6100 = vsel %vm6089, %v6068, 0
    %6102 = vmatprep.subr.mxu0 0.0
    %6103 = vmatpush1.msra.mxu0 %v6085
    %6104 = vmatprep.subr.mxu0 0.0
    %6105 = vmatpush1.msra.mxu0 %v6086
    %6106 = vmatprep.subr.mxu0 0.0
    %6107 = vmatpush1.msra.mxu0 0.0
    %6108 = vmatprep.subr.mxu0 0.0
    %6109 = vmatpush1.msra.mxu0 0.0
    %6110 = vmatprep.subr.mxu0 0.0
    %6111 = vmatpush1.msra.mxu0 0.0
    %6112 = vmatprep.subr.mxu0 0.0
    %6113 = vmatpush1.msra.mxu0 0.0
    %6114 = vmatprep.subr.mxu0 0.0
    %6115 = vmatpush1.msra.mxu0 0.0
    %6116 = vmatprep.subr.mxu0 0.0
    %6117 = vmatpush1.msra.mxu0 0.0
    %6118 = vmatprep.subr.mxu0 0.0
    %6119 = vmatpush1.msra.mxu0 0.0
    %6120 = vmatprep.subr.mxu0 0.0
    %6121 = vmatpush1.msra.mxu0 0.0
    %6122 = vmatprep.subr.mxu0 0.0
    %6123 = vmatpush1.msra.mxu0 0.0
    %6124 = vmatprep.subr.mxu0 0.0
    %6125 = vmatpush1.msra.mxu0 0.0
    %6126 = vmatprep.subr.mxu0 0.0
    %6127 = vmatpush1.msra.mxu0 0.0
    %6128 = vmatprep.subr.mxu0 0.0
    %6129 = vmatpush1.msra.mxu0 0.0
    %6130 = vmatprep.subr.mxu0 0.0
    %6131 = vmatpush1.msra.mxu0 0.0
    %6132 = vmatprep.subr.mxu0 0.0
    %6133 = vmatpush1.msra.mxu0 0.0
    %6134 = vmatprep.subr.mxu0 0.0
    %6135 = vmatpush1.msra.mxu0 0.0
    %6136 = vmatprep.subr.mxu0 0.0
    %6137 = vmatpush1.msra.mxu0 0.0
    %6138 = vmatprep.subr.mxu0 0.0
    %6139 = vmatpush1.msra.mxu0 0.0
    %6140 = vmatprep.subr.mxu0 0.0
    %6141 = vmatpush1.msra.mxu0 0.0
    %6142 = vmatprep.subr.mxu0 0.0
    %6143 = vmatpush1.msra.mxu0 0.0
    %6144 = vmatprep.subr.mxu0 0.0
    %6145 = vmatpush1.msra.mxu0 0.0
    %6146 = vmatprep.subr.mxu0 0.0
    %6147 = vmatpush1.msra.mxu0 0.0
    %6148 = vmatprep.subr.mxu0 0.0
    %6149 = vmatpush1.msra.mxu0 0.0
    %6150 = vmatprep.subr.mxu0 0.0
    %6151 = vmatpush1.msra.mxu0 0.0
    %6152 = vmatprep.subr.mxu0 0.0
    %6153 = vmatpush1.msra.mxu0 0.0
    %6154 = vmatprep.subr.mxu0 0.0
    %6155 = vmatpush1.msra.mxu0 0.0
    %6156 = vmatprep.subr.mxu0 0.0
    %6157 = vmatpush1.msra.mxu0 0.0
    %6158 = vmatprep.subr.mxu0 0.0
    %6159 = vmatpush1.msra.mxu0 0.0
    %6160 = vmatprep.subr.mxu0 0.0
    %6161 = vmatpush1.msra.mxu0 0.0
    %6162 = vmatprep.subr.mxu0 0.0
    %6163 = vmatpush1.msra.mxu0 0.0
    %6164 = vmatprep.subr.mxu0 0.0
    %6165 = vmatpush1.msra.mxu0 0.0
    %6166 = vmatprep.mubr.f32.mxu0 0.0
    %6167 = vmatmul.mubr.f32.gmra.mrb[0].mxu0 %v6091
    %v6168 = vpop.f32.mrb[0].mxu0
    %v6169 = vadd.f32 0.0, %v6168
    %v6170 = vpop.f32.mrb[0].mxu0
    %6171 = vmatprep.mubr.f32.mxu0 0.0
    %6172 = vmatmul.mubr.f32.gmra.mrb[0].mxu0 %v6094
    %v6173 = vpop.f32.mrb[0].mxu0
    %v6174 = vadd.f32 0.0, %v6173
    %v6175 = vpop.f32.mrb[0].mxu0
    %6176 = vmatprep.mubr.f32.mxu0 0.0
    %6177 = vmatmul.mubr.f32.gmra.mrb[0].mxu0 %v6097
    %v6178 = vpop.f32.mrb[0].mxu0
    %v6179 = vadd.f32 0.0, %v6178
    %v6180 = vpop.f32.mrb[0].mxu0
    %6181 = vmatprep.mubr.f32.mxu0 0.0
    %6182 = vmatmul.mubr.f32.gmra.mrb[0].mxu0 %v6100
    %v6183 = vpop.f32.mrb[0].mxu0
    %v6184 = vadd.f32 0.0, %v6183
    %v6185 = vpop.f32.mrb[0].mxu0
    %6186 = vdwg.mxu0
    %v6188 = vsel %vm6089, %v6058, 0
    %v6191 = vsel %vm6089, %v6059, 0
    %v6194 = vsel %vm6089, %v6060, 0
    %v6197 = vsel %vm6089, %v6061, 0
    %6199 = vmatprep.subr.mxu0 0.0
    %6200 = vmatpush1.msra.mxu0 %v6062
    %6201 = vmatprep.subr.mxu0 0.0
    %6202 = vmatpush1.msra.mxu0 %v6063
    %6203 = vmatprep.subr.mxu0 0.0
    %6204 = vmatpush1.msra.mxu0 0.0
    %6205 = vmatprep.subr.mxu0 0.0
    %6206 = vmatpush1.msra.mxu0 0.0
    %6207 = vmatprep.subr.mxu0 0.0
    %6208 = vmatpush1.msra.mxu0 0.0
    %6209 = vmatprep.subr.mxu0 0.0
    %6210 = vmatpush1.msra.mxu0 0.0
    %6211 = vmatprep.subr.mxu0 0.0
    %6212 = vmatpush1.msra.mxu0 0.0
    %6213 = vmatprep.subr.mxu0 0.0
    %6214 = vmatpush1.msra.mxu0 0.0
    %6215 = vmatprep.subr.mxu0 0.0
    %6216 = vmatpush1.msra.mxu0 0.0
    %6217 = vmatprep.subr.mxu0 0.0
    %6218 = vmatpush1.msra.mxu0 0.0
    %6219 = vmatprep.subr.mxu0 0.0
    %6220 = vmatpush1.msra.mxu0 0.0
    %6221 = vmatprep.subr.mxu0 0.0
    %6222 = vmatpush1.msra.mxu0 0.0
    %6223 = vmatprep.subr.mxu0 0.0
    %6224 = vmatpush1.msra.mxu0 0.0
    %6225 = vmatprep.subr.mxu0 0.0
    %6226 = vmatpush1.msra.mxu0 0.0
    %6227 = vmatprep.subr.mxu0 0.0
    %6228 = vmatpush1.msra.mxu0 0.0
    %6229 = vmatprep.subr.mxu0 0.0
    %6230 = vmatpush1.msra.mxu0 0.0
    %6231 = vmatprep.subr.mxu0 0.0
    %6232 = vmatpush1.msra.mxu0 0.0
    %6233 = vmatprep.subr.mxu0 0.0
    %6234 = vmatpush1.msra.mxu0 0.0
    %6235 = vmatprep.subr.mxu0 0.0
    %6236 = vmatpush1.msra.mxu0 0.0
    %6237 = vmatprep.subr.mxu0 0.0
    %6238 = vmatpush1.msra.mxu0 0.0
    %6239 = vmatprep.subr.mxu0 0.0
    %6240 = vmatpush1.msra.mxu0 0.0
    %6241 = vmatprep.subr.mxu0 0.0
    %6242 = vmatpush1.msra.mxu0 0.0
    %6243 = vmatprep.subr.mxu0 0.0
    %6244 = vmatpush1.msra.mxu0 0.0
    %6245 = vmatprep.subr.mxu0 0.0
    %6246 = vmatpush1.msra.mxu0 0.0
    %6247 = vmatprep.subr.mxu0 0.0
    %6248 = vmatpush1.msra.mxu0 0.0
    %6249 = vmatprep.subr.mxu0 0.0
    %6250 = vmatpush1.msra.mxu0 0.0
    %6251 = vmatprep.subr.mxu0 0.0
    %6252 = vmatpush1.msra.mxu0 0.0
    %6253 = vmatprep.subr.mxu0 0.0
    %6254 = vmatpush1.msra.mxu0 0.0
    %6255 = vmatprep.subr.mxu0 0.0
    %6256 = vmatpush1.msra.mxu0 0.0
    %6257 = vmatprep.subr.mxu0 0.0
    %6258 = vmatpush1.msra.mxu0 0.0
    %6259 = vmatprep.subr.mxu0 0.0
    %6260 = vmatpush1.msra.mxu0 0.0
    %6261 = vmatprep.subr.mxu0 0.0
    %6262 = vmatpush1.msra.mxu0 0.0
    %6263 = vmatprep.mubr.f32.mxu0 0.0
    %6264 = vmatmul.mubr.f32.gmra.mrb[0].mxu0 %v6188
    %v6265 = vpop.f32.mrb[0].mxu0
    %v6266 = vadd.f32 %v6169, %v6265
    %v6267 = vpop.f32.mrb[0].mxu0
    %6268 = vmatprep.mubr.f32.mxu0 0.0
    %6269 = vmatmul.mubr.f32.gmra.mrb[0].mxu0 %v6191
    %v6270 = vpop.f32.mrb[0].mxu0
    %v6271 = vadd.f32 %v6174, %v6270
    %v6272 = vpop.f32.mrb[0].mxu0
    %6273 = vmatprep.mubr.f32.mxu0 0.0
    %6274 = vmatmul.mubr.f32.gmra.mrb[0].mxu0 %v6194
    %v6275 = vpop.f32.mrb[0].mxu0
    %v6276 = vadd.f32 %v6179, %v6275
    %v6277 = vpop.f32.mrb[0].mxu0
    %6278 = vmatprep.mubr.f32.mxu0 0.0
    %6279 = vmatmul.mubr.f32.gmra.mrb[0].mxu0 %v6197
    %v6280 = vpop.f32.mrb[0].mxu0
    %v6281 = vadd.f32 %v6184, %v6280
    %v6282 = vpop.f32.mrb[0].mxu0
    %6283 = vdwg.mxu0
    %s6284 = scalar_lea.vmem %s9, 64
    %v6285 = vld [vmem:[%s6284] sm:$0xff]
    %v6286 = vld [vmem:[%s6284 + $0x8] sm:$0xff]
    %v6287 = vld [vmem:[%s6284 + $0x10] sm:$0xff]
    %v6288 = vld [vmem:[%s6284 + $0x18] sm:$0xff]
    %6289 = vrot.lane.b32.xlu0 %v6069, 126
    %v6290 = vpop.permute.xlu0 %6289
    %6291 = vrot.lane.b32.xlu0 %v6070, 126
    %v6292 = vpop.permute.xlu0 %6291
    %6293 = vrot.lane.b32.xlu0 %v6071, 126
    %v6294 = vpop.permute.xlu0 %6293
    %6295 = vrot.lane.b32.xlu0 %v6072, 126
    %v6296 = vpop.permute.xlu0 %6295
    %v6297 = vsel %vm935, %v6290, %v6292
    %v6298 = vsel %vm935, %v6294, %v6296
    %v6302 = vsel %vm6089, %v6285, 0
    %v6305 = vsel %vm6089, %v6286, 0
    %v6308 = vsel %vm6089, %v6287, 0
    %v6311 = vsel %vm6089, %v6288, 0
    %6313 = vmatprep.subr.mxu0 0.0
    %6314 = vmatpush1.msra.mxu0 %v6297
    %6315 = vmatprep.subr.mxu0 0.0
    %6316 = vmatpush1.msra.mxu0 %v6298
    %6317 = vmatprep.subr.mxu0 0.0
    %6318 = vmatpush1.msra.mxu0 0.0
    %6319 = vmatprep.subr.mxu0 0.0
    %6320 = vmatpush1.msra.mxu0 0.0
    %6321 = vmatprep.subr.mxu0 0.0
    %6322 = vmatpush1.msra.mxu0 0.0
    %6323 = vmatprep.subr.mxu0 0.0
    %6324 = vmatpush1.msra.mxu0 0.0
    %6325 = vmatprep.subr.mxu0 0.0
    %6326 = vmatpush1.msra.mxu0 0.0
    %6327 = vmatprep.subr.mxu0 0.0
    %6328 = vmatpush1.msra.mxu0 0.0
    %6329 = vmatprep.subr.mxu0 0.0
    %6330 = vmatpush1.msra.mxu0 0.0
    %6331 = vmatprep.subr.mxu0 0.0
    %6332 = vmatpush1.msra.mxu0 0.0
    %6333 = vmatprep.subr.mxu0 0.0
    %6334 = vmatpush1.msra.mxu0 0.0
    %6335 = vmatprep.subr.mxu0 0.0
    %6336 = vmatpush1.msra.mxu0 0.0
    %6337 = vmatprep.subr.mxu0 0.0
    %6338 = vmatpush1.msra.mxu0 0.0
    %6339 = vmatprep.subr.mxu0 0.0
    %6340 = vmatpush1.msra.mxu0 0.0
    %6341 = vmatprep.subr.mxu0 0.0
    %6342 = vmatpush1.msra.mxu0 0.0
    %6343 = vmatprep.subr.mxu0 0.0
    %6344 = vmatpush1.msra.mxu0 0.0
    %6345 = vmatprep.subr.mxu0 0.0
    %6346 = vmatpush1.msra.mxu0 0.0
    %6347 = vmatprep.subr.mxu0 0.0
    %6348 = vmatpush1.msra.mxu0 0.0
    %6349 = vmatprep.subr.mxu0 0.0
    %6350 = vmatpush1.msra.mxu0 0.0
    %6351 = vmatprep.subr.mxu0 0.0
    %6352 = vmatpush1.msra.mxu0 0.0
    %6353 = vmatprep.subr.mxu0 0.0
    %6354 = vmatpush1.msra.mxu0 0.0
    %6355 = vmatprep.subr.mxu0 0.0
    %6356 = vmatpush1.msra.mxu0 0.0
    %6357 = vmatprep.subr.mxu0 0.0
    %6358 = vmatpush1.msra.mxu0 0.0
    %6359 = vmatprep.subr.mxu0 0.0
    %6360 = vmatpush1.msra.mxu0 0.0
    %6361 = vmatprep.subr.mxu0 0.0
    %6362 = vmatpush1.msra.mxu0 0.0
    %6363 = vmatprep.subr.mxu0 0.0
    %6364 = vmatpush1.msra.mxu0 0.0
    %6365 = vmatprep.subr.mxu0 0.0
    %6366 = vmatpush1.msra.mxu0 0.0
    %6367 = vmatprep.subr.mxu0 0.0
    %6368 = vmatpush1.msra.mxu0 0.0
    %6369 = vmatprep.subr.mxu0 0.0
    %6370 = vmatpush1.msra.mxu0 0.0
    %6371 = vmatprep.subr.mxu0 0.0
    %6372 = vmatpush1.msra.mxu0 0.0
    %6373 = vmatprep.subr.mxu0 0.0
    %6374 = vmatpush1.msra.mxu0 0.0
    %6375 = vmatprep.subr.mxu0 0.0
    %6376 = vmatpush1.msra.mxu0 0.0
    %6377 = vmatprep.mubr.f32.mxu0 0.0
    %6378 = vmatmul.mubr.f32.gmra.mrb[0].mxu0 %v6302
    %v6379 = vpop.f32.mrb[0].mxu0
    %v6380 = vadd.f32 0.0, %v6379
    %v6381 = vpop.f32.mrb[0].mxu0
    %6382 = vmatprep.mubr.f32.mxu0 0.0
    %6383 = vmatmul.mubr.f32.gmra.mrb[0].mxu0 %v6305
    %v6384 = vpop.f32.mrb[0].mxu0
    %v6385 = vadd.f32 0.0, %v6384
    %v6386 = vpop.f32.mrb[0].mxu0
    %6387 = vmatprep.mubr.f32.mxu0 0.0
    %6388 = vmatmul.mubr.f32.gmra.mrb[0].mxu0 %v6308
    %v6389 = vpop.f32.mrb[0].mxu0
    %v6390 = vadd.f32 0.0, %v6389
    %v6391 = vpop.f32.mrb[0].mxu0
    %6392 = vmatprep.mubr.f32.mxu0 0.0
    %6393 = vmatmul.mubr.f32.gmra.mrb[0].mxu0 %v6311
    %v6394 = vpop.f32.mrb[0].mxu0
    %v6395 = vadd.f32 0.0, %v6394
    %v6396 = vpop.f32.mrb[0].mxu0
    %6397 = vdwg.mxu0
    %v6398 = vadd.f32 %v6266, %v6380
    %v6399 = vadd.f32 %v6271, %v6385
    %v6400 = vadd.f32 %v6276, %v6390
    %v6401 = vadd.f32 %v6281, %v6395
    %s6402 = scalar_lea.vmem %s9, 96
    %v6403 = vld [vmem:[%s6402] sm:$0xff]
    %v6404 = vld [vmem:[%s6402 + $0x8] sm:$0xff]
    %v6405 = vld [vmem:[%s6402 + $0x10] sm:$0xff]
    %v6406 = vld [vmem:[%s6402 + $0x18] sm:$0xff]
    %6407 = vrot.lane.b32.xlu0 %v6069, 125
    %v6408 = vpop.permute.xlu0 %6407
    %6409 = vrot.lane.b32.xlu0 %v6070, 125
    %v6410 = vpop.permute.xlu0 %6409
    %6411 = vrot.lane.b32.xlu0 %v6071, 125
    %v6412 = vpop.permute.xlu0 %6411
    %6413 = vrot.lane.b32.xlu0 %v6072, 125
    %v6414 = vpop.permute.xlu0 %6413
    %vm6415 = vcmask 1022976
    %v6416 = vsel %vm6415, %v6408, %v6410
    %v6417 = vsel %vm6415, %v6412, %v6414
    %v6421 = vsel %vm6089, %v6403, 0
    %v6424 = vsel %vm6089, %v6404, 0
    %v6427 = vsel %vm6089, %v6405, 0
    %v6430 = vsel %vm6089, %v6406, 0
    %6432 = vmatprep.subr.mxu0 0.0
    %6433 = vmatpush1.msra.mxu0 %v6416
    %6434 = vmatprep.subr.mxu0 0.0
    %6435 = vmatpush1.msra.mxu0 %v6417
    %6436 = vmatprep.subr.mxu0 0.0
    %6437 = vmatpush1.msra.mxu0 0.0
    %6438 = vmatprep.subr.mxu0 0.0
    %6439 = vmatpush1.msra.mxu0 0.0
    %6440 = vmatprep.subr.mxu0 0.0
    %6441 = vmatpush1.msra.mxu0 0.0
    %6442 = vmatprep.subr.mxu0 0.0
    %6443 = vmatpush1.msra.mxu0 0.0
    %6444 = vmatprep.subr.mxu0 0.0
    %6445 = vmatpush1.msra.mxu0 0.0
    %6446 = vmatprep.subr.mxu0 0.0
    %6447 = vmatpush1.msra.mxu0 0.0
    %6448 = vmatprep.subr.mxu0 0.0
    %6449 = vmatpush1.msra.mxu0 0.0
    %6450 = vmatprep.subr.mxu0 0.0
    %6451 = vmatpush1.msra.mxu0 0.0
    %6452 = vmatprep.subr.mxu0 0.0
    %6453 = vmatpush1.msra.mxu0 0.0
    %6454 = vmatprep.subr.mxu0 0.0
    %6455 = vmatpush1.msra.mxu0 0.0
    %6456 = vmatprep.subr.mxu0 0.0
    %6457 = vmatpush1.msra.mxu0 0.0
    %6458 = vmatprep.subr.mxu0 0.0
    %6459 = vmatpush1.msra.mxu0 0.0
    %6460 = vmatprep.subr.mxu0 0.0
    %6461 = vmatpush1.msra.mxu0 0.0
    %6462 = vmatprep.subr.mxu0 0.0
    %6463 = vmatpush1.msra.mxu0 0.0
    %6464 = vmatprep.subr.mxu0 0.0
    %6465 = vmatpush1.msra.mxu0 0.0
    %6466 = vmatprep.subr.mxu0 0.0
    %6467 = vmatpush1.msra.mxu0 0.0
    %6468 = vmatprep.subr.mxu0 0.0
    %6469 = vmatpush1.msra.mxu0 0.0
    %6470 = vmatprep.subr.mxu0 0.0
    %6471 = vmatpush1.msra.mxu0 0.0
    %6472 = vmatprep.subr.mxu0 0.0
    %6473 = vmatpush1.msra.mxu0 0.0
    %6474 = vmatprep.subr.mxu0 0.0
    %6475 = vmatpush1.msra.mxu0 0.0
    %6476 = vmatprep.subr.mxu0 0.0
    %6477 = vmatpush1.msra.mxu0 0.0
    %6478 = vmatprep.subr.mxu0 0.0
    %6479 = vmatpush1.msra.mxu0 0.0
    %6480 = vmatprep.subr.mxu0 0.0
    %6481 = vmatpush1.msra.mxu0 0.0
    %6482 = vmatprep.subr.mxu0 0.0
    %6483 = vmatpush1.msra.mxu0 0.0
    %6484 = vmatprep.subr.mxu0 0.0
    %6485 = vmatpush1.msra.mxu0 0.0
    %6486 = vmatprep.subr.mxu0 0.0
    %6487 = vmatpush1.msra.mxu0 0.0
    %6488 = vmatprep.subr.mxu0 0.0
    %6489 = vmatpush1.msra.mxu0 0.0
    %6490 = vmatprep.subr.mxu0 0.0
    %6491 = vmatpush1.msra.mxu0 0.0
    %6492 = vmatprep.subr.mxu0 0.0
    %6493 = vmatpush1.msra.mxu0 0.0
    %6494 = vmatprep.subr.mxu0 0.0
    %6495 = vmatpush1.msra.mxu0 0.0
    %6496 = vmatprep.mubr.f32.mxu0 0.0
    %6497 = vmatmul.mubr.f32.gmra.mrb[0].mxu0 %v6421
    %v6498 = vpop.f32.mrb[0].mxu0
    %v6499 = vadd.f32 0.0, %v6498
    %v6500 = vpop.f32.mrb[0].mxu0
    %6501 = vmatprep.mubr.f32.mxu0 0.0
    %6502 = vmatmul.mubr.f32.gmra.mrb[0].mxu0 %v6424
    %v6503 = vpop.f32.mrb[0].mxu0
    %v6504 = vadd.f32 0.0, %v6503
    %v6505 = vpop.f32.mrb[0].mxu0
    %6506 = vmatprep.mubr.f32.mxu0 0.0
    %6507 = vmatmul.mubr.f32.gmra.mrb[0].mxu0 %v6427
    %v6508 = vpop.f32.mrb[0].mxu0
    %v6509 = vadd.f32 0.0, %v6508
    %v6510 = vpop.f32.mrb[0].mxu0
    %6511 = vmatprep.mubr.f32.mxu0 0.0
    %6512 = vmatmul.mubr.f32.gmra.mrb[0].mxu0 %v6430
    %v6513 = vpop.f32.mrb[0].mxu0
    %v6514 = vadd.f32 0.0, %v6513
    %v6515 = vpop.f32.mrb[0].mxu0
    %6516 = vdwg.mxu0
    %v6517 = vadd.f32 %v6398, %v6499
    %v6518 = vadd.f32 %v6399, %v6504
    %v6519 = vadd.f32 %v6400, %v6509
    %v6520 = vadd.f32 %v6401, %v6514
    %v6521 = vld [vmem:[%s10] sm:$0xff]
    %v6522 = vld [vmem:[%s10 + $0x8] sm:$0xff]
    %v6523 = vld [vmem:[%s10 + $0x10] sm:$0xff]
    %v6524 = vld [vmem:[%s10 + $0x18] sm:$0xff]
    %6526 = vset.pattern.permute.xlu0 0
    %6527 = vperm.xlu0 %6526, %v6521
    %v6528 = vpop.permute.xlu0 %6527
    %6531 = vset.pattern.permute.xlu0 0
    %6532 = vperm.xlu0 %6531, %v6522
    %v6533 = vpop.permute.xlu0 %6532
    %6536 = vset.pattern.permute.xlu0 0
    %6537 = vperm.xlu0 %6536, %v6523
    %v6538 = vpop.permute.xlu0 %6537
    %6541 = vset.pattern.permute.xlu0 0
    %6542 = vperm.xlu0 %6541, %v6524
    %v6543 = vpop.permute.xlu0 %6542
    %v6545 = vmul.f32 %v6517, %v6528
    %v6546 = vmul.f32 %v6518, %v6533
    %v6547 = vmul.f32 %v6519, %v6538
    %v6548 = vmul.f32 %v6520, %v6543
    %v6549 = vld [vmem:[%s11] sm:$0xff]
    %v6550 = vld [vmem:[%s11 + $0x8] sm:$0xff]
    %v6551 = vld [vmem:[%s11 + $0x10] sm:$0xff]
    %v6552 = vld [vmem:[%s11 + $0x18] sm:$0xff]
    %6554 = vset.pattern.permute.xlu0 0
    %6555 = vperm.xlu0 %6554, %v6549
    %v6556 = vpop.permute.xlu0 %6555
    %6559 = vset.pattern.permute.xlu0 0
    %6560 = vperm.xlu0 %6559, %v6550
    %v6561 = vpop.permute.xlu0 %6560
    %6564 = vset.pattern.permute.xlu0 0
    %6565 = vperm.xlu0 %6564, %v6551
    %v6566 = vpop.permute.xlu0 %6565
    %6569 = vset.pattern.permute.xlu0 0
    %6570 = vperm.xlu0 %6569, %v6552
    %v6571 = vpop.permute.xlu0 %6570
    %v6573 = vadd.f32 %v6545, %v6556
    %v6574 = vadd.f32 %v6546, %v6561
    %v6575 = vadd.f32 %v6547, %v6566
    %v6576 = vadd.f32 %v6548, %v6571
    %v6577 = vmax.f32 %v6573, 0.0
    %v6578 = vmax.f32 %v6574, 0.0
    %v6579 = vmax.f32 %v6575, 0.0
    %v6580 = vmax.f32 %v6576, 0.0
    %v6581 = vld [vmem:[%s12] sm:$0xff]
    %v6582 = vld [vmem:[%s12 + $0x8] sm:$0xff]
    %v6583 = vld [vmem:[%s12 + $0x10] sm:$0xff]
    %v6584 = vld [vmem:[%s12 + $0x18] sm:$0xff]
    %v6585 = vld [vmem:[%s12 + $0x20] sm:$0xff]
    %v6586 = vld [vmem:[%s12 + $0x28] sm:$0xff]
    %v6587 = vld [vmem:[%s12 + $0x30] sm:$0xff]
    %v6588 = vld [vmem:[%s12 + $0x38] sm:$0xff]
    %v6589 = vld [vmem:[%s12 + $0x40] sm:$0xff]
    %v6590 = vld [vmem:[%s12 + $0x48] sm:$0xff]
    %v6591 = vld [vmem:[%s12 + $0x50] sm:$0xff]
    %v6592 = vld [vmem:[%s12 + $0x58] sm:$0xff]
    %v6593 = vld [vmem:[%s12 + $0x60] sm:$0xff]
    %v6594 = vld [vmem:[%s12 + $0x68] sm:$0xff]
    %v6595 = vld [vmem:[%s12 + $0x70] sm:$0xff]
    %v6596 = vld [vmem:[%s12 + $0x78] sm:$0xff]
    %6597 = vmatprep.subr.mxu0 0.0
    %6598 = vmatpush1.msra.mxu0 %v6581
    %6599 = vmatprep.subr.mxu0 0.0
    %6600 = vmatpush1.msra.mxu0 %v6582
    %6601 = vmatprep.subr.mxu0 0.0
    %6602 = vmatpush1.msra.mxu0 %v6583
    %6603 = vmatprep.subr.mxu0 0.0
    %6604 = vmatpush1.msra.mxu0 %v6584
    %6605 = vmatprep.subr.mxu0 0.0
    %6606 = vmatpush1.msra.mxu0 %v6585
    %6607 = vmatprep.subr.mxu0 0.0
    %6608 = vmatpush1.msra.mxu0 %v6586
    %6609 = vmatprep.subr.mxu0 0.0
    %6610 = vmatpush1.msra.mxu0 %v6587
    %6611 = vmatprep.subr.mxu0 0.0
    %6612 = vmatpush1.msra.mxu0 %v6588
    %6613 = vmatprep.subr.mxu0 0.0
    %6614 = vmatpush1.msra.mxu0 %v6589
    %6615 = vmatprep.subr.mxu0 0.0
    %6616 = vmatpush1.msra.mxu0 %v6590
    %6617 = vmatprep.subr.mxu0 0.0
    %6618 = vmatpush1.msra.mxu0 %v6591
    %6619 = vmatprep.subr.mxu0 0.0
    %6620 = vmatpush1.msra.mxu0 %v6592
    %6621 = vmatprep.subr.mxu0 0.0
    %6622 = vmatpush1.msra.mxu0 %v6593
    %6623 = vmatprep.subr.mxu0 0.0
    %6624 = vmatpush1.msra.mxu0 %v6594
    %6625 = vmatprep.subr.mxu0 0.0
    %6626 = vmatpush1.msra.mxu0 %v6595
    %6627 = vmatprep.subr.mxu0 0.0
    %6628 = vmatpush1.msra.mxu0 %v6596
    %6629 = vmatprep.subr.mxu0 0.0
    %6630 = vmatpush1.msra.mxu0 0.0
    %6631 = vmatprep.subr.mxu0 0.0
    %6632 = vmatpush1.msra.mxu0 0.0
    %6633 = vmatprep.subr.mxu0 0.0
    %6634 = vmatpush1.msra.mxu0 0.0
    %6635 = vmatprep.subr.mxu0 0.0
    %6636 = vmatpush1.msra.mxu0 0.0
    %6637 = vmatprep.subr.mxu0 0.0
    %6638 = vmatpush1.msra.mxu0 0.0
    %6639 = vmatprep.subr.mxu0 0.0
    %6640 = vmatpush1.msra.mxu0 0.0
    %6641 = vmatprep.subr.mxu0 0.0
    %6642 = vmatpush1.msra.mxu0 0.0
    %6643 = vmatprep.subr.mxu0 0.0
    %6644 = vmatpush1.msra.mxu0 0.0
    %6645 = vmatprep.subr.mxu0 0.0
    %6646 = vmatpush1.msra.mxu0 0.0
    %6647 = vmatprep.subr.mxu0 0.0
    %6648 = vmatpush1.msra.mxu0 0.0
    %6649 = vmatprep.subr.mxu0 0.0
    %6650 = vmatpush1.msra.mxu0 0.0
    %6651 = vmatprep.subr.mxu0 0.0
    %6652 = vmatpush1.msra.mxu0 0.0
    %6653 = vmatprep.subr.mxu0 0.0
    %6654 = vmatpush1.msra.mxu0 0.0
    %6655 = vmatprep.subr.mxu0 0.0
    %6656 = vmatpush1.msra.mxu0 0.0
    %6657 = vmatprep.subr.mxu0 0.0
    %6658 = vmatpush1.msra.mxu0 0.0
    %6659 = vmatprep.subr.mxu0 0.0
    %6660 = vmatpush1.msra.mxu0 0.0
    %6661 = vmatprep.mubr.f32.mxu0 0.0
    %6662 = vmatmul.mubr.f32.gmra.mrb[0].mxu0 %v6577
    %v6663 = vpop.f32.mrb[0].mxu0
    %v6664 = vadd.f32 0.0, %v6663
    %v6665 = vpop.f32.mrb[0].mxu0
    %6666 = vmatprep.mubr.f32.mxu0 0.0
    %6667 = vmatmul.mubr.f32.gmra.mrb[0].mxu0 %v6578
    %v6668 = vpop.f32.mrb[0].mxu0
    %v6669 = vadd.f32 0.0, %v6668
    %v6670 = vpop.f32.mrb[0].mxu0
    %6671 = vmatprep.mubr.f32.mxu0 0.0
    %6672 = vmatmul.mubr.f32.gmra.mrb[0].mxu0 %v6579
    %v6673 = vpop.f32.mrb[0].mxu0
    %v6674 = vadd.f32 0.0, %v6673
    %v6675 = vpop.f32.mrb[0].mxu0
    %6676 = vmatprep.mubr.f32.mxu0 0.0
    %6677 = vmatmul.mubr.f32.gmra.mrb[0].mxu0 %v6580
    %v6678 = vpop.f32.mrb[0].mxu0
    %v6679 = vadd.f32 0.0, %v6678
    %v6680 = vpop.f32.mrb[0].mxu0
    %6681 = vdwg.mxu0
    %v6682 = vld [vmem:[%s13] sm:$0xff]
    %v6683 = vld [vmem:[%s13 + $0x8] sm:$0xff]
    %v6684 = vld [vmem:[%s13 + $0x10] sm:$0xff]
    %v6685 = vld [vmem:[%s13 + $0x18] sm:$0xff]
    %v6686 = vld [vmem:[%s13 + $0x20] sm:$0xff]
    %v6687 = vld [vmem:[%s13 + $0x28] sm:$0xff]
    %v6688 = vld [vmem:[%s13 + $0x30] sm:$0xff]
    %v6689 = vld [vmem:[%s13 + $0x38] sm:$0xff]
    %v6690 = vld [vmem:[%s13 + $0x40] sm:$0xff]
    %v6691 = vld [vmem:[%s13 + $0x48] sm:$0xff]
    %v6692 = vld [vmem:[%s13 + $0x50] sm:$0xff]
    %v6693 = vld [vmem:[%s13 + $0x58] sm:$0xff]
    %v6694 = vld [vmem:[%s13 + $0x60] sm:$0xff]
    %v6695 = vld [vmem:[%s13 + $0x68] sm:$0xff]
    %v6696 = vld [vmem:[%s13 + $0x70] sm:$0xff]
    %v6697 = vld [vmem:[%s13 + $0x78] sm:$0xff]
    %v6698 = vld [vmem:[%s15] sm:$0xff]
    %v6699 = vld [vmem:[%s15 + $0x8] sm:$0xff]
    %v6700 = vld [vmem:[%s15 + $0x10] sm:$0xff]
    %v6701 = vld [vmem:[%s15 + $0x18] sm:$0xff]
    %v6702 = vld [vmem:[%s15 + $0x20] sm:$0xff]
    %v6703 = vld [vmem:[%s15 + $0x28] sm:$0xff]
    %v6704 = vld [vmem:[%s15 + $0x30] sm:$0xff]
    %v6705 = vld [vmem:[%s15 + $0x38] sm:$0xff]
    %v6706 = vld [vmem:[%s15 + $0x40] sm:$0xff]
    %v6707 = vld [vmem:[%s15 + $0x48] sm:$0xff]
    %v6708 = vld [vmem:[%s15 + $0x50] sm:$0xff]
    %v6709 = vld [vmem:[%s15 + $0x58] sm:$0xff]
    %v6710 = vld [vmem:[%s15 + $0x60] sm:$0xff]
    %v6711 = vld [vmem:[%s15 + $0x68] sm:$0xff]
    %v6712 = vld [vmem:[%s15 + $0x70] sm:$0xff]
    %v6713 = vld [vmem:[%s15 + $0x78] sm:$0xff]
    %6715 = vset.pattern.permute.xlu0 0
    %6716 = vperm.xlu0 %6715, %v6698
    %v6717 = vpop.permute.xlu0 %6716
    %6720 = vset.pattern.permute.xlu0 0
    %6721 = vperm.xlu0 %6720, %v6699
    %v6722 = vpop.permute.xlu0 %6721
    %6725 = vset.pattern.permute.xlu0 0
    %6726 = vperm.xlu0 %6725, %v6700
    %v6727 = vpop.permute.xlu0 %6726
    %6730 = vset.pattern.permute.xlu0 0
    %6731 = vperm.xlu0 %6730, %v6701
    %v6732 = vpop.permute.xlu0 %6731
    %6735 = vset.pattern.permute.xlu0 0
    %6736 = vperm.xlu0 %6735, %v6702
    %v6737 = vpop.permute.xlu0 %6736
    %6740 = vset.pattern.permute.xlu0 0
    %6741 = vperm.xlu0 %6740, %v6703
    %v6742 = vpop.permute.xlu0 %6741
    %6745 = vset.pattern.permute.xlu0 0
    %6746 = vperm.xlu0 %6745, %v6704
    %v6747 = vpop.permute.xlu0 %6746
    %6750 = vset.pattern.permute.xlu0 0
    %6751 = vperm.xlu0 %6750, %v6705
    %v6752 = vpop.permute.xlu0 %6751
    %6755 = vset.pattern.permute.xlu0 0
    %6756 = vperm.xlu0 %6755, %v6706
    %v6757 = vpop.permute.xlu0 %6756
    %6760 = vset.pattern.permute.xlu0 0
    %6761 = vperm.xlu0 %6760, %v6707
    %v6762 = vpop.permute.xlu0 %6761
    %6765 = vset.pattern.permute.xlu0 0
    %6766 = vperm.xlu0 %6765, %v6708
    %v6767 = vpop.permute.xlu0 %6766
    %6770 = vset.pattern.permute.xlu0 0
    %6771 = vperm.xlu0 %6770, %v6709
    %v6772 = vpop.permute.xlu0 %6771
    %6775 = vset.pattern.permute.xlu0 0
    %6776 = vperm.xlu0 %6775, %v6710
    %v6777 = vpop.permute.xlu0 %6776
    %6780 = vset.pattern.permute.xlu0 0
    %6781 = vperm.xlu0 %6780, %v6711
    %v6782 = vpop.permute.xlu0 %6781
    %6785 = vset.pattern.permute.xlu0 0
    %6786 = vperm.xlu0 %6785, %v6712
    %v6787 = vpop.permute.xlu0 %6786
    %6790 = vset.pattern.permute.xlu0 0
    %6791 = vperm.xlu0 %6790, %v6713
    %v6792 = vpop.permute.xlu0 %6791
    %vm6794 = vcmask 261120
    %v6796 = vsel %vm6794, %v6682, 0
    %v6799 = vsel %vm6794, %v6683, 0
    %v6802 = vsel %vm6794, %v6684, 0
    %v6805 = vsel %vm6794, %v6685, 0
    %v6808 = vsel %vm6794, %v6686, 0
    %v6811 = vsel %vm6794, %v6687, 0
    %v6814 = vsel %vm6794, %v6688, 0
    %v6817 = vsel %vm6794, %v6689, 0
    %v6820 = vsel %vm6794, %v6690, 0
    %v6823 = vsel %vm6794, %v6691, 0
    %v6826 = vsel %vm6794, %v6692, 0
    %v6829 = vsel %vm6794, %v6693, 0
    %v6832 = vsel %vm6794, %v6694, 0
    %v6835 = vsel %vm6794, %v6695, 0
    %v6838 = vsel %vm6794, %v6696, 0
    %v6841 = vsel %vm6794, %v6697, 0
    %6843 = vmatprep.subr.mxu0 0.0
    %6844 = vmatpush1.msra.mxu0 %v6664
    %6845 = vmatprep.subr.mxu0 0.0
    %6846 = vmatpush1.msra.mxu0 %v6669
    %6847 = vmatprep.subr.mxu0 0.0
    %6848 = vmatpush1.msra.mxu0 %v6674
    %6849 = vmatprep.subr.mxu0 0.0
    %6850 = vmatpush1.msra.mxu0 %v6679
    %6851 = vmatprep.subr.mxu0 0.0
    %6852 = vmatpush1.msra.mxu0 0.0
    %6853 = vmatprep.subr.mxu0 0.0
    %6854 = vmatpush1.msra.mxu0 0.0
    %6855 = vmatprep.subr.mxu0 0.0
    %6856 = vmatpush1.msra.mxu0 0.0
    %6857 = vmatprep.subr.mxu0 0.0
    %6858 = vmatpush1.msra.mxu0 0.0
    %6859 = vmatprep.subr.mxu0 0.0
    %6860 = vmatpush1.msra.mxu0 0.0
    %6861 = vmatprep.subr.mxu0 0.0
    %6862 = vmatpush1.msra.mxu0 0.0
    %6863 = vmatprep.subr.mxu0 0.0
    %6864 = vmatpush1.msra.mxu0 0.0
    %6865 = vmatprep.subr.mxu0 0.0
    %6866 = vmatpush1.msra.mxu0 0.0
    %6867 = vmatprep.subr.mxu0 0.0
    %6868 = vmatpush1.msra.mxu0 0.0
    %6869 = vmatprep.subr.mxu0 0.0
    %6870 = vmatpush1.msra.mxu0 0.0
    %6871 = vmatprep.subr.mxu0 0.0
    %6872 = vmatpush1.msra.mxu0 0.0
    %6873 = vmatprep.subr.mxu0 0.0
    %6874 = vmatpush1.msra.mxu0 0.0
    %6875 = vmatprep.subr.mxu0 0.0
    %6876 = vmatpush1.msra.mxu0 0.0
    %6877 = vmatprep.subr.mxu0 0.0
    %6878 = vmatpush1.msra.mxu0 0.0
    %6879 = vmatprep.subr.mxu0 0.0
    %6880 = vmatpush1.msra.mxu0 0.0
    %6881 = vmatprep.subr.mxu0 0.0
    %6882 = vmatpush1.msra.mxu0 0.0
    %6883 = vmatprep.subr.mxu0 0.0
    %6884 = vmatpush1.msra.mxu0 0.0
    %6885 = vmatprep.subr.mxu0 0.0
    %6886 = vmatpush1.msra.mxu0 0.0
    %6887 = vmatprep.subr.mxu0 0.0
    %6888 = vmatpush1.msra.mxu0 0.0
    %6889 = vmatprep.subr.mxu0 0.0
    %6890 = vmatpush1.msra.mxu0 0.0
    %6891 = vmatprep.subr.mxu0 0.0
    %6892 = vmatpush1.msra.mxu0 0.0
    %6893 = vmatprep.subr.mxu0 0.0
    %6894 = vmatpush1.msra.mxu0 0.0
    %6895 = vmatprep.subr.mxu0 0.0
    %6896 = vmatpush1.msra.mxu0 0.0
    %6897 = vmatprep.subr.mxu0 0.0
    %6898 = vmatpush1.msra.mxu0 0.0
    %6899 = vmatprep.subr.mxu0 0.0
    %6900 = vmatpush1.msra.mxu0 0.0
    %6901 = vmatprep.subr.mxu0 0.0
    %6902 = vmatpush1.msra.mxu0 0.0
    %6903 = vmatprep.subr.mxu0 0.0
    %6904 = vmatpush1.msra.mxu0 0.0
    %6905 = vmatprep.subr.mxu0 0.0
    %6906 = vmatpush1.msra.mxu0 0.0
    %6907 = vmatprep.mubr.f32.mxu0 0.0
    %6908 = vmatmul.mubr.f32.gmra.mrb[0].mxu0 %v6796
    %v6909 = vpop.f32.mrb[0].mxu0
    %v6910 = vadd.f32 %v6717, %v6909
    %v6911 = vpop.f32.mrb[0].mxu0
    %6912 = vmatprep.mubr.f32.mxu0 0.0
    %6913 = vmatmul.mubr.f32.gmra.mrb[0].mxu0 %v6799
    %v6914 = vpop.f32.mrb[0].mxu0
    %v6915 = vadd.f32 %v6722, %v6914
    %v6916 = vpop.f32.mrb[0].mxu0
    %6917 = vmatprep.mubr.f32.mxu0 0.0
    %6918 = vmatmul.mubr.f32.gmra.mrb[0].mxu0 %v6802
    %v6919 = vpop.f32.mrb[0].mxu0
    %v6920 = vadd.f32 %v6727, %v6919
    %v6921 = vpop.f32.mrb[0].mxu0
    %6922 = vmatprep.mubr.f32.mxu0 0.0
    %6923 = vmatmul.mubr.f32.gmra.mrb[0].mxu0 %v6805
    %v6924 = vpop.f32.mrb[0].mxu0
    %v6925 = vadd.f32 %v6732, %v6924
    %v6926 = vpop.f32.mrb[0].mxu0
    %6927 = vmatprep.mubr.f32.mxu0 0.0
    %6928 = vmatmul.mubr.f32.gmra.mrb[0].mxu0 %v6808
    %v6929 = vpop.f32.mrb[0].mxu0
    %v6930 = vadd.f32 %v6737, %v6929
    %v6931 = vpop.f32.mrb[0].mxu0
    %6932 = vmatprep.mubr.f32.mxu0 0.0
    %6933 = vmatmul.mubr.f32.gmra.mrb[0].mxu0 %v6811
    %v6934 = vpop.f32.mrb[0].mxu0
    %v6935 = vadd.f32 %v6742, %v6934
    %v6936 = vpop.f32.mrb[0].mxu0
    %6937 = vmatprep.mubr.f32.mxu0 0.0
    %6938 = vmatmul.mubr.f32.gmra.mrb[0].mxu0 %v6814
    %v6939 = vpop.f32.mrb[0].mxu0
    %v6940 = vadd.f32 %v6747, %v6939
    %v6941 = vpop.f32.mrb[0].mxu0
    %6942 = vmatprep.mubr.f32.mxu0 0.0
    %6943 = vmatmul.mubr.f32.gmra.mrb[0].mxu0 %v6817
    %v6944 = vpop.f32.mrb[0].mxu0
    %v6945 = vadd.f32 %v6752, %v6944
    %v6946 = vpop.f32.mrb[0].mxu0
    %6947 = vmatprep.mubr.f32.mxu0 0.0
    %6948 = vmatmul.mubr.f32.gmra.mrb[0].mxu0 %v6820
    %v6949 = vpop.f32.mrb[0].mxu0
    %v6950 = vadd.f32 %v6757, %v6949
    %v6951 = vpop.f32.mrb[0].mxu0
    %6952 = vmatprep.mubr.f32.mxu0 0.0
    %6953 = vmatmul.mubr.f32.gmra.mrb[0].mxu0 %v6823
    %v6954 = vpop.f32.mrb[0].mxu0
    %v6955 = vadd.f32 %v6762, %v6954
    %v6956 = vpop.f32.mrb[0].mxu0
    %6957 = vmatprep.mubr.f32.mxu0 0.0
    %6958 = vmatmul.mubr.f32.gmra.mrb[0].mxu0 %v6826
    %v6959 = vpop.f32.mrb[0].mxu0
    %v6960 = vadd.f32 %v6767, %v6959
    %v6961 = vpop.f32.mrb[0].mxu0
    %6962 = vmatprep.mubr.f32.mxu0 0.0
    %6963 = vmatmul.mubr.f32.gmra.mrb[0].mxu0 %v6829
    %v6964 = vpop.f32.mrb[0].mxu0
    %v6965 = vadd.f32 %v6772, %v6964
    %v6966 = vpop.f32.mrb[0].mxu0
    %6967 = vmatprep.mubr.f32.mxu0 0.0
    %6968 = vmatmul.mubr.f32.gmra.mrb[0].mxu0 %v6832
    %v6969 = vpop.f32.mrb[0].mxu0
    %v6970 = vadd.f32 %v6777, %v6969
    %v6971 = vpop.f32.mrb[0].mxu0
    %6972 = vmatprep.mubr.f32.mxu0 0.0
    %6973 = vmatmul.mubr.f32.gmra.mrb[0].mxu0 %v6835
    %v6974 = vpop.f32.mrb[0].mxu0
    %v6975 = vadd.f32 %v6782, %v6974
    %v6976 = vpop.f32.mrb[0].mxu0
    %6977 = vmatprep.mubr.f32.mxu0 0.0
    %6978 = vmatmul.mubr.f32.gmra.mrb[0].mxu0 %v6838
    %v6979 = vpop.f32.mrb[0].mxu0
    %v6980 = vadd.f32 %v6787, %v6979
    %v6981 = vpop.f32.mrb[0].mxu0
    %6982 = vmatprep.mubr.f32.mxu0 0.0
    %6983 = vmatmul.mubr.f32.gmra.mrb[0].mxu0 %v6841
    %v6984 = vpop.f32.mrb[0].mxu0
    %v6985 = vadd.f32 %v6792, %v6984
    %v6986 = vpop.f32.mrb[0].mxu0
    %6987 = vdwg.mxu0
    %6988 = vst.msk [vmem:[#allocation6] sm:$0xff] %vm6089, %v6910
    %6989 = vst.msk [vmem:[#allocation6 + $0x8] sm:$0xff] %vm6089, %v6915
    %6990 = vst.msk [vmem:[#allocation6 + $0x10] sm:$0xff] %vm6089, %v6920
    %6991 = vst.msk [vmem:[#allocation6 + $0x18] sm:$0xff] %vm6089, %v6925
    %6992 = vst.msk [vmem:[#allocation6 + $0x20] sm:$0xff] %vm6089, %v6930
    %6993 = vst.msk [vmem:[#allocation6 + $0x28] sm:$0xff] %vm6089, %v6935
    %6994 = vst.msk [vmem:[#allocation6 + $0x30] sm:$0xff] %vm6089, %v6940
    %6995 = vst.msk [vmem:[#allocation6 + $0x38] sm:$0xff] %vm6089, %v6945
    %6996 = vst.msk [vmem:[#allocation6 + $0x40] sm:$0xff] %vm6089, %v6950
    %6997 = vst.msk [vmem:[#allocation6 + $0x48] sm:$0xff] %vm6089, %v6955
    %6998 = vst.msk [vmem:[#allocation6 + $0x50] sm:$0xff] %vm6089, %v6960
    %6999 = vst.msk [vmem:[#allocation6 + $0x58] sm:$0xff] %vm6089, %v6965
    %7000 = vst.msk [vmem:[#allocation6 + $0x60] sm:$0xff] %vm6089, %v6970
    %7001 = vst.msk [vmem:[#allocation6 + $0x68] sm:$0xff] %vm6089, %v6975
    %7002 = vst.msk [vmem:[#allocation6 + $0x70] sm:$0xff] %vm6089, %v6980
    %7003 = vst.msk [vmem:[#allocation6 + $0x78] sm:$0xff] %vm6089, %v6985
    %v7004 = vld [vmem:[%s16] sm:$0xff]
    %v7005 = vld [vmem:[%s16 + $0x8] sm:$0xff]
    %v7006 = vld [vmem:[%s16 + $0x10] sm:$0xff]
    %v7007 = vld [vmem:[%s16 + $0x18] sm:$0xff]
    %v7008 = vld [vmem:[%s16 + $0x20] sm:$0xff]
    %v7009 = vld [vmem:[%s16 + $0x28] sm:$0xff]
    %v7010 = vld [vmem:[%s16 + $0x30] sm:$0xff]
    %v7011 = vld [vmem:[%s16 + $0x38] sm:$0xff]
    %v7012 = vld [vmem:[%s16 + $0x40] sm:$0xff]
    %v7013 = vld [vmem:[%s16 + $0x48] sm:$0xff]
    %v7014 = vld [vmem:[%s16 + $0x50] sm:$0xff]
    %v7015 = vld [vmem:[%s16 + $0x58] sm:$0xff]
    %v7016 = vld [vmem:[%s16 + $0x60] sm:$0xff]
    %v7017 = vld [vmem:[%s16 + $0x68] sm:$0xff]
    %v7018 = vld [vmem:[%s16 + $0x70] sm:$0xff]
    %v7019 = vld [vmem:[%s16 + $0x78] sm:$0xff]
    %v7020 = vld [vmem:[%s18] sm:$0xff]
    %v7021 = vld [vmem:[%s18 + $0x8] sm:$0xff]
    %v7022 = vld [vmem:[%s18 + $0x10] sm:$0xff]
    %v7023 = vld [vmem:[%s18 + $0x18] sm:$0xff]
    %v7024 = vld [vmem:[%s18 + $0x20] sm:$0xff]
    %v7025 = vld [vmem:[%s18 + $0x28] sm:$0xff]
    %v7026 = vld [vmem:[%s18 + $0x30] sm:$0xff]
    %v7027 = vld [vmem:[%s18 + $0x38] sm:$0xff]
    %v7028 = vld [vmem:[%s18 + $0x40] sm:$0xff]
    %v7029 = vld [vmem:[%s18 + $0x48] sm:$0xff]
    %v7030 = vld [vmem:[%s18 + $0x50] sm:$0xff]
    %v7031 = vld [vmem:[%s18 + $0x58] sm:$0xff]
    %v7032 = vld [vmem:[%s18 + $0x60] sm:$0xff]
    %v7033 = vld [vmem:[%s18 + $0x68] sm:$0xff]
    %v7034 = vld [vmem:[%s18 + $0x70] sm:$0xff]
    %v7035 = vld [vmem:[%s18 + $0x78] sm:$0xff]
    %7037 = vset.pattern.permute.xlu0 0
    %7038 = vperm.xlu0 %7037, %v7020
    %v7039 = vpop.permute.xlu0 %7038
    %7042 = vset.pattern.permute.xlu0 0
    %7043 = vperm.xlu0 %7042, %v7021
    %v7044 = vpop.permute.xlu0 %7043
    %7047 = vset.pattern.permute.xlu0 0
    %7048 = vperm.xlu0 %7047, %v7022
    %v7049 = vpop.permute.xlu0 %7048
    %7052 = vset.pattern.permute.xlu0 0
    %7053 = vperm.xlu0 %7052, %v7023
    %v7054 = vpop.permute.xlu0 %7053
    %7057 = vset.pattern.permute.xlu0 0
    %7058 = vperm.xlu0 %7057, %v7024
    %v7059 = vpop.permute.xlu0 %7058
    %7062 = vset.pattern.permute.xlu0 0
    %7063 = vperm.xlu0 %7062, %v7025
    %v7064 = vpop.permute.xlu0 %7063
    %7067 = vset.pattern.permute.xlu0 0
    %7068 = vperm.xlu0 %7067, %v7026
    %v7069 = vpop.permute.xlu0 %7068
    %7072 = vset.pattern.permute.xlu0 0
    %7073 = vperm.xlu0 %7072, %v7027
    %v7074 = vpop.permute.xlu0 %7073
    %7077 = vset.pattern.permute.xlu0 0
    %7078 = vperm.xlu0 %7077, %v7028
    %v7079 = vpop.permute.xlu0 %7078
    %7082 = vset.pattern.permute.xlu0 0
    %7083 = vperm.xlu0 %7082, %v7029
    %v7084 = vpop.permute.xlu0 %7083
    %7087 = vset.pattern.permute.xlu0 0
    %7088 = vperm.xlu0 %7087, %v7030
    %v7089 = vpop.permute.xlu0 %7088
    %7092 = vset.pattern.permute.xlu0 0
    %7093 = vperm.xlu0 %7092, %v7031
    %v7094 = vpop.permute.xlu0 %7093
    %7097 = vset.pattern.permute.xlu0 0
    %7098 = vperm.xlu0 %7097, %v7032
    %v7099 = vpop.permute.xlu0 %7098
    %7102 = vset.pattern.permute.xlu0 0
    %7103 = vperm.xlu0 %7102, %v7033
    %v7104 = vpop.permute.xlu0 %7103
    %7107 = vset.pattern.permute.xlu0 0
    %7108 = vperm.xlu0 %7107, %v7034
    %v7109 = vpop.permute.xlu0 %7108
    %7112 = vset.pattern.permute.xlu0 0
    %7113 = vperm.xlu0 %7112, %v7035
    %v7114 = vpop.permute.xlu0 %7113
    %v7117 = vsel %vm6794, %v7004, 0
    %v7120 = vsel %vm6794, %v7005, 0
    %v7123 = vsel %vm6794, %v7006, 0
    %v7126 = vsel %vm6794, %v7007, 0
    %v7129 = vsel %vm6794, %v7008, 0
    %v7132 = vsel %vm6794, %v7009, 0
    %v7135 = vsel %vm6794, %v7010, 0
    %v7138 = vsel %vm6794, %v7011, 0
    %v7141 = vsel %vm6794, %v7012, 0
    %v7144 = vsel %vm6794, %v7013, 0
    %v7147 = vsel %vm6794, %v7014, 0
    %v7150 = vsel %vm6794, %v7015, 0
    %v7153 = vsel %vm6794, %v7016, 0
    %v7156 = vsel %vm6794, %v7017, 0
    %v7159 = vsel %vm6794, %v7018, 0
    %v7162 = vsel %vm6794, %v7019, 0
    %7164 = vmatprep.subr.mxu0 0.0
    %7165 = vmatpush1.msra.mxu0 %v6664
    %7166 = vmatprep.subr.mxu0 0.0
    %7167 = vmatpush1.msra.mxu0 %v6669
    %7168 = vmatprep.subr.mxu0 0.0
    %7169 = vmatpush1.msra.mxu0 %v6674
    %7170 = vmatprep.subr.mxu0 0.0
    %7171 = vmatpush1.msra.mxu0 %v6679
    %7172 = vmatprep.subr.mxu0 0.0
    %7173 = vmatpush1.msra.mxu0 0.0
    %7174 = vmatprep.subr.mxu0 0.0
    %7175 = vmatpush1.msra.mxu0 0.0
    %7176 = vmatprep.subr.mxu0 0.0
    %7177 = vmatpush1.msra.mxu0 0.0
    %7178 = vmatprep.subr.mxu0 0.0
    %7179 = vmatpush1.msra.mxu0 0.0
    %7180 = vmatprep.subr.mxu0 0.0
    %7181 = vmatpush1.msra.mxu0 0.0
    %7182 = vmatprep.subr.mxu0 0.0
    %7183 = vmatpush1.msra.mxu0 0.0
    %7184 = vmatprep.subr.mxu0 0.0
    %7185 = vmatpush1.msra.mxu0 0.0
    %7186 = vmatprep.subr.mxu0 0.0
    %7187 = vmatpush1.msra.mxu0 0.0
    %7188 = vmatprep.subr.mxu0 0.0
    %7189 = vmatpush1.msra.mxu0 0.0
    %7190 = vmatprep.subr.mxu0 0.0
    %7191 = vmatpush1.msra.mxu0 0.0
    %7192 = vmatprep.subr.mxu0 0.0
    %7193 = vmatpush1.msra.mxu0 0.0
    %7194 = vmatprep.subr.mxu0 0.0
    %7195 = vmatpush1.msra.mxu0 0.0
    %7196 = vmatprep.subr.mxu0 0.0
    %7197 = vmatpush1.msra.mxu0 0.0
    %7198 = vmatprep.subr.mxu0 0.0
    %7199 = vmatpush1.msra.mxu0 0.0
    %7200 = vmatprep.subr.mxu0 0.0
    %7201 = vmatpush1.msra.mxu0 0.0
    %7202 = vmatprep.subr.mxu0 0.0
    %7203 = vmatpush1.msra.mxu0 0.0
    %7204 = vmatprep.subr.mxu0 0.0
    %7205 = vmatpush1.msra.mxu0 0.0
    %7206 = vmatprep.subr.mxu0 0.0
    %7207 = vmatpush1.msra.mxu0 0.0
    %7208 = vmatprep.subr.mxu0 0.0
    %7209 = vmatpush1.msra.mxu0 0.0
    %7210 = vmatprep.subr.mxu0 0.0
    %7211 = vmatpush1.msra.mxu0 0.0
    %7212 = vmatprep.subr.mxu0 0.0
    %7213 = vmatpush1.msra.mxu0 0.0
    %7214 = vmatprep.subr.mxu0 0.0
    %7215 = vmatpush1.msra.mxu0 0.0
    %7216 = vmatprep.subr.mxu0 0.0
    %7217 = vmatpush1.msra.mxu0 0.0
    %7218 = vmatprep.subr.mxu0 0.0
    %7219 = vmatpush1.msra.mxu0 0.0
    %7220 = vmatprep.subr.mxu0 0.0
    %7221 = vmatpush1.msra.mxu0 0.0
    %7222 = vmatprep.subr.mxu0 0.0
    %7223 = vmatpush1.msra.mxu0 0.0
    %7224 = vmatprep.subr.mxu0 0.0
    %7225 = vmatpush1.msra.mxu0 0.0
    %7226 = vmatprep.subr.mxu0 0.0
    %7227 = vmatpush1.msra.mxu0 0.0
    %7228 = vmatprep.mubr.f32.mxu0 0.0
    %7229 = vmatmul.mubr.f32.gmra.mrb[0].mxu0 %v7117
    %v7230 = vpop.f32.mrb[0].mxu0
    %v7231 = vadd.f32 %v7039, %v7230
    %v7232 = vpop.f32.mrb[0].mxu0
    %7233 = vmatprep.mubr.f32.mxu0 0.0
    %7234 = vmatmul.mubr.f32.gmra.mrb[0].mxu0 %v7120
    %v7235 = vpop.f32.mrb[0].mxu0
    %v7236 = vadd.f32 %v7044, %v7235
    %v7237 = vpop.f32.mrb[0].mxu0
    %7238 = vmatprep.mubr.f32.mxu0 0.0
    %7239 = vmatmul.mubr.f32.gmra.mrb[0].mxu0 %v7123
    %v7240 = vpop.f32.mrb[0].mxu0
    %v7241 = vadd.f32 %v7049, %v7240
    %v7242 = vpop.f32.mrb[0].mxu0
    %7243 = vmatprep.mubr.f32.mxu0 0.0
    %7244 = vmatmul.mubr.f32.gmra.mrb[0].mxu0 %v7126
    %v7245 = vpop.f32.mrb[0].mxu0
    %v7246 = vadd.f32 %v7054, %v7245
    %v7247 = vpop.f32.mrb[0].mxu0
    %7248 = vmatprep.mubr.f32.mxu0 0.0
    %7249 = vmatmul.mubr.f32.gmra.mrb[0].mxu0 %v7129
    %v7250 = vpop.f32.mrb[0].mxu0
    %v7251 = vadd.f32 %v7059, %v7250
    %v7252 = vpop.f32.mrb[0].mxu0
    %7253 = vmatprep.mubr.f32.mxu0 0.0
    %7254 = vmatmul.mubr.f32.gmra.mrb[0].mxu0 %v7132
    %v7255 = vpop.f32.mrb[0].mxu0
    %v7256 = vadd.f32 %v7064, %v7255
    %v7257 = vpop.f32.mrb[0].mxu0
    %7258 = vmatprep.mubr.f32.mxu0 0.0
    %7259 = vmatmul.mubr.f32.gmra.mrb[0].mxu0 %v7135
    %v7260 = vpop.f32.mrb[0].mxu0
    %v7261 = vadd.f32 %v7069, %v7260
    %v7262 = vpop.f32.mrb[0].mxu0
    %7263 = vmatprep.mubr.f32.mxu0 0.0
    %7264 = vmatmul.mubr.f32.gmra.mrb[0].mxu0 %v7138
    %v7265 = vpop.f32.mrb[0].mxu0
    %v7266 = vadd.f32 %v7074, %v7265
    %v7267 = vpop.f32.mrb[0].mxu0
    %7268 = vmatprep.mubr.f32.mxu0 0.0
    %7269 = vmatmul.mubr.f32.gmra.mrb[0].mxu0 %v7141
    %v7270 = vpop.f32.mrb[0].mxu0
    %v7271 = vadd.f32 %v7079, %v7270
    %v7272 = vpop.f32.mrb[0].mxu0
    %7273 = vmatprep.mubr.f32.mxu0 0.0
    %7274 = vmatmul.mubr.f32.gmra.mrb[0].mxu0 %v7144
    %v7275 = vpop.f32.mrb[0].mxu0
    %v7276 = vadd.f32 %v7084, %v7275
    %v7277 = vpop.f32.mrb[0].mxu0
    %7278 = vmatprep.mubr.f32.mxu0 0.0
    %7279 = vmatmul.mubr.f32.gmra.mrb[0].mxu0 %v7147
    %v7280 = vpop.f32.mrb[0].mxu0
    %v7281 = vadd.f32 %v7089, %v7280
    %v7282 = vpop.f32.mrb[0].mxu0
    %7283 = vmatprep.mubr.f32.mxu0 0.0
    %7284 = vmatmul.mubr.f32.gmra.mrb[0].mxu0 %v7150
    %v7285 = vpop.f32.mrb[0].mxu0
    %v7286 = vadd.f32 %v7094, %v7285
    %v7287 = vpop.f32.mrb[0].mxu0
    %7288 = vmatprep.mubr.f32.mxu0 0.0
    %7289 = vmatmul.mubr.f32.gmra.mrb[0].mxu0 %v7153
    %v7290 = vpop.f32.mrb[0].mxu0
    %v7291 = vadd.f32 %v7099, %v7290
    %v7292 = vpop.f32.mrb[0].mxu0
    %7293 = vmatprep.mubr.f32.mxu0 0.0
    %7294 = vmatmul.mubr.f32.gmra.mrb[0].mxu0 %v7156
    %v7295 = vpop.f32.mrb[0].mxu0
    %v7296 = vadd.f32 %v7104, %v7295
    %v7297 = vpop.f32.mrb[0].mxu0
    %7298 = vmatprep.mubr.f32.mxu0 0.0
    %7299 = vmatmul.mubr.f32.gmra.mrb[0].mxu0 %v7159
    %v7300 = vpop.f32.mrb[0].mxu0
    %v7301 = vadd.f32 %v7109, %v7300
    %v7302 = vpop.f32.mrb[0].mxu0
    %7303 = vmatprep.mubr.f32.mxu0 0.0
    %7304 = vmatmul.mubr.f32.gmra.mrb[0].mxu0 %v7162
    %v7305 = vpop.f32.mrb[0].mxu0
    %v7306 = vadd.f32 %v7114, %v7305
    %v7307 = vpop.f32.mrb[0].mxu0
    %7308 = vdwg.mxu0
    %7309 = vst.msk [vmem:[#allocation7] sm:$0xff] %vm6089, %v7231
    %7310 = vst.msk [vmem:[#allocation7 + $0x8] sm:$0xff] %vm6089, %v7236
    %7311 = vst.msk [vmem:[#allocation7 + $0x10] sm:$0xff] %vm6089, %v7241
    %7312 = vst.msk [vmem:[#allocation7 + $0x18] sm:$0xff] %vm6089, %v7246
    %7313 = vst.msk [vmem:[#allocation7 + $0x20] sm:$0xff] %vm6089, %v7251
    %7314 = vst.msk [vmem:[#allocation7 + $0x28] sm:$0xff] %vm6089, %v7256
    %7315 = vst.msk [vmem:[#allocation7 + $0x30] sm:$0xff] %vm6089, %v7261
    %7316 = vst.msk [vmem:[#allocation7 + $0x38] sm:$0xff] %vm6089, %v7266
    %7317 = vst.msk [vmem:[#allocation7 + $0x40] sm:$0xff] %vm6089, %v7271
    %7318 = vst.msk [vmem:[#allocation7 + $0x48] sm:$0xff] %vm6089, %v7276
    %7319 = vst.msk [vmem:[#allocation7 + $0x50] sm:$0xff] %vm6089, %v7281
    %7320 = vst.msk [vmem:[#allocation7 + $0x58] sm:$0xff] %vm6089, %v7286
    %7321 = vst.msk [vmem:[#allocation7 + $0x60] sm:$0xff] %vm6089, %v7291
    %7322 = vst.msk [vmem:[#allocation7 + $0x68] sm:$0xff] %vm6089, %v7296
    %7323 = vst.msk [vmem:[#allocation7 + $0x70] sm:$0xff] %vm6089, %v7301
    %7324 = vst.msk [vmem:[#allocation7 + $0x78] sm:$0xff] %vm6089, %v7306
    %v7325 = vld [vmem:[%s14] sm:$0xff]
    %v7326 = vld [vmem:[%s14 + $0x8] sm:$0xff]
    %v7327 = vld [vmem:[%s14 + $0x10] sm:$0xff]
    %v7328 = vld [vmem:[%s14 + $0x18] sm:$0xff]
    %v7329 = vld [vmem:[%s14 + $0x20] sm:$0xff]
    %v7330 = vld [vmem:[%s14 + $0x28] sm:$0xff]
    %v7331 = vld [vmem:[%s14 + $0x30] sm:$0xff]
    %v7332 = vld [vmem:[%s14 + $0x38] sm:$0xff]
    %v7333 = vld [vmem:[%s14 + $0x40] sm:$0xff]
    %v7334 = vld [vmem:[%s14 + $0x48] sm:$0xff]
    %v7335 = vld [vmem:[%s14 + $0x50] sm:$0xff]
    %v7336 = vld [vmem:[%s14 + $0x58] sm:$0xff]
    %v7337 = vld [vmem:[%s14 + $0x60] sm:$0xff]
    %v7338 = vld [vmem:[%s14 + $0x68] sm:$0xff]
    %v7339 = vld [vmem:[%s14 + $0x70] sm:$0xff]
    %v7340 = vld [vmem:[%s14 + $0x78] sm:$0xff]
    %v7341 = vld [vmem:[%s17] sm:$0xff]
    %v7342 = vld [vmem:[%s17 + $0x8] sm:$0xff]
    %v7343 = vld [vmem:[%s17 + $0x10] sm:$0xff]
    %v7344 = vld [vmem:[%s17 + $0x18] sm:$0xff]
    %v7345 = vld [vmem:[%s17 + $0x20] sm:$0xff]
    %v7346 = vld [vmem:[%s17 + $0x28] sm:$0xff]
    %v7347 = vld [vmem:[%s17 + $0x30] sm:$0xff]
    %v7348 = vld [vmem:[%s17 + $0x38] sm:$0xff]
    %v7349 = vld [vmem:[%s17 + $0x40] sm:$0xff]
    %v7350 = vld [vmem:[%s17 + $0x48] sm:$0xff]
    %v7351 = vld [vmem:[%s17 + $0x50] sm:$0xff]
    %v7352 = vld [vmem:[%s17 + $0x58] sm:$0xff]
    %v7353 = vld [vmem:[%s17 + $0x60] sm:$0xff]
    %v7354 = vld [vmem:[%s17 + $0x68] sm:$0xff]
    %v7355 = vld [vmem:[%s17 + $0x70] sm:$0xff]
    %v7356 = vld [vmem:[%s17 + $0x78] sm:$0xff]
    %v7357 = vld [vmem:[#allocation6] sm:$0xff]
    %v7358 = vld [vmem:[#allocation6 + $0x8] sm:$0xff]
    %v7359 = vld [vmem:[#allocation6 + $0x10] sm:$0xff]
    %v7360 = vld [vmem:[#allocation6 + $0x18] sm:$0xff]
    %v7361 = vld [vmem:[#allocation6 + $0x20] sm:$0xff]
    %v7362 = vld [vmem:[#allocation6 + $0x28] sm:$0xff]
    %v7363 = vld [vmem:[#allocation6 + $0x30] sm:$0xff]
    %v7364 = vld [vmem:[#allocation6 + $0x38] sm:$0xff]
    %v7365 = vld [vmem:[#allocation6 + $0x40] sm:$0xff]
    %v7366 = vld [vmem:[#allocation6 + $0x48] sm:$0xff]
    %v7367 = vld [vmem:[#allocation6 + $0x50] sm:$0xff]
    %v7368 = vld [vmem:[#allocation6 + $0x58] sm:$0xff]
    %v7369 = vld [vmem:[#allocation6 + $0x60] sm:$0xff]
    %v7370 = vld [vmem:[#allocation6 + $0x68] sm:$0xff]
    %v7371 = vld [vmem:[#allocation6 + $0x70] sm:$0xff]
    %v7372 = vld [vmem:[#allocation6 + $0x78] sm:$0xff]
    %v7374 = vsel %vm6794, %v7325, 0
    %v7377 = vsel %vm6794, %v7326, 0
    %v7380 = vsel %vm6794, %v7327, 0
    %v7383 = vsel %vm6794, %v7328, 0
    %v7386 = vsel %vm6794, %v7329, 0
    %v7389 = vsel %vm6794, %v7330, 0
    %v7392 = vsel %vm6794, %v7331, 0
    %v7395 = vsel %vm6794, %v7332, 0
    %v7398 = vsel %vm6794, %v7333, 0
    %v7401 = vsel %vm6794, %v7334, 0
    %v7404 = vsel %vm6794, %v7335, 0
    %v7407 = vsel %vm6794, %v7336, 0
    %v7410 = vsel %vm6794, %v7337, 0
    %v7413 = vsel %vm6794, %v7338, 0
    %v7416 = vsel %vm6794, %v7339, 0
    %v7419 = vsel %vm6794, %v7340, 0
    %7421 = vmatprep.subr.mxu0 0.0
    %7422 = vmatpush1.msra.mxu0 0.0
    %7423 = vmatprep.subr.mxu0 0.0
    %7424 = vmatpush1.msra.mxu0 0.0
    %7425 = vmatprep.subr.mxu0 0.0
    %7426 = vmatpush1.msra.mxu0 0.0
    %7427 = vmatprep.subr.mxu0 0.0
    %7428 = vmatpush1.msra.mxu0 0.0
    %7429 = vmatprep.subr.mxu0 0.0
    %7430 = vmatpush1.msra.mxu0 0.0
    %7431 = vmatprep.subr.mxu0 0.0
    %7432 = vmatpush1.msra.mxu0 0.0
    %7433 = vmatprep.subr.mxu0 0.0
    %7434 = vmatpush1.msra.mxu0 0.0
    %7435 = vmatprep.subr.mxu0 0.0
    %7436 = vmatpush1.msra.mxu0 0.0
    %7437 = vmatprep.subr.mxu0 0.0
    %7438 = vmatpush1.msra.mxu0 0.0
    %7439 = vmatprep.subr.mxu0 0.0
    %7440 = vmatpush1.msra.mxu0 0.0
    %7441 = vmatprep.subr.mxu0 0.0
    %7442 = vmatpush1.msra.mxu0 0.0
    %7443 = vmatprep.subr.mxu0 0.0
    %7444 = vmatpush1.msra.mxu0 0.0
    %7445 = vmatprep.subr.mxu0 0.0
    %7446 = vmatpush1.msra.mxu0 0.0
    %7447 = vmatprep.subr.mxu0 0.0
    %7448 = vmatpush1.msra.mxu0 0.0
    %7449 = vmatprep.subr.mxu0 0.0
    %7450 = vmatpush1.msra.mxu0 0.0
    %7451 = vmatprep.subr.mxu0 0.0
    %7452 = vmatpush1.msra.mxu0 0.0
    %7453 = vmatprep.subr.mxu0 0.0
    %7454 = vmatpush1.msra.mxu0 0.0
    %7455 = vmatprep.subr.mxu0 0.0
    %7456 = vmatpush1.msra.mxu0 0.0
    %7457 = vmatprep.subr.mxu0 0.0
    %7458 = vmatpush1.msra.mxu0 0.0
    %7459 = vmatprep.subr.mxu0 0.0
    %7460 = vmatpush1.msra.mxu0 0.0
    %7461 = vmatprep.subr.mxu0 0.0
    %7462 = vmatpush1.msra.mxu0 0.0
    %7463 = vmatprep.subr.mxu0 0.0
    %7464 = vmatpush1.msra.mxu0 0.0
    %7465 = vmatprep.subr.mxu0 0.0
    %7466 = vmatpush1.msra.mxu0 0.0
    %7467 = vmatprep.subr.mxu0 0.0
    %7468 = vmatpush1.msra.mxu0 0.0
    %7469 = vmatprep.subr.mxu0 0.0
    %7470 = vmatpush1.msra.mxu0 0.0
    %7471 = vmatprep.subr.mxu0 0.0
    %7472 = vmatpush1.msra.mxu0 0.0
    %7473 = vmatprep.subr.mxu0 0.0
    %7474 = vmatpush1.msra.mxu0 0.0
    %7475 = vmatprep.subr.mxu0 0.0
    %7476 = vmatpush1.msra.mxu0 0.0
    %7477 = vmatprep.subr.mxu0 0.0
    %7478 = vmatpush1.msra.mxu0 0.0
    %7479 = vmatprep.subr.mxu0 0.0
    %7480 = vmatpush1.msra.mxu0 0.0
    %7481 = vmatprep.subr.mxu0 0.0
    %7482 = vmatpush1.msra.mxu0 0.0
    %7483 = vmatprep.subr.mxu0 0.0
    %7484 = vmatpush1.msra.mxu0 0.0
    %7485 = vmatprep.mubr.f32.mxu0 0.0
    %7486 = vmatmul.mubr.f32.gmra.mrb[0].mxu0 %v7374
    %v7487 = vpop.f32.mrb[0].mxu0
    %v7488 = vadd.f32 0.0, %v7487
    %v7489 = vpop.f32.mrb[0].mxu0
    %7490 = vmatprep.mubr.f32.mxu0 0.0
    %7491 = vmatmul.mubr.f32.gmra.mrb[0].mxu0 %v7377
    %v7492 = vpop.f32.mrb[0].mxu0
    %v7493 = vadd.f32 0.0, %v7492
    %v7494 = vpop.f32.mrb[0].mxu0
    %7495 = vmatprep.mubr.f32.mxu0 0.0
    %7496 = vmatmul.mubr.f32.gmra.mrb[0].mxu0 %v7380
    %v7497 = vpop.f32.mrb[0].mxu0
    %v7498 = vadd.f32 0.0, %v7497
    %v7499 = vpop.f32.mrb[0].mxu0
    %7500 = vmatprep.mubr.f32.mxu0 0.0
    %7501 = vmatmul.mubr.f32.gmra.mrb[0].mxu0 %v7383
    %v7502 = vpop.f32.mrb[0].mxu0
    %v7503 = vadd.f32 0.0, %v7502
    %v7504 = vpop.f32.mrb[0].mxu0
    %7505 = vmatprep.mubr.f32.mxu0 0.0
    %7506 = vmatmul.mubr.f32.gmra.mrb[0].mxu0 %v7386
    %v7507 = vpop.f32.mrb[0].mxu0
    %v7508 = vadd.f32 0.0, %v7507
    %v7509 = vpop.f32.mrb[0].mxu0
    %7510 = vmatprep.mubr.f32.mxu0 0.0
    %7511 = vmatmul.mubr.f32.gmra.mrb[0].mxu0 %v7389
    %v7512 = vpop.f32.mrb[0].mxu0
    %v7513 = vadd.f32 0.0, %v7512
    %v7514 = vpop.f32.mrb[0].mxu0
    %7515 = vmatprep.mubr.f32.mxu0 0.0
    %7516 = vmatmul.mubr.f32.gmra.mrb[0].mxu0 %v7392
    %v7517 = vpop.f32.mrb[0].mxu0
    %v7518 = vadd.f32 0.0, %v7517
    %v7519 = vpop.f32.mrb[0].mxu0
    %7520 = vmatprep.mubr.f32.mxu0 0.0
    %7521 = vmatmul.mubr.f32.gmra.mrb[0].mxu0 %v7395
    %v7522 = vpop.f32.mrb[0].mxu0
    %v7523 = vadd.f32 0.0, %v7522
    %v7524 = vpop.f32.mrb[0].mxu0
    %7525 = vmatprep.mubr.f32.mxu0 0.0
    %7526 = vmatmul.mubr.f32.gmra.mrb[0].mxu0 %v7398
    %v7527 = vpop.f32.mrb[0].mxu0
    %v7528 = vadd.f32 0.0, %v7527
    %v7529 = vpop.f32.mrb[0].mxu0
    %7530 = vmatprep.mubr.f32.mxu0 0.0
    %7531 = vmatmul.mubr.f32.gmra.mrb[0].mxu0 %v7401
    %v7532 = vpop.f32.mrb[0].mxu0
    %v7533 = vadd.f32 0.0, %v7532
    %v7534 = vpop.f32.mrb[0].mxu0
    %7535 = vmatprep.mubr.f32.mxu0 0.0
    %7536 = vmatmul.mubr.f32.gmra.mrb[0].mxu0 %v7404
    %v7537 = vpop.f32.mrb[0].mxu0
    %v7538 = vadd.f32 0.0, %v7537
    %v7539 = vpop.f32.mrb[0].mxu0
    %7540 = vmatprep.mubr.f32.mxu0 0.0
    %7541 = vmatmul.mubr.f32.gmra.mrb[0].mxu0 %v7407
    %v7542 = vpop.f32.mrb[0].mxu0
    %v7543 = vadd.f32 0.0, %v7542
    %v7544 = vpop.f32.mrb[0].mxu0
    %7545 = vmatprep.mubr.f32.mxu0 0.0
    %7546 = vmatmul.mubr.f32.gmra.mrb[0].mxu0 %v7410
    %v7547 = vpop.f32.mrb[0].mxu0
    %v7548 = vadd.f32 0.0, %v7547
    %v7549 = vpop.f32.mrb[0].mxu0
    %7550 = vmatprep.mubr.f32.mxu0 0.0
    %7551 = vmatmul.mubr.f32.gmra.mrb[0].mxu0 %v7413
    %v7552 = vpop.f32.mrb[0].mxu0
    %v7553 = vadd.f32 0.0, %v7552
    %v7554 = vpop.f32.mrb[0].mxu0
    %7555 = vmatprep.mubr.f32.mxu0 0.0
    %7556 = vmatmul.mubr.f32.gmra.mrb[0].mxu0 %v7416
    %v7557 = vpop.f32.mrb[0].mxu0
    %v7558 = vadd.f32 0.0, %v7557
    %v7559 = vpop.f32.mrb[0].mxu0
    %7560 = vmatprep.mubr.f32.mxu0 0.0
    %7561 = vmatmul.mubr.f32.gmra.mrb[0].mxu0 %v7419
    %v7562 = vpop.f32.mrb[0].mxu0
    %v7563 = vadd.f32 0.0, %v7562
    %v7564 = vpop.f32.mrb[0].mxu0
    %7565 = vdwg.mxu0
    %v7566 = vadd.f32 %v7357, %v7488
    %v7567 = vadd.f32 %v7358, %v7493
    %v7568 = vadd.f32 %v7359, %v7498
    %v7569 = vadd.f32 %v7360, %v7503
    %v7570 = vadd.f32 %v7361, %v7508
    %v7571 = vadd.f32 %v7362, %v7513
    %v7572 = vadd.f32 %v7363, %v7518
    %v7573 = vadd.f32 %v7364, %v7523
    %v7574 = vadd.f32 %v7365, %v7528
    %v7575 = vadd.f32 %v7366, %v7533
    %v7576 = vadd.f32 %v7367, %v7538
    %v7577 = vadd.f32 %v7368, %v7543
    %v7578 = vadd.f32 %v7369, %v7548
    %v7579 = vadd.f32 %v7370, %v7553
    %v7580 = vadd.f32 %v7371, %v7558
    %v7581 = vadd.f32 %v7372, %v7563
    %v7582 = vsub.f32 0.0, %v7566
    %v7583 = vsub.f32 0.0, %v7567
    %v7584 = vsub.f32 0.0, %v7568
    %v7585 = vsub.f32 0.0, %v7569
    %v7586 = vmul.f32 %v7582, 1.442695
    %v7587 = vpow.pop %v7586
    %v7588 = vmul.f32 %v7583, 1.442695
    %v7589 = vpow.pop %v7588
    %v7590 = vmul.f32 %v7584, 1.442695
    %v7591 = vpow.pop %v7590
    %v7592 = vmul.f32 %v7585, 1.442695
    %v7593 = vpow.pop %v7592
    %v7594 = vadd.f32 %v7587, 1.0
    %v7595 = vadd.f32 %v7589, 1.0
    %v7596 = vadd.f32 %v7591, 1.0
    %v7597 = vadd.f32 %v7593, 1.0
    %v7598 = vrcp.pop %v7594
    %v7599 = vmul.f32 1.0, %v7598
    %v7600 = vrcp.pop %v7595
    %v7601 = vmul.f32 1.0, %v7600
    %v7602 = vrcp.pop %v7596
    %v7603 = vmul.f32 1.0, %v7602
    %v7604 = vrcp.pop %v7597
    %v7605 = vmul.f32 1.0, %v7604
    %v7606 = vsub.f32 0.0, %v7570
    %v7607 = vsub.f32 0.0, %v7571
    %v7608 = vsub.f32 0.0, %v7572
    %v7609 = vsub.f32 0.0, %v7573
    %v7610 = vmul.f32 %v7606, 1.442695
    %v7611 = vpow.pop %v7610
    %v7612 = vmul.f32 %v7607, 1.442695
    %v7613 = vpow.pop %v7612
    %v7614 = vmul.f32 %v7608, 1.442695
    %v7615 = vpow.pop %v7614
    %v7616 = vmul.f32 %v7609, 1.442695
    %v7617 = vpow.pop %v7616
    %v7618 = vadd.f32 %v7611, 1.0
    %v7619 = vadd.f32 %v7613, 1.0
    %v7620 = vadd.f32 %v7615, 1.0
    %v7621 = vadd.f32 %v7617, 1.0
    %v7622 = vrcp.pop %v7618
    %v7623 = vmul.f32 1.0, %v7622
    %v7624 = vrcp.pop %v7619
    %v7625 = vmul.f32 1.0, %v7624
    %v7626 = vrcp.pop %v7620
    %v7627 = vmul.f32 1.0, %v7626
    %v7628 = vrcp.pop %v7621
    %v7629 = vmul.f32 1.0, %v7628
    %v7630 = vtanh.pop %v7574
    %v7631 = vtanh.pop %v7575
    %v7632 = vtanh.pop %v7576
    %v7633 = vtanh.pop %v7577
    %v7634 = vsub.f32 0.0, %v7578
    %v7635 = vsub.f32 0.0, %v7579
    %v7636 = vsub.f32 0.0, %v7580
    %v7637 = vsub.f32 0.0, %v7581
    %v7638 = vmul.f32 %v7634, 1.442695
    %v7639 = vpow.pop %v7638
    %v7640 = vmul.f32 %v7635, 1.442695
    %v7641 = vpow.pop %v7640
    %v7642 = vmul.f32 %v7636, 1.442695
    %v7643 = vpow.pop %v7642
    %v7644 = vmul.f32 %v7637, 1.442695
    %v7645 = vpow.pop %v7644
    %v7646 = vadd.f32 %v7639, 1.0
    %v7647 = vadd.f32 %v7641, 1.0
    %v7648 = vadd.f32 %v7643, 1.0
    %v7649 = vadd.f32 %v7645, 1.0
    %v7650 = vrcp.pop %v7646
    %v7651 = vmul.f32 1.0, %v7650
    %v7652 = vrcp.pop %v7647
    %v7653 = vmul.f32 1.0, %v7652
    %v7654 = vrcp.pop %v7648
    %v7655 = vmul.f32 1.0, %v7654
    %v7656 = vrcp.pop %v7649
    %v7657 = vmul.f32 1.0, %v7656
    %v7658 = vmul.f32 %v7623, 0.0
    %v7659 = vmul.f32 %v7625, 0.0
    %v7660 = vmul.f32 %v7627, 0.0
    %v7661 = vmul.f32 %v7629, 0.0
    %v7662 = vmul.f32 %v7599, %v7630
    %v7663 = vmul.f32 %v7601, %v7631
    %v7664 = vmul.f32 %v7603, %v7632
    %v7665 = vmul.f32 %v7605, %v7633
    %v7666 = vadd.f32 %v7658, %v7662
    %v7667 = vadd.f32 %v7659, %v7663
    %v7668 = vadd.f32 %v7660, %v7664
    %v7669 = vadd.f32 %v7661, %v7665
    %v7670 = vtanh.pop %v7666
    %v7671 = vtanh.pop %v7667
    %v7672 = vtanh.pop %v7668
    %v7673 = vtanh.pop %v7669
    %v7674 = vmul.f32 %v7651, %v7670
    %v7675 = vmul.f32 %v7653, %v7671
    %v7676 = vmul.f32 %v7655, %v7672
    %v7677 = vmul.f32 %v7657, %v7673
    %v7678 = vld [vmem:[#allocation7] sm:$0xff]
    %v7679 = vld [vmem:[#allocation7 + $0x8] sm:$0xff]
    %v7680 = vld [vmem:[#allocation7 + $0x10] sm:$0xff]
    %v7681 = vld [vmem:[#allocation7 + $0x18] sm:$0xff]
    %v7682 = vld [vmem:[#allocation7 + $0x20] sm:$0xff]
    %v7683 = vld [vmem:[#allocation7 + $0x28] sm:$0xff]
    %v7684 = vld [vmem:[#allocation7 + $0x30] sm:$0xff]
    %v7685 = vld [vmem:[#allocation7 + $0x38] sm:$0xff]
    %v7686 = vld [vmem:[#allocation7 + $0x40] sm:$0xff]
    %v7687 = vld [vmem:[#allocation7 + $0x48] sm:$0xff]
    %v7688 = vld [vmem:[#allocation7 + $0x50] sm:$0xff]
    %v7689 = vld [vmem:[#allocation7 + $0x58] sm:$0xff]
    %v7690 = vld [vmem:[#allocation7 + $0x60] sm:$0xff]
    %v7691 = vld [vmem:[#allocation7 + $0x68] sm:$0xff]
    %v7692 = vld [vmem:[#allocation7 + $0x70] sm:$0xff]
    %v7693 = vld [vmem:[#allocation7 + $0x78] sm:$0xff]
    %v7695 = vsel %vm6794, %v7341, 0
    %v7698 = vsel %vm6794, %v7342, 0
    %v7701 = vsel %vm6794, %v7343, 0
    %v7704 = vsel %vm6794, %v7344, 0
    %v7707 = vsel %vm6794, %v7345, 0
    %v7710 = vsel %vm6794, %v7346, 0
    %v7713 = vsel %vm6794, %v7347, 0
    %v7716 = vsel %vm6794, %v7348, 0
    %v7719 = vsel %vm6794, %v7349, 0
    %v7722 = vsel %vm6794, %v7350, 0
    %v7725 = vsel %vm6794, %v7351, 0
    %v7728 = vsel %vm6794, %v7352, 0
    %v7731 = vsel %vm6794, %v7353, 0
    %v7734 = vsel %vm6794, %v7354, 0
    %v7737 = vsel %vm6794, %v7355, 0
    %v7740 = vsel %vm6794, %v7356, 0
    %7742 = vmatprep.subr.mxu0 0.0
    %7743 = vmatpush1.msra.mxu0 0.0
    %7744 = vmatprep.subr.mxu0 0.0
    %7745 = vmatpush1.msra.mxu0 0.0
    %7746 = vmatprep.subr.mxu0 0.0
    %7747 = vmatpush1.msra.mxu0 0.0
    %7748 = vmatprep.subr.mxu0 0.0
    %7749 = vmatpush1.msra.mxu0 0.0
    %7750 = vmatprep.subr.mxu0 0.0
    %7751 = vmatpush1.msra.mxu0 0.0
    %7752 = vmatprep.subr.mxu0 0.0
    %7753 = vmatpush1.msra.mxu0 0.0
    %7754 = vmatprep.subr.mxu0 0.0
    %7755 = vmatpush1.msra.mxu0 0.0
    %7756 = vmatprep.subr.mxu0 0.0
    %7757 = vmatpush1.msra.mxu0 0.0
    %7758 = vmatprep.subr.mxu0 0.0
    %7759 = vmatpush1.msra.mxu0 0.0
    %7760 = vmatprep.subr.mxu0 0.0
    %7761 = vmatpush1.msra.mxu0 0.0
    %7762 = vmatprep.subr.mxu0 0.0
    %7763 = vmatpush1.msra.mxu0 0.0
    %7764 = vmatprep.subr.mxu0 0.0
    %7765 = vmatpush1.msra.mxu0 0.0
    %7766 = vmatprep.subr.mxu0 0.0
    %7767 = vmatpush1.msra.mxu0 0.0
    %7768 = vmatprep.subr.mxu0 0.0
    %7769 = vmatpush1.msra.mxu0 0.0
    %7770 = vmatprep.subr.mxu0 0.0
    %7771 = vmatpush1.msra.mxu0 0.0
    %7772 = vmatprep.subr.mxu0 0.0
    %7773 = vmatpush1.msra.mxu0 0.0
    %7774 = vmatprep.subr.mxu0 0.0
    %7775 = vmatpush1.msra.mxu0 0.0
    %7776 = vmatprep.subr.mxu0 0.0
    %7777 = vmatpush1.msra.mxu0 0.0
    %7778 = vmatprep.subr.mxu0 0.0
    %7779 = vmatpush1.msra.mxu0 0.0
    %7780 = vmatprep.subr.mxu0 0.0
    %7781 = vmatpush1.msra.mxu0 0.0
    %7782 = vmatprep.subr.mxu0 0.0
    %7783 = vmatpush1.msra.mxu0 0.0
    %7784 = vmatprep.subr.mxu0 0.0
    %7785 = vmatpush1.msra.mxu0 0.0
    %7786 = vmatprep.subr.mxu0 0.0
    %7787 = vmatpush1.msra.mxu0 0.0
    %7788 = vmatprep.subr.mxu0 0.0
    %7789 = vmatpush1.msra.mxu0 0.0
    %7790 = vmatprep.subr.mxu0 0.0
    %7791 = vmatpush1.msra.mxu0 0.0
    %7792 = vmatprep.subr.mxu0 0.0
    %7793 = vmatpush1.msra.mxu0 0.0
    %7794 = vmatprep.subr.mxu0 0.0
    %7795 = vmatpush1.msra.mxu0 0.0
    %7796 = vmatprep.subr.mxu0 0.0
    %7797 = vmatpush1.msra.mxu0 0.0
    %7798 = vmatprep.subr.mxu0 0.0
    %7799 = vmatpush1.msra.mxu0 0.0
    %7800 = vmatprep.subr.mxu0 0.0
    %7801 = vmatpush1.msra.mxu0 0.0
    %7802 = vmatprep.subr.mxu0 0.0
    %7803 = vmatpush1.msra.mxu0 0.0
    %7804 = vmatprep.subr.mxu0 0.0
    %7805 = vmatpush1.msra.mxu0 0.0
    %7806 = vmatprep.mubr.f32.mxu0 0.0
    %7807 = vmatmul.mubr.f32.gmra.mrb[0].mxu0 %v7695
    %v7808 = vpop.f32.mrb[0].mxu0
    %v7809 = vadd.f32 0.0, %v7808
    %v7810 = vpop.f32.mrb[0].mxu0
    %7811 = vmatprep.mubr.f32.mxu0 0.0
    %7812 = vmatmul.mubr.f32.gmra.mrb[0].mxu0 %v7698
    %v7813 = vpop.f32.mrb[0].mxu0
    %v7814 = vadd.f32 0.0, %v7813
    %v7815 = vpop.f32.mrb[0].mxu0
    %7816 = vmatprep.mubr.f32.mxu0 0.0
    %7817 = vmatmul.mubr.f32.gmra.mrb[0].mxu0 %v7701
    %v7818 = vpop.f32.mrb[0].mxu0
    %v7819 = vadd.f32 0.0, %v7818
    %v7820 = vpop.f32.mrb[0].mxu0
    %7821 = vmatprep.mubr.f32.mxu0 0.0
    %7822 = vmatmul.mubr.f32.gmra.mrb[0].mxu0 %v7704
    %v7823 = vpop.f32.mrb[0].mxu0
    %v7824 = vadd.f32 0.0, %v7823
    %v7825 = vpop.f32.mrb[0].mxu0
    %7826 = vmatprep.mubr.f32.mxu0 0.0
    %7827 = vmatmul.mubr.f32.gmra.mrb[0].mxu0 %v7707
    %v7828 = vpop.f32.mrb[0].mxu0
    %v7829 = vadd.f32 0.0, %v7828
    %v7830 = vpop.f32.mrb[0].mxu0
    %7831 = vmatprep.mubr.f32.mxu0 0.0
    %7832 = vmatmul.mubr.f32.gmra.mrb[0].mxu0 %v7710
    %v7833 = vpop.f32.mrb[0].mxu0
    %v7834 = vadd.f32 0.0, %v7833
    %v7835 = vpop.f32.mrb[0].mxu0
    %7836 = vmatprep.mubr.f32.mxu0 0.0
    %7837 = vmatmul.mubr.f32.gmra.mrb[0].mxu0 %v7713
    %v7838 = vpop.f32.mrb[0].mxu0
    %v7839 = vadd.f32 0.0, %v7838
    %v7840 = vpop.f32.mrb[0].mxu0
    %7841 = vmatprep.mubr.f32.mxu0 0.0
    %7842 = vmatmul.mubr.f32.gmra.mrb[0].mxu0 %v7716
    %v7843 = vpop.f32.mrb[0].mxu0
    %v7844 = vadd.f32 0.0, %v7843
    %v7845 = vpop.f32.mrb[0].mxu0
    %7846 = vmatprep.mubr.f32.mxu0 0.0
    %7847 = vmatmul.mubr.f32.gmra.mrb[0].mxu0 %v7719
    %v7848 = vpop.f32.mrb[0].mxu0
    %v7849 = vadd.f32 0.0, %v7848
    %v7850 = vpop.f32.mrb[0].mxu0
    %7851 = vmatprep.mubr.f32.mxu0 0.0
    %7852 = vmatmul.mubr.f32.gmra.mrb[0].mxu0 %v7722
    %v7853 = vpop.f32.mrb[0].mxu0
    %v7854 = vadd.f32 0.0, %v7853
    %v7855 = vpop.f32.mrb[0].mxu0
    %7856 = vmatprep.mubr.f32.mxu0 0.0
    %7857 = vmatmul.mubr.f32.gmra.mrb[0].mxu0 %v7725
    %v7858 = vpop.f32.mrb[0].mxu0
    %v7859 = vadd.f32 0.0, %v7858
    %v7860 = vpop.f32.mrb[0].mxu0
    %7861 = vmatprep.mubr.f32.mxu0 0.0
    %7862 = vmatmul.mubr.f32.gmra.mrb[0].mxu0 %v7728
    %v7863 = vpop.f32.mrb[0].mxu0
    %v7864 = vadd.f32 0.0, %v7863
    %v7865 = vpop.f32.mrb[0].mxu0
    %7866 = vmatprep.mubr.f32.mxu0 0.0
    %7867 = vmatmul.mubr.f32.gmra.mrb[0].mxu0 %v7731
    %v7868 = vpop.f32.mrb[0].mxu0
    %v7869 = vadd.f32 0.0, %v7868
    %v7870 = vpop.f32.mrb[0].mxu0
    %7871 = vmatprep.mubr.f32.mxu0 0.0
    %7872 = vmatmul.mubr.f32.gmra.mrb[0].mxu0 %v7734
    %v7873 = vpop.f32.mrb[0].mxu0
    %v7874 = vadd.f32 0.0, %v7873
    %v7875 = vpop.f32.mrb[0].mxu0
    %7876 = vmatprep.mubr.f32.mxu0 0.0
    %7877 = vmatmul.mubr.f32.gmra.mrb[0].mxu0 %v7737
    %v7878 = vpop.f32.mrb[0].mxu0
    %v7879 = vadd.f32 0.0, %v7878
    %v7880 = vpop.f32.mrb[0].mxu0
    %7881 = vmatprep.mubr.f32.mxu0 0.0
    %7882 = vmatmul.mubr.f32.gmra.mrb[0].mxu0 %v7740
    %v7883 = vpop.f32.mrb[0].mxu0
    %v7884 = vadd.f32 0.0, %v7883
    %v7885 = vpop.f32.mrb[0].mxu0
    %7886 = vdwg.mxu0
    %7903 = vrot.lane.b32.xlu0 %v7809, 8
    %v7904 = vpop.permute.xlu0 %7903
    %7905 = vrot.lane.b32.xlu0 %v7814, 8
    %v7906 = vpop.permute.xlu0 %7905
    %7907 = vrot.lane.b32.xlu0 %v7819, 8
    %v7908 = vpop.permute.xlu0 %7907
    %7909 = vrot.lane.b32.xlu0 %v7824, 8
    %v7910 = vpop.permute.xlu0 %7909
    %7911 = vrot.lane.b32.xlu0 %v7829, 8
    %v7912 = vpop.permute.xlu0 %7911
    %7913 = vrot.lane.b32.xlu0 %v7834, 8
    %v7914 = vpop.permute.xlu0 %7913
    %7915 = vrot.lane.b32.xlu0 %v7839, 8
    %v7916 = vpop.permute.xlu0 %7915
    %7917 = vrot.lane.b32.xlu0 %v7844, 8
    %v7918 = vpop.permute.xlu0 %7917
    %7919 = vrot.lane.b32.xlu0 %v7849, 8
    %v7920 = vpop.permute.xlu0 %7919
    %7921 = vrot.lane.b32.xlu0 %v7854, 8
    %v7922 = vpop.permute.xlu0 %7921
    %7923 = vrot.lane.b32.xlu0 %v7859, 8
    %v7924 = vpop.permute.xlu0 %7923
    %7925 = vrot.lane.b32.xlu0 %v7864, 8
    %v7926 = vpop.permute.xlu0 %7925
    %7927 = vrot.lane.b32.xlu0 %v7869, 8
    %v7928 = vpop.permute.xlu0 %7927
    %7929 = vrot.lane.b32.xlu0 %v7874, 8
    %v7930 = vpop.permute.xlu0 %7929
    %7931 = vrot.lane.b32.xlu0 %v7879, 8
    %v7932 = vpop.permute.xlu0 %7931
    %7933 = vrot.lane.b32.xlu0 %v7884, 8
    %v7934 = vpop.permute.xlu0 %7933
    %v7951 = vadd.f32 %v7678, %v7904
    %v7952 = vadd.f32 %v7679, %v7906
    %v7953 = vadd.f32 %v7680, %v7908
    %v7954 = vadd.f32 %v7681, %v7910
    %v7955 = vadd.f32 %v7682, %v7912
    %v7956 = vadd.f32 %v7683, %v7914
    %v7957 = vadd.f32 %v7684, %v7916
    %v7958 = vadd.f32 %v7685, %v7918
    %v7959 = vadd.f32 %v7686, %v7920
    %v7960 = vadd.f32 %v7687, %v7922
    %v7961 = vadd.f32 %v7688, %v7924
    %v7962 = vadd.f32 %v7689, %v7926
    %v7963 = vadd.f32 %v7690, %v7928
    %v7964 = vadd.f32 %v7691, %v7930
    %v7965 = vadd.f32 %v7692, %v7932
    %v7966 = vadd.f32 %v7693, %v7934
    %v7967 = vsub.f32 0.0, %v7951
    %v7968 = vsub.f32 0.0, %v7952
    %v7969 = vsub.f32 0.0, %v7953
    %v7970 = vsub.f32 0.0, %v7954
    %v7971 = vmul.f32 %v7967, 1.442695
    %v7972 = vpow.pop %v7971
    %v7973 = vmul.f32 %v7968, 1.442695
    %v7974 = vpow.pop %v7973
    %v7975 = vmul.f32 %v7969, 1.442695
    %v7976 = vpow.pop %v7975
    %v7977 = vmul.f32 %v7970, 1.442695
    %v7978 = vpow.pop %v7977
    %v7979 = vadd.f32 %v7972, 1.0
    %v7980 = vadd.f32 %v7974, 1.0
    %v7981 = vadd.f32 %v7976, 1.0
    %v7982 = vadd.f32 %v7978, 1.0
    %v7983 = vrcp.pop %v7979
    %v7984 = vmul.f32 1.0, %v7983
    %v7985 = vrcp.pop %v7980
    %v7986 = vmul.f32 1.0, %v7985
    %v7987 = vrcp.pop %v7981
    %v7988 = vmul.f32 1.0, %v7987
    %v7989 = vrcp.pop %v7982
    %v7990 = vmul.f32 1.0, %v7989
    %v7991 = vsub.f32 0.0, %v7955
    %v7992 = vsub.f32 0.0, %v7956
    %v7993 = vsub.f32 0.0, %v7957
    %v7994 = vsub.f32 0.0, %v7958
    %v7995 = vmul.f32 %v7991, 1.442695
    %v7996 = vpow.pop %v7995
    %v7997 = vmul.f32 %v7992, 1.442695
    %v7998 = vpow.pop %v7997
    %v7999 = vmul.f32 %v7993, 1.442695
    %v8000 = vpow.pop %v7999
    %v8001 = vmul.f32 %v7994, 1.442695
    %v8002 = vpow.pop %v8001
    %v8003 = vadd.f32 %v7996, 1.0
    %v8004 = vadd.f32 %v7998, 1.0
    %v8005 = vadd.f32 %v8000, 1.0
    %v8006 = vadd.f32 %v8002, 1.0
    %v8007 = vrcp.pop %v8003
    %v8008 = vmul.f32 1.0, %v8007
    %v8009 = vrcp.pop %v8004
    %v8010 = vmul.f32 1.0, %v8009
    %v8011 = vrcp.pop %v8005
    %v8012 = vmul.f32 1.0, %v8011
    %v8013 = vrcp.pop %v8006
    %v8014 = vmul.f32 1.0, %v8013
    %v8015 = vtanh.pop %v7959
    %v8016 = vtanh.pop %v7960
    %v8017 = vtanh.pop %v7961
    %v8018 = vtanh.pop %v7962
    %v8019 = vsub.f32 0.0, %v7963
    %v8020 = vsub.f32 0.0, %v7964
    %v8021 = vsub.f32 0.0, %v7965
    %v8022 = vsub.f32 0.0, %v7966
    %v8023 = vmul.f32 %v8019, 1.442695
    %v8024 = vpow.pop %v8023
    %v8025 = vmul.f32 %v8020, 1.442695
    %v8026 = vpow.pop %v8025
    %v8027 = vmul.f32 %v8021, 1.442695
    %v8028 = vpow.pop %v8027
    %v8029 = vmul.f32 %v8022, 1.442695
    %v8030 = vpow.pop %v8029
    %v8031 = vadd.f32 %v8024, 1.0
    %v8032 = vadd.f32 %v8026, 1.0
    %v8033 = vadd.f32 %v8028, 1.0
    %v8034 = vadd.f32 %v8030, 1.0
    %v8035 = vrcp.pop %v8031
    %v8036 = vmul.f32 1.0, %v8035
    %v8037 = vrcp.pop %v8032
    %v8038 = vmul.f32 1.0, %v8037
    %v8039 = vrcp.pop %v8033
    %v8040 = vmul.f32 1.0, %v8039
    %v8041 = vrcp.pop %v8034
    %v8042 = vmul.f32 1.0, %v8041
    %v8043 = vmul.f32 %v8008, 0.0
    %v8044 = vmul.f32 %v8010, 0.0
    %v8045 = vmul.f32 %v8012, 0.0
    %v8046 = vmul.f32 %v8014, 0.0
    %v8047 = vmul.f32 %v7984, %v8015
    %v8048 = vmul.f32 %v7986, %v8016
    %v8049 = vmul.f32 %v7988, %v8017
    %v8050 = vmul.f32 %v7990, %v8018
    %v8051 = vadd.f32 %v8043, %v8047
    %v8052 = vadd.f32 %v8044, %v8048
    %v8053 = vadd.f32 %v8045, %v8049
    %v8054 = vadd.f32 %v8046, %v8050
    %v8055 = vtanh.pop %v8051
    %v8056 = vtanh.pop %v8052
    %v8057 = vtanh.pop %v8053
    %v8058 = vtanh.pop %v8054
    %v8059 = vmul.f32 %v8036, %v8055
    %v8060 = vmul.f32 %v8038, %v8056
    %v8061 = vmul.f32 %v8040, %v8057
    %v8062 = vmul.f32 %v8042, %v8058
    %8063 = vmatprep.subr.mxu0 0.0
    %8064 = vmatpush1.msra.mxu0 %v7674
    %8065 = vmatprep.subr.mxu0 0.0
    %8066 = vmatpush1.msra.mxu0 %v7675
    %8067 = vmatprep.subr.mxu0 0.0
    %8068 = vmatpush1.msra.mxu0 %v7676
    %8069 = vmatprep.subr.mxu0 0.0
    %8070 = vmatpush1.msra.mxu0 %v7677
    %8071 = vmatprep.subr.mxu0 0.0
    %8072 = vmatpush1.msra.mxu0 0.0
    %8073 = vmatprep.subr.mxu0 0.0
    %8074 = vmatpush1.msra.mxu0 0.0
    %8075 = vmatprep.subr.mxu0 0.0
    %8076 = vmatpush1.msra.mxu0 0.0
    %8077 = vmatprep.subr.mxu0 0.0
    %8078 = vmatpush1.msra.mxu0 0.0
    %8079 = vmatprep.subr.mxu0 0.0
    %8080 = vmatpush1.msra.mxu0 0.0
    %8081 = vmatprep.subr.mxu0 0.0
    %8082 = vmatpush1.msra.mxu0 0.0
    %8083 = vmatprep.subr.mxu0 0.0
    %8084 = vmatpush1.msra.mxu0 0.0
    %8085 = vmatprep.subr.mxu0 0.0
    %8086 = vmatpush1.msra.mxu0 0.0
    %8087 = vmatprep.subr.mxu0 0.0
    %8088 = vmatpush1.msra.mxu0 0.0
    %8089 = vmatprep.subr.mxu0 0.0
    %8090 = vmatpush1.msra.mxu0 0.0
    %8091 = vmatprep.subr.mxu0 0.0
    %8092 = vmatpush1.msra.mxu0 0.0
    %8093 = vmatprep.subr.mxu0 0.0
    %8094 = vmatpush1.msra.mxu0 0.0
    %8095 = vmatprep.subr.mxu0 0.0
    %8096 = vmatpush1.msra.mxu0 0.0
    %8097 = vmatprep.subr.mxu0 0.0
    %8098 = vmatpush1.msra.mxu0 0.0
    %8099 = vmatprep.subr.mxu0 0.0
    %8100 = vmatpush1.msra.mxu0 0.0
    %8101 = vmatprep.subr.mxu0 0.0
    %8102 = vmatpush1.msra.mxu0 0.0
    %8103 = vmatprep.subr.mxu0 0.0
    %8104 = vmatpush1.msra.mxu0 0.0
    %8105 = vmatprep.subr.mxu0 0.0
    %8106 = vmatpush1.msra.mxu0 0.0
    %8107 = vmatprep.subr.mxu0 0.0
    %8108 = vmatpush1.msra.mxu0 0.0
    %8109 = vmatprep.subr.mxu0 0.0
    %8110 = vmatpush1.msra.mxu0 0.0
    %8111 = vmatprep.subr.mxu0 0.0
    %8112 = vmatpush1.msra.mxu0 0.0
    %8113 = vmatprep.subr.mxu0 0.0
    %8114 = vmatpush1.msra.mxu0 0.0
    %8115 = vmatprep.subr.mxu0 0.0
    %8116 = vmatpush1.msra.mxu0 0.0
    %8117 = vmatprep.subr.mxu0 0.0
    %8118 = vmatpush1.msra.mxu0 0.0
    %8119 = vmatprep.subr.mxu0 0.0
    %8120 = vmatpush1.msra.mxu0 0.0
    %8121 = vmatprep.subr.mxu0 0.0
    %8122 = vmatpush1.msra.mxu0 0.0
    %8123 = vmatprep.subr.mxu0 0.0
    %8124 = vmatpush1.msra.mxu0 0.0
    %8125 = vmatprep.subr.mxu0 0.0
    %8126 = vmatpush1.msra.mxu0 0.0
    %8127 = vmatprep.mubr.f32.mxu0 0.0
    %8128 = vmatmul.mubr.f32.gmra.mrb[0].mxu0 %v7374
    %v8129 = vpop.f32.mrb[0].mxu0
    %v8130 = vadd.f32 0.0, %v8129
    %v8131 = vpop.f32.mrb[0].mxu0
    %8132 = vmatprep.mubr.f32.mxu0 0.0
    %8133 = vmatmul.mubr.f32.gmra.mrb[0].mxu0 %v7377
    %v8134 = vpop.f32.mrb[0].mxu0
    %v8135 = vadd.f32 0.0, %v8134
    %v8136 = vpop.f32.mrb[0].mxu0
    %8137 = vmatprep.mubr.f32.mxu0 0.0
    %8138 = vmatmul.mubr.f32.gmra.mrb[0].mxu0 %v7380
    %v8139 = vpop.f32.mrb[0].mxu0
    %v8140 = vadd.f32 0.0, %v8139
    %v8141 = vpop.f32.mrb[0].mxu0
    %8142 = vmatprep.mubr.f32.mxu0 0.0
    %8143 = vmatmul.mubr.f32.gmra.mrb[0].mxu0 %v7383
    %v8144 = vpop.f32.mrb[0].mxu0
    %v8145 = vadd.f32 0.0, %v8144
    %v8146 = vpop.f32.mrb[0].mxu0
    %8147 = vmatprep.mubr.f32.mxu0 0.0
    %8148 = vmatmul.mubr.f32.gmra.mrb[0].mxu0 %v7386
    %v8149 = vpop.f32.mrb[0].mxu0
    %v8150 = vadd.f32 0.0, %v8149
    %v8151 = vpop.f32.mrb[0].mxu0
    %8152 = vmatprep.mubr.f32.mxu0 0.0
    %8153 = vmatmul.mubr.f32.gmra.mrb[0].mxu0 %v7389
    %v8154 = vpop.f32.mrb[0].mxu0
    %v8155 = vadd.f32 0.0, %v8154
    %v8156 = vpop.f32.mrb[0].mxu0
    %8157 = vmatprep.mubr.f32.mxu0 0.0
    %8158 = vmatmul.mubr.f32.gmra.mrb[0].mxu0 %v7392
    %v8159 = vpop.f32.mrb[0].mxu0
    %v8160 = vadd.f32 0.0, %v8159
    %v8161 = vpop.f32.mrb[0].mxu0
    %8162 = vmatprep.mubr.f32.mxu0 0.0
    %8163 = vmatmul.mubr.f32.gmra.mrb[0].mxu0 %v7395
    %v8164 = vpop.f32.mrb[0].mxu0
    %v8165 = vadd.f32 0.0, %v8164
    %v8166 = vpop.f32.mrb[0].mxu0
    %8167 = vmatprep.mubr.f32.mxu0 0.0
    %8168 = vmatmul.mubr.f32.gmra.mrb[0].mxu0 %v7398
    %v8169 = vpop.f32.mrb[0].mxu0
    %v8170 = vadd.f32 0.0, %v8169
    %v8171 = vpop.f32.mrb[0].mxu0
    %8172 = vmatprep.mubr.f32.mxu0 0.0
    %8173 = vmatmul.mubr.f32.gmra.mrb[0].mxu0 %v7401
    %v8174 = vpop.f32.mrb[0].mxu0
    %v8175 = vadd.f32 0.0, %v8174
    %v8176 = vpop.f32.mrb[0].mxu0
    %8177 = vmatprep.mubr.f32.mxu0 0.0
    %8178 = vmatmul.mubr.f32.gmra.mrb[0].mxu0 %v7404
    %v8179 = vpop.f32.mrb[0].mxu0
    %v8180 = vadd.f32 0.0, %v8179
    %v8181 = vpop.f32.mrb[0].mxu0
    %8182 = vmatprep.mubr.f32.mxu0 0.0
    %8183 = vmatmul.mubr.f32.gmra.mrb[0].mxu0 %v7407
    %v8184 = vpop.f32.mrb[0].mxu0
    %v8185 = vadd.f32 0.0, %v8184
    %v8186 = vpop.f32.mrb[0].mxu0
    %8187 = vmatprep.mubr.f32.mxu0 0.0
    %8188 = vmatmul.mubr.f32.gmra.mrb[0].mxu0 %v7410
    %v8189 = vpop.f32.mrb[0].mxu0
    %v8190 = vadd.f32 0.0, %v8189
    %v8191 = vpop.f32.mrb[0].mxu0
    %8192 = vmatprep.mubr.f32.mxu0 0.0
    %8193 = vmatmul.mubr.f32.gmra.mrb[0].mxu0 %v7413
    %v8194 = vpop.f32.mrb[0].mxu0
    %v8195 = vadd.f32 0.0, %v8194
    %v8196 = vpop.f32.mrb[0].mxu0
    %8197 = vmatprep.mubr.f32.mxu0 0.0
    %8198 = vmatmul.mubr.f32.gmra.mrb[0].mxu0 %v7416
    %v8199 = vpop.f32.mrb[0].mxu0
    %v8200 = vadd.f32 0.0, %v8199
    %v8201 = vpop.f32.mrb[0].mxu0
    %8202 = vmatprep.mubr.f32.mxu0 0.0
    %8203 = vmatmul.mubr.f32.gmra.mrb[0].mxu0 %v7419
    %v8204 = vpop.f32.mrb[0].mxu0
    %v8205 = vadd.f32 0.0, %v8204
    %v8206 = vpop.f32.mrb[0].mxu0
    %8207 = vdwg.mxu0
    %8224 = vrot.lane.b32.xlu0 %v8130, 2
    %v8225 = vpop.permute.xlu0 %8224
    %8226 = vrot.lane.b32.xlu0 %v8135, 2
    %v8227 = vpop.permute.xlu0 %8226
    %8228 = vrot.lane.b32.xlu0 %v8140, 2
    %v8229 = vpop.permute.xlu0 %8228
    %8230 = vrot.lane.b32.xlu0 %v8145, 2
    %v8231 = vpop.permute.xlu0 %8230
    %8232 = vrot.lane.b32.xlu0 %v8150, 2
    %v8233 = vpop.permute.xlu0 %8232
    %8234 = vrot.lane.b32.xlu0 %v8155, 2
    %v8235 = vpop.permute.xlu0 %8234
    %8236 = vrot.lane.b32.xlu0 %v8160, 2
    %v8237 = vpop.permute.xlu0 %8236
    %8238 = vrot.lane.b32.xlu0 %v8165, 2
    %v8239 = vpop.permute.xlu0 %8238
    %8240 = vrot.lane.b32.xlu0 %v8170, 2
    %v8241 = vpop.permute.xlu0 %8240
    %8242 = vrot.lane.b32.xlu0 %v8175, 2
    %v8243 = vpop.permute.xlu0 %8242
    %8244 = vrot.lane.b32.xlu0 %v8180, 2
    %v8245 = vpop.permute.xlu0 %8244
    %8246 = vrot.lane.b32.xlu0 %v8185, 2
    %v8247 = vpop.permute.xlu0 %8246
    %8248 = vrot.lane.b32.xlu0 %v8190, 2
    %v8249 = vpop.permute.xlu0 %8248
    %8250 = vrot.lane.b32.xlu0 %v8195, 2
    %v8251 = vpop.permute.xlu0 %8250
    %8252 = vrot.lane.b32.xlu0 %v8200, 2
    %v8253 = vpop.permute.xlu0 %8252
    %8254 = vrot.lane.b32.xlu0 %v8205, 2
    %v8255 = vpop.permute.xlu0 %8254
    %v8272 = vadd.f32 %v7357, %v8225
    %v8273 = vadd.f32 %v7358, %v8227
    %v8274 = vadd.f32 %v7359, %v8229
    %v8275 = vadd.f32 %v7360, %v8231
    %v8276 = vadd.f32 %v7361, %v8233
    %v8277 = vadd.f32 %v7362, %v8235
    %v8278 = vadd.f32 %v7363, %v8237
    %v8279 = vadd.f32 %v7364, %v8239
    %v8280 = vadd.f32 %v7365, %v8241
    %v8281 = vadd.f32 %v7366, %v8243
    %v8282 = vadd.f32 %v7367, %v8245
    %v8283 = vadd.f32 %v7368, %v8247
    %v8284 = vadd.f32 %v7369, %v8249
    %v8285 = vadd.f32 %v7370, %v8251
    %v8286 = vadd.f32 %v7371, %v8253
    %v8287 = vadd.f32 %v7372, %v8255
    %v8288 = vsub.f32 0.0, %v8272
    %v8289 = vsub.f32 0.0, %v8273
    %v8290 = vsub.f32 0.0, %v8274
    %v8291 = vsub.f32 0.0, %v8275
    %v8292 = vmul.f32 %v8288, 1.442695
    %v8293 = vpow.pop %v8292
    %v8294 = vmul.f32 %v8289, 1.442695
    %v8295 = vpow.pop %v8294
    %v8296 = vmul.f32 %v8290, 1.442695
    %v8297 = vpow.pop %v8296
    %v8298 = vmul.f32 %v8291, 1.442695
    %v8299 = vpow.pop %v8298
    %v8300 = vadd.f32 %v8293, 1.0
    %v8301 = vadd.f32 %v8295, 1.0
    %v8302 = vadd.f32 %v8297, 1.0
    %v8303 = vadd.f32 %v8299, 1.0
    %v8304 = vrcp.pop %v8300
    %v8305 = vmul.f32 1.0, %v8304
    %v8306 = vrcp.pop %v8301
    %v8307 = vmul.f32 1.0, %v8306
    %v8308 = vrcp.pop %v8302
    %v8309 = vmul.f32 1.0, %v8308
    %v8310 = vrcp.pop %v8303
    %v8311 = vmul.f32 1.0, %v8310
    %v8312 = vsub.f32 0.0, %v8276
    %v8313 = vsub.f32 0.0, %v8277
    %v8314 = vsub.f32 0.0, %v8278
    %v8315 = vsub.f32 0.0, %v8279
    %v8316 = vmul.f32 %v8312, 1.442695
    %v8317 = vpow.pop %v8316
    %v8318 = vmul.f32 %v8313, 1.442695
    %v8319 = vpow.pop %v8318
    %v8320 = vmul.f32 %v8314, 1.442695
    %v8321 = vpow.pop %v8320
    %v8322 = vmul.f32 %v8315, 1.442695
    %v8323 = vpow.pop %v8322
    %v8324 = vadd.f32 %v8317, 1.0
    %v8325 = vadd.f32 %v8319, 1.0
    %v8326 = vadd.f32 %v8321, 1.0
    %v8327 = vadd.f32 %v8323, 1.0
    %v8328 = vrcp.pop %v8324
    %v8329 = vmul.f32 1.0, %v8328
    %v8330 = vrcp.pop %v8325
    %v8331 = vmul.f32 1.0, %v8330
    %v8332 = vrcp.pop %v8326
    %v8333 = vmul.f32 1.0, %v8332
    %v8334 = vrcp.pop %v8327
    %v8335 = vmul.f32 1.0, %v8334
    %v8336 = vtanh.pop %v8280
    %v8337 = vtanh.pop %v8281
    %v8338 = vtanh.pop %v8282
    %v8339 = vtanh.pop %v8283
    %v8340 = vsub.f32 0.0, %v8284
    %v8341 = vsub.f32 0.0, %v8285
    %v8342 = vsub.f32 0.0, %v8286
    %v8343 = vsub.f32 0.0, %v8287
    %v8344 = vmul.f32 %v8340, 1.442695
    %v8345 = vpow.pop %v8344
    %v8346 = vmul.f32 %v8341, 1.442695
    %v8347 = vpow.pop %v8346
    %v8348 = vmul.f32 %v8342, 1.442695
    %v8349 = vpow.pop %v8348
    %v8350 = vmul.f32 %v8343, 1.442695
    %v8351 = vpow.pop %v8350
    %v8352 = vadd.f32 %v8345, 1.0
    %v8353 = vadd.f32 %v8347, 1.0
    %v8354 = vadd.f32 %v8349, 1.0
    %v8355 = vadd.f32 %v8351, 1.0
    %v8356 = vrcp.pop %v8352
    %v8357 = vmul.f32 1.0, %v8356
    %v8358 = vrcp.pop %v8353
    %v8359 = vmul.f32 1.0, %v8358
    %v8360 = vrcp.pop %v8354
    %v8361 = vmul.f32 1.0, %v8360
    %v8362 = vrcp.pop %v8355
    %v8363 = vmul.f32 1.0, %v8362
    %8368 = vrot.lane.b32.xlu0 %v7666, 2
    %v8369 = vpop.permute.xlu0 %8368
    %8370 = vrot.lane.b32.xlu0 %v7667, 2
    %v8371 = vpop.permute.xlu0 %8370
    %8372 = vrot.lane.b32.xlu0 %v7668, 2
    %v8373 = vpop.permute.xlu0 %8372
    %8374 = vrot.lane.b32.xlu0 %v7669, 2
    %v8375 = vpop.permute.xlu0 %8374
    %v8380 = vmul.f32 %v8329, %v8369
    %v8381 = vmul.f32 %v8331, %v8371
    %v8382 = vmul.f32 %v8333, %v8373
    %v8383 = vmul.f32 %v8335, %v8375
    %v8384 = vmul.f32 %v8305, %v8336
    %v8385 = vmul.f32 %v8307, %v8337
    %v8386 = vmul.f32 %v8309, %v8338
    %v8387 = vmul.f32 %v8311, %v8339
    %v8388 = vadd.f32 %v8380, %v8384
    %v8389 = vadd.f32 %v8381, %v8385
    %v8390 = vadd.f32 %v8382, %v8386
    %v8391 = vadd.f32 %v8383, %v8387
    %v8392 = vtanh.pop %v8388
    %v8393 = vtanh.pop %v8389
    %v8394 = vtanh.pop %v8390
    %v8395 = vtanh.pop %v8391
    %v8396 = vmul.f32 %v8357, %v8392
    %v8397 = vmul.f32 %v8359, %v8393
    %v8398 = vmul.f32 %v8361, %v8394
    %v8399 = vmul.f32 %v8363, %v8395
    %8404 = vrot.lane.b32.xlu0 %v8059, 120
    %v8405 = vpop.permute.xlu0 %8404
    %8406 = vrot.lane.b32.xlu0 %v8060, 120
    %v8407 = vpop.permute.xlu0 %8406
    %8408 = vrot.lane.b32.xlu0 %v8061, 120
    %v8409 = vpop.permute.xlu0 %8408
    %8410 = vrot.lane.b32.xlu0 %v8062, 120
    %v8411 = vpop.permute.xlu0 %8410
    %8416 = vmatprep.subr.mxu0 0.0
    %8417 = vmatpush1.msra.mxu0 %v8405
    %8418 = vmatprep.subr.mxu0 0.0
    %8419 = vmatpush1.msra.mxu0 %v8407
    %8420 = vmatprep.subr.mxu0 0.0
    %8421 = vmatpush1.msra.mxu0 %v8409
    %8422 = vmatprep.subr.mxu0 0.0
    %8423 = vmatpush1.msra.mxu0 %v8411
    %8424 = vmatprep.subr.mxu0 0.0
    %8425 = vmatpush1.msra.mxu0 0.0
    %8426 = vmatprep.subr.mxu0 0.0
    %8427 = vmatpush1.msra.mxu0 0.0
    %8428 = vmatprep.subr.mxu0 0.0
    %8429 = vmatpush1.msra.mxu0 0.0
    %8430 = vmatprep.subr.mxu0 0.0
    %8431 = vmatpush1.msra.mxu0 0.0
    %8432 = vmatprep.subr.mxu0 0.0
    %8433 = vmatpush1.msra.mxu0 0.0
    %8434 = vmatprep.subr.mxu0 0.0
    %8435 = vmatpush1.msra.mxu0 0.0
    %8436 = vmatprep.subr.mxu0 0.0
    %8437 = vmatpush1.msra.mxu0 0.0
    %8438 = vmatprep.subr.mxu0 0.0
    %8439 = vmatpush1.msra.mxu0 0.0
    %8440 = vmatprep.subr.mxu0 0.0
    %8441 = vmatpush1.msra.mxu0 0.0
    %8442 = vmatprep.subr.mxu0 0.0
    %8443 = vmatpush1.msra.mxu0 0.0
    %8444 = vmatprep.subr.mxu0 0.0
    %8445 = vmatpush1.msra.mxu0 0.0
    %8446 = vmatprep.subr.mxu0 0.0
    %8447 = vmatpush1.msra.mxu0 0.0
    %8448 = vmatprep.subr.mxu0 0.0
    %8449 = vmatpush1.msra.mxu0 0.0
    %8450 = vmatprep.subr.mxu0 0.0
    %8451 = vmatpush1.msra.mxu0 0.0
    %8452 = vmatprep.subr.mxu0 0.0
    %8453 = vmatpush1.msra.mxu0 0.0
    %8454 = vmatprep.subr.mxu0 0.0
    %8455 = vmatpush1.msra.mxu0 0.0
    %8456 = vmatprep.subr.mxu0 0.0
    %8457 = vmatpush1.msra.mxu0 0.0
    %8458 = vmatprep.subr.mxu0 0.0
    %8459 = vmatpush1.msra.mxu0 0.0
    %8460 = vmatprep.subr.mxu0 0.0
    %8461 = vmatpush1.msra.mxu0 0.0
    %8462 = vmatprep.subr.mxu0 0.0
    %8463 = vmatpush1.msra.mxu0 0.0
    %8464 = vmatprep.subr.mxu0 0.0
    %8465 = vmatpush1.msra.mxu0 0.0
    %8466 = vmatprep.subr.mxu0 0.0
    %8467 = vmatpush1.msra.mxu0 0.0
    %8468 = vmatprep.subr.mxu0 0.0
    %8469 = vmatpush1.msra.mxu0 0.0
    %8470 = vmatprep.subr.mxu0 0.0
    %8471 = vmatpush1.msra.mxu0 0.0
    %8472 = vmatprep.subr.mxu0 0.0
    %8473 = vmatpush1.msra.mxu0 0.0
    %8474 = vmatprep.subr.mxu0 0.0
    %8475 = vmatpush1.msra.mxu0 0.0
    %8476 = vmatprep.subr.mxu0 0.0
    %8477 = vmatpush1.msra.mxu0 0.0
    %8478 = vmatprep.subr.mxu0 0.0
    %8479 = vmatpush1.msra.mxu0 0.0
    %8480 = vmatprep.mubr.f32.mxu0 0.0
    %8481 = vmatmul.mubr.f32.gmra.mrb[0].mxu0 %v7695
    %v8482 = vpop.f32.mrb[0].mxu0
    %v8483 = vadd.f32 0.0, %v8482
    %v8484 = vpop.f32.mrb[0].mxu0
    %8485 = vmatprep.mubr.f32.mxu0 0.0
    %8486 = vmatmul.mubr.f32.gmra.mrb[0].mxu0 %v7698
    %v8487 = vpop.f32.mrb[0].mxu0
    %v8488 = vadd.f32 0.0, %v8487
    %v8489 = vpop.f32.mrb[0].mxu0
    %8490 = vmatprep.mubr.f32.mxu0 0.0
    %8491 = vmatmul.mubr.f32.gmra.mrb[0].mxu0 %v7701
    %v8492 = vpop.f32.mrb[0].mxu0
    %v8493 = vadd.f32 0.0, %v8492
    %v8494 = vpop.f32.mrb[0].mxu0
    %8495 = vmatprep.mubr.f32.mxu0 0.0
    %8496 = vmatmul.mubr.f32.gmra.mrb[0].mxu0 %v7704
    %v8497 = vpop.f32.mrb[0].mxu0
    %v8498 = vadd.f32 0.0, %v8497
    %v8499 = vpop.f32.mrb[0].mxu0
    %8500 = vmatprep.mubr.f32.mxu0 0.0
    %8501 = vmatmul.mubr.f32.gmra.mrb[0].mxu0 %v7707
    %v8502 = vpop.f32.mrb[0].mxu0
    %v8503 = vadd.f32 0.0, %v8502
    %v8504 = vpop.f32.mrb[0].mxu0
    %8505 = vmatprep.mubr.f32.mxu0 0.0
    %8506 = vmatmul.mubr.f32.gmra.mrb[0].mxu0 %v7710
    %v8507 = vpop.f32.mrb[0].mxu0
    %v8508 = vadd.f32 0.0, %v8507
    %v8509 = vpop.f32.mrb[0].mxu0
    %8510 = vmatprep.mubr.f32.mxu0 0.0
    %8511 = vmatmul.mubr.f32.gmra.mrb[0].mxu0 %v7713
    %v8512 = vpop.f32.mrb[0].mxu0
    %v8513 = vadd.f32 0.0, %v8512
    %v8514 = vpop.f32.mrb[0].mxu0
    %8515 = vmatprep.mubr.f32.mxu0 0.0
    %8516 = vmatmul.mubr.f32.gmra.mrb[0].mxu0 %v7716
    %v8517 = vpop.f32.mrb[0].mxu0
    %v8518 = vadd.f32 0.0, %v8517
    %v8519 = vpop.f32.mrb[0].mxu0
    %8520 = vmatprep.mubr.f32.mxu0 0.0
    %8521 = vmatmul.mubr.f32.gmra.mrb[0].mxu0 %v7719
    %v8522 = vpop.f32.mrb[0].mxu0
    %v8523 = vadd.f32 0.0, %v8522
    %v8524 = vpop.f32.mrb[0].mxu0
    %8525 = vmatprep.mubr.f32.mxu0 0.0
    %8526 = vmatmul.mubr.f32.gmra.mrb[0].mxu0 %v7722
    %v8527 = vpop.f32.mrb[0].mxu0
    %v8528 = vadd.f32 0.0, %v8527
    %v8529 = vpop.f32.mrb[0].mxu0
    %8530 = vmatprep.mubr.f32.mxu0 0.0
    %8531 = vmatmul.mubr.f32.gmra.mrb[0].mxu0 %v7725
    %v8532 = vpop.f32.mrb[0].mxu0
    %v8533 = vadd.f32 0.0, %v8532
    %v8534 = vpop.f32.mrb[0].mxu0
    %8535 = vmatprep.mubr.f32.mxu0 0.0
    %8536 = vmatmul.mubr.f32.gmra.mrb[0].mxu0 %v7728
    %v8537 = vpop.f32.mrb[0].mxu0
    %v8538 = vadd.f32 0.0, %v8537
    %v8539 = vpop.f32.mrb[0].mxu0
    %8540 = vmatprep.mubr.f32.mxu0 0.0
    %8541 = vmatmul.mubr.f32.gmra.mrb[0].mxu0 %v7731
    %v8542 = vpop.f32.mrb[0].mxu0
    %v8543 = vadd.f32 0.0, %v8542
    %v8544 = vpop.f32.mrb[0].mxu0
    %8545 = vmatprep.mubr.f32.mxu0 0.0
    %8546 = vmatmul.mubr.f32.gmra.mrb[0].mxu0 %v7734
    %v8547 = vpop.f32.mrb[0].mxu0
    %v8548 = vadd.f32 0.0, %v8547
    %v8549 = vpop.f32.mrb[0].mxu0
    %8550 = vmatprep.mubr.f32.mxu0 0.0
    %8551 = vmatmul.mubr.f32.gmra.mrb[0].mxu0 %v7737
    %v8552 = vpop.f32.mrb[0].mxu0
    %v8553 = vadd.f32 0.0, %v8552
    %v8554 = vpop.f32.mrb[0].mxu0
    %8555 = vmatprep.mubr.f32.mxu0 0.0
    %8556 = vmatmul.mubr.f32.gmra.mrb[0].mxu0 %v7740
    %v8557 = vpop.f32.mrb[0].mxu0
    %v8558 = vadd.f32 0.0, %v8557
    %v8559 = vpop.f32.mrb[0].mxu0
    %8560 = vdwg.mxu0
    %8577 = vrot.lane.b32.xlu0 %v8483, 6
    %v8578 = vpop.permute.xlu0 %8577
    %8579 = vrot.lane.b32.xlu0 %v8488, 6
    %v8580 = vpop.permute.xlu0 %8579
    %8581 = vrot.lane.b32.xlu0 %v8493, 6
    %v8582 = vpop.permute.xlu0 %8581
    %8583 = vrot.lane.b32.xlu0 %v8498, 6
    %v8584 = vpop.permute.xlu0 %8583
    %8585 = vrot.lane.b32.xlu0 %v8503, 6
    %v8586 = vpop.permute.xlu0 %8585
    %8587 = vrot.lane.b32.xlu0 %v8508, 6
    %v8588 = vpop.permute.xlu0 %8587
    %8589 = vrot.lane.b32.xlu0 %v8513, 6
    %v8590 = vpop.permute.xlu0 %8589
    %8591 = vrot.lane.b32.xlu0 %v8518, 6
    %v8592 = vpop.permute.xlu0 %8591
    %8593 = vrot.lane.b32.xlu0 %v8523, 6
    %v8594 = vpop.permute.xlu0 %8593
    %8595 = vrot.lane.b32.xlu0 %v8528, 6
    %v8596 = vpop.permute.xlu0 %8595
    %8597 = vrot.lane.b32.xlu0 %v8533, 6
    %v8598 = vpop.permute.xlu0 %8597
    %8599 = vrot.lane.b32.xlu0 %v8538, 6
    %v8600 = vpop.permute.xlu0 %8599
    %8601 = vrot.lane.b32.xlu0 %v8543, 6
    %v8602 = vpop.permute.xlu0 %8601
    %8603 = vrot.lane.b32.xlu0 %v8548, 6
    %v8604 = vpop.permute.xlu0 %8603
    %8605 = vrot.lane.b32.xlu0 %v8553, 6
    %v8606 = vpop.permute.xlu0 %8605
    %8607 = vrot.lane.b32.xlu0 %v8558, 6
    %v8608 = vpop.permute.xlu0 %8607
    %v8625 = vadd.f32 %v7678, %v8578
    %v8626 = vadd.f32 %v7679, %v8580
    %v8627 = vadd.f32 %v7680, %v8582
    %v8628 = vadd.f32 %v7681, %v8584
    %v8629 = vadd.f32 %v7682, %v8586
    %v8630 = vadd.f32 %v7683, %v8588
    %v8631 = vadd.f32 %v7684, %v8590
    %v8632 = vadd.f32 %v7685, %v8592
    %v8633 = vadd.f32 %v7686, %v8594
    %v8634 = vadd.f32 %v7687, %v8596
    %v8635 = vadd.f32 %v7688, %v8598
    %v8636 = vadd.f32 %v7689, %v8600
    %v8637 = vadd.f32 %v7690, %v8602
    %v8638 = vadd.f32 %v7691, %v8604
    %v8639 = vadd.f32 %v7692, %v8606
    %v8640 = vadd.f32 %v7693, %v8608
    %v8641 = vsub.f32 0.0, %v8625
    %v8642 = vsub.f32 0.0, %v8626
    %v8643 = vsub.f32 0.0, %v8627
    %v8644 = vsub.f32 0.0, %v8628
    %v8645 = vmul.f32 %v8641, 1.442695
    %v8646 = vpow.pop %v8645
    %v8647 = vmul.f32 %v8642, 1.442695
    %v8648 = vpow.pop %v8647
    %v8649 = vmul.f32 %v8643, 1.442695
    %v8650 = vpow.pop %v8649
    %v8651 = vmul.f32 %v8644, 1.442695
    %v8652 = vpow.pop %v8651
    %v8653 = vadd.f32 %v8646, 1.0
    %v8654 = vadd.f32 %v8648, 1.0
    %v8655 = vadd.f32 %v8650, 1.0
    %v8656 = vadd.f32 %v8652, 1.0
    %v8657 = vrcp.pop %v8653
    %v8658 = vmul.f32 1.0, %v8657
    %v8659 = vrcp.pop %v8654
    %v8660 = vmul.f32 1.0, %v8659
    %v8661 = vrcp.pop %v8655
    %v8662 = vmul.f32 1.0, %v8661
    %v8663 = vrcp.pop %v8656
    %v8664 = vmul.f32 1.0, %v8663
    %v8665 = vsub.f32 0.0, %v8629
    %v8666 = vsub.f32 0.0, %v8630
    %v8667 = vsub.f32 0.0, %v8631
    %v8668 = vsub.f32 0.0, %v8632
    %v8669 = vmul.f32 %v8665, 1.442695
    %v8670 = vpow.pop %v8669
    %v8671 = vmul.f32 %v8666, 1.442695
    %v8672 = vpow.pop %v8671
    %v8673 = vmul.f32 %v8667, 1.442695
    %v8674 = vpow.pop %v8673
    %v8675 = vmul.f32 %v8668, 1.442695
    %v8676 = vpow.pop %v8675
    %v8677 = vadd.f32 %v8670, 1.0
    %v8678 = vadd.f32 %v8672, 1.0
    %v8679 = vadd.f32 %v8674, 1.0
    %v8680 = vadd.f32 %v8676, 1.0
    %v8681 = vrcp.pop %v8677
    %v8682 = vmul.f32 1.0, %v8681
    %v8683 = vrcp.pop %v8678
    %v8684 = vmul.f32 1.0, %v8683
    %v8685 = vrcp.pop %v8679
    %v8686 = vmul.f32 1.0, %v8685
    %v8687 = vrcp.pop %v8680
    %v8688 = vmul.f32 1.0, %v8687
    %v8689 = vtanh.pop %v8633
    %v8690 = vtanh.pop %v8634
    %v8691 = vtanh.pop %v8635
    %v8692 = vtanh.pop %v8636
    %v8693 = vsub.f32 0.0, %v8637
    %v8694 = vsub.f32 0.0, %v8638
    %v8695 = vsub.f32 0.0, %v8639
    %v8696 = vsub.f32 0.0, %v8640
    %v8697 = vmul.f32 %v8693, 1.442695
    %v8698 = vpow.pop %v8697
    %v8699 = vmul.f32 %v8694, 1.442695
    %v8700 = vpow.pop %v8699
    %v8701 = vmul.f32 %v8695, 1.442695
    %v8702 = vpow.pop %v8701
    %v8703 = vmul.f32 %v8696, 1.442695
    %v8704 = vpow.pop %v8703
    %v8705 = vadd.f32 %v8698, 1.0
    %v8706 = vadd.f32 %v8700, 1.0
    %v8707 = vadd.f32 %v8702, 1.0
    %v8708 = vadd.f32 %v8704, 1.0
    %v8709 = vrcp.pop %v8705
    %v8710 = vmul.f32 1.0, %v8709
    %v8711 = vrcp.pop %v8706
    %v8712 = vmul.f32 1.0, %v8711
    %v8713 = vrcp.pop %v8707
    %v8714 = vmul.f32 1.0, %v8713
    %v8715 = vrcp.pop %v8708
    %v8716 = vmul.f32 1.0, %v8715
    %8721 = vrot.lane.b32.xlu0 %v8051, 126
    %v8722 = vpop.permute.xlu0 %8721
    %8723 = vrot.lane.b32.xlu0 %v8052, 126
    %v8724 = vpop.permute.xlu0 %8723
    %8725 = vrot.lane.b32.xlu0 %v8053, 126
    %v8726 = vpop.permute.xlu0 %8725
    %8727 = vrot.lane.b32.xlu0 %v8054, 126
    %v8728 = vpop.permute.xlu0 %8727
    %v8733 = vmul.f32 %v8682, %v8722
    %v8734 = vmul.f32 %v8684, %v8724
    %v8735 = vmul.f32 %v8686, %v8726
    %v8736 = vmul.f32 %v8688, %v8728
    %v8737 = vmul.f32 %v8658, %v8689
    %v8738 = vmul.f32 %v8660, %v8690
    %v8739 = vmul.f32 %v8662, %v8691
    %v8740 = vmul.f32 %v8664, %v8692
    %v8741 = vadd.f32 %v8733, %v8737
    %v8742 = vadd.f32 %v8734, %v8738
    %v8743 = vadd.f32 %v8735, %v8739
    %v8744 = vadd.f32 %v8736, %v8740
    %v8745 = vtanh.pop %v8741
    %v8746 = vtanh.pop %v8742
    %v8747 = vtanh.pop %v8743
    %v8748 = vtanh.pop %v8744
    %v8749 = vmul.f32 %v8710, %v8745
    %v8750 = vmul.f32 %v8712, %v8746
    %v8751 = vmul.f32 %v8714, %v8747
    %v8752 = vmul.f32 %v8716, %v8748
    %8757 = vrot.lane.b32.xlu0 %v8396, 126
    %v8758 = vpop.permute.xlu0 %8757
    %8759 = vrot.lane.b32.xlu0 %v8397, 126
    %v8760 = vpop.permute.xlu0 %8759
    %8761 = vrot.lane.b32.xlu0 %v8398, 126
    %v8762 = vpop.permute.xlu0 %8761
    %8763 = vrot.lane.b32.xlu0 %v8399, 126
    %v8764 = vpop.permute.xlu0 %8763
    %8769 = vmatprep.subr.mxu0 0.0
    %8770 = vmatpush1.msra.mxu0 %v8758
    %8771 = vmatprep.subr.mxu0 0.0
    %8772 = vmatpush1.msra.mxu0 %v8760
    %8773 = vmatprep.subr.mxu0 0.0
    %8774 = vmatpush1.msra.mxu0 %v8762
    %8775 = vmatprep.subr.mxu0 0.0
    %8776 = vmatpush1.msra.mxu0 %v8764
    %8777 = vmatprep.subr.mxu0 0.0
    %8778 = vmatpush1.msra.mxu0 0.0
    %8779 = vmatprep.subr.mxu0 0.0
    %8780 = vmatpush1.msra.mxu0 0.0
    %8781 = vmatprep.subr.mxu0 0.0
    %8782 = vmatpush1.msra.mxu0 0.0
    %8783 = vmatprep.subr.mxu0 0.0
    %8784 = vmatpush1.msra.mxu0 0.0
    %8785 = vmatprep.subr.mxu0 0.0
    %8786 = vmatpush1.msra.mxu0 0.0
    %8787 = vmatprep.subr.mxu0 0.0
    %8788 = vmatpush1.msra.mxu0 0.0
    %8789 = vmatprep.subr.mxu0 0.0
    %8790 = vmatpush1.msra.mxu0 0.0
    %8791 = vmatprep.subr.mxu0 0.0
    %8792 = vmatpush1.msra.mxu0 0.0
    %8793 = vmatprep.subr.mxu0 0.0
    %8794 = vmatpush1.msra.mxu0 0.0
    %8795 = vmatprep.subr.mxu0 0.0
    %8796 = vmatpush1.msra.mxu0 0.0
    %8797 = vmatprep.subr.mxu0 0.0
    %8798 = vmatpush1.msra.mxu0 0.0
    %8799 = vmatprep.subr.mxu0 0.0
    %8800 = vmatpush1.msra.mxu0 0.0
    %8801 = vmatprep.subr.mxu0 0.0
    %8802 = vmatpush1.msra.mxu0 0.0
    %8803 = vmatprep.subr.mxu0 0.0
    %8804 = vmatpush1.msra.mxu0 0.0
    %8805 = vmatprep.subr.mxu0 0.0
    %8806 = vmatpush1.msra.mxu0 0.0
    %8807 = vmatprep.subr.mxu0 0.0
    %8808 = vmatpush1.msra.mxu0 0.0
    %8809 = vmatprep.subr.mxu0 0.0
    %8810 = vmatpush1.msra.mxu0 0.0
    %8811 = vmatprep.subr.mxu0 0.0
    %8812 = vmatpush1.msra.mxu0 0.0
    %8813 = vmatprep.subr.mxu0 0.0
    %8814 = vmatpush1.msra.mxu0 0.0
    %8815 = vmatprep.subr.mxu0 0.0
    %8816 = vmatpush1.msra.mxu0 0.0
    %8817 = vmatprep.subr.mxu0 0.0
    %8818 = vmatpush1.msra.mxu0 0.0
    %8819 = vmatprep.subr.mxu0 0.0
    %8820 = vmatpush1.msra.mxu0 0.0
    %8821 = vmatprep.subr.mxu0 0.0
    %8822 = vmatpush1.msra.mxu0 0.0
    %8823 = vmatprep.subr.mxu0 0.0
    %8824 = vmatpush1.msra.mxu0 0.0
    %8825 = vmatprep.subr.mxu0 0.0
    %8826 = vmatpush1.msra.mxu0 0.0
    %8827 = vmatprep.subr.mxu0 0.0
    %8828 = vmatpush1.msra.mxu0 0.0
    %8829 = vmatprep.subr.mxu0 0.0
    %8830 = vmatpush1.msra.mxu0 0.0
    %8831 = vmatprep.subr.mxu0 0.0
    %8832 = vmatpush1.msra.mxu0 0.0
    %8833 = vmatprep.mubr.f32.mxu0 0.0
    %8834 = vmatmul.mubr.f32.gmra.mrb[0].mxu0 %v7374
    %v8835 = vpop.f32.mrb[0].mxu0
    %v8836 = vadd.f32 0.0, %v8835
    %v8837 = vpop.f32.mrb[0].mxu0
    %8838 = vmatprep.mubr.f32.mxu0 0.0
    %8839 = vmatmul.mubr.f32.gmra.mrb[0].mxu0 %v7377
    %v8840 = vpop.f32.mrb[0].mxu0
    %v8841 = vadd.f32 0.0, %v8840
    %v8842 = vpop.f32.mrb[0].mxu0
    %8843 = vmatprep.mubr.f32.mxu0 0.0
    %8844 = vmatmul.mubr.f32.gmra.mrb[0].mxu0 %v7380
    %v8845 = vpop.f32.mrb[0].mxu0
    %v8846 = vadd.f32 0.0, %v8845
    %v8847 = vpop.f32.mrb[0].mxu0
    %8848 = vmatprep.mubr.f32.mxu0 0.0
    %8849 = vmatmul.mubr.f32.gmra.mrb[0].mxu0 %v7383
    %v8850 = vpop.f32.mrb[0].mxu0
    %v8851 = vadd.f32 0.0, %v8850
    %v8852 = vpop.f32.mrb[0].mxu0
    %8853 = vmatprep.mubr.f32.mxu0 0.0
    %8854 = vmatmul.mubr.f32.gmra.mrb[0].mxu0 %v7386
    %v8855 = vpop.f32.mrb[0].mxu0
    %v8856 = vadd.f32 0.0, %v8855
    %v8857 = vpop.f32.mrb[0].mxu0
    %8858 = vmatprep.mubr.f32.mxu0 0.0
    %8859 = vmatmul.mubr.f32.gmra.mrb[0].mxu0 %v7389
    %v8860 = vpop.f32.mrb[0].mxu0
    %v8861 = vadd.f32 0.0, %v8860
    %v8862 = vpop.f32.mrb[0].mxu0
    %8863 = vmatprep.mubr.f32.mxu0 0.0
    %8864 = vmatmul.mubr.f32.gmra.mrb[0].mxu0 %v7392
    %v8865 = vpop.f32.mrb[0].mxu0
    %v8866 = vadd.f32 0.0, %v8865
    %v8867 = vpop.f32.mrb[0].mxu0
    %8868 = vmatprep.mubr.f32.mxu0 0.0
    %8869 = vmatmul.mubr.f32.gmra.mrb[0].mxu0 %v7395
    %v8870 = vpop.f32.mrb[0].mxu0
    %v8871 = vadd.f32 0.0, %v8870
    %v8872 = vpop.f32.mrb[0].mxu0
    %8873 = vmatprep.mubr.f32.mxu0 0.0
    %8874 = vmatmul.mubr.f32.gmra.mrb[0].mxu0 %v7398
    %v8875 = vpop.f32.mrb[0].mxu0
    %v8876 = vadd.f32 0.0, %v8875
    %v8877 = vpop.f32.mrb[0].mxu0
    %8878 = vmatprep.mubr.f32.mxu0 0.0
    %8879 = vmatmul.mubr.f32.gmra.mrb[0].mxu0 %v7401
    %v8880 = vpop.f32.mrb[0].mxu0
    %v8881 = vadd.f32 0.0, %v8880
    %v8882 = vpop.f32.mrb[0].mxu0
    %8883 = vmatprep.mubr.f32.mxu0 0.0
    %8884 = vmatmul.mubr.f32.gmra.mrb[0].mxu0 %v7404
    %v8885 = vpop.f32.mrb[0].mxu0
    %v8886 = vadd.f32 0.0, %v8885
    %v8887 = vpop.f32.mrb[0].mxu0
    %8888 = vmatprep.mubr.f32.mxu0 0.0
    %8889 = vmatmul.mubr.f32.gmra.mrb[0].mxu0 %v7407
    %v8890 = vpop.f32.mrb[0].mxu0
    %v8891 = vadd.f32 0.0, %v8890
    %v8892 = vpop.f32.mrb[0].mxu0
    %8893 = vmatprep.mubr.f32.mxu0 0.0
    %8894 = vmatmul.mubr.f32.gmra.mrb[0].mxu0 %v7410
    %v8895 = vpop.f32.mrb[0].mxu0
    %v8896 = vadd.f32 0.0, %v8895
    %v8897 = vpop.f32.mrb[0].mxu0
    %8898 = vmatprep.mubr.f32.mxu0 0.0
    %8899 = vmatmul.mubr.f32.gmra.mrb[0].mxu0 %v7413
    %v8900 = vpop.f32.mrb[0].mxu0
    %v8901 = vadd.f32 0.0, %v8900
    %v8902 = vpop.f32.mrb[0].mxu0
    %8903 = vmatprep.mubr.f32.mxu0 0.0
    %8904 = vmatmul.mubr.f32.gmra.mrb[0].mxu0 %v7416
    %v8905 = vpop.f32.mrb[0].mxu0
    %v8906 = vadd.f32 0.0, %v8905
    %v8907 = vpop.f32.mrb[0].mxu0
    %8908 = vmatprep.mubr.f32.mxu0 0.0
    %8909 = vmatmul.mubr.f32.gmra.mrb[0].mxu0 %v7419
    %v8910 = vpop.f32.mrb[0].mxu0
    %v8911 = vadd.f32 0.0, %v8910
    %v8912 = vpop.f32.mrb[0].mxu0
    %8913 = vdwg.mxu0
    %8930 = vrot.lane.b32.xlu0 %v8836, 4
    %v8931 = vpop.permute.xlu0 %8930
    %8932 = vrot.lane.b32.xlu0 %v8841, 4
    %v8933 = vpop.permute.xlu0 %8932
    %8934 = vrot.lane.b32.xlu0 %v8846, 4
    %v8935 = vpop.permute.xlu0 %8934
    %8936 = vrot.lane.b32.xlu0 %v8851, 4
    %v8937 = vpop.permute.xlu0 %8936
    %8938 = vrot.lane.b32.xlu0 %v8856, 4
    %v8939 = vpop.permute.xlu0 %8938
    %8940 = vrot.lane.b32.xlu0 %v8861, 4
    %v8941 = vpop.permute.xlu0 %8940
    %8942 = vrot.lane.b32.xlu0 %v8866, 4
    %v8943 = vpop.permute.xlu0 %8942
    %8944 = vrot.lane.b32.xlu0 %v8871, 4
    %v8945 = vpop.permute.xlu0 %8944
    %8946 = vrot.lane.b32.xlu0 %v8876, 4
    %v8947 = vpop.permute.xlu0 %8946
    %8948 = vrot.lane.b32.xlu0 %v8881, 4
    %v8949 = vpop.permute.xlu0 %8948
    %8950 = vrot.lane.b32.xlu0 %v8886, 4
    %v8951 = vpop.permute.xlu0 %8950
    %8952 = vrot.lane.b32.xlu0 %v8891, 4
    %v8953 = vpop.permute.xlu0 %8952
    %8954 = vrot.lane.b32.xlu0 %v8896, 4
    %v8955 = vpop.permute.xlu0 %8954
    %8956 = vrot.lane.b32.xlu0 %v8901, 4
    %v8957 = vpop.permute.xlu0 %8956
    %8958 = vrot.lane.b32.xlu0 %v8906, 4
    %v8959 = vpop.permute.xlu0 %8958
    %8960 = vrot.lane.b32.xlu0 %v8911, 4
    %v8961 = vpop.permute.xlu0 %8960
    %v8978 = vadd.f32 %v7357, %v8931
    %v8979 = vadd.f32 %v7358, %v8933
    %v8980 = vadd.f32 %v7359, %v8935
    %v8981 = vadd.f32 %v7360, %v8937
    %v8982 = vadd.f32 %v7361, %v8939
    %v8983 = vadd.f32 %v7362, %v8941
    %v8984 = vadd.f32 %v7363, %v8943
    %v8985 = vadd.f32 %v7364, %v8945
    %v8986 = vadd.f32 %v7365, %v8947
    %v8987 = vadd.f32 %v7366, %v8949
    %v8988 = vadd.f32 %v7367, %v8951
    %v8989 = vadd.f32 %v7368, %v8953
    %v8990 = vadd.f32 %v7369, %v8955
    %v8991 = vadd.f32 %v7370, %v8957
    %v8992 = vadd.f32 %v7371, %v8959
    %v8993 = vadd.f32 %v7372, %v8961
    %v8994 = vsub.f32 0.0, %v8978
    %v8995 = vsub.f32 0.0, %v8979
    %v8996 = vsub.f32 0.0, %v8980
    %v8997 = vsub.f32 0.0, %v8981
    %v8998 = vmul.f32 %v8994, 1.442695
    %v8999 = vpow.pop %v8998
    %v9000 = vmul.f32 %v8995, 1.442695
    %v9001 = vpow.pop %v9000
    %v9002 = vmul.f32 %v8996, 1.442695
    %v9003 = vpow.pop %v9002
    %v9004 = vmul.f32 %v8997, 1.442695
    %v9005 = vpow.pop %v9004
    %v9006 = vadd.f32 %v8999, 1.0
    %v9007 = vadd.f32 %v9001, 1.0
    %v9008 = vadd.f32 %v9003, 1.0
    %v9009 = vadd.f32 %v9005, 1.0
    %v9010 = vrcp.pop %v9006
    %v9011 = vmul.f32 1.0, %v9010
    %v9012 = vrcp.pop %v9007
    %v9013 = vmul.f32 1.0, %v9012
    %v9014 = vrcp.pop %v9008
    %v9015 = vmul.f32 1.0, %v9014
    %v9016 = vrcp.pop %v9009
    %v9017 = vmul.f32 1.0, %v9016
    %v9018 = vsub.f32 0.0, %v8982
    %v9019 = vsub.f32 0.0, %v8983
    %v9020 = vsub.f32 0.0, %v8984
    %v9021 = vsub.f32 0.0, %v8985
    %v9022 = vmul.f32 %v9018, 1.442695
    %v9023 = vpow.pop %v9022
    %v9024 = vmul.f32 %v9019, 1.442695
    %v9025 = vpow.pop %v9024
    %v9026 = vmul.f32 %v9020, 1.442695
    %v9027 = vpow.pop %v9026
    %v9028 = vmul.f32 %v9021, 1.442695
    %v9029 = vpow.pop %v9028
    %v9030 = vadd.f32 %v9023, 1.0
    %v9031 = vadd.f32 %v9025, 1.0
    %v9032 = vadd.f32 %v9027, 1.0
    %v9033 = vadd.f32 %v9029, 1.0
    %v9034 = vrcp.pop %v9030
    %v9035 = vmul.f32 1.0, %v9034
    %v9036 = vrcp.pop %v9031
    %v9037 = vmul.f32 1.0, %v9036
    %v9038 = vrcp.pop %v9032
    %v9039 = vmul.f32 1.0, %v9038
    %v9040 = vrcp.pop %v9033
    %v9041 = vmul.f32 1.0, %v9040
    %v9042 = vtanh.pop %v8986
    %v9043 = vtanh.pop %v8987
    %v9044 = vtanh.pop %v8988
    %v9045 = vtanh.pop %v8989
    %v9046 = vsub.f32 0.0, %v8990
    %v9047 = vsub.f32 0.0, %v8991
    %v9048 = vsub.f32 0.0, %v8992
    %v9049 = vsub.f32 0.0, %v8993
    %v9050 = vmul.f32 %v9046, 1.442695
    %v9051 = vpow.pop %v9050
    %v9052 = vmul.f32 %v9047, 1.442695
    %v9053 = vpow.pop %v9052
    %v9054 = vmul.f32 %v9048, 1.442695
    %v9055 = vpow.pop %v9054
    %v9056 = vmul.f32 %v9049, 1.442695
    %v9057 = vpow.pop %v9056
    %v9058 = vadd.f32 %v9051, 1.0
    %v9059 = vadd.f32 %v9053, 1.0
    %v9060 = vadd.f32 %v9055, 1.0
    %v9061 = vadd.f32 %v9057, 1.0
    %v9062 = vrcp.pop %v9058
    %v9063 = vmul.f32 1.0, %v9062
    %v9064 = vrcp.pop %v9059
    %v9065 = vmul.f32 1.0, %v9064
    %v9066 = vrcp.pop %v9060
    %v9067 = vmul.f32 1.0, %v9066
    %v9068 = vrcp.pop %v9061
    %v9069 = vmul.f32 1.0, %v9068
    %9074 = vrot.lane.b32.xlu0 %v8388, 2
    %v9075 = vpop.permute.xlu0 %9074
    %9076 = vrot.lane.b32.xlu0 %v8389, 2
    %v9077 = vpop.permute.xlu0 %9076
    %9078 = vrot.lane.b32.xlu0 %v8390, 2
    %v9079 = vpop.permute.xlu0 %9078
    %9080 = vrot.lane.b32.xlu0 %v8391, 2
    %v9081 = vpop.permute.xlu0 %9080
    %v9086 = vmul.f32 %v9035, %v9075
    %v9087 = vmul.f32 %v9037, %v9077
    %v9088 = vmul.f32 %v9039, %v9079
    %v9089 = vmul.f32 %v9041, %v9081
    %v9090 = vmul.f32 %v9011, %v9042
    %v9091 = vmul.f32 %v9013, %v9043
    %v9092 = vmul.f32 %v9015, %v9044
    %v9093 = vmul.f32 %v9017, %v9045
    %v9094 = vadd.f32 %v9086, %v9090
    %v9095 = vadd.f32 %v9087, %v9091
    %v9096 = vadd.f32 %v9088, %v9092
    %v9097 = vadd.f32 %v9089, %v9093
    %v9098 = vtanh.pop %v9094
    %v9099 = vtanh.pop %v9095
    %v9100 = vtanh.pop %v9096
    %v9101 = vtanh.pop %v9097
    %v9102 = vmul.f32 %v9063, %v9098
    %v9103 = vmul.f32 %v9065, %v9099
    %v9104 = vmul.f32 %v9067, %v9100
    %v9105 = vmul.f32 %v9069, %v9101
    %9110 = vrot.lane.b32.xlu0 %v8749, 122
    %v9111 = vpop.permute.xlu0 %9110
    %9112 = vrot.lane.b32.xlu0 %v8750, 122
    %v9113 = vpop.permute.xlu0 %9112
    %9114 = vrot.lane.b32.xlu0 %v8751, 122
    %v9115 = vpop.permute.xlu0 %9114
    %9116 = vrot.lane.b32.xlu0 %v8752, 122
    %v9117 = vpop.permute.xlu0 %9116
    %9122 = vmatprep.subr.mxu0 0.0
    %9123 = vmatpush1.msra.mxu0 %v9111
    %9124 = vmatprep.subr.mxu0 0.0
    %9125 = vmatpush1.msra.mxu0 %v9113
    %9126 = vmatprep.subr.mxu0 0.0
    %9127 = vmatpush1.msra.mxu0 %v9115
    %9128 = vmatprep.subr.mxu0 0.0
    %9129 = vmatpush1.msra.mxu0 %v9117
    %9130 = vmatprep.subr.mxu0 0.0
    %9131 = vmatpush1.msra.mxu0 0.0
    %9132 = vmatprep.subr.mxu0 0.0
    %9133 = vmatpush1.msra.mxu0 0.0
    %9134 = vmatprep.subr.mxu0 0.0
    %9135 = vmatpush1.msra.mxu0 0.0
    %9136 = vmatprep.subr.mxu0 0.0
    %9137 = vmatpush1.msra.mxu0 0.0
    %9138 = vmatprep.subr.mxu0 0.0
    %9139 = vmatpush1.msra.mxu0 0.0
    %9140 = vmatprep.subr.mxu0 0.0
    %9141 = vmatpush1.msra.mxu0 0.0
    %9142 = vmatprep.subr.mxu0 0.0
    %9143 = vmatpush1.msra.mxu0 0.0
    %9144 = vmatprep.subr.mxu0 0.0
    %9145 = vmatpush1.msra.mxu0 0.0
    %9146 = vmatprep.subr.mxu0 0.0
    %9147 = vmatpush1.msra.mxu0 0.0
    %9148 = vmatprep.subr.mxu0 0.0
    %9149 = vmatpush1.msra.mxu0 0.0
    %9150 = vmatprep.subr.mxu0 0.0
    %9151 = vmatpush1.msra.mxu0 0.0
    %9152 = vmatprep.subr.mxu0 0.0
    %9153 = vmatpush1.msra.mxu0 0.0
    %9154 = vmatprep.subr.mxu0 0.0
    %9155 = vmatpush1.msra.mxu0 0.0
    %9156 = vmatprep.subr.mxu0 0.0
    %9157 = vmatpush1.msra.mxu0 0.0
    %9158 = vmatprep.subr.mxu0 0.0
    %9159 = vmatpush1.msra.mxu0 0.0
    %9160 = vmatprep.subr.mxu0 0.0
    %9161 = vmatpush1.msra.mxu0 0.0
    %9162 = vmatprep.subr.mxu0 0.0
    %9163 = vmatpush1.msra.mxu0 0.0
    %9164 = vmatprep.subr.mxu0 0.0
    %9165 = vmatpush1.msra.mxu0 0.0
    %9166 = vmatprep.subr.mxu0 0.0
    %9167 = vmatpush1.msra.mxu0 0.0
    %9168 = vmatprep.subr.mxu0 0.0
    %9169 = vmatpush1.msra.mxu0 0.0
    %9170 = vmatprep.subr.mxu0 0.0
    %9171 = vmatpush1.msra.mxu0 0.0
    %9172 = vmatprep.subr.mxu0 0.0
    %9173 = vmatpush1.msra.mxu0 0.0
    %9174 = vmatprep.subr.mxu0 0.0
    %9175 = vmatpush1.msra.mxu0 0.0
    %9176 = vmatprep.subr.mxu0 0.0
    %9177 = vmatpush1.msra.mxu0 0.0
    %9178 = vmatprep.subr.mxu0 0.0
    %9179 = vmatpush1.msra.mxu0 0.0
    %9180 = vmatprep.subr.mxu0 0.0
    %9181 = vmatpush1.msra.mxu0 0.0
    %9182 = vmatprep.subr.mxu0 0.0
    %9183 = vmatpush1.msra.mxu0 0.0
    %9184 = vmatprep.subr.mxu0 0.0
    %9185 = vmatpush1.msra.mxu0 0.0
    %9186 = vmatprep.mubr.f32.mxu0 0.0
    %9187 = vmatmul.mubr.f32.gmra.mrb[0].mxu0 %v7695
    %v9188 = vpop.f32.mrb[0].mxu0
    %v9189 = vadd.f32 0.0, %v9188
    %v9190 = vpop.f32.mrb[0].mxu0
    %9191 = vmatprep.mubr.f32.mxu0 0.0
    %9192 = vmatmul.mubr.f32.gmra.mrb[0].mxu0 %v7698
    %v9193 = vpop.f32.mrb[0].mxu0
    %v9194 = vadd.f32 0.0, %v9193
    %v9195 = vpop.f32.mrb[0].mxu0
    %9196 = vmatprep.mubr.f32.mxu0 0.0
    %9197 = vmatmul.mubr.f32.gmra.mrb[0].mxu0 %v7701
    %v9198 = vpop.f32.mrb[0].mxu0
    %v9199 = vadd.f32 0.0, %v9198
    %v9200 = vpop.f32.mrb[0].mxu0
    %9201 = vmatprep.mubr.f32.mxu0 0.0
    %9202 = vmatmul.mubr.f32.gmra.mrb[0].mxu0 %v7704
    %v9203 = vpop.f32.mrb[0].mxu0
    %v9204 = vadd.f32 0.0, %v9203
    %v9205 = vpop.f32.mrb[0].mxu0
    %9206 = vmatprep.mubr.f32.mxu0 0.0
    %9207 = vmatmul.mubr.f32.gmra.mrb[0].mxu0 %v7707
    %v9208 = vpop.f32.mrb[0].mxu0
    %v9209 = vadd.f32 0.0, %v9208
    %v9210 = vpop.f32.mrb[0].mxu0
    %9211 = vmatprep.mubr.f32.mxu0 0.0
    %9212 = vmatmul.mubr.f32.gmra.mrb[0].mxu0 %v7710
    %v9213 = vpop.f32.mrb[0].mxu0
    %v9214 = vadd.f32 0.0, %v9213
    %v9215 = vpop.f32.mrb[0].mxu0
    %9216 = vmatprep.mubr.f32.mxu0 0.0
    %9217 = vmatmul.mubr.f32.gmra.mrb[0].mxu0 %v7713
    %v9218 = vpop.f32.mrb[0].mxu0
    %v9219 = vadd.f32 0.0, %v9218
    %v9220 = vpop.f32.mrb[0].mxu0
    %9221 = vmatprep.mubr.f32.mxu0 0.0
    %9222 = vmatmul.mubr.f32.gmra.mrb[0].mxu0 %v7716
    %v9223 = vpop.f32.mrb[0].mxu0
    %v9224 = vadd.f32 0.0, %v9223
    %v9225 = vpop.f32.mrb[0].mxu0
    %9226 = vmatprep.mubr.f32.mxu0 0.0
    %9227 = vmatmul.mubr.f32.gmra.mrb[0].mxu0 %v7719
    %v9228 = vpop.f32.mrb[0].mxu0
    %v9229 = vadd.f32 0.0, %v9228
    %v9230 = vpop.f32.mrb[0].mxu0
    %9231 = vmatprep.mubr.f32.mxu0 0.0
    %9232 = vmatmul.mubr.f32.gmra.mrb[0].mxu0 %v7722
    %v9233 = vpop.f32.mrb[0].mxu0
    %v9234 = vadd.f32 0.0, %v9233
    %v9235 = vpop.f32.mrb[0].mxu0
    %9236 = vmatprep.mubr.f32.mxu0 0.0
    %9237 = vmatmul.mubr.f32.gmra.mrb[0].mxu0 %v7725
    %v9238 = vpop.f32.mrb[0].mxu0
    %v9239 = vadd.f32 0.0, %v9238
    %v9240 = vpop.f32.mrb[0].mxu0
    %9241 = vmatprep.mubr.f32.mxu0 0.0
    %9242 = vmatmul.mubr.f32.gmra.mrb[0].mxu0 %v7728
    %v9243 = vpop.f32.mrb[0].mxu0
    %v9244 = vadd.f32 0.0, %v9243
    %v9245 = vpop.f32.mrb[0].mxu0
    %9246 = vmatprep.mubr.f32.mxu0 0.0
    %9247 = vmatmul.mubr.f32.gmra.mrb[0].mxu0 %v7731
    %v9248 = vpop.f32.mrb[0].mxu0
    %v9249 = vadd.f32 0.0, %v9248
    %v9250 = vpop.f32.mrb[0].mxu0
    %9251 = vmatprep.mubr.f32.mxu0 0.0
    %9252 = vmatmul.mubr.f32.gmra.mrb[0].mxu0 %v7734
    %v9253 = vpop.f32.mrb[0].mxu0
    %v9254 = vadd.f32 0.0, %v9253
    %v9255 = vpop.f32.mrb[0].mxu0
    %9256 = vmatprep.mubr.f32.mxu0 0.0
    %9257 = vmatmul.mubr.f32.gmra.mrb[0].mxu0 %v7737
    %v9258 = vpop.f32.mrb[0].mxu0
    %v9259 = vadd.f32 0.0, %v9258
    %v9260 = vpop.f32.mrb[0].mxu0
    %9261 = vmatprep.mubr.f32.mxu0 0.0
    %9262 = vmatmul.mubr.f32.gmra.mrb[0].mxu0 %v7740
    %v9263 = vpop.f32.mrb[0].mxu0
    %v9264 = vadd.f32 0.0, %v9263
    %v9265 = vpop.f32.mrb[0].mxu0
    %9266 = vdwg.mxu0
    %9283 = vrot.lane.b32.xlu0 %v9189, 4
    %v9284 = vpop.permute.xlu0 %9283
    %9285 = vrot.lane.b32.xlu0 %v9194, 4
    %v9286 = vpop.permute.xlu0 %9285
    %9287 = vrot.lane.b32.xlu0 %v9199, 4
    %v9288 = vpop.permute.xlu0 %9287
    %9289 = vrot.lane.b32.xlu0 %v9204, 4
    %v9290 = vpop.permute.xlu0 %9289
    %9291 = vrot.lane.b32.xlu0 %v9209, 4
    %v9292 = vpop.permute.xlu0 %9291
    %9293 = vrot.lane.b32.xlu0 %v9214, 4
    %v9294 = vpop.permute.xlu0 %9293
    %9295 = vrot.lane.b32.xlu0 %v9219, 4
    %v9296 = vpop.permute.xlu0 %9295
    %9297 = vrot.lane.b32.xlu0 %v9224, 4
    %v9298 = vpop.permute.xlu0 %9297
    %9299 = vrot.lane.b32.xlu0 %v9229, 4
    %v9300 = vpop.permute.xlu0 %9299
    %9301 = vrot.lane.b32.xlu0 %v9234, 4
    %v9302 = vpop.permute.xlu0 %9301
    %9303 = vrot.lane.b32.xlu0 %v9239, 4
    %v9304 = vpop.permute.xlu0 %9303
    %9305 = vrot.lane.b32.xlu0 %v9244, 4
    %v9306 = vpop.permute.xlu0 %9305
    %9307 = vrot.lane.b32.xlu0 %v9249, 4
    %v9308 = vpop.permute.xlu0 %9307
    %9309 = vrot.lane.b32.xlu0 %v9254, 4
    %v9310 = vpop.permute.xlu0 %9309
    %9311 = vrot.lane.b32.xlu0 %v9259, 4
    %v9312 = vpop.permute.xlu0 %9311
    %9313 = vrot.lane.b32.xlu0 %v9264, 4
    %v9314 = vpop.permute.xlu0 %9313
    %v9331 = vadd.f32 %v7678, %v9284
    %v9332 = vadd.f32 %v7679, %v9286
    %v9333 = vadd.f32 %v7680, %v9288
    %v9334 = vadd.f32 %v7681, %v9290
    %v9335 = vadd.f32 %v7682, %v9292
    %v9336 = vadd.f32 %v7683, %v9294
    %v9337 = vadd.f32 %v7684, %v9296
    %v9338 = vadd.f32 %v7685, %v9298
    %v9339 = vadd.f32 %v7686, %v9300
    %v9340 = vadd.f32 %v7687, %v9302
    %v9341 = vadd.f32 %v7688, %v9304
    %v9342 = vadd.f32 %v7689, %v9306
    %v9343 = vadd.f32 %v7690, %v9308
    %v9344 = vadd.f32 %v7691, %v9310
    %v9345 = vadd.f32 %v7692, %v9312
    %v9346 = vadd.f32 %v7693, %v9314
    %v9347 = vsub.f32 0.0, %v9331
    %v9348 = vsub.f32 0.0, %v9332
    %v9349 = vsub.f32 0.0, %v9333
    %v9350 = vsub.f32 0.0, %v9334
    %v9351 = vmul.f32 %v9347, 1.442695
    %v9352 = vpow.pop %v9351
    %v9353 = vmul.f32 %v9348, 1.442695
    %v9354 = vpow.pop %v9353
    %v9355 = vmul.f32 %v9349, 1.442695
    %v9356 = vpow.pop %v9355
    %v9357 = vmul.f32 %v9350, 1.442695
    %v9358 = vpow.pop %v9357
    %v9359 = vadd.f32 %v9352, 1.0
    %v9360 = vadd.f32 %v9354, 1.0
    %v9361 = vadd.f32 %v9356, 1.0
    %v9362 = vadd.f32 %v9358, 1.0
    %v9363 = vrcp.pop %v9359
    %v9364 = vmul.f32 1.0, %v9363
    %v9365 = vrcp.pop %v9360
    %v9366 = vmul.f32 1.0, %v9365
    %v9367 = vrcp.pop %v9361
    %v9368 = vmul.f32 1.0, %v9367
    %v9369 = vrcp.pop %v9362
    %v9370 = vmul.f32 1.0, %v9369
    %v9371 = vsub.f32 0.0, %v9335
    %v9372 = vsub.f32 0.0, %v9336
    %v9373 = vsub.f32 0.0, %v9337
    %v9374 = vsub.f32 0.0, %v9338
    %v9375 = vmul.f32 %v9371, 1.442695
    %v9376 = vpow.pop %v9375
    %v9377 = vmul.f32 %v9372, 1.442695
    %v9378 = vpow.pop %v9377
    %v9379 = vmul.f32 %v9373, 1.442695
    %v9380 = vpow.pop %v9379
    %v9381 = vmul.f32 %v9374, 1.442695
    %v9382 = vpow.pop %v9381
    %v9383 = vadd.f32 %v9376, 1.0
    %v9384 = vadd.f32 %v9378, 1.0
    %v9385 = vadd.f32 %v9380, 1.0
    %v9386 = vadd.f32 %v9382, 1.0
    %v9387 = vrcp.pop %v9383
    %v9388 = vmul.f32 1.0, %v9387
    %v9389 = vrcp.pop %v9384
    %v9390 = vmul.f32 1.0, %v9389
    %v9391 = vrcp.pop %v9385
    %v9392 = vmul.f32 1.0, %v9391
    %v9393 = vrcp.pop %v9386
    %v9394 = vmul.f32 1.0, %v9393
    %v9395 = vtanh.pop %v9339
    %v9396 = vtanh.pop %v9340
    %v9397 = vtanh.pop %v9341
    %v9398 = vtanh.pop %v9342
    %v9399 = vsub.f32 0.0, %v9343
    %v9400 = vsub.f32 0.0, %v9344
    %v9401 = vsub.f32 0.0, %v9345
    %v9402 = vsub.f32 0.0, %v9346
    %v9403 = vmul.f32 %v9399, 1.442695
    %v9404 = vpow.pop %v9403
    %v9405 = vmul.f32 %v9400, 1.442695
    %v9406 = vpow.pop %v9405
    %v9407 = vmul.f32 %v9401, 1.442695
    %v9408 = vpow.pop %v9407
    %v9409 = vmul.f32 %v9402, 1.442695
    %v9410 = vpow.pop %v9409
    %v9411 = vadd.f32 %v9404, 1.0
    %v9412 = vadd.f32 %v9406, 1.0
    %v9413 = vadd.f32 %v9408, 1.0
    %v9414 = vadd.f32 %v9410, 1.0
    %v9415 = vrcp.pop %v9411
    %v9416 = vmul.f32 1.0, %v9415
    %v9417 = vrcp.pop %v9412
    %v9418 = vmul.f32 1.0, %v9417
    %v9419 = vrcp.pop %v9413
    %v9420 = vmul.f32 1.0, %v9419
    %v9421 = vrcp.pop %v9414
    %v9422 = vmul.f32 1.0, %v9421
    %9427 = vrot.lane.b32.xlu0 %v8741, 126
    %v9428 = vpop.permute.xlu0 %9427
    %9429 = vrot.lane.b32.xlu0 %v8742, 126
    %v9430 = vpop.permute.xlu0 %9429
    %9431 = vrot.lane.b32.xlu0 %v8743, 126
    %v9432 = vpop.permute.xlu0 %9431
    %9433 = vrot.lane.b32.xlu0 %v8744, 126
    %v9434 = vpop.permute.xlu0 %9433
    %v9439 = vmul.f32 %v9388, %v9428
    %v9440 = vmul.f32 %v9390, %v9430
    %v9441 = vmul.f32 %v9392, %v9432
    %v9442 = vmul.f32 %v9394, %v9434
    %v9443 = vmul.f32 %v9364, %v9395
    %v9444 = vmul.f32 %v9366, %v9396
    %v9445 = vmul.f32 %v9368, %v9397
    %v9446 = vmul.f32 %v9370, %v9398
    %v9447 = vadd.f32 %v9439, %v9443
    %v9448 = vadd.f32 %v9440, %v9444
    %v9449 = vadd.f32 %v9441, %v9445
    %v9450 = vadd.f32 %v9442, %v9446
    %v9451 = vtanh.pop %v9447
    %v9452 = vtanh.pop %v9448
    %v9453 = vtanh.pop %v9449
    %v9454 = vtanh.pop %v9450
    %v9455 = vmul.f32 %v9416, %v9451
    %v9456 = vmul.f32 %v9418, %v9452
    %v9457 = vmul.f32 %v9420, %v9453
    %v9458 = vmul.f32 %v9422, %v9454
    %9463 = vrot.lane.b32.xlu0 %v9102, 124
    %v9464 = vpop.permute.xlu0 %9463
    %9465 = vrot.lane.b32.xlu0 %v9103, 124
    %v9466 = vpop.permute.xlu0 %9465
    %9467 = vrot.lane.b32.xlu0 %v9104, 124
    %v9468 = vpop.permute.xlu0 %9467
    %9469 = vrot.lane.b32.xlu0 %v9105, 124
    %v9470 = vpop.permute.xlu0 %9469
    %9475 = vmatprep.subr.mxu0 0.0
    %9476 = vmatpush1.msra.mxu0 %v9464
    %9477 = vmatprep.subr.mxu0 0.0
    %9478 = vmatpush1.msra.mxu0 %v9466
    %9479 = vmatprep.subr.mxu0 0.0
    %9480 = vmatpush1.msra.mxu0 %v9468
    %9481 = vmatprep.subr.mxu0 0.0
    %9482 = vmatpush1.msra.mxu0 %v9470
    %9483 = vmatprep.subr.mxu0 0.0
    %9484 = vmatpush1.msra.mxu0 0.0
    %9485 = vmatprep.subr.mxu0 0.0
    %9486 = vmatpush1.msra.mxu0 0.0
    %9487 = vmatprep.subr.mxu0 0.0
    %9488 = vmatpush1.msra.mxu0 0.0
    %9489 = vmatprep.subr.mxu0 0.0
    %9490 = vmatpush1.msra.mxu0 0.0
    %9491 = vmatprep.subr.mxu0 0.0
    %9492 = vmatpush1.msra.mxu0 0.0
    %9493 = vmatprep.subr.mxu0 0.0
    %9494 = vmatpush1.msra.mxu0 0.0
    %9495 = vmatprep.subr.mxu0 0.0
    %9496 = vmatpush1.msra.mxu0 0.0
    %9497 = vmatprep.subr.mxu0 0.0
    %9498 = vmatpush1.msra.mxu0 0.0
    %9499 = vmatprep.subr.mxu0 0.0
    %9500 = vmatpush1.msra.mxu0 0.0
    %9501 = vmatprep.subr.mxu0 0.0
    %9502 = vmatpush1.msra.mxu0 0.0
    %9503 = vmatprep.subr.mxu0 0.0
    %9504 = vmatpush1.msra.mxu0 0.0
    %9505 = vmatprep.subr.mxu0 0.0
    %9506 = vmatpush1.msra.mxu0 0.0
    %9507 = vmatprep.subr.mxu0 0.0
    %9508 = vmatpush1.msra.mxu0 0.0
    %9509 = vmatprep.subr.mxu0 0.0
    %9510 = vmatpush1.msra.mxu0 0.0
    %9511 = vmatprep.subr.mxu0 0.0
    %9512 = vmatpush1.msra.mxu0 0.0
    %9513 = vmatprep.subr.mxu0 0.0
    %9514 = vmatpush1.msra.mxu0 0.0
    %9515 = vmatprep.subr.mxu0 0.0
    %9516 = vmatpush1.msra.mxu0 0.0
    %9517 = vmatprep.subr.mxu0 0.0
    %9518 = vmatpush1.msra.mxu0 0.0
    %9519 = vmatprep.subr.mxu0 0.0
    %9520 = vmatpush1.msra.mxu0 0.0
    %9521 = vmatprep.subr.mxu0 0.0
    %9522 = vmatpush1.msra.mxu0 0.0
    %9523 = vmatprep.subr.mxu0 0.0
    %9524 = vmatpush1.msra.mxu0 0.0
    %9525 = vmatprep.subr.mxu0 0.0
    %9526 = vmatpush1.msra.mxu0 0.0
    %9527 = vmatprep.subr.mxu0 0.0
    %9528 = vmatpush1.msra.mxu0 0.0
    %9529 = vmatprep.subr.mxu0 0.0
    %9530 = vmatpush1.msra.mxu0 0.0
    %9531 = vmatprep.subr.mxu0 0.0
    %9532 = vmatpush1.msra.mxu0 0.0
    %9533 = vmatprep.subr.mxu0 0.0
    %9534 = vmatpush1.msra.mxu0 0.0
    %9535 = vmatprep.subr.mxu0 0.0
    %9536 = vmatpush1.msra.mxu0 0.0
    %9537 = vmatprep.subr.mxu0 0.0
    %9538 = vmatpush1.msra.mxu0 0.0
    %9539 = vmatprep.mubr.f32.mxu0 0.0
    %9540 = vmatmul.mubr.f32.gmra.mrb[0].mxu0 %v7374
    %v9541 = vpop.f32.mrb[0].mxu0
    %v9542 = vadd.f32 0.0, %v9541
    %v9543 = vpop.f32.mrb[0].mxu0
    %9544 = vmatprep.mubr.f32.mxu0 0.0
    %9545 = vmatmul.mubr.f32.gmra.mrb[0].mxu0 %v7377
    %v9546 = vpop.f32.mrb[0].mxu0
    %v9547 = vadd.f32 0.0, %v9546
    %v9548 = vpop.f32.mrb[0].mxu0
    %9549 = vmatprep.mubr.f32.mxu0 0.0
    %9550 = vmatmul.mubr.f32.gmra.mrb[0].mxu0 %v7380
    %v9551 = vpop.f32.mrb[0].mxu0
    %v9552 = vadd.f32 0.0, %v9551
    %v9553 = vpop.f32.mrb[0].mxu0
    %9554 = vmatprep.mubr.f32.mxu0 0.0
    %9555 = vmatmul.mubr.f32.gmra.mrb[0].mxu0 %v7383
    %v9556 = vpop.f32.mrb[0].mxu0
    %v9557 = vadd.f32 0.0, %v9556
    %v9558 = vpop.f32.mrb[0].mxu0
    %9559 = vmatprep.mubr.f32.mxu0 0.0
    %9560 = vmatmul.mubr.f32.gmra.mrb[0].mxu0 %v7386
    %v9561 = vpop.f32.mrb[0].mxu0
    %v9562 = vadd.f32 0.0, %v9561
    %v9563 = vpop.f32.mrb[0].mxu0
    %9564 = vmatprep.mubr.f32.mxu0 0.0
    %9565 = vmatmul.mubr.f32.gmra.mrb[0].mxu0 %v7389
    %v9566 = vpop.f32.mrb[0].mxu0
    %v9567 = vadd.f32 0.0, %v9566
    %v9568 = vpop.f32.mrb[0].mxu0
    %9569 = vmatprep.mubr.f32.mxu0 0.0
    %9570 = vmatmul.mubr.f32.gmra.mrb[0].mxu0 %v7392
    %v9571 = vpop.f32.mrb[0].mxu0
    %v9572 = vadd.f32 0.0, %v9571
    %v9573 = vpop.f32.mrb[0].mxu0
    %9574 = vmatprep.mubr.f32.mxu0 0.0
    %9575 = vmatmul.mubr.f32.gmra.mrb[0].mxu0 %v7395
    %v9576 = vpop.f32.mrb[0].mxu0
    %v9577 = vadd.f32 0.0, %v9576
    %v9578 = vpop.f32.mrb[0].mxu0
    %9579 = vmatprep.mubr.f32.mxu0 0.0
    %9580 = vmatmul.mubr.f32.gmra.mrb[0].mxu0 %v7398
    %v9581 = vpop.f32.mrb[0].mxu0
    %v9582 = vadd.f32 0.0, %v9581
    %v9583 = vpop.f32.mrb[0].mxu0
    %9584 = vmatprep.mubr.f32.mxu0 0.0
    %9585 = vmatmul.mubr.f32.gmra.mrb[0].mxu0 %v7401
    %v9586 = vpop.f32.mrb[0].mxu0
    %v9587 = vadd.f32 0.0, %v9586
    %v9588 = vpop.f32.mrb[0].mxu0
    %9589 = vmatprep.mubr.f32.mxu0 0.0
    %9590 = vmatmul.mubr.f32.gmra.mrb[0].mxu0 %v7404
    %v9591 = vpop.f32.mrb[0].mxu0
    %v9592 = vadd.f32 0.0, %v9591
    %v9593 = vpop.f32.mrb[0].mxu0
    %9594 = vmatprep.mubr.f32.mxu0 0.0
    %9595 = vmatmul.mubr.f32.gmra.mrb[0].mxu0 %v7407
    %v9596 = vpop.f32.mrb[0].mxu0
    %v9597 = vadd.f32 0.0, %v9596
    %v9598 = vpop.f32.mrb[0].mxu0
    %9599 = vmatprep.mubr.f32.mxu0 0.0
    %9600 = vmatmul.mubr.f32.gmra.mrb[0].mxu0 %v7410
    %v9601 = vpop.f32.mrb[0].mxu0
    %v9602 = vadd.f32 0.0, %v9601
    %v9603 = vpop.f32.mrb[0].mxu0
    %9604 = vmatprep.mubr.f32.mxu0 0.0
    %9605 = vmatmul.mubr.f32.gmra.mrb[0].mxu0 %v7413
    %v9606 = vpop.f32.mrb[0].mxu0
    %v9607 = vadd.f32 0.0, %v9606
    %v9608 = vpop.f32.mrb[0].mxu0
    %9609 = vmatprep.mubr.f32.mxu0 0.0
    %9610 = vmatmul.mubr.f32.gmra.mrb[0].mxu0 %v7416
    %v9611 = vpop.f32.mrb[0].mxu0
    %v9612 = vadd.f32 0.0, %v9611
    %v9613 = vpop.f32.mrb[0].mxu0
    %9614 = vmatprep.mubr.f32.mxu0 0.0
    %9615 = vmatmul.mubr.f32.gmra.mrb[0].mxu0 %v7419
    %v9616 = vpop.f32.mrb[0].mxu0
    %v9617 = vadd.f32 0.0, %v9616
    %v9618 = vpop.f32.mrb[0].mxu0
    %9619 = vdwg.mxu0
    %9636 = vrot.lane.b32.xlu0 %v9542, 6
    %v9637 = vpop.permute.xlu0 %9636
    %9638 = vrot.lane.b32.xlu0 %v9547, 6
    %v9639 = vpop.permute.xlu0 %9638
    %9640 = vrot.lane.b32.xlu0 %v9552, 6
    %v9641 = vpop.permute.xlu0 %9640
    %9642 = vrot.lane.b32.xlu0 %v9557, 6
    %v9643 = vpop.permute.xlu0 %9642
    %9644 = vrot.lane.b32.xlu0 %v9562, 6
    %v9645 = vpop.permute.xlu0 %9644
    %9646 = vrot.lane.b32.xlu0 %v9567, 6
    %v9647 = vpop.permute.xlu0 %9646
    %9648 = vrot.lane.b32.xlu0 %v9572, 6
    %v9649 = vpop.permute.xlu0 %9648
    %9650 = vrot.lane.b32.xlu0 %v9577, 6
    %v9651 = vpop.permute.xlu0 %9650
    %9652 = vrot.lane.b32.xlu0 %v9582, 6
    %v9653 = vpop.permute.xlu0 %9652
    %9654 = vrot.lane.b32.xlu0 %v9587, 6
    %v9655 = vpop.permute.xlu0 %9654
    %9656 = vrot.lane.b32.xlu0 %v9592, 6
    %v9657 = vpop.permute.xlu0 %9656
    %9658 = vrot.lane.b32.xlu0 %v9597, 6
    %v9659 = vpop.permute.xlu0 %9658
    %9660 = vrot.lane.b32.xlu0 %v9602, 6
    %v9661 = vpop.permute.xlu0 %9660
    %9662 = vrot.lane.b32.xlu0 %v9607, 6
    %v9663 = vpop.permute.xlu0 %9662
    %9664 = vrot.lane.b32.xlu0 %v9612, 6
    %v9665 = vpop.permute.xlu0 %9664
    %9666 = vrot.lane.b32.xlu0 %v9617, 6
    %v9667 = vpop.permute.xlu0 %9666
    %v9684 = vadd.f32 %v7357, %v9637
    %v9685 = vadd.f32 %v7358, %v9639
    %v9686 = vadd.f32 %v7359, %v9641
    %v9687 = vadd.f32 %v7360, %v9643
    %v9688 = vadd.f32 %v7361, %v9645
    %v9689 = vadd.f32 %v7362, %v9647
    %v9690 = vadd.f32 %v7363, %v9649
    %v9691 = vadd.f32 %v7364, %v9651
    %v9692 = vadd.f32 %v7365, %v9653
    %v9693 = vadd.f32 %v7366, %v9655
    %v9694 = vadd.f32 %v7367, %v9657
    %v9695 = vadd.f32 %v7368, %v9659
    %v9696 = vadd.f32 %v7369, %v9661
    %v9697 = vadd.f32 %v7370, %v9663
    %v9698 = vadd.f32 %v7371, %v9665
    %v9699 = vadd.f32 %v7372, %v9667
    %v9700 = vsub.f32 0.0, %v9684
    %v9701 = vsub.f32 0.0, %v9685
    %v9702 = vsub.f32 0.0, %v9686
    %v9703 = vsub.f32 0.0, %v9687
    %v9704 = vmul.f32 %v9700, 1.442695
    %v9705 = vpow.pop %v9704
    %v9706 = vmul.f32 %v9701, 1.442695
    %v9707 = vpow.pop %v9706
    %v9708 = vmul.f32 %v9702, 1.442695
    %v9709 = vpow.pop %v9708
    %v9710 = vmul.f32 %v9703, 1.442695
    %v9711 = vpow.pop %v9710
    %v9712 = vadd.f32 %v9705, 1.0
    %v9713 = vadd.f32 %v9707, 1.0
    %v9714 = vadd.f32 %v9709, 1.0
    %v9715 = vadd.f32 %v9711, 1.0
    %v9716 = vrcp.pop %v9712
    %v9717 = vmul.f32 1.0, %v9716
    %v9718 = vrcp.pop %v9713
    %v9719 = vmul.f32 1.0, %v9718
    %v9720 = vrcp.pop %v9714
    %v9721 = vmul.f32 1.0, %v9720
    %v9722 = vrcp.pop %v9715
    %v9723 = vmul.f32 1.0, %v9722
    %v9724 = vsub.f32 0.0, %v9688
    %v9725 = vsub.f32 0.0, %v9689
    %v9726 = vsub.f32 0.0, %v9690
    %v9727 = vsub.f32 0.0, %v9691
    %v9728 = vmul.f32 %v9724, 1.442695
    %v9729 = vpow.pop %v9728
    %v9730 = vmul.f32 %v9725, 1.442695
    %v9731 = vpow.pop %v9730
    %v9732 = vmul.f32 %v9726, 1.442695
    %v9733 = vpow.pop %v9732
    %v9734 = vmul.f32 %v9727, 1.442695
    %v9735 = vpow.pop %v9734
    %v9736 = vadd.f32 %v9729, 1.0
    %v9737 = vadd.f32 %v9731, 1.0
    %v9738 = vadd.f32 %v9733, 1.0
    %v9739 = vadd.f32 %v9735, 1.0
    %v9740 = vrcp.pop %v9736
    %v9741 = vmul.f32 1.0, %v9740
    %v9742 = vrcp.pop %v9737
    %v9743 = vmul.f32 1.0, %v9742
    %v9744 = vrcp.pop %v9738
    %v9745 = vmul.f32 1.0, %v9744
    %v9746 = vrcp.pop %v9739
    %v9747 = vmul.f32 1.0, %v9746
    %v9748 = vtanh.pop %v9692
    %v9749 = vtanh.pop %v9693
    %v9750 = vtanh.pop %v9694
    %v9751 = vtanh.pop %v9695
    %v9752 = vsub.f32 0.0, %v9696
    %v9753 = vsub.f32 0.0, %v9697
    %v9754 = vsub.f32 0.0, %v9698
    %v9755 = vsub.f32 0.0, %v9699
    %v9756 = vmul.f32 %v9752, 1.442695
    %v9757 = vpow.pop %v9756
    %v9758 = vmul.f32 %v9753, 1.442695
    %v9759 = vpow.pop %v9758
    %v9760 = vmul.f32 %v9754, 1.442695
    %v9761 = vpow.pop %v9760
    %v9762 = vmul.f32 %v9755, 1.442695
    %v9763 = vpow.pop %v9762
    %v9764 = vadd.f32 %v9757, 1.0
    %v9765 = vadd.f32 %v9759, 1.0
    %v9766 = vadd.f32 %v9761, 1.0
    %v9767 = vadd.f32 %v9763, 1.0
    %v9768 = vrcp.pop %v9764
    %v9769 = vmul.f32 1.0, %v9768
    %v9770 = vrcp.pop %v9765
    %v9771 = vmul.f32 1.0, %v9770
    %v9772 = vrcp.pop %v9766
    %v9773 = vmul.f32 1.0, %v9772
    %v9774 = vrcp.pop %v9767
    %v9775 = vmul.f32 1.0, %v9774
    %9780 = vrot.lane.b32.xlu0 %v9094, 2
    %v9781 = vpop.permute.xlu0 %9780
    %9782 = vrot.lane.b32.xlu0 %v9095, 2
    %v9783 = vpop.permute.xlu0 %9782
    %9784 = vrot.lane.b32.xlu0 %v9096, 2
    %v9785 = vpop.permute.xlu0 %9784
    %9786 = vrot.lane.b32.xlu0 %v9097, 2
    %v9787 = vpop.permute.xlu0 %9786
    %v9792 = vmul.f32 %v9741, %v9781
    %v9793 = vmul.f32 %v9743, %v9783
    %v9794 = vmul.f32 %v9745, %v9785
    %v9795 = vmul.f32 %v9747, %v9787
    %v9796 = vmul.f32 %v9717, %v9748
    %v9797 = vmul.f32 %v9719, %v9749
    %v9798 = vmul.f32 %v9721, %v9750
    %v9799 = vmul.f32 %v9723, %v9751
    %v9800 = vadd.f32 %v9792, %v9796
    %v9801 = vadd.f32 %v9793, %v9797
    %v9802 = vadd.f32 %v9794, %v9798
    %v9803 = vadd.f32 %v9795, %v9799
    %v9804 = vtanh.pop %v9800
    %v9805 = vtanh.pop %v9801
    %v9806 = vtanh.pop %v9802
    %v9807 = vtanh.pop %v9803
    %v9808 = vmul.f32 %v9769, %v9804
    %v9809 = vmul.f32 %v9771, %v9805
    %v9810 = vmul.f32 %v9773, %v9806
    %v9811 = vmul.f32 %v9775, %v9807
    %9816 = vrot.lane.b32.xlu0 %v9455, 124
    %v9817 = vpop.permute.xlu0 %9816
    %9818 = vrot.lane.b32.xlu0 %v9456, 124
    %v9819 = vpop.permute.xlu0 %9818
    %9820 = vrot.lane.b32.xlu0 %v9457, 124
    %v9821 = vpop.permute.xlu0 %9820
    %9822 = vrot.lane.b32.xlu0 %v9458, 124
    %v9823 = vpop.permute.xlu0 %9822
    %9828 = vmatprep.subr.mxu0 0.0
    %9829 = vmatpush1.msra.mxu0 %v9817
    %9830 = vmatprep.subr.mxu0 0.0
    %9831 = vmatpush1.msra.mxu0 %v9819
    %9832 = vmatprep.subr.mxu0 0.0
    %9833 = vmatpush1.msra.mxu0 %v9821
    %9834 = vmatprep.subr.mxu0 0.0
    %9835 = vmatpush1.msra.mxu0 %v9823
    %9836 = vmatprep.subr.mxu0 0.0
    %9837 = vmatpush1.msra.mxu0 0.0
    %9838 = vmatprep.subr.mxu0 0.0
    %9839 = vmatpush1.msra.mxu0 0.0
    %9840 = vmatprep.subr.mxu0 0.0
    %9841 = vmatpush1.msra.mxu0 0.0
    %9842 = vmatprep.subr.mxu0 0.0
    %9843 = vmatpush1.msra.mxu0 0.0
    %9844 = vmatprep.subr.mxu0 0.0
    %9845 = vmatpush1.msra.mxu0 0.0
    %9846 = vmatprep.subr.mxu0 0.0
    %9847 = vmatpush1.msra.mxu0 0.0
    %9848 = vmatprep.subr.mxu0 0.0
    %9849 = vmatpush1.msra.mxu0 0.0
    %9850 = vmatprep.subr.mxu0 0.0
    %9851 = vmatpush1.msra.mxu0 0.0
    %9852 = vmatprep.subr.mxu0 0.0
    %9853 = vmatpush1.msra.mxu0 0.0
    %9854 = vmatprep.subr.mxu0 0.0
    %9855 = vmatpush1.msra.mxu0 0.0
    %9856 = vmatprep.subr.mxu0 0.0
    %9857 = vmatpush1.msra.mxu0 0.0
    %9858 = vmatprep.subr.mxu0 0.0
    %9859 = vmatpush1.msra.mxu0 0.0
    %9860 = vmatprep.subr.mxu0 0.0
    %9861 = vmatpush1.msra.mxu0 0.0
    %9862 = vmatprep.subr.mxu0 0.0
    %9863 = vmatpush1.msra.mxu0 0.0
    %9864 = vmatprep.subr.mxu0 0.0
    %9865 = vmatpush1.msra.mxu0 0.0
    %9866 = vmatprep.subr.mxu0 0.0
    %9867 = vmatpush1.msra.mxu0 0.0
    %9868 = vmatprep.subr.mxu0 0.0
    %9869 = vmatpush1.msra.mxu0 0.0
    %9870 = vmatprep.subr.mxu0 0.0
    %9871 = vmatpush1.msra.mxu0 0.0
    %9872 = vmatprep.subr.mxu0 0.0
    %9873 = vmatpush1.msra.mxu0 0.0
    %9874 = vmatprep.subr.mxu0 0.0
    %9875 = vmatpush1.msra.mxu0 0.0
    %9876 = vmatprep.subr.mxu0 0.0
    %9877 = vmatpush1.msra.mxu0 0.0
    %9878 = vmatprep.subr.mxu0 0.0
    %9879 = vmatpush1.msra.mxu0 0.0
    %9880 = vmatprep.subr.mxu0 0.0
    %9881 = vmatpush1.msra.mxu0 0.0
    %9882 = vmatprep.subr.mxu0 0.0
    %9883 = vmatpush1.msra.mxu0 0.0
    %9884 = vmatprep.subr.mxu0 0.0
    %9885 = vmatpush1.msra.mxu0 0.0
    %9886 = vmatprep.subr.mxu0 0.0
    %9887 = vmatpush1.msra.mxu0 0.0
    %9888 = vmatprep.subr.mxu0 0.0
    %9889 = vmatpush1.msra.mxu0 0.0
    %9890 = vmatprep.subr.mxu0 0.0
    %9891 = vmatpush1.msra.mxu0 0.0
    %9892 = vmatprep.mubr.f32.mxu0 0.0
    %9893 = vmatmul.mubr.f32.gmra.mrb[0].mxu0 %v7695
    %v9894 = vpop.f32.mrb[0].mxu0
    %v9895 = vadd.f32 0.0, %v9894
    %v9896 = vpop.f32.mrb[0].mxu0
    %9897 = vmatprep.mubr.f32.mxu0 0.0
    %9898 = vmatmul.mubr.f32.gmra.mrb[0].mxu0 %v7698
    %v9899 = vpop.f32.mrb[0].mxu0
    %v9900 = vadd.f32 0.0, %v9899
    %v9901 = vpop.f32.mrb[0].mxu0
    %9902 = vmatprep.mubr.f32.mxu0 0.0
    %9903 = vmatmul.mubr.f32.gmra.mrb[0].mxu0 %v7701
    %v9904 = vpop.f32.mrb[0].mxu0
    %v9905 = vadd.f32 0.0, %v9904
    %v9906 = vpop.f32.mrb[0].mxu0
    %9907 = vmatprep.mubr.f32.mxu0 0.0
    %9908 = vmatmul.mubr.f32.gmra.mrb[0].mxu0 %v7704
    %v9909 = vpop.f32.mrb[0].mxu0
    %v9910 = vadd.f32 0.0, %v9909
    %v9911 = vpop.f32.mrb[0].mxu0
    %9912 = vmatprep.mubr.f32.mxu0 0.0
    %9913 = vmatmul.mubr.f32.gmra.mrb[0].mxu0 %v7707
    %v9914 = vpop.f32.mrb[0].mxu0
    %v9915 = vadd.f32 0.0, %v9914
    %v9916 = vpop.f32.mrb[0].mxu0
    %9917 = vmatprep.mubr.f32.mxu0 0.0
    %9918 = vmatmul.mubr.f32.gmra.mrb[0].mxu0 %v7710
    %v9919 = vpop.f32.mrb[0].mxu0
    %v9920 = vadd.f32 0.0, %v9919
    %v9921 = vpop.f32.mrb[0].mxu0
    %9922 = vmatprep.mubr.f32.mxu0 0.0
    %9923 = vmatmul.mubr.f32.gmra.mrb[0].mxu0 %v7713
    %v9924 = vpop.f32.mrb[0].mxu0
    %v9925 = vadd.f32 0.0, %v9924
    %v9926 = vpop.f32.mrb[0].mxu0
    %9927 = vmatprep.mubr.f32.mxu0 0.0
    %9928 = vmatmul.mubr.f32.gmra.mrb[0].mxu0 %v7716
    %v9929 = vpop.f32.mrb[0].mxu0
    %v9930 = vadd.f32 0.0, %v9929
    %v9931 = vpop.f32.mrb[0].mxu0
    %9932 = vmatprep.mubr.f32.mxu0 0.0
    %9933 = vmatmul.mubr.f32.gmra.mrb[0].mxu0 %v7719
    %v9934 = vpop.f32.mrb[0].mxu0
    %v9935 = vadd.f32 0.0, %v9934
    %v9936 = vpop.f32.mrb[0].mxu0
    %9937 = vmatprep.mubr.f32.mxu0 0.0
    %9938 = vmatmul.mubr.f32.gmra.mrb[0].mxu0 %v7722
    %v9939 = vpop.f32.mrb[0].mxu0
    %v9940 = vadd.f32 0.0, %v9939
    %v9941 = vpop.f32.mrb[0].mxu0
    %9942 = vmatprep.mubr.f32.mxu0 0.0
    %9943 = vmatmul.mubr.f32.gmra.mrb[0].mxu0 %v7725
    %v9944 = vpop.f32.mrb[0].mxu0
    %v9945 = vadd.f32 0.0, %v9944
    %v9946 = vpop.f32.mrb[0].mxu0
    %9947 = vmatprep.mubr.f32.mxu0 0.0
    %9948 = vmatmul.mubr.f32.gmra.mrb[0].mxu0 %v7728
    %v9949 = vpop.f32.mrb[0].mxu0
    %v9950 = vadd.f32 0.0, %v9949
    %v9951 = vpop.f32.mrb[0].mxu0
    %9952 = vmatprep.mubr.f32.mxu0 0.0
    %9953 = vmatmul.mubr.f32.gmra.mrb[0].mxu0 %v7731
    %v9954 = vpop.f32.mrb[0].mxu0
    %v9955 = vadd.f32 0.0, %v9954
    %v9956 = vpop.f32.mrb[0].mxu0
    %9957 = vmatprep.mubr.f32.mxu0 0.0
    %9958 = vmatmul.mubr.f32.gmra.mrb[0].mxu0 %v7734
    %v9959 = vpop.f32.mrb[0].mxu0
    %v9960 = vadd.f32 0.0, %v9959
    %v9961 = vpop.f32.mrb[0].mxu0
    %9962 = vmatprep.mubr.f32.mxu0 0.0
    %9963 = vmatmul.mubr.f32.gmra.mrb[0].mxu0 %v7737
    %v9964 = vpop.f32.mrb[0].mxu0
    %v9965 = vadd.f32 0.0, %v9964
    %v9966 = vpop.f32.mrb[0].mxu0
    %9967 = vmatprep.mubr.f32.mxu0 0.0
    %9968 = vmatmul.mubr.f32.gmra.mrb[0].mxu0 %v7740
    %v9969 = vpop.f32.mrb[0].mxu0
    %v9970 = vadd.f32 0.0, %v9969
    %v9971 = vpop.f32.mrb[0].mxu0
    %9972 = vdwg.mxu0
    %9989 = vrot.lane.b32.xlu0 %v9895, 2
    %v9990 = vpop.permute.xlu0 %9989
    %9991 = vrot.lane.b32.xlu0 %v9900, 2
    %v9992 = vpop.permute.xlu0 %9991
    %9993 = vrot.lane.b32.xlu0 %v9905, 2
    %v9994 = vpop.permute.xlu0 %9993
    %9995 = vrot.lane.b32.xlu0 %v9910, 2
    %v9996 = vpop.permute.xlu0 %9995
    %9997 = vrot.lane.b32.xlu0 %v9915, 2
    %v9998 = vpop.permute.xlu0 %9997
    %9999 = vrot.lane.b32.xlu0 %v9920, 2
    %v10000 = vpop.permute.xlu0 %9999
    %10001 = vrot.lane.b32.xlu0 %v9925, 2
    %v10002 = vpop.permute.xlu0 %10001
    %10003 = vrot.lane.b32.xlu0 %v9930, 2
    %v10004 = vpop.permute.xlu0 %10003
    %10005 = vrot.lane.b32.xlu0 %v9935, 2
    %v10006 = vpop.permute.xlu0 %10005
    %10007 = vrot.lane.b32.xlu0 %v9940, 2
    %v10008 = vpop.permute.xlu0 %10007
    %10009 = vrot.lane.b32.xlu0 %v9945, 2
    %v10010 = vpop.permute.xlu0 %10009
    %10011 = vrot.lane.b32.xlu0 %v9950, 2
    %v10012 = vpop.permute.xlu0 %10011
    %10013 = vrot.lane.b32.xlu0 %v9955, 2
    %v10014 = vpop.permute.xlu0 %10013
    %10015 = vrot.lane.b32.xlu0 %v9960, 2
    %v10016 = vpop.permute.xlu0 %10015
    %10017 = vrot.lane.b32.xlu0 %v9965, 2
    %v10018 = vpop.permute.xlu0 %10017
    %10019 = vrot.lane.b32.xlu0 %v9970, 2
    %v10020 = vpop.permute.xlu0 %10019
    %v10037 = vadd.f32 %v7678, %v9990
    %v10038 = vadd.f32 %v7679, %v9992
    %v10039 = vadd.f32 %v7680, %v9994
    %v10040 = vadd.f32 %v7681, %v9996
    %v10041 = vadd.f32 %v7682, %v9998
    %v10042 = vadd.f32 %v7683, %v10000
    %v10043 = vadd.f32 %v7684, %v10002
    %v10044 = vadd.f32 %v7685, %v10004
    %v10045 = vadd.f32 %v7686, %v10006
    %v10046 = vadd.f32 %v7687, %v10008
    %v10047 = vadd.f32 %v7688, %v10010
    %v10048 = vadd.f32 %v7689, %v10012
    %v10049 = vadd.f32 %v7690, %v10014
    %v10050 = vadd.f32 %v7691, %v10016
    %v10051 = vadd.f32 %v7692, %v10018
    %v10052 = vadd.f32 %v7693, %v10020
    %v10053 = vsub.f32 0.0, %v10037
    %v10054 = vsub.f32 0.0, %v10038
    %v10055 = vsub.f32 0.0, %v10039
    %v10056 = vsub.f32 0.0, %v10040
    %v10057 = vmul.f32 %v10053, 1.442695
    %v10058 = vpow.pop %v10057
    %v10059 = vmul.f32 %v10054, 1.442695
    %v10060 = vpow.pop %v10059
    %v10061 = vmul.f32 %v10055, 1.442695
    %v10062 = vpow.pop %v10061
    %v10063 = vmul.f32 %v10056, 1.442695
    %v10064 = vpow.pop %v10063
    %v10065 = vadd.f32 %v10058, 1.0
    %v10066 = vadd.f32 %v10060, 1.0
    %v10067 = vadd.f32 %v10062, 1.0
    %v10068 = vadd.f32 %v10064, 1.0
    %v10069 = vrcp.pop %v10065
    %v10070 = vmul.f32 1.0, %v10069
    %v10071 = vrcp.pop %v10066
    %v10072 = vmul.f32 1.0, %v10071
    %v10073 = vrcp.pop %v10067
    %v10074 = vmul.f32 1.0, %v10073
    %v10075 = vrcp.pop %v10068
    %v10076 = vmul.f32 1.0, %v10075
    %v10077 = vsub.f32 0.0, %v10041
    %v10078 = vsub.f32 0.0, %v10042
    %v10079 = vsub.f32 0.0, %v10043
    %v10080 = vsub.f32 0.0, %v10044
    %v10081 = vmul.f32 %v10077, 1.442695
    %v10082 = vpow.pop %v10081
    %v10083 = vmul.f32 %v10078, 1.442695
    %v10084 = vpow.pop %v10083
    %v10085 = vmul.f32 %v10079, 1.442695
    %v10086 = vpow.pop %v10085
    %v10087 = vmul.f32 %v10080, 1.442695
    %v10088 = vpow.pop %v10087
    %v10089 = vadd.f32 %v10082, 1.0
    %v10090 = vadd.f32 %v10084, 1.0
    %v10091 = vadd.f32 %v10086, 1.0
    %v10092 = vadd.f32 %v10088, 1.0
    %v10093 = vrcp.pop %v10089
    %v10094 = vmul.f32 1.0, %v10093
    %v10095 = vrcp.pop %v10090
    %v10096 = vmul.f32 1.0, %v10095
    %v10097 = vrcp.pop %v10091
    %v10098 = vmul.f32 1.0, %v10097
    %v10099 = vrcp.pop %v10092
    %v10100 = vmul.f32 1.0, %v10099
    %v10101 = vtanh.pop %v10045
    %v10102 = vtanh.pop %v10046
    %v10103 = vtanh.pop %v10047
    %v10104 = vtanh.pop %v10048
    %v10105 = vsub.f32 0.0, %v10049
    %v10106 = vsub.f32 0.0, %v10050
    %v10107 = vsub.f32 0.0, %v10051
    %v10108 = vsub.f32 0.0, %v10052
    %v10109 = vmul.f32 %v10105, 1.442695
    %v10110 = vpow.pop %v10109
    %v10111 = vmul.f32 %v10106, 1.442695
    %v10112 = vpow.pop %v10111
    %v10113 = vmul.f32 %v10107, 1.442695
    %v10114 = vpow.pop %v10113
    %v10115 = vmul.f32 %v10108, 1.442695
    %v10116 = vpow.pop %v10115
    %v10117 = vadd.f32 %v10110, 1.0
    %v10118 = vadd.f32 %v10112, 1.0
    %v10119 = vadd.f32 %v10114, 1.0
    %v10120 = vadd.f32 %v10116, 1.0
    %v10121 = vrcp.pop %v10117
    %v10122 = vmul.f32 1.0, %v10121
    %v10123 = vrcp.pop %v10118
    %v10124 = vmul.f32 1.0, %v10123
    %v10125 = vrcp.pop %v10119
    %v10126 = vmul.f32 1.0, %v10125
    %v10127 = vrcp.pop %v10120
    %v10128 = vmul.f32 1.0, %v10127
    %10133 = vrot.lane.b32.xlu0 %v9447, 126
    %v10134 = vpop.permute.xlu0 %10133
    %10135 = vrot.lane.b32.xlu0 %v9448, 126
    %v10136 = vpop.permute.xlu0 %10135
    %10137 = vrot.lane.b32.xlu0 %v9449, 126
    %v10138 = vpop.permute.xlu0 %10137
    %10139 = vrot.lane.b32.xlu0 %v9450, 126
    %v10140 = vpop.permute.xlu0 %10139
    %v10145 = vmul.f32 %v10094, %v10134
    %v10146 = vmul.f32 %v10096, %v10136
    %v10147 = vmul.f32 %v10098, %v10138
    %v10148 = vmul.f32 %v10100, %v10140
    %v10149 = vmul.f32 %v10070, %v10101
    %v10150 = vmul.f32 %v10072, %v10102
    %v10151 = vmul.f32 %v10074, %v10103
    %v10152 = vmul.f32 %v10076, %v10104
    %v10153 = vadd.f32 %v10145, %v10149
    %v10154 = vadd.f32 %v10146, %v10150
    %v10155 = vadd.f32 %v10147, %v10151
    %v10156 = vadd.f32 %v10148, %v10152
    %v10157 = vtanh.pop %v10153
    %v10158 = vtanh.pop %v10154
    %v10159 = vtanh.pop %v10155
    %v10160 = vtanh.pop %v10156
    %v10161 = vmul.f32 %v10122, %v10157
    %v10162 = vmul.f32 %v10124, %v10158
    %v10163 = vmul.f32 %v10126, %v10159
    %v10164 = vmul.f32 %v10128, %v10160
    %10169 = vrot.lane.b32.xlu0 %v9808, 122
    %v10170 = vpop.permute.xlu0 %10169
    %10171 = vrot.lane.b32.xlu0 %v9809, 122
    %v10172 = vpop.permute.xlu0 %10171
    %10173 = vrot.lane.b32.xlu0 %v9810, 122
    %v10174 = vpop.permute.xlu0 %10173
    %10175 = vrot.lane.b32.xlu0 %v9811, 122
    %v10176 = vpop.permute.xlu0 %10175
    %10181 = vmatprep.subr.mxu0 0.0
    %10182 = vmatpush1.msra.mxu0 %v10170
    %10183 = vmatprep.subr.mxu0 0.0
    %10184 = vmatpush1.msra.mxu0 %v10172
    %10185 = vmatprep.subr.mxu0 0.0
    %10186 = vmatpush1.msra.mxu0 %v10174
    %10187 = vmatprep.subr.mxu0 0.0
    %10188 = vmatpush1.msra.mxu0 %v10176
    %10189 = vmatprep.subr.mxu0 0.0
    %10190 = vmatpush1.msra.mxu0 0.0
    %10191 = vmatprep.subr.mxu0 0.0
    %10192 = vmatpush1.msra.mxu0 0.0
    %10193 = vmatprep.subr.mxu0 0.0
    %10194 = vmatpush1.msra.mxu0 0.0
    %10195 = vmatprep.subr.mxu0 0.0
    %10196 = vmatpush1.msra.mxu0 0.0
    %10197 = vmatprep.subr.mxu0 0.0
    %10198 = vmatpush1.msra.mxu0 0.0
    %10199 = vmatprep.subr.mxu0 0.0
    %10200 = vmatpush1.msra.mxu0 0.0
    %10201 = vmatprep.subr.mxu0 0.0
    %10202 = vmatpush1.msra.mxu0 0.0
    %10203 = vmatprep.subr.mxu0 0.0
    %10204 = vmatpush1.msra.mxu0 0.0
    %10205 = vmatprep.subr.mxu0 0.0
    %10206 = vmatpush1.msra.mxu0 0.0
    %10207 = vmatprep.subr.mxu0 0.0
    %10208 = vmatpush1.msra.mxu0 0.0
    %10209 = vmatprep.subr.mxu0 0.0
    %10210 = vmatpush1.msra.mxu0 0.0
    %10211 = vmatprep.subr.mxu0 0.0
    %10212 = vmatpush1.msra.mxu0 0.0
    %10213 = vmatprep.subr.mxu0 0.0
    %10214 = vmatpush1.msra.mxu0 0.0
    %10215 = vmatprep.subr.mxu0 0.0
    %10216 = vmatpush1.msra.mxu0 0.0
    %10217 = vmatprep.subr.mxu0 0.0
    %10218 = vmatpush1.msra.mxu0 0.0
    %10219 = vmatprep.subr.mxu0 0.0
    %10220 = vmatpush1.msra.mxu0 0.0
    %10221 = vmatprep.subr.mxu0 0.0
    %10222 = vmatpush1.msra.mxu0 0.0
    %10223 = vmatprep.subr.mxu0 0.0
    %10224 = vmatpush1.msra.mxu0 0.0
    %10225 = vmatprep.subr.mxu0 0.0
    %10226 = vmatpush1.msra.mxu0 0.0
    %10227 = vmatprep.subr.mxu0 0.0
    %10228 = vmatpush1.msra.mxu0 0.0
    %10229 = vmatprep.subr.mxu0 0.0
    %10230 = vmatpush1.msra.mxu0 0.0
    %10231 = vmatprep.subr.mxu0 0.0
    %10232 = vmatpush1.msra.mxu0 0.0
    %10233 = vmatprep.subr.mxu0 0.0
    %10234 = vmatpush1.msra.mxu0 0.0
    %10235 = vmatprep.subr.mxu0 0.0
    %10236 = vmatpush1.msra.mxu0 0.0
    %10237 = vmatprep.subr.mxu0 0.0
    %10238 = vmatpush1.msra.mxu0 0.0
    %10239 = vmatprep.subr.mxu0 0.0
    %10240 = vmatpush1.msra.mxu0 0.0
    %10241 = vmatprep.subr.mxu0 0.0
    %10242 = vmatpush1.msra.mxu0 0.0
    %10243 = vmatprep.subr.mxu0 0.0
    %10244 = vmatpush1.msra.mxu0 0.0
    %10245 = vmatprep.mubr.f32.mxu0 0.0
    %10246 = vmatmul.mubr.f32.gmra.mrb[0].mxu0 %v7374
    %v10247 = vpop.f32.mrb[0].mxu0
    %v10248 = vadd.f32 0.0, %v10247
    %v10249 = vpop.f32.mrb[0].mxu0
    %10250 = vmatprep.mubr.f32.mxu0 0.0
    %10251 = vmatmul.mubr.f32.gmra.mrb[0].mxu0 %v7377
    %v10252 = vpop.f32.mrb[0].mxu0
    %v10253 = vadd.f32 0.0, %v10252
    %v10254 = vpop.f32.mrb[0].mxu0
    %10255 = vmatprep.mubr.f32.mxu0 0.0
    %10256 = vmatmul.mubr.f32.gmra.mrb[0].mxu0 %v7380
    %v10257 = vpop.f32.mrb[0].mxu0
    %v10258 = vadd.f32 0.0, %v10257
    %v10259 = vpop.f32.mrb[0].mxu0
    %10260 = vmatprep.mubr.f32.mxu0 0.0
    %10261 = vmatmul.mubr.f32.gmra.mrb[0].mxu0 %v7383
    %v10262 = vpop.f32.mrb[0].mxu0
    %v10263 = vadd.f32 0.0, %v10262
    %v10264 = vpop.f32.mrb[0].mxu0
    %10265 = vmatprep.mubr.f32.mxu0 0.0
    %10266 = vmatmul.mubr.f32.gmra.mrb[0].mxu0 %v7386
    %v10267 = vpop.f32.mrb[0].mxu0
    %v10268 = vadd.f32 0.0, %v10267
    %v10269 = vpop.f32.mrb[0].mxu0
    %10270 = vmatprep.mubr.f32.mxu0 0.0
    %10271 = vmatmul.mubr.f32.gmra.mrb[0].mxu0 %v7389
    %v10272 = vpop.f32.mrb[0].mxu0
    %v10273 = vadd.f32 0.0, %v10272
    %v10274 = vpop.f32.mrb[0].mxu0
    %10275 = vmatprep.mubr.f32.mxu0 0.0
    %10276 = vmatmul.mubr.f32.gmra.mrb[0].mxu0 %v7392
    %v10277 = vpop.f32.mrb[0].mxu0
    %v10278 = vadd.f32 0.0, %v10277
    %v10279 = vpop.f32.mrb[0].mxu0
    %10280 = vmatprep.mubr.f32.mxu0 0.0
    %10281 = vmatmul.mubr.f32.gmra.mrb[0].mxu0 %v7395
    %v10282 = vpop.f32.mrb[0].mxu0
    %v10283 = vadd.f32 0.0, %v10282
    %v10284 = vpop.f32.mrb[0].mxu0
    %10285 = vmatprep.mubr.f32.mxu0 0.0
    %10286 = vmatmul.mubr.f32.gmra.mrb[0].mxu0 %v7398
    %v10287 = vpop.f32.mrb[0].mxu0
    %v10288 = vadd.f32 0.0, %v10287
    %v10289 = vpop.f32.mrb[0].mxu0
    %10290 = vmatprep.mubr.f32.mxu0 0.0
    %10291 = vmatmul.mubr.f32.gmra.mrb[0].mxu0 %v7401
    %v10292 = vpop.f32.mrb[0].mxu0
    %v10293 = vadd.f32 0.0, %v10292
    %v10294 = vpop.f32.mrb[0].mxu0
    %10295 = vmatprep.mubr.f32.mxu0 0.0
    %10296 = vmatmul.mubr.f32.gmra.mrb[0].mxu0 %v7404
    %v10297 = vpop.f32.mrb[0].mxu0
    %v10298 = vadd.f32 0.0, %v10297
    %v10299 = vpop.f32.mrb[0].mxu0
    %10300 = vmatprep.mubr.f32.mxu0 0.0
    %10301 = vmatmul.mubr.f32.gmra.mrb[0].mxu0 %v7407
    %v10302 = vpop.f32.mrb[0].mxu0
    %v10303 = vadd.f32 0.0, %v10302
    %v10304 = vpop.f32.mrb[0].mxu0
    %10305 = vmatprep.mubr.f32.mxu0 0.0
    %10306 = vmatmul.mubr.f32.gmra.mrb[0].mxu0 %v7410
    %v10307 = vpop.f32.mrb[0].mxu0
    %v10308 = vadd.f32 0.0, %v10307
    %v10309 = vpop.f32.mrb[0].mxu0
    %10310 = vmatprep.mubr.f32.mxu0 0.0
    %10311 = vmatmul.mubr.f32.gmra.mrb[0].mxu0 %v7413
    %v10312 = vpop.f32.mrb[0].mxu0
    %v10313 = vadd.f32 0.0, %v10312
    %v10314 = vpop.f32.mrb[0].mxu0
    %10315 = vmatprep.mubr.f32.mxu0 0.0
    %10316 = vmatmul.mubr.f32.gmra.mrb[0].mxu0 %v7416
    %v10317 = vpop.f32.mrb[0].mxu0
    %v10318 = vadd.f32 0.0, %v10317
    %v10319 = vpop.f32.mrb[0].mxu0
    %10320 = vmatprep.mubr.f32.mxu0 0.0
    %10321 = vmatmul.mubr.f32.gmra.mrb[0].mxu0 %v7419
    %v10322 = vpop.f32.mrb[0].mxu0
    %v10323 = vadd.f32 0.0, %v10322
    %v10324 = vpop.f32.mrb[0].mxu0
    %10325 = vdwg.mxu0
    %10342 = vrot.lane.b32.xlu0 %v10248, 8
    %v10343 = vpop.permute.xlu0 %10342
    %10344 = vrot.lane.b32.xlu0 %v10253, 8
    %v10345 = vpop.permute.xlu0 %10344
    %10346 = vrot.lane.b32.xlu0 %v10258, 8
    %v10347 = vpop.permute.xlu0 %10346
    %10348 = vrot.lane.b32.xlu0 %v10263, 8
    %v10349 = vpop.permute.xlu0 %10348
    %10350 = vrot.lane.b32.xlu0 %v10268, 8
    %v10351 = vpop.permute.xlu0 %10350
    %10352 = vrot.lane.b32.xlu0 %v10273, 8
    %v10353 = vpop.permute.xlu0 %10352
    %10354 = vrot.lane.b32.xlu0 %v10278, 8
    %v10355 = vpop.permute.xlu0 %10354
    %10356 = vrot.lane.b32.xlu0 %v10283, 8
    %v10357 = vpop.permute.xlu0 %10356
    %10358 = vrot.lane.b32.xlu0 %v10288, 8
    %v10359 = vpop.permute.xlu0 %10358
    %10360 = vrot.lane.b32.xlu0 %v10293, 8
    %v10361 = vpop.permute.xlu0 %10360
    %10362 = vrot.lane.b32.xlu0 %v10298, 8
    %v10363 = vpop.permute.xlu0 %10362
    %10364 = vrot.lane.b32.xlu0 %v10303, 8
    %v10365 = vpop.permute.xlu0 %10364
    %10366 = vrot.lane.b32.xlu0 %v10308, 8
    %v10367 = vpop.permute.xlu0 %10366
    %10368 = vrot.lane.b32.xlu0 %v10313, 8
    %v10369 = vpop.permute.xlu0 %10368
    %10370 = vrot.lane.b32.xlu0 %v10318, 8
    %v10371 = vpop.permute.xlu0 %10370
    %10372 = vrot.lane.b32.xlu0 %v10323, 8
    %v10373 = vpop.permute.xlu0 %10372
    %v10390 = vadd.f32 %v7357, %v10343
    %v10391 = vadd.f32 %v7358, %v10345
    %v10392 = vadd.f32 %v7359, %v10347
    %v10393 = vadd.f32 %v7360, %v10349
    %v10394 = vadd.f32 %v7361, %v10351
    %v10395 = vadd.f32 %v7362, %v10353
    %v10396 = vadd.f32 %v7363, %v10355
    %v10397 = vadd.f32 %v7364, %v10357
    %v10398 = vadd.f32 %v7365, %v10359
    %v10399 = vadd.f32 %v7366, %v10361
    %v10400 = vadd.f32 %v7367, %v10363
    %v10401 = vadd.f32 %v7368, %v10365
    %v10402 = vadd.f32 %v7369, %v10367
    %v10403 = vadd.f32 %v7370, %v10369
    %v10404 = vadd.f32 %v7371, %v10371
    %v10405 = vadd.f32 %v7372, %v10373
    %v10406 = vsub.f32 0.0, %v10390
    %v10407 = vsub.f32 0.0, %v10391
    %v10408 = vsub.f32 0.0, %v10392
    %v10409 = vsub.f32 0.0, %v10393
    %v10410 = vmul.f32 %v10406, 1.442695
    %v10411 = vpow.pop %v10410
    %v10412 = vmul.f32 %v10407, 1.442695
    %v10413 = vpow.pop %v10412
    %v10414 = vmul.f32 %v10408, 1.442695
    %v10415 = vpow.pop %v10414
    %v10416 = vmul.f32 %v10409, 1.442695
    %v10417 = vpow.pop %v10416
    %v10418 = vadd.f32 %v10411, 1.0
    %v10419 = vadd.f32 %v10413, 1.0
    %v10420 = vadd.f32 %v10415, 1.0
    %v10421 = vadd.f32 %v10417, 1.0
    %v10422 = vrcp.pop %v10418
    %v10423 = vmul.f32 1.0, %v10422
    %v10424 = vrcp.pop %v10419
    %v10425 = vmul.f32 1.0, %v10424
    %v10426 = vrcp.pop %v10420
    %v10427 = vmul.f32 1.0, %v10426
    %v10428 = vrcp.pop %v10421
    %v10429 = vmul.f32 1.0, %v10428
    %v10430 = vsub.f32 0.0, %v10394
    %v10431 = vsub.f32 0.0, %v10395
    %v10432 = vsub.f32 0.0, %v10396
    %v10433 = vsub.f32 0.0, %v10397
    %v10434 = vmul.f32 %v10430, 1.442695
    %v10435 = vpow.pop %v10434
    %v10436 = vmul.f32 %v10431, 1.442695
    %v10437 = vpow.pop %v10436
    %v10438 = vmul.f32 %v10432, 1.442695
    %v10439 = vpow.pop %v10438
    %v10440 = vmul.f32 %v10433, 1.442695
    %v10441 = vpow.pop %v10440
    %v10442 = vadd.f32 %v10435, 1.0
    %v10443 = vadd.f32 %v10437, 1.0
    %v10444 = vadd.f32 %v10439, 1.0
    %v10445 = vadd.f32 %v10441, 1.0
    %v10446 = vrcp.pop %v10442
    %v10447 = vmul.f32 1.0, %v10446
    %v10448 = vrcp.pop %v10443
    %v10449 = vmul.f32 1.0, %v10448
    %v10450 = vrcp.pop %v10444
    %v10451 = vmul.f32 1.0, %v10450
    %v10452 = vrcp.pop %v10445
    %v10453 = vmul.f32 1.0, %v10452
    %v10454 = vtanh.pop %v10398
    %v10455 = vtanh.pop %v10399
    %v10456 = vtanh.pop %v10400
    %v10457 = vtanh.pop %v10401
    %v10458 = vsub.f32 0.0, %v10402
    %v10459 = vsub.f32 0.0, %v10403
    %v10460 = vsub.f32 0.0, %v10404
    %v10461 = vsub.f32 0.0, %v10405
    %v10462 = vmul.f32 %v10458, 1.442695
    %v10463 = vpow.pop %v10462
    %v10464 = vmul.f32 %v10459, 1.442695
    %v10465 = vpow.pop %v10464
    %v10466 = vmul.f32 %v10460, 1.442695
    %v10467 = vpow.pop %v10466
    %v10468 = vmul.f32 %v10461, 1.442695
    %v10469 = vpow.pop %v10468
    %v10470 = vadd.f32 %v10463, 1.0
    %v10471 = vadd.f32 %v10465, 1.0
    %v10472 = vadd.f32 %v10467, 1.0
    %v10473 = vadd.f32 %v10469, 1.0
    %v10474 = vrcp.pop %v10470
    %v10475 = vmul.f32 1.0, %v10474
    %v10476 = vrcp.pop %v10471
    %v10477 = vmul.f32 1.0, %v10476
    %v10478 = vrcp.pop %v10472
    %v10479 = vmul.f32 1.0, %v10478
    %v10480 = vrcp.pop %v10473
    %v10481 = vmul.f32 1.0, %v10480
    %10486 = vrot.lane.b32.xlu0 %v9800, 2
    %v10487 = vpop.permute.xlu0 %10486
    %10488 = vrot.lane.b32.xlu0 %v9801, 2
    %v10489 = vpop.permute.xlu0 %10488
    %10490 = vrot.lane.b32.xlu0 %v9802, 2
    %v10491 = vpop.permute.xlu0 %10490
    %10492 = vrot.lane.b32.xlu0 %v9803, 2
    %v10493 = vpop.permute.xlu0 %10492
    %v10498 = vmul.f32 %v10447, %v10487
    %v10499 = vmul.f32 %v10449, %v10489
    %v10500 = vmul.f32 %v10451, %v10491
    %v10501 = vmul.f32 %v10453, %v10493
    %v10502 = vmul.f32 %v10423, %v10454
    %v10503 = vmul.f32 %v10425, %v10455
    %v10504 = vmul.f32 %v10427, %v10456
    %v10505 = vmul.f32 %v10429, %v10457
    %v10506 = vadd.f32 %v10498, %v10502
    %v10507 = vadd.f32 %v10499, %v10503
    %v10508 = vadd.f32 %v10500, %v10504
    %v10509 = vadd.f32 %v10501, %v10505
    %v10510 = vtanh.pop %v10506
    %v10511 = vtanh.pop %v10507
    %v10512 = vtanh.pop %v10508
    %v10513 = vtanh.pop %v10509
    %v10514 = vmul.f32 %v10475, %v10510
    %v10515 = vmul.f32 %v10477, %v10511
    %v10516 = vmul.f32 %v10479, %v10512
    %v10517 = vmul.f32 %v10481, %v10513
    %10522 = vrot.lane.b32.xlu0 %v10161, 126
    %v10523 = vpop.permute.xlu0 %10522
    %10524 = vrot.lane.b32.xlu0 %v10162, 126
    %v10525 = vpop.permute.xlu0 %10524
    %10526 = vrot.lane.b32.xlu0 %v10163, 126
    %v10527 = vpop.permute.xlu0 %10526
    %10528 = vrot.lane.b32.xlu0 %v10164, 126
    %v10529 = vpop.permute.xlu0 %10528
    %10534 = vmatprep.subr.mxu0 0.0
    %10535 = vmatpush1.msra.mxu0 %v10523
    %10536 = vmatprep.subr.mxu0 0.0
    %10537 = vmatpush1.msra.mxu0 %v10525
    %10538 = vmatprep.subr.mxu0 0.0
    %10539 = vmatpush1.msra.mxu0 %v10527
    %10540 = vmatprep.subr.mxu0 0.0
    %10541 = vmatpush1.msra.mxu0 %v10529
    %10542 = vmatprep.subr.mxu0 0.0
    %10543 = vmatpush1.msra.mxu0 0.0
    %10544 = vmatprep.subr.mxu0 0.0
    %10545 = vmatpush1.msra.mxu0 0.0
    %10546 = vmatprep.subr.mxu0 0.0
    %10547 = vmatpush1.msra.mxu0 0.0
    %10548 = vmatprep.subr.mxu0 0.0
    %10549 = vmatpush1.msra.mxu0 0.0
    %10550 = vmatprep.subr.mxu0 0.0
    %10551 = vmatpush1.msra.mxu0 0.0
    %10552 = vmatprep.subr.mxu0 0.0
    %10553 = vmatpush1.msra.mxu0 0.0
    %10554 = vmatprep.subr.mxu0 0.0
    %10555 = vmatpush1.msra.mxu0 0.0
    %10556 = vmatprep.subr.mxu0 0.0
    %10557 = vmatpush1.msra.mxu0 0.0
    %10558 = vmatprep.subr.mxu0 0.0
    %10559 = vmatpush1.msra.mxu0 0.0
    %10560 = vmatprep.subr.mxu0 0.0
    %10561 = vmatpush1.msra.mxu0 0.0
    %10562 = vmatprep.subr.mxu0 0.0
    %10563 = vmatpush1.msra.mxu0 0.0
    %10564 = vmatprep.subr.mxu0 0.0
    %10565 = vmatpush1.msra.mxu0 0.0
    %10566 = vmatprep.subr.mxu0 0.0
    %10567 = vmatpush1.msra.mxu0 0.0
    %10568 = vmatprep.subr.mxu0 0.0
    %10569 = vmatpush1.msra.mxu0 0.0
    %10570 = vmatprep.subr.mxu0 0.0
    %10571 = vmatpush1.msra.mxu0 0.0
    %10572 = vmatprep.subr.mxu0 0.0
    %10573 = vmatpush1.msra.mxu0 0.0
    %10574 = vmatprep.subr.mxu0 0.0
    %10575 = vmatpush1.msra.mxu0 0.0
    %10576 = vmatprep.subr.mxu0 0.0
    %10577 = vmatpush1.msra.mxu0 0.0
    %10578 = vmatprep.subr.mxu0 0.0
    %10579 = vmatpush1.msra.mxu0 0.0
    %10580 = vmatprep.subr.mxu0 0.0
    %10581 = vmatpush1.msra.mxu0 0.0
    %10582 = vmatprep.subr.mxu0 0.0
    %10583 = vmatpush1.msra.mxu0 0.0
    %10584 = vmatprep.subr.mxu0 0.0
    %10585 = vmatpush1.msra.mxu0 0.0
    %10586 = vmatprep.subr.mxu0 0.0
    %10587 = vmatpush1.msra.mxu0 0.0
    %10588 = vmatprep.subr.mxu0 0.0
    %10589 = vmatpush1.msra.mxu0 0.0
    %10590 = vmatprep.subr.mxu0 0.0
    %10591 = vmatpush1.msra.mxu0 0.0
    %10592 = vmatprep.subr.mxu0 0.0
    %10593 = vmatpush1.msra.mxu0 0.0
    %10594 = vmatprep.subr.mxu0 0.0
    %10595 = vmatpush1.msra.mxu0 0.0
    %10596 = vmatprep.subr.mxu0 0.0
    %10597 = vmatpush1.msra.mxu0 0.0
    %10598 = vmatprep.mubr.f32.mxu0 0.0
    %10599 = vmatmul.mubr.f32.gmra.mrb[0].mxu0 %v7695
    %v10600 = vpop.f32.mrb[0].mxu0
    %v10601 = vadd.f32 0.0, %v10600
    %v10602 = vpop.f32.mrb[0].mxu0
    %10603 = vmatprep.mubr.f32.mxu0 0.0
    %10604 = vmatmul.mubr.f32.gmra.mrb[0].mxu0 %v7698
    %v10605 = vpop.f32.mrb[0].mxu0
    %v10606 = vadd.f32 0.0, %v10605
    %v10607 = vpop.f32.mrb[0].mxu0
    %10608 = vmatprep.mubr.f32.mxu0 0.0
    %10609 = vmatmul.mubr.f32.gmra.mrb[0].mxu0 %v7701
    %v10610 = vpop.f32.mrb[0].mxu0
    %v10611 = vadd.f32 0.0, %v10610
    %v10612 = vpop.f32.mrb[0].mxu0
    %10613 = vmatprep.mubr.f32.mxu0 0.0
    %10614 = vmatmul.mubr.f32.gmra.mrb[0].mxu0 %v7704
    %v10615 = vpop.f32.mrb[0].mxu0
    %v10616 = vadd.f32 0.0, %v10615
    %v10617 = vpop.f32.mrb[0].mxu0
    %10618 = vmatprep.mubr.f32.mxu0 0.0
    %10619 = vmatmul.mubr.f32.gmra.mrb[0].mxu0 %v7707
    %v10620 = vpop.f32.mrb[0].mxu0
    %v10621 = vadd.f32 0.0, %v10620
    %v10622 = vpop.f32.mrb[0].mxu0
    %10623 = vmatprep.mubr.f32.mxu0 0.0
    %10624 = vmatmul.mubr.f32.gmra.mrb[0].mxu0 %v7710
    %v10625 = vpop.f32.mrb[0].mxu0
    %v10626 = vadd.f32 0.0, %v10625
    %v10627 = vpop.f32.mrb[0].mxu0
    %10628 = vmatprep.mubr.f32.mxu0 0.0
    %10629 = vmatmul.mubr.f32.gmra.mrb[0].mxu0 %v7713
    %v10630 = vpop.f32.mrb[0].mxu0
    %v10631 = vadd.f32 0.0, %v10630
    %v10632 = vpop.f32.mrb[0].mxu0
    %10633 = vmatprep.mubr.f32.mxu0 0.0
    %10634 = vmatmul.mubr.f32.gmra.mrb[0].mxu0 %v7716
    %v10635 = vpop.f32.mrb[0].mxu0
    %v10636 = vadd.f32 0.0, %v10635
    %v10637 = vpop.f32.mrb[0].mxu0
    %10638 = vmatprep.mubr.f32.mxu0 0.0
    %10639 = vmatmul.mubr.f32.gmra.mrb[0].mxu0 %v7719
    %v10640 = vpop.f32.mrb[0].mxu0
    %v10641 = vadd.f32 0.0, %v10640
    %v10642 = vpop.f32.mrb[0].mxu0
    %10643 = vmatprep.mubr.f32.mxu0 0.0
    %10644 = vmatmul.mubr.f32.gmra.mrb[0].mxu0 %v7722
    %v10645 = vpop.f32.mrb[0].mxu0
    %v10646 = vadd.f32 0.0, %v10645
    %v10647 = vpop.f32.mrb[0].mxu0
    %10648 = vmatprep.mubr.f32.mxu0 0.0
    %10649 = vmatmul.mubr.f32.gmra.mrb[0].mxu0 %v7725
    %v10650 = vpop.f32.mrb[0].mxu0
    %v10651 = vadd.f32 0.0, %v10650
    %v10652 = vpop.f32.mrb[0].mxu0
    %10653 = vmatprep.mubr.f32.mxu0 0.0
    %10654 = vmatmul.mubr.f32.gmra.mrb[0].mxu0 %v7728
    %v10655 = vpop.f32.mrb[0].mxu0
    %v10656 = vadd.f32 0.0, %v10655
    %v10657 = vpop.f32.mrb[0].mxu0
    %10658 = vmatprep.mubr.f32.mxu0 0.0
    %10659 = vmatmul.mubr.f32.gmra.mrb[0].mxu0 %v7731
    %v10660 = vpop.f32.mrb[0].mxu0
    %v10661 = vadd.f32 0.0, %v10660
    %v10662 = vpop.f32.mrb[0].mxu0
    %10663 = vmatprep.mubr.f32.mxu0 0.0
    %10664 = vmatmul.mubr.f32.gmra.mrb[0].mxu0 %v7734
    %v10665 = vpop.f32.mrb[0].mxu0
    %v10666 = vadd.f32 0.0, %v10665
    %v10667 = vpop.f32.mrb[0].mxu0
    %10668 = vmatprep.mubr.f32.mxu0 0.0
    %10669 = vmatmul.mubr.f32.gmra.mrb[0].mxu0 %v7737
    %v10670 = vpop.f32.mrb[0].mxu0
    %v10671 = vadd.f32 0.0, %v10670
    %v10672 = vpop.f32.mrb[0].mxu0
    %10673 = vmatprep.mubr.f32.mxu0 0.0
    %10674 = vmatmul.mubr.f32.gmra.mrb[0].mxu0 %v7740
    %v10675 = vpop.f32.mrb[0].mxu0
    %v10676 = vadd.f32 0.0, %v10675
    %v10677 = vpop.f32.mrb[0].mxu0
    %10678 = vdwg.mxu0
    %v10679 = vadd.f32 %v7678, %v10601
    %v10680 = vadd.f32 %v7679, %v10606
    %v10681 = vadd.f32 %v7680, %v10611
    %v10682 = vadd.f32 %v7681, %v10616
    %v10683 = vadd.f32 %v7682, %v10621
    %v10684 = vadd.f32 %v7683, %v10626
    %v10685 = vadd.f32 %v7684, %v10631
    %v10686 = vadd.f32 %v7685, %v10636
    %v10687 = vadd.f32 %v7686, %v10641
    %v10688 = vadd.f32 %v7687, %v10646
    %v10689 = vadd.f32 %v7688, %v10651
    %v10690 = vadd.f32 %v7689, %v10656
    %v10691 = vadd.f32 %v7690, %v10661
    %v10692 = vadd.f32 %v7691, %v10666
    %v10693 = vadd.f32 %v7692, %v10671
    %v10694 = vadd.f32 %v7693, %v10676
    %v10695 = vsub.f32 0.0, %v10679
    %v10696 = vsub.f32 0.0, %v10680
    %v10697 = vsub.f32 0.0, %v10681
    %v10698 = vsub.f32 0.0, %v10682
    %v10699 = vmul.f32 %v10695, 1.442695
    %v10700 = vpow.pop %v10699
    %v10701 = vmul.f32 %v10696, 1.442695
    %v10702 = vpow.pop %v10701
    %v10703 = vmul.f32 %v10697, 1.442695
    %v10704 = vpow.pop %v10703
    %v10705 = vmul.f32 %v10698, 1.442695
    %v10706 = vpow.pop %v10705
    %v10707 = vadd.f32 %v10700, 1.0
    %v10708 = vadd.f32 %v10702, 1.0
    %v10709 = vadd.f32 %v10704, 1.0
    %v10710 = vadd.f32 %v10706, 1.0
    %v10711 = vrcp.pop %v10707
    %v10712 = vmul.f32 1.0, %v10711
    %v10713 = vrcp.pop %v10708
    %v10714 = vmul.f32 1.0, %v10713
    %v10715 = vrcp.pop %v10709
    %v10716 = vmul.f32 1.0, %v10715
    %v10717 = vrcp.pop %v10710
    %v10718 = vmul.f32 1.0, %v10717
    %v10719 = vsub.f32 0.0, %v10683
    %v10720 = vsub.f32 0.0, %v10684
    %v10721 = vsub.f32 0.0, %v10685
    %v10722 = vsub.f32 0.0, %v10686
    %v10723 = vmul.f32 %v10719, 1.442695
    %v10724 = vpow.pop %v10723
    %v10725 = vmul.f32 %v10720, 1.442695
    %v10726 = vpow.pop %v10725
    %v10727 = vmul.f32 %v10721, 1.442695
    %v10728 = vpow.pop %v10727
    %v10729 = vmul.f32 %v10722, 1.442695
    %v10730 = vpow.pop %v10729
    %v10731 = vadd.f32 %v10724, 1.0
    %v10732 = vadd.f32 %v10726, 1.0
    %v10733 = vadd.f32 %v10728, 1.0
    %v10734 = vadd.f32 %v10730, 1.0
    %v10735 = vrcp.pop %v10731
    %v10736 = vmul.f32 1.0, %v10735
    %v10737 = vrcp.pop %v10732
    %v10738 = vmul.f32 1.0, %v10737
    %v10739 = vrcp.pop %v10733
    %v10740 = vmul.f32 1.0, %v10739
    %v10741 = vrcp.pop %v10734
    %v10742 = vmul.f32 1.0, %v10741
    %v10743 = vtanh.pop %v10687
    %v10744 = vtanh.pop %v10688
    %v10745 = vtanh.pop %v10689
    %v10746 = vtanh.pop %v10690
    %v10747 = vsub.f32 0.0, %v10691
    %v10748 = vsub.f32 0.0, %v10692
    %v10749 = vsub.f32 0.0, %v10693
    %v10750 = vsub.f32 0.0, %v10694
    %v10751 = vmul.f32 %v10747, 1.442695
    %v10752 = vpow.pop %v10751
    %v10753 = vmul.f32 %v10748, 1.442695
    %v10754 = vpow.pop %v10753
    %v10755 = vmul.f32 %v10749, 1.442695
    %v10756 = vpow.pop %v10755
    %v10757 = vmul.f32 %v10750, 1.442695
    %v10758 = vpow.pop %v10757
    %v10759 = vadd.f32 %v10752, 1.0
    %v10760 = vadd.f32 %v10754, 1.0
    %v10761 = vadd.f32 %v10756, 1.0
    %v10762 = vadd.f32 %v10758, 1.0
    %v10763 = vrcp.pop %v10759
    %v10764 = vmul.f32 1.0, %v10763
    %v10765 = vrcp.pop %v10760
    %v10766 = vmul.f32 1.0, %v10765
    %v10767 = vrcp.pop %v10761
    %v10768 = vmul.f32 1.0, %v10767
    %v10769 = vrcp.pop %v10762
    %v10770 = vmul.f32 1.0, %v10769
    %10775 = vrot.lane.b32.xlu0 %v10153, 126
    %v10776 = vpop.permute.xlu0 %10775
    %10777 = vrot.lane.b32.xlu0 %v10154, 126
    %v10778 = vpop.permute.xlu0 %10777
    %10779 = vrot.lane.b32.xlu0 %v10155, 126
    %v10780 = vpop.permute.xlu0 %10779
    %10781 = vrot.lane.b32.xlu0 %v10156, 126
    %v10782 = vpop.permute.xlu0 %10781
    %v10787 = vmul.f32 %v10736, %v10776
    %v10788 = vmul.f32 %v10738, %v10778
    %v10789 = vmul.f32 %v10740, %v10780
    %v10790 = vmul.f32 %v10742, %v10782
    %v10791 = vmul.f32 %v10712, %v10743
    %v10792 = vmul.f32 %v10714, %v10744
    %v10793 = vmul.f32 %v10716, %v10745
    %v10794 = vmul.f32 %v10718, %v10746
    %v10795 = vadd.f32 %v10787, %v10791
    %v10796 = vadd.f32 %v10788, %v10792
    %v10797 = vadd.f32 %v10789, %v10793
    %v10798 = vadd.f32 %v10790, %v10794
    %v10799 = vtanh.pop %v10795
    %v10800 = vtanh.pop %v10796
    %v10801 = vtanh.pop %v10797
    %v10802 = vtanh.pop %v10798
    %v10803 = vmul.f32 %v10764, %v10799
    %v10804 = vmul.f32 %v10766, %v10800
    %v10805 = vmul.f32 %v10768, %v10801
    %v10806 = vmul.f32 %v10770, %v10802
    %10811 = vrot.lane.b32.xlu0 %v10803, 8
    %v10812 = vpop.permute.xlu0 %10811
    %10813 = vrot.lane.b32.xlu0 %v10804, 8
    %v10814 = vpop.permute.xlu0 %10813
    %10815 = vrot.lane.b32.xlu0 %v10805, 8
    %v10816 = vpop.permute.xlu0 %10815
    %10817 = vrot.lane.b32.xlu0 %v10806, 8
    %v10818 = vpop.permute.xlu0 %10817
    %v10819 = vld [vmem:[#allocation12] sm:$0xff]
    %v10820 = vld [vmem:[#allocation12 + $0x8] sm:$0xff]
    %v10821 = vld [vmem:[#allocation12 + $0x10] sm:$0xff]
    %v10822 = vld [vmem:[#allocation12 + $0x18] sm:$0xff]
    %v10823 = vld [vmem:[%s20] sm:$0xff]
    %v10824 = vld [vmem:[%s20 + $0x8] sm:$0xff]
    %v10825 = vld [vmem:[%s20 + $0x10] sm:$0xff]
    %v10826 = vld [vmem:[%s20 + $0x18] sm:$0xff]
    %10828 = vset.pattern.permute.xlu0 0
    %10829 = vperm.xlu0 %10828, %v10823
    %v10830 = vpop.permute.xlu0 %10829
    %10833 = vset.pattern.permute.xlu0 0
    %10834 = vperm.xlu0 %10833, %v10824
    %v10835 = vpop.permute.xlu0 %10834
    %10838 = vset.pattern.permute.xlu0 0
    %10839 = vperm.xlu0 %10838, %v10825
    %v10840 = vpop.permute.xlu0 %10839
    %10843 = vset.pattern.permute.xlu0 0
    %10844 = vperm.xlu0 %10843, %v10826
    %v10845 = vpop.permute.xlu0 %10844
    %10851 = vrot.lane.b32.xlu0 %v10514, 120
    %v10852 = vpop.permute.xlu0 %10851
    %10853 = vrot.lane.b32.xlu0 %v10515, 120
    %v10854 = vpop.permute.xlu0 %10853
    %10855 = vrot.lane.b32.xlu0 %v10516, 120
    %v10856 = vpop.permute.xlu0 %10855
    %10857 = vrot.lane.b32.xlu0 %v10517, 120
    %v10858 = vpop.permute.xlu0 %10857
    %10859 = vrot.lane.b32.xlu0 %v10812, 120
    %v10860 = vpop.permute.xlu0 %10859
    %10861 = vrot.lane.b32.xlu0 %v10814, 120
    %v10862 = vpop.permute.xlu0 %10861
    %10863 = vrot.lane.b32.xlu0 %v10816, 120
    %v10864 = vpop.permute.xlu0 %10863
    %10865 = vrot.lane.b32.xlu0 %v10818, 120
    %v10866 = vpop.permute.xlu0 %10865
    %vm10875 = vcmask 523264
    %v10877 = vsel %vm10875, %v10819, 0
    %v10880 = vsel %vm10875, %v10820, 0
    %v10883 = vsel %vm10875, %v10821, 0
    %v10886 = vsel %vm10875, %v10822, 0
    %10888 = vmatprep.subr.mxu0 0.0
    %10889 = vmatpush1.msra.mxu0 %v10852
    %10890 = vmatprep.subr.mxu0 0.0
    %10891 = vmatpush1.msra.mxu0 %v10854
    %10892 = vmatprep.subr.mxu0 0.0
    %10893 = vmatpush1.msra.mxu0 %v10856
    %10894 = vmatprep.subr.mxu0 0.0
    %10895 = vmatpush1.msra.mxu0 %v10858
    %10896 = vmatprep.subr.mxu0 0.0
    %10897 = vmatpush1.msra.mxu0 %v10860
    %10898 = vmatprep.subr.mxu0 0.0
    %10899 = vmatpush1.msra.mxu0 %v10862
    %10900 = vmatprep.subr.mxu0 0.0
    %10901 = vmatpush1.msra.mxu0 %v10864
    %10902 = vmatprep.subr.mxu0 0.0
    %10903 = vmatpush1.msra.mxu0 %v10866
    %10904 = vmatprep.subr.mxu0 0.0
    %10905 = vmatpush1.msra.mxu0 0.0
    %10906 = vmatprep.subr.mxu0 0.0
    %10907 = vmatpush1.msra.mxu0 0.0
    %10908 = vmatprep.subr.mxu0 0.0
    %10909 = vmatpush1.msra.mxu0 0.0
    %10910 = vmatprep.subr.mxu0 0.0
    %10911 = vmatpush1.msra.mxu0 0.0
    %10912 = vmatprep.subr.mxu0 0.0
    %10913 = vmatpush1.msra.mxu0 0.0
    %10914 = vmatprep.subr.mxu0 0.0
    %10915 = vmatpush1.msra.mxu0 0.0
    %10916 = vmatprep.subr.mxu0 0.0
    %10917 = vmatpush1.msra.mxu0 0.0
    %10918 = vmatprep.subr.mxu0 0.0
    %10919 = vmatpush1.msra.mxu0 0.0
    %10920 = vmatprep.subr.mxu0 0.0
    %10921 = vmatpush1.msra.mxu0 0.0
    %10922 = vmatprep.subr.mxu0 0.0
    %10923 = vmatpush1.msra.mxu0 0.0
    %10924 = vmatprep.subr.mxu0 0.0
    %10925 = vmatpush1.msra.mxu0 0.0
    %10926 = vmatprep.subr.mxu0 0.0
    %10927 = vmatpush1.msra.mxu0 0.0
    %10928 = vmatprep.subr.mxu0 0.0
    %10929 = vmatpush1.msra.mxu0 0.0
    %10930 = vmatprep.subr.mxu0 0.0
    %10931 = vmatpush1.msra.mxu0 0.0
    %10932 = vmatprep.subr.mxu0 0.0
    %10933 = vmatpush1.msra.mxu0 0.0
    %10934 = vmatprep.subr.mxu0 0.0
    %10935 = vmatpush1.msra.mxu0 0.0
    %10936 = vmatprep.subr.mxu0 0.0
    %10937 = vmatpush1.msra.mxu0 0.0
    %10938 = vmatprep.subr.mxu0 0.0
    %10939 = vmatpush1.msra.mxu0 0.0
    %10940 = vmatprep.subr.mxu0 0.0
    %10941 = vmatpush1.msra.mxu0 0.0
    %10942 = vmatprep.subr.mxu0 0.0
    %10943 = vmatpush1.msra.mxu0 0.0
    %10944 = vmatprep.subr.mxu0 0.0
    %10945 = vmatpush1.msra.mxu0 0.0
    %10946 = vmatprep.subr.mxu0 0.0
    %10947 = vmatpush1.msra.mxu0 0.0
    %10948 = vmatprep.subr.mxu0 0.0
    %10949 = vmatpush1.msra.mxu0 0.0
    %10950 = vmatprep.subr.mxu0 0.0
    %10951 = vmatpush1.msra.mxu0 0.0
    %10952 = vmatprep.mubr.f32.mxu0 0.0
    %10953 = vmatmul.mubr.f32.gmra.mrb[0].mxu0 %v10877
    %v10954 = vpop.f32.mrb[0].mxu0
    %v10955 = vadd.f32 %v10830, %v10954
    %v10956 = vpop.f32.mrb[0].mxu0
    %10957 = vmatprep.mubr.f32.mxu0 0.0
    %10958 = vmatmul.mubr.f32.gmra.mrb[0].mxu0 %v10880
    %v10959 = vpop.f32.mrb[0].mxu0
    %v10960 = vadd.f32 %v10835, %v10959
    %v10961 = vpop.f32.mrb[0].mxu0
    %10962 = vmatprep.mubr.f32.mxu0 0.0
    %10963 = vmatmul.mubr.f32.gmra.mrb[0].mxu0 %v10883
    %v10964 = vpop.f32.mrb[0].mxu0
    %v10965 = vadd.f32 %v10840, %v10964
    %v10966 = vpop.f32.mrb[0].mxu0
    %10967 = vmatprep.mubr.f32.mxu0 0.0
    %10968 = vmatmul.mubr.f32.gmra.mrb[0].mxu0 %v10886
    %v10969 = vpop.f32.mrb[0].mxu0
    %v10970 = vadd.f32 %v10845, %v10969
    %v10971 = vpop.f32.mrb[0].mxu0
    %10972 = vdwg.mxu0
    %v10973 = vmax.f32 %v10955, 0.0
    %v10974 = vmax.f32 %v10960, 0.0
    %v10975 = vmax.f32 %v10965, 0.0
    %v10976 = vmax.f32 %v10970, 0.0
    %v10977 = vld [vmem:[#allocation13] sm:$0xf]
    %v10978 = vld [vmem:[%s22] sm:$0xf]
    %10980 = vset.pattern.permute.xlu0 0
    %10981 = vperm.xlu0 %10980, %v10978
    %v10982 = vpop.permute.xlu0 %10981
    %v10985 = vsel %vm6794, %v10977, 0
    %10987 = vmatprep.subr.mxu0 0.0
    %10988 = vmatpush1.msra.mxu0 %v10973
    %10989 = vmatprep.subr.mxu0 0.0
    %10990 = vmatpush1.msra.mxu0 %v10974
    %10991 = vmatprep.subr.mxu0 0.0
    %10992 = vmatpush1.msra.mxu0 %v10975
    %10993 = vmatprep.subr.mxu0 0.0
    %10994 = vmatpush1.msra.mxu0 %v10976
    %10995 = vmatprep.subr.mxu0 0.0
    %10996 = vmatpush1.msra.mxu0 0.0
    %10997 = vmatprep.subr.mxu0 0.0
    %10998 = vmatpush1.msra.mxu0 0.0
    %10999 = vmatprep.subr.mxu0 0.0
    %11000 = vmatpush1.msra.mxu0 0.0
    %11001 = vmatprep.subr.mxu0 0.0
    %11002 = vmatpush1.msra.mxu0 0.0
    %11003 = vmatprep.subr.mxu0 0.0
    %11004 = vmatpush1.msra.mxu0 0.0
    %11005 = vmatprep.subr.mxu0 0.0
    %11006 = vmatpush1.msra.mxu0 0.0
    %11007 = vmatprep.subr.mxu0 0.0
    %11008 = vmatpush1.msra.mxu0 0.0
    %11009 = vmatprep.subr.mxu0 0.0
    %11010 = vmatpush1.msra.mxu0 0.0
    %11011 = vmatprep.subr.mxu0 0.0
    %11012 = vmatpush1.msra.mxu0 0.0
    %11013 = vmatprep.subr.mxu0 0.0
    %11014 = vmatpush1.msra.mxu0 0.0
    %11015 = vmatprep.subr.mxu0 0.0
    %11016 = vmatpush1.msra.mxu0 0.0
    %11017 = vmatprep.subr.mxu0 0.0
    %11018 = vmatpush1.msra.mxu0 0.0
    %11019 = vmatprep.subr.mxu0 0.0
    %11020 = vmatpush1.msra.mxu0 0.0
    %11021 = vmatprep.subr.mxu0 0.0
    %11022 = vmatpush1.msra.mxu0 0.0
    %11023 = vmatprep.subr.mxu0 0.0
    %11024 = vmatpush1.msra.mxu0 0.0
    %11025 = vmatprep.subr.mxu0 0.0
    %11026 = vmatpush1.msra.mxu0 0.0
    %11027 = vmatprep.subr.mxu0 0.0
    %11028 = vmatpush1.msra.mxu0 0.0
    %11029 = vmatprep.subr.mxu0 0.0
    %11030 = vmatpush1.msra.mxu0 0.0
    %11031 = vmatprep.subr.mxu0 0.0
    %11032 = vmatpush1.msra.mxu0 0.0
    %11033 = vmatprep.subr.mxu0 0.0
    %11034 = vmatpush1.msra.mxu0 0.0
    %11035 = vmatprep.subr.mxu0 0.0
    %11036 = vmatpush1.msra.mxu0 0.0
    %11037 = vmatprep.subr.mxu0 0.0
    %11038 = vmatpush1.msra.mxu0 0.0
    %11039 = vmatprep.subr.mxu0 0.0
    %11040 = vmatpush1.msra.mxu0 0.0
    %11041 = vmatprep.subr.mxu0 0.0
    %11042 = vmatpush1.msra.mxu0 0.0
    %11043 = vmatprep.subr.mxu0 0.0
    %11044 = vmatpush1.msra.mxu0 0.0
    %11045 = vmatprep.subr.mxu0 0.0
    %11046 = vmatpush1.msra.mxu0 0.0
    %11047 = vmatprep.subr.mxu0 0.0
    %11048 = vmatpush1.msra.mxu0 0.0
    %11049 = vmatprep.subr.mxu0 0.0
    %11050 = vmatpush1.msra.mxu0 0.0
    %11051 = vmatprep.mubr.f32.mxu0 0.0
    %11052 = vmatmul.mubr.f32.gmra.mrb[0].mxu0 %v10985
    %v11053 = vpop.f32.mrb[0].mxu0
    %v11054 = vadd.f32 %v10982, %v11053
    %v11055 = vpop.f32.mrb[0].mxu0
    %11056 = vdwg.mxu0
    %vm11057 = vcmask 11264
    %11058 = vst.msk [vmem:[%s23] sm:$0xf] %vm11057, %v11054
    // Predicated region
    $region110: #{fwd.1} parent=1 // pred_check
      _
    $region111: #{fwd.1} parent=1 // pred_check_branch
      %11060 = sbr.rel (0) target = $region113
    $region112: #{fwd.1} parent=1 // pred_region
      _
    $region113: #{fwd.1} parent=1 // pred_fallthru
      _
    // Predicated region
    $region114: #{fwd.1} parent=1 // pred_check
      _
    $region115: #{fwd.1} parent=1 // pred_check_branch
      %11062 = sbr.rel (0) target = $region117
    $region116: #{fwd.1} parent=1 // pred_region
      _
    $region117: #{fwd.1} parent=1 // pred_fallthru
      _
    %11063 = vsyncpa [#allocation9], 1
    %11064 = vsyncpa [#allocation11], 1
    %11065 = vsyncpa [#allocation14], 1

</llo_original>
